<compile_context>
chip_gen: v5e
topology: v5e:2x2
jax: 0.10.0
libtpu: 0.0.40
codegen_flags: <defaults>
</compile_context>

<pallas_src>
import numpy as np
import jax
import jax.numpy as jnp
from jax import lax
from jax.experimental import pallas as pl
from jax.experimental.pallas import tpu as pltpu

# ---- module constants (from EEGNet_1D.__init__) ---------------------------
K1, C1, PAD1 = 64, 8, 32          # block1: Conv1d(1->8, k=64, pad=32)
C2, GROUPS2, POOL2 = 16, 2, 4     # block2: Conv1d(8->16, k=1, groups=2) + pool(4)
K3, PAD3, POOL3 = 16, 8, 8        # block3: depthwise k=16 pad=8 + pointwise + pool(8)
L3 = POOL2 + 2 * PAD3 - K3 + 1    # 5 (depthwise output length)
FEAT = C2 * POOL3                 # 128  -> Linear(128, 1)
TT = 128                          # time tile (sublane extent of the Toeplitz matmul)


def _elu(x):
    # PyTorch nn.ELU(alpha=1): x for x > 0 else exp(x) - 1   (kept in f32)
    return jnp.where(x > 0, x, jnp.exp(jnp.minimum(x, 0.0)) - 1.0)


def eegnet_kernel(xt_ref, wt_ref, b2_ref, p1_ref, m34_ref, wcls_ref, bcls_ref, o_ref):
    """One grid step = Bt trials.  Batch is the lane axis of every operand."""
    n_t, pool2, tt = p1_ref.shape          # (#time tiles, 4, 128)
    win = wt_ref.shape[1]                  # 192
    c2 = wt_ref.shape[0] // tt             # 16
    bt = xt_ref.shape[1]                   # trials per step (lanes)

    # per-channel adaptive-avg-pool-1 accumulators, concatenated after the loop
    pooled = [jnp.zeros((pool2, bt), jnp.float32) for _ in range(c2)]

    # NOTE: n_t is small for EEG-scale traces; static unroll keeps the LLO
    # scheduler's full visibility.
    for it in range(n_t):                                       # time tiles
        t0 = it * tt
        xwin = xt_ref[t0:t0 + win, :]                           # (192, Bt) bf16
        # block1 conv (Toeplitz) + folded BN + block2 grouped 1x1:
        # ALL 16 channels in ONE bf16 MXU dot against the shared window.
        pre = jnp.dot(wt_ref[...], xwin,
                      preferred_element_type=jnp.float32)       # (C2*TT, Bt) f32
        p1t = p1_ref[it]                                        # (4, 128) bf16 pool-1 tile
        for d in range(c2):                                     # bias + ELU + pool, channel d
            h = _elu(pre[d * tt:(d + 1) * tt, :] + b2_ref[d])   # f32
            pooled[d] = pooled[d] + jnp.dot(
                p1t, h.astype(jnp.bfloat16),
                preferred_element_type=jnp.float32)             # (4, Bt)

    pooled_acc = jnp.concatenate(pooled, axis=0)                # (C2*POOL2, Bt) = (64, Bt)

    # block3 depthwise+pointwise folded matrix: ONE (80, 64) @ (64, Bt) dot
    pre4 = jnp.dot(m34_ref[...], pooled_acc.astype(jnp.bfloat16),
                   preferred_element_type=jnp.float32)
    e4 = _elu(pre4)                                             # block3 ELU (f32)
    # pool-2 + Linear(128, 1) folded into wcls (1, 80); single lane-dense store
    o_ref[...] = (jnp.dot(wcls_ref[...], e4.astype(jnp.bfloat16),
                          preferred_element_type=jnp.float32)
                  + bcls_ref[...])


def adaptive_avg_pool_matrix(l_in, l_out):
    """Matrix P (l_in, l_out) s.t. (C,l_in) @ P == AdaptiveAvgPool1d(l_out)."""
    p = np.zeros((l_in, l_out), dtype=np.float32)
    for i in range(l_out):
        s = (i * l_in) // l_out
        e = -((-(i + 1) * l_in) // l_out)   # ceil
        p[s:e, i] = 1.0 / (e - s)
    return p


def init_params(key):
    ks = jax.random.split(key, 10)
    p = {}
    p["w1"] = 0.1 * jax.random.normal(ks[0], (C1, K1), jnp.float32)            # Conv1d(1,8,64)
    p["bn_gamma"] = 1.0 + 0.1 * jax.random.normal(ks[1], (C1,), jnp.float32)
    p["bn_beta"] = 0.1 * jax.random.normal(ks[2], (C1,), jnp.float32)
    p["bn_mean"] = 0.1 * jax.random.normal(ks[3], (C1,), jnp.float32)
    p["bn_var"] = jax.random.uniform(ks[4], (C1,), jnp.float32, 0.5, 1.5)
    p["w2"] = 0.2 * jax.random.normal(ks[5], (C2, C1 // GROUPS2), jnp.float32)  # Conv1d(8,16,1,g=2)
    p["wd"] = 0.2 * jax.random.normal(ks[6], (C2, K3), jnp.float32)             # depthwise Conv1d
    p["w3"] = 0.2 * jax.random.normal(ks[7], (C2, C2), jnp.float32)             # pointwise Conv1d
    p["wfc"] = 0.1 * jax.random.normal(ks[8], (1, FEAT), jnp.float32)           # Linear(128,1)
    p["bfc"] = 0.1 * jax.random.normal(ks[9], (1,), jnp.float32)
    return p


def _fold_params(params, T):
    """One-time host-side folding of all linear stages into small matrices."""
    L1 = T + 2 * PAD1 - K1 + 1            # block1 output length
    n_t = -(-L1 // TT)                    # ceil(L1 / 128) time tiles
    L1p = n_t * TT                        # time padded to a multiple of 128
    win = TT + K1                         # 192-sublane input window per tile

    w1 = np.asarray(params["w1"], np.float64)
    gamma = np.asarray(params["bn_gamma"], np.float64)
    beta = np.asarray(params["bn_beta"], np.float64)
    mean = np.asarray(params["bn_mean"], np.float64)
    var = np.asarray(params["bn_var"], np.float64)
    w2 = np.asarray(params["w2"], np.float64)
    wd = np.asarray(params["wd"], np.float64)
    w3 = np.asarray(params["w3"], np.float64)
    wfc = np.asarray(params["wfc"], np.float64)
    bfc = np.asarray(params["bfc"], np.float64)

    # BatchNorm (eval) folded into per-channel scale / bias
    s = gamma / np.sqrt(var + 1e-5)
    bb = beta - mean * s

    # grouped 1x1 conv expanded to a dense (16, 8) matrix
    cpg = C1 // GROUPS2
    w2_dense = np.zeros((C2, C1))
    w2_dense[:C2 // 2, :cpg] = w2[:C2 // 2]
    w2_dense[C2 // 2:, cpg:] = w2[C2 // 2:]

    # block1 conv * BN scale * block2 conv, all folded:  W (16, 64)
    W = w2_dense @ (w1 * s[:, None])
    b2 = (w2_dense @ bb).reshape(C2, 1)                  # folded bias (pre block2-ELU)

    # Toeplitz expansion: wtoep[d*TT + t, m] = W[d, m - t] for 0 <= m-t < K1
    off = np.arange(win)[None, :] - np.arange(TT)[:, None]          # (TT, win)
    mask = (off >= 0) & (off < K1)
    wtoep = np.where(mask[None], W[:, np.clip(off, 0, K1 - 1)], 0.0)  # (16, TT, win)
    wtoep = wtoep.reshape(C2 * TT, win)

    # adaptive-avg-pool(4) over the real L1 positions, zero rows for padding
    p1 = adaptive_avg_pool_matrix(L1, POOL2).astype(np.float64)      # (L1, 4)
    p1 = np.pad(p1, ((0, L1p - L1), (0, 0)))
    p1_tiles = np.ascontiguousarray(p1.reshape(n_t, TT, POOL2).transpose(0, 2, 1))

    # block3 depthwise (k=16, pad=8, len 4->5) + pointwise 1x1 folded: (80, 64)
    # out3[d, j] = sum_i hp1[d, i] * wd[d, 8 + i - j]
    tap = PAD3 + np.arange(POOL2)[:, None] - np.arange(L3)[None, :]  # (4, 5), values in [4, 11]
    wd_taps = wd[:, tap]                                             # (16, 4, 5)
    m34 = np.einsum("ed,dij->ejdi", w3, wd_taps).reshape(C2 * L3, C2 * POOL2)

    # adaptive-avg-pool(8) over L3 + Linear(128, 1) folded: (1, 80)
    p2 = adaptive_avg_pool_matrix(L3, POOL3).astype(np.float64)      # (5, 8)
    wcls = (wfc.reshape(C2, POOL3) @ p2.T).reshape(1, C2 * L3)
    bcls = bfc.reshape(1, 1)

    bf16 = lambda a: jnp.asarray(a, jnp.bfloat16)   # MXU operands
    f32 = lambda a: jnp.asarray(a, jnp.float32)     # bias terms stay f32
    return (bf16(wtoep), f32(b2), bf16(p1_tiles), bf16(m34), bf16(wcls), f32(bcls),
            L1p, n_t, win)


def make_eegnet_forward(params, T):
    """Fold weights ONCE (host numpy), return a jitted forward for x: [B, 1, T]."""
    wtoep, b2, p1_tiles, m34, wcls, bcls, L1p, n_t, win = _fold_params(params, T)
    tp_pad = L1p + K1                            # sublane extent of the padded signal

    def forward(x):
        B = x.shape[0]
        xf = x.reshape(B, -1).astype(jnp.bfloat16)     # flatten(start_dim=2); bf16 halves HBM

        # Batch lives on the LANE axis, always padded to full 128-lane vregs.
        # bt=256 on big batches fills the 256-wide v6e/v7x MXU; >=2 grid steps
        # when B allows so v7x's two TensorCores both get work.
        bt = 128 if B <= 128 else 256
        bp = -(-B // bt) * bt
        n_steps = bp // bt

        # padded signal, time-major, batch on the LANE axis: (tp_pad, bp)
        xt = jnp.pad(xf.T, ((PAD1, tp_pad - T - PAD1), (0, bp - B)))

        out = pl.pallas_call(
            eegnet_kernel,
            out_shape=jax.ShapeDtypeStruct((1, bp), jnp.float32),
            grid=(n_steps,),
            in_specs=[
                pl.BlockSpec((tp_pad, bt), lambda i: (0, i)),          # signal, per batch tile
                pl.BlockSpec((C2 * TT, win), lambda i: (0, 0)),        # Toeplitz conv weights
                pl.BlockSpec((C2, 1), lambda i: (0, 0)),               # folded BN/block2 bias
                pl.BlockSpec((n_t, POOL2, TT), lambda i: (0, 0, 0)),   # pool-1 tiles
                pl.BlockSpec((C2 * L3, C2 * POOL2), lambda i: (0, 0)), # block3 folded matrix
                pl.BlockSpec((1, C2 * L3), lambda i: (0, 0)),          # pool-2 + classifier weight
                pl.BlockSpec((1, 1), lambda i: (0, 0)),                # classifier bias
            ],
            out_specs=pl.BlockSpec((1, bt), lambda i: (0, i)),         # lane-dense logits
            compiler_params=pltpu.CompilerParams(
                dimension_semantics=("parallel",),
                vmem_limit_bytes=32 * 1024 * 1024),
        )(xt, wtoep, b2, p1_tiles, m34, wcls, bcls)

        logits = out[0, :B]
        attention_weights = jnp.zeros((1,), jnp.float32)               # matches torch.zeros(1)
        return logits, attention_weights

    return jax.jit(forward)


def eegnet_reference(x, params):
    """Pure-JAX (lax.conv) reference with identical eval-mode semantics."""
    B = x.shape[0]
    xf = x.reshape(B, 1, -1).astype(jnp.float32)
    dn = ("NCH", "OIH", "NCH")
    hi = lax.Precision.HIGHEST
    y = lax.conv_general_dilated(xf, params["w1"].reshape(C1, 1, K1), (1,), [(PAD1, PAD1)],
                                 dimension_numbers=dn, precision=hi)
    s = params["bn_gamma"] / jnp.sqrt(params["bn_var"] + 1e-5)
    b = params["bn_beta"] - params["bn_mean"] * s
    y = y * s[None, :, None] + b[None, :, None]
    h = lax.conv_general_dilated(y, params["w2"].reshape(C2, C1 // GROUPS2, 1), (1,), [(0, 0)],
                                 dimension_numbers=dn, feature_group_count=GROUPS2, precision=hi)
    h = jax.nn.elu(h)
    h = jnp.einsum("bct,tp->bcp", h, adaptive_avg_pool_matrix(h.shape[2], POOL2))
    d = lax.conv_general_dilated(h, params["wd"].reshape(C2, 1, K3), (1,), [(PAD3, PAD3)],
                                 dimension_numbers=dn, feature_group_count=C2, precision=hi)
    d = lax.conv_general_dilated(d, params["w3"].reshape(C2, C2, 1), (1,), [(0, 0)],
                                 dimension_numbers=dn, precision=hi)
    d = jax.nn.elu(d)
    d = jnp.einsum("bct,tp->bcp", d, adaptive_avg_pool_matrix(d.shape[2], POOL3))
    flat = d.reshape(B, -1)
    out = flat @ params["wfc"].T + params["bfc"]
    return out[:, 0], jnp.zeros((1,), jnp.float32)


if __name__ == "__main__":
    key = jax.random.PRNGKey(0)
    pkey, xkey = jax.random.split(key)
    params = init_params(pkey)
    # Batch of trials: [batch_size, 1, n_time_points]
    x = jax.random.normal(xkey, (4, 1, 200), jnp.float32)

    forward = make_eegnet_forward(params, T=x.shape[-1])   # one-time fold + jit
    logits, attn = forward(x)
    logits = jax.block_until_ready(logits)

    ref_logits, _ = eegnet_reference(x, params)
    np.testing.assert_allclose(np.asarray(logits), np.asarray(ref_logits),
                               rtol=2e-2, atol=2e-2)
    assert logits.shape == (4,) and attn.shape == (1,)
    print("KERNEL_OK")
</pallas_src>

<mosaic_0001>
module attributes {stable_mosaic.version = 11 : i64} {
  func.func @eegnet_kernel(%arg0: i32, %arg1: memref<320x128xbf16, #tpu.memory_space<vmem>>, %arg2: memref<2048x192xbf16, #tpu.memory_space<vmem>>, %arg3: memref<16x1xf32, #tpu.memory_space<vmem>>, %arg4: memref<2x4x128xbf16, #tpu.memory_space<vmem>>, %arg5: memref<80x64xbf16, #tpu.memory_space<vmem>>, %arg6: memref<1x80xbf16, #tpu.memory_space<vmem>>, %arg7: memref<1x1xf32, #tpu.memory_space<vmem>>, %arg8: memref<1x128xf32, #tpu.memory_space<vmem>>) attributes {dimension_semantics = [#tpu.dimension_semantics<parallel>], iteration_bounds = array<i64: 1>, scalar_prefetch = 0 : i64, scratch_operands = 0 : i64, tpu.core_type = #tpu.core_type<tc>, window_params = [{transform_indices = @transform_0, window_bounds = array<i64: 320, 128>}, {pipeline_mode = #tpu.pipeline_mode<synchronous>, transform_indices = @transform_1, window_bounds = array<i64: 2048, 192>}, {pipeline_mode = #tpu.pipeline_mode<synchronous>, transform_indices = @transform_2, window_bounds = array<i64: 16, 1>}, {pipeline_mode = #tpu.pipeline_mode<synchronous>, transform_indices = @transform_3, window_bounds = array<i64: 2, 4, 128>}, {pipeline_mode = #tpu.pipeline_mode<synchronous>, transform_indices = @transform_4, window_bounds = array<i64: 80, 64>}, {pipeline_mode = #tpu.pipeline_mode<synchronous>, transform_indices = @transform_5, window_bounds = array<i64: 1, 80>}, {pipeline_mode = #tpu.pipeline_mode<synchronous>, transform_indices = @transform_6, window_bounds = array<i64: 1, 1>}, {transform_indices = @transform_7, window_bounds = array<i64: 1, 128>}]} {
    %cst = arith.constant 0.000000e+00 : f32
    %0 = vector.broadcast %cst : f32 to vector<4x128xf32>
    %cst_0 = arith.constant 0.000000e+00 : f32
    %1 = vector.broadcast %cst_0 : f32 to vector<4x128xf32>
    %cst_1 = arith.constant 0.000000e+00 : f32
    %2 = vector.broadcast %cst_1 : f32 to vector<4x128xf32>
    %cst_2 = arith.constant 0.000000e+00 : f32
    %3 = vector.broadcast %cst_2 : f32 to vector<4x128xf32>
    %cst_3 = arith.constant 0.000000e+00 : f32
    %4 = vector.broadcast %cst_3 : f32 to vector<4x128xf32>
    %cst_4 = arith.constant 0.000000e+00 : f32
    %5 = vector.broadcast %cst_4 : f32 to vector<4x128xf32>
    %cst_5 = arith.constant 0.000000e+00 : f32
    %6 = vector.broadcast %cst_5 : f32 to vector<4x128xf32>
    %cst_6 = arith.constant 0.000000e+00 : f32
    %7 = vector.broadcast %cst_6 : f32 to vector<4x128xf32>
    %cst_7 = arith.constant 0.000000e+00 : f32
    %8 = vector.broadcast %cst_7 : f32 to vector<4x128xf32>
    %cst_8 = arith.constant 0.000000e+00 : f32
    %9 = vector.broadcast %cst_8 : f32 to vector<4x128xf32>
    %cst_9 = arith.constant 0.000000e+00 : f32
    %10 = vector.broadcast %cst_9 : f32 to vector<4x128xf32>
    %cst_10 = arith.constant 0.000000e+00 : f32
    %11 = vector.broadcast %cst_10 : f32 to vector<4x128xf32>
    %cst_11 = arith.constant 0.000000e+00 : f32
    %12 = vector.broadcast %cst_11 : f32 to vector<4x128xf32>
    %cst_12 = arith.constant 0.000000e+00 : f32
    %13 = vector.broadcast %cst_12 : f32 to vector<4x128xf32>
    %cst_13 = arith.constant 0.000000e+00 : f32
    %14 = vector.broadcast %cst_13 : f32 to vector<4x128xf32>
    %cst_14 = arith.constant 0.000000e+00 : f32
    %15 = vector.broadcast %cst_14 : f32 to vector<4x128xf32>
    %c0 = arith.constant 0 : index
    %c0_15 = arith.constant 0 : index
    %16 = vector.load %arg1[%c0, %c0_15] : memref<320x128xbf16, #tpu.memory_space<vmem>>, vector<192x128xbf16>
    %c0_16 = arith.constant 0 : index
    %c0_17 = arith.constant 0 : index
    %17 = vector.load %arg2[%c0_16, %c0_17] : memref<2048x192xbf16, #tpu.memory_space<vmem>>, vector<2048x192xbf16>
    %cst_18 = arith.constant dense<0.000000e+00> : vector<2048x128xf32>
    %18 = tpu.matmul %17, %16, %cst_18 {dimension_numbers = #tpu.dot_dimension_numbers<[1], [0], [0], [1], [0, 0, 1, 1], [], []>} : vector<2048x192xbf16>, vector<192x128xbf16>, vector<2048x128xf32> -> vector<2048x128xf32>
    %c0_19 = arith.constant 0 : index
    %c0_20 = arith.constant 0 : index
    %c0_21 = arith.constant 0 : index
    %19 = vector.load %arg4[%c0_19, %c0_20, %c0_21] : memref<2x4x128xbf16, #tpu.memory_space<vmem>>, vector<1x4x128xbf16>
    %20 = vector.shape_cast %19 : vector<1x4x128xbf16> to vector<4x128xbf16>
    %21 = vector.extract_strided_slice %18 {offsets = [0, 0], sizes = [128, 128], strides = [1, 1]} : vector<2048x128xf32> to vector<128x128xf32>
    %c0_22 = arith.constant 0 : index
    %c0_23 = arith.constant 0 : index
    %22 = vector.load %arg3[%c0_22, %c0_23] : memref<16x1xf32, #tpu.memory_space<vmem>>, vector<1x1xf32>
    %23 = vector.shape_cast %22 : vector<1x1xf32> to vector<1xf32>
    %24 = vector.shape_cast %23 : vector<1xf32> to vector<1x1xf32>
    %25 = vector.broadcast %24 : vector<1x1xf32> to vector<128x128xf32>
    %26 = arith.addf %21, %25 : vector<128x128xf32>
    %cst_24 = arith.constant 0.000000e+00 : f32
    %27 = vector.broadcast %cst_24 : f32 to vector<128x128xf32>
    %28 = arith.cmpf ogt, %26, %27 : vector<128x128xf32>
    %cst_25 = arith.constant 0.000000e+00 : f32
    %29 = vector.broadcast %cst_25 : f32 to vector<128x128xf32>
    %30 = arith.minimumf %26, %29 : vector<128x128xf32>
    %31 = math.exp %30 : vector<128x128xf32>
    %cst_26 = arith.constant 1.000000e+00 : f32
    %32 = vector.broadcast %cst_26 : f32 to vector<128x128xf32>
    %33 = arith.subf %31, %32 : vector<128x128xf32>
    %34 = arith.select %28, %26, %33 : vector<128x128xi1>, vector<128x128xf32>
    %35 = arith.truncf %34 : vector<128x128xf32> to vector<128x128xbf16>
    %cst_27 = arith.constant dense<0.000000e+00> : vector<4x128xf32>
    %36 = tpu.matmul %20, %35, %cst_27 {dimension_numbers = #tpu.dot_dimension_numbers<[1], [0], [0], [1], [0, 0, 1, 1], [], []>} : vector<4x128xbf16>, vector<128x128xbf16>, vector<4x128xf32> -> vector<4x128xf32>
    %37 = arith.addf %0, %36 : vector<4x128xf32>
    %38 = vector.extract_strided_slice %18 {offsets = [128, 0], sizes = [128, 128], strides = [1, 1]} : vector<2048x128xf32> to vector<128x128xf32>
    %c1 = arith.constant 1 : index
    %c0_28 = arith.constant 0 : index
    %39 = vector.load %arg3[%c1, %c0_28] : memref<16x1xf32, #tpu.memory_space<vmem>>, vector<1x1xf32>
    %40 = vector.shape_cast %39 : vector<1x1xf32> to vector<1xf32>
    %41 = vector.shape_cast %40 : vector<1xf32> to vector<1x1xf32>
    %42 = vector.broadcast %41 : vector<1x1xf32> to vector<128x128xf32>
    %43 = arith.addf %38, %42 : vector<128x128xf32>
    %cst_29 = arith.constant 0.000000e+00 : f32
    %44 = vector.broadcast %cst_29 : f32 to vector<128x128xf32>
    %45 = arith.cmpf ogt, %43, %44 : vector<128x128xf32>
    %cst_30 = arith.constant 0.000000e+00 : f32
    %46 = vector.broadcast %cst_30 : f32 to vector<128x128xf32>
    %47 = arith.minimumf %43, %46 : vector<128x128xf32>
    %48 = math.exp %47 : vector<128x128xf32>
    %cst_31 = arith.constant 1.000000e+00 : f32
    %49 = vector.broadcast %cst_31 : f32 to vector<128x128xf32>
    %50 = arith.subf %48, %49 : vector<128x128xf32>
    %51 = arith.select %45, %43, %50 : vector<128x128xi1>, vector<128x128xf32>
    %52 = arith.truncf %51 : vector<128x128xf32> to vector<128x128xbf16>
    %cst_32 = arith.constant dense<0.000000e+00> : vector<4x128xf32>
    %53 = tpu.matmul %20, %52, %cst_32 {dimension_numbers = #tpu.dot_dimension_numbers<[1], [0], [0], [1], [0, 0, 1, 1], [], []>} : vector<4x128xbf16>, vector<128x128xbf16>, vector<4x128xf32> -> vector<4x128xf32>
    %54 = arith.addf %1, %53 : vector<4x128xf32>
    %55 = vector.extract_strided_slice %18 {offsets = [256, 0], sizes = [128, 128], strides = [1, 1]} : vector<2048x128xf32> to vector<128x128xf32>
    %c2 = arith.constant 2 : index
    %c0_33 = arith.constant 0 : index
    %56 = vector.load %arg3[%c2, %c0_33] : memref<16x1xf32, #tpu.memory_space<vmem>>, vector<1x1xf32>
    %57 = vector.shape_cast %56 : vector<1x1xf32> to vector<1xf32>
    %58 = vector.shape_cast %57 : vector<1xf32> to vector<1x1xf32>
    %59 = vector.broadcast %58 : vector<1x1xf32> to vector<128x128xf32>
    %60 = arith.addf %55, %59 : vector<128x128xf32>
    %cst_34 = arith.constant 0.000000e+00 : f32
    %61 = vector.broadcast %cst_34 : f32 to vector<128x128xf32>
    %62 = arith.cmpf ogt, %60, %61 : vector<128x128xf32>
    %cst_35 = arith.constant 0.000000e+00 : f32
    %63 = vector.broadcast %cst_35 : f32 to vector<128x128xf32>
    %64 = arith.minimumf %60, %63 : vector<128x128xf32>
    %65 = math.exp %64 : vector<128x128xf32>
    %cst_36 = arith.constant 1.000000e+00 : f32
    %66 = vector.broadcast %cst_36 : f32 to vector<128x128xf32>
    %67 = arith.subf %65, %66 : vector<128x128xf32>
    %68 = arith.select %62, %60, %67 : vector<128x128xi1>, vector<128x128xf32>
    %69 = arith.truncf %68 : vector<128x128xf32> to vector<128x128xbf16>
    %cst_37 = arith.constant dense<0.000000e+00> : vector<4x128xf32>
    %70 = tpu.matmul %20, %69, %cst_37 {dimension_numbers = #tpu.dot_dimension_numbers<[1], [0], [0], [1], [0, 0, 1, 1], [], []>} : vector<4x128xbf16>, vector<128x128xbf16>, vector<4x128xf32> -> vector<4x128xf32>
    %71 = arith.addf %2, %70 : vector<4x128xf32>
    %72 = vector.extract_strided_slice %18 {offsets = [384, 0], sizes = [128, 128], strides = [1, 1]} : vector<2048x128xf32> to vector<128x128xf32>
    %c3 = arith.constant 3 : index
    %c0_38 = arith.constant 0 : index
    %73 = vector.load %arg3[%c3, %c0_38] : memref<16x1xf32, #tpu.memory_space<vmem>>, vector<1x1xf32>
    %74 = vector.shape_cast %73 : vector<1x1xf32> to vector<1xf32>
    %75 = vector.shape_cast %74 : vector<1xf32> to vector<1x1xf32>
    %76 = vector.broadcast %75 : vector<1x1xf32> to vector<128x128xf32>
    %77 = arith.addf %72, %76 : vector<128x128xf32>
    %cst_39 = arith.constant 0.000000e+00 : f32
    %78 = vector.broadcast %cst_39 : f32 to vector<128x128xf32>
    %79 = arith.cmpf ogt, %77, %78 : vector<128x128xf32>
    %cst_40 = arith.constant 0.000000e+00 : f32
    %80 = vector.broadcast %cst_40 : f32 to vector<128x128xf32>
    %81 = arith.minimumf %77, %80 : vector<128x128xf32>
    %82 = math.exp %81 : vector<128x128xf32>
    %cst_41 = arith.constant 1.000000e+00 : f32
    %83 = vector.broadcast %cst_41 : f32 to vector<128x128xf32>
    %84 = arith.subf %82, %83 : vector<128x128xf32>
    %85 = arith.select %79, %77, %84 : vector<128x128xi1>, vector<128x128xf32>
    %86 = arith.truncf %85 : vector<128x128xf32> to vector<128x128xbf16>
    %cst_42 = arith.constant dense<0.000000e+00> : vector<4x128xf32>
    %87 = tpu.matmul %20, %86, %cst_42 {dimension_numbers = #tpu.dot_dimension_numbers<[1], [0], [0], [1], [0, 0, 1, 1], [], []>} : vector<4x128xbf16>, vector<128x128xbf16>, vector<4x128xf32> -> vector<4x128xf32>
    %88 = arith.addf %3, %87 : vector<4x128xf32>
    %89 = vector.extract_strided_slice %18 {offsets = [512, 0], sizes = [128, 128], strides = [1, 1]} : vector<2048x128xf32> to vector<128x128xf32>
    %c4 = arith.constant 4 : index
    %c0_43 = arith.constant 0 : index
    %90 = vector.load %arg3[%c4, %c0_43] : memref<16x1xf32, #tpu.memory_space<vmem>>, vector<1x1xf32>
    %91 = vector.shape_cast %90 : vector<1x1xf32> to vector<1xf32>
    %92 = vector.shape_cast %91 : vector<1xf32> to vector<1x1xf32>
    %93 = vector.broadcast %92 : vector<1x1xf32> to vector<128x128xf32>
    %94 = arith.addf %89, %93 : vector<128x128xf32>
    %cst_44 = arith.constant 0.000000e+00 : f32
    %95 = vector.broadcast %cst_44 : f32 to vector<128x128xf32>
    %96 = arith.cmpf ogt, %94, %95 : vector<128x128xf32>
    %cst_45 = arith.constant 0.000000e+00 : f32
    %97 = vector.broadcast %cst_45 : f32 to vector<128x128xf32>
    %98 = arith.minimumf %94, %97 : vector<128x128xf32>
    %99 = math.exp %98 : vector<128x128xf32>
    %cst_46 = arith.constant 1.000000e+00 : f32
    %100 = vector.broadcast %cst_46 : f32 to vector<128x128xf32>
    %101 = arith.subf %99, %100 : vector<128x128xf32>
    %102 = arith.select %96, %94, %101 : vector<128x128xi1>, vector<128x128xf32>
    %103 = arith.truncf %102 : vector<128x128xf32> to vector<128x128xbf16>
    %cst_47 = arith.constant dense<0.000000e+00> : vector<4x128xf32>
    %104 = tpu.matmul %20, %103, %cst_47 {dimension_numbers = #tpu.dot_dimension_numbers<[1], [0], [0], [1], [0, 0, 1, 1], [], []>} : vector<4x128xbf16>, vector<128x128xbf16>, vector<4x128xf32> -> vector<4x128xf32>
    %105 = arith.addf %4, %104 : vector<4x128xf32>
    %106 = vector.extract_strided_slice %18 {offsets = [640, 0], sizes = [128, 128], strides = [1, 1]} : vector<2048x128xf32> to vector<128x128xf32>
    %c5 = arith.constant 5 : index
    %c0_48 = arith.constant 0 : index
    %107 = vector.load %arg3[%c5, %c0_48] : memref<16x1xf32, #tpu.memory_space<vmem>>, vector<1x1xf32>
    %108 = vector.shape_cast %107 : vector<1x1xf32> to vector<1xf32>
    %109 = vector.shape_cast %108 : vector<1xf32> to vector<1x1xf32>
    %110 = vector.broadcast %109 : vector<1x1xf32> to vector<128x128xf32>
    %111 = arith.addf %106, %110 : vector<128x128xf32>
    %cst_49 = arith.constant 0.000000e+00 : f32
    %112 = vector.broadcast %cst_49 : f32 to vector<128x128xf32>
    %113 = arith.cmpf ogt, %111, %112 : vector<128x128xf32>
    %cst_50 = arith.constant 0.000000e+00 : f32
    %114 = vector.broadcast %cst_50 : f32 to vector<128x128xf32>
    %115 = arith.minimumf %111, %114 : vector<128x128xf32>
    %116 = math.exp %115 : vector<128x128xf32>
    %cst_51 = arith.constant 1.000000e+00 : f32
    %117 = vector.broadcast %cst_51 : f32 to vector<128x128xf32>
    %118 = arith.subf %116, %117 : vector<128x128xf32>
    %119 = arith.select %113, %111, %118 : vector<128x128xi1>, vector<128x128xf32>
    %120 = arith.truncf %119 : vector<128x128xf32> to vector<128x128xbf16>
    %cst_52 = arith.constant dense<0.000000e+00> : vector<4x128xf32>
    %121 = tpu.matmul %20, %120, %cst_52 {dimension_numbers = #tpu.dot_dimension_numbers<[1], [0], [0], [1], [0, 0, 1, 1], [], []>} : vector<4x128xbf16>, vector<128x128xbf16>, vector<4x128xf32> -> vector<4x128xf32>
    %122 = arith.addf %5, %121 : vector<4x128xf32>
    %123 = vector.extract_strided_slice %18 {offsets = [768, 0], sizes = [128, 128], strides = [1, 1]} : vector<2048x128xf32> to vector<128x128xf32>
    %c6 = arith.constant 6 : index
    %c0_53 = arith.constant 0 : index
    %124 = vector.load %arg3[%c6, %c0_53] : memref<16x1xf32, #tpu.memory_space<vmem>>, vector<1x1xf32>
    %125 = vector.shape_cast %124 : vector<1x1xf32> to vector<1xf32>
    %126 = vector.shape_cast %125 : vector<1xf32> to vector<1x1xf32>
    %127 = vector.broadcast %126 : vector<1x1xf32> to vector<128x128xf32>
    %128 = arith.addf %123, %127 : vector<128x128xf32>
    %cst_54 = arith.constant 0.000000e+00 : f32
    %129 = vector.broadcast %cst_54 : f32 to vector<128x128xf32>
    %130 = arith.cmpf ogt, %128, %129 : vector<128x128xf32>
    %cst_55 = arith.constant 0.000000e+00 : f32
    %131 = vector.broadcast %cst_55 : f32 to vector<128x128xf32>
    %132 = arith.minimumf %128, %131 : vector<128x128xf32>
    %133 = math.exp %132 : vector<128x128xf32>
    %cst_56 = arith.constant 1.000000e+00 : f32
    %134 = vector.broadcast %cst_56 : f32 to vector<128x128xf32>
    %135 = arith.subf %133, %134 : vector<128x128xf32>
    %136 = arith.select %130, %128, %135 : vector<128x128xi1>, vector<128x128xf32>
    %137 = arith.truncf %136 : vector<128x128xf32> to vector<128x128xbf16>
    %cst_57 = arith.constant dense<0.000000e+00> : vector<4x128xf32>
    %138 = tpu.matmul %20, %137, %cst_57 {dimension_numbers = #tpu.dot_dimension_numbers<[1], [0], [0], [1], [0, 0, 1, 1], [], []>} : vector<4x128xbf16>, vector<128x128xbf16>, vector<4x128xf32> -> vector<4x128xf32>
    %139 = arith.addf %6, %138 : vector<4x128xf32>
    %140 = vector.extract_strided_slice %18 {offsets = [896, 0], sizes = [128, 128], strides = [1, 1]} : vector<2048x128xf32> to vector<128x128xf32>
    %c7 = arith.constant 7 : index
    %c0_58 = arith.constant 0 : index
    %141 = vector.load %arg3[%c7, %c0_58] : memref<16x1xf32, #tpu.memory_space<vmem>>, vector<1x1xf32>
    %142 = vector.shape_cast %141 : vector<1x1xf32> to vector<1xf32>
    %143 = vector.shape_cast %142 : vector<1xf32> to vector<1x1xf32>
    %144 = vector.broadcast %143 : vector<1x1xf32> to vector<128x128xf32>
    %145 = arith.addf %140, %144 : vector<128x128xf32>
    %cst_59 = arith.constant 0.000000e+00 : f32
    %146 = vector.broadcast %cst_59 : f32 to vector<128x128xf32>
    %147 = arith.cmpf ogt, %145, %146 : vector<128x128xf32>
    %cst_60 = arith.constant 0.000000e+00 : f32
    %148 = vector.broadcast %cst_60 : f32 to vector<128x128xf32>
    %149 = arith.minimumf %145, %148 : vector<128x128xf32>
    %150 = math.exp %149 : vector<128x128xf32>
    %cst_61 = arith.constant 1.000000e+00 : f32
    %151 = vector.broadcast %cst_61 : f32 to vector<128x128xf32>
    %152 = arith.subf %150, %151 : vector<128x128xf32>
    %153 = arith.select %147, %145, %152 : vector<128x128xi1>, vector<128x128xf32>
    %154 = arith.truncf %153 : vector<128x128xf32> to vector<128x128xbf16>
    %cst_62 = arith.constant dense<0.000000e+00> : vector<4x128xf32>
    %155 = tpu.matmul %20, %154, %cst_62 {dimension_numbers = #tpu.dot_dimension_numbers<[1], [0], [0], [1], [0, 0, 1, 1], [], []>} : vector<4x128xbf16>, vector<128x128xbf16>, vector<4x128xf32> -> vector<4x128xf32>
    %156 = arith.addf %7, %155 : vector<4x128xf32>
    %157 = vector.extract_strided_slice %18 {offsets = [1024, 0], sizes = [128, 128], strides = [1, 1]} : vector<2048x128xf32> to vector<128x128xf32>
    %c8 = arith.constant 8 : index
    %c0_63 = arith.constant 0 : index
    %158 = vector.load %arg3[%c8, %c0_63] : memref<16x1xf32, #tpu.memory_space<vmem>>, vector<1x1xf32>
    %159 = vector.shape_cast %158 : vector<1x1xf32> to vector<1xf32>
    %160 = vector.shape_cast %159 : vector<1xf32> to vector<1x1xf32>
    %161 = vector.broadcast %160 : vector<1x1xf32> to vector<128x128xf32>
    %162 = arith.addf %157, %161 : vector<128x128xf32>
    %cst_64 = arith.constant 0.000000e+00 : f32
    %163 = vector.broadcast %cst_64 : f32 to vector<128x128xf32>
    %164 = arith.cmpf ogt, %162, %163 : vector<128x128xf32>
    %cst_65 = arith.constant 0.000000e+00 : f32
    %165 = vector.broadcast %cst_65 : f32 to vector<128x128xf32>
    %166 = arith.minimumf %162, %165 : vector<128x128xf32>
    %167 = math.exp %166 : vector<128x128xf32>
    %cst_66 = arith.constant 1.000000e+00 : f32
    %168 = vector.broadcast %cst_66 : f32 to vector<128x128xf32>
    %169 = arith.subf %167, %168 : vector<128x128xf32>
    %170 = arith.select %164, %162, %169 : vector<128x128xi1>, vector<128x128xf32>
    %171 = arith.truncf %170 : vector<128x128xf32> to vector<128x128xbf16>
    %cst_67 = arith.constant dense<0.000000e+00> : vector<4x128xf32>
    %172 = tpu.matmul %20, %171, %cst_67 {dimension_numbers = #tpu.dot_dimension_numbers<[1], [0], [0], [1], [0, 0, 1, 1], [], []>} : vector<4x128xbf16>, vector<128x128xbf16>, vector<4x128xf32> -> vector<4x128xf32>
    %173 = arith.addf %8, %172 : vector<4x128xf32>
    %174 = vector.extract_strided_slice %18 {offsets = [1152, 0], sizes = [128, 128], strides = [1, 1]} : vector<2048x128xf32> to vector<128x128xf32>
    %c9 = arith.constant 9 : index
    %c0_68 = arith.constant 0 : index
    %175 = vector.load %arg3[%c9, %c0_68] : memref<16x1xf32, #tpu.memory_space<vmem>>, vector<1x1xf32>
    %176 = vector.shape_cast %175 : vector<1x1xf32> to vector<1xf32>
    %177 = vector.shape_cast %176 : vector<1xf32> to vector<1x1xf32>
    %178 = vector.broadcast %177 : vector<1x1xf32> to vector<128x128xf32>
    %179 = arith.addf %174, %178 : vector<128x128xf32>
    %cst_69 = arith.constant 0.000000e+00 : f32
    %180 = vector.broadcast %cst_69 : f32 to vector<128x128xf32>
    %181 = arith.cmpf ogt, %179, %180 : vector<128x128xf32>
    %cst_70 = arith.constant 0.000000e+00 : f32
    %182 = vector.broadcast %cst_70 : f32 to vector<128x128xf32>
    %183 = arith.minimumf %179, %182 : vector<128x128xf32>
    %184 = math.exp %183 : vector<128x128xf32>
    %cst_71 = arith.constant 1.000000e+00 : f32
    %185 = vector.broadcast %cst_71 : f32 to vector<128x128xf32>
    %186 = arith.subf %184, %185 : vector<128x128xf32>
    %187 = arith.select %181, %179, %186 : vector<128x128xi1>, vector<128x128xf32>
    %188 = arith.truncf %187 : vector<128x128xf32> to vector<128x128xbf16>
    %cst_72 = arith.constant dense<0.000000e+00> : vector<4x128xf32>
    %189 = tpu.matmul %20, %188, %cst_72 {dimension_numbers = #tpu.dot_dimension_numbers<[1], [0], [0], [1], [0, 0, 1, 1], [], []>} : vector<4x128xbf16>, vector<128x128xbf16>, vector<4x128xf32> -> vector<4x128xf32>
    %190 = arith.addf %9, %189 : vector<4x128xf32>
    %191 = vector.extract_strided_slice %18 {offsets = [1280, 0], sizes = [128, 128], strides = [1, 1]} : vector<2048x128xf32> to vector<128x128xf32>
    %c10 = arith.constant 10 : index
    %c0_73 = arith.constant 0 : index
    %192 = vector.load %arg3[%c10, %c0_73] : memref<16x1xf32, #tpu.memory_space<vmem>>, vector<1x1xf32>
    %193 = vector.shape_cast %192 : vector<1x1xf32> to vector<1xf32>
    %194 = vector.shape_cast %193 : vector<1xf32> to vector<1x1xf32>
    %195 = vector.broadcast %194 : vector<1x1xf32> to vector<128x128xf32>
    %196 = arith.addf %191, %195 : vector<128x128xf32>
    %cst_74 = arith.constant 0.000000e+00 : f32
    %197 = vector.broadcast %cst_74 : f32 to vector<128x128xf32>
    %198 = arith.cmpf ogt, %196, %197 : vector<128x128xf32>
    %cst_75 = arith.constant 0.000000e+00 : f32
    %199 = vector.broadcast %cst_75 : f32 to vector<128x128xf32>
    %200 = arith.minimumf %196, %199 : vector<128x128xf32>
    %201 = math.exp %200 : vector<128x128xf32>
    %cst_76 = arith.constant 1.000000e+00 : f32
    %202 = vector.broadcast %cst_76 : f32 to vector<128x128xf32>
    %203 = arith.subf %201, %202 : vector<128x128xf32>
    %204 = arith.select %198, %196, %203 : vector<128x128xi1>, vector<128x128xf32>
    %205 = arith.truncf %204 : vector<128x128xf32> to vector<128x128xbf16>
    %cst_77 = arith.constant dense<0.000000e+00> : vector<4x128xf32>
    %206 = tpu.matmul %20, %205, %cst_77 {dimension_numbers = #tpu.dot_dimension_numbers<[1], [0], [0], [1], [0, 0, 1, 1], [], []>} : vector<4x128xbf16>, vector<128x128xbf16>, vector<4x128xf32> -> vector<4x128xf32>
    %207 = arith.addf %10, %206 : vector<4x128xf32>
    %208 = vector.extract_strided_slice %18 {offsets = [1408, 0], sizes = [128, 128], strides = [1, 1]} : vector<2048x128xf32> to vector<128x128xf32>
    %c11 = arith.constant 11 : index
    %c0_78 = arith.constant 0 : index
    %209 = vector.load %arg3[%c11, %c0_78] : memref<16x1xf32, #tpu.memory_space<vmem>>, vector<1x1xf32>
    %210 = vector.shape_cast %209 : vector<1x1xf32> to vector<1xf32>
    %211 = vector.shape_cast %210 : vector<1xf32> to vector<1x1xf32>
    %212 = vector.broadcast %211 : vector<1x1xf32> to vector<128x128xf32>
    %213 = arith.addf %208, %212 : vector<128x128xf32>
    %cst_79 = arith.constant 0.000000e+00 : f32
    %214 = vector.broadcast %cst_79 : f32 to vector<128x128xf32>
    %215 = arith.cmpf ogt, %213, %214 : vector<128x128xf32>
    %cst_80 = arith.constant 0.000000e+00 : f32
    %216 = vector.broadcast %cst_80 : f32 to vector<128x128xf32>
    %217 = arith.minimumf %213, %216 : vector<128x128xf32>
    %218 = math.exp %217 : vector<128x128xf32>
    %cst_81 = arith.constant 1.000000e+00 : f32
    %219 = vector.broadcast %cst_81 : f32 to vector<128x128xf32>
    %220 = arith.subf %218, %219 : vector<128x128xf32>
    %221 = arith.select %215, %213, %220 : vector<128x128xi1>, vector<128x128xf32>
    %222 = arith.truncf %221 : vector<128x128xf32> to vector<128x128xbf16>
    %cst_82 = arith.constant dense<0.000000e+00> : vector<4x128xf32>
    %223 = tpu.matmul %20, %222, %cst_82 {dimension_numbers = #tpu.dot_dimension_numbers<[1], [0], [0], [1], [0, 0, 1, 1], [], []>} : vector<4x128xbf16>, vector<128x128xbf16>, vector<4x128xf32> -> vector<4x128xf32>
    %224 = arith.addf %11, %223 : vector<4x128xf32>
    %225 = vector.extract_strided_slice %18 {offsets = [1536, 0], sizes = [128, 128], strides = [1, 1]} : vector<2048x128xf32> to vector<128x128xf32>
    %c12 = arith.constant 12 : index
    %c0_83 = arith.constant 0 : index
    %226 = vector.load %arg3[%c12, %c0_83] : memref<16x1xf32, #tpu.memory_space<vmem>>, vector<1x1xf32>
    %227 = vector.shape_cast %226 : vector<1x1xf32> to vector<1xf32>
    %228 = vector.shape_cast %227 : vector<1xf32> to vector<1x1xf32>
    %229 = vector.broadcast %228 : vector<1x1xf32> to vector<128x128xf32>
    %230 = arith.addf %225, %229 : vector<128x128xf32>
    %cst_84 = arith.constant 0.000000e+00 : f32
    %231 = vector.broadcast %cst_84 : f32 to vector<128x128xf32>
    %232 = arith.cmpf ogt, %230, %231 : vector<128x128xf32>
    %cst_85 = arith.constant 0.000000e+00 : f32
    %233 = vector.broadcast %cst_85 : f32 to vector<128x128xf32>
    %234 = arith.minimumf %230, %233 : vector<128x128xf32>
    %235 = math.exp %234 : vector<128x128xf32>
    %cst_86 = arith.constant 1.000000e+00 : f32
    %236 = vector.broadcast %cst_86 : f32 to vector<128x128xf32>
    %237 = arith.subf %235, %236 : vector<128x128xf32>
    %238 = arith.select %232, %230, %237 : vector<128x128xi1>, vector<128x128xf32>
    %239 = arith.truncf %238 : vector<128x128xf32> to vector<128x128xbf16>
    %cst_87 = arith.constant dense<0.000000e+00> : vector<4x128xf32>
    %240 = tpu.matmul %20, %239, %cst_87 {dimension_numbers = #tpu.dot_dimension_numbers<[1], [0], [0], [1], [0, 0, 1, 1], [], []>} : vector<4x128xbf16>, vector<128x128xbf16>, vector<4x128xf32> -> vector<4x128xf32>
    %241 = arith.addf %12, %240 : vector<4x128xf32>
    %242 = vector.extract_strided_slice %18 {offsets = [1664, 0], sizes = [128, 128], strides = [1, 1]} : vector<2048x128xf32> to vector<128x128xf32>
    %c13 = arith.constant 13 : index
    %c0_88 = arith.constant 0 : index
    %243 = vector.load %arg3[%c13, %c0_88] : memref<16x1xf32, #tpu.memory_space<vmem>>, vector<1x1xf32>
    %244 = vector.shape_cast %243 : vector<1x1xf32> to vector<1xf32>
    %245 = vector.shape_cast %244 : vector<1xf32> to vector<1x1xf32>
    %246 = vector.broadcast %245 : vector<1x1xf32> to vector<128x128xf32>
    %247 = arith.addf %242, %246 : vector<128x128xf32>
    %cst_89 = arith.constant 0.000000e+00 : f32
    %248 = vector.broadcast %cst_89 : f32 to vector<128x128xf32>
    %249 = arith.cmpf ogt, %247, %248 : vector<128x128xf32>
    %cst_90 = arith.constant 0.000000e+00 : f32
    %250 = vector.broadcast %cst_90 : f32 to vector<128x128xf32>
    %251 = arith.minimumf %247, %250 : vector<128x128xf32>
    %252 = math.exp %251 : vector<128x128xf32>
    %cst_91 = arith.constant 1.000000e+00 : f32
    %253 = vector.broadcast %cst_91 : f32 to vector<128x128xf32>
    %254 = arith.subf %252, %253 : vector<128x128xf32>
    %255 = arith.select %249, %247, %254 : vector<128x128xi1>, vector<128x128xf32>
    %256 = arith.truncf %255 : vector<128x128xf32> to vector<128x128xbf16>
    %cst_92 = arith.constant dense<0.000000e+00> : vector<4x128xf32>
    %257 = tpu.matmul %20, %256, %cst_92 {dimension_numbers = #tpu.dot_dimension_numbers<[1], [0], [0], [1], [0, 0, 1, 1], [], []>} : vector<4x128xbf16>, vector<128x128xbf16>, vector<4x128xf32> -> vector<4x128xf32>
    %258 = arith.addf %13, %257 : vector<4x128xf32>
    %259 = vector.extract_strided_slice %18 {offsets = [1792, 0], sizes = [128, 128], strides = [1, 1]} : vector<2048x128xf32> to vector<128x128xf32>
    %c14 = arith.constant 14 : index
    %c0_93 = arith.constant 0 : index
    %260 = vector.load %arg3[%c14, %c0_93] : memref<16x1xf32, #tpu.memory_space<vmem>>, vector<1x1xf32>
    %261 = vector.shape_cast %260 : vector<1x1xf32> to vector<1xf32>
    %262 = vector.shape_cast %261 : vector<1xf32> to vector<1x1xf32>
    %263 = vector.broadcast %262 : vector<1x1xf32> to vector<128x128xf32>
    %264 = arith.addf %259, %263 : vector<128x128xf32>
    %cst_94 = arith.constant 0.000000e+00 : f32
    %265 = vector.broadcast %cst_94 : f32 to vector<128x128xf32>
    %266 = arith.cmpf ogt, %264, %265 : vector<128x128xf32>
    %cst_95 = arith.constant 0.000000e+00 : f32
    %267 = vector.broadcast %cst_95 : f32 to vector<128x128xf32>
    %268 = arith.minimumf %264, %267 : vector<128x128xf32>
    %269 = math.exp %268 : vector<128x128xf32>
    %cst_96 = arith.constant 1.000000e+00 : f32
    %270 = vector.broadcast %cst_96 : f32 to vector<128x128xf32>
    %271 = arith.subf %269, %270 : vector<128x128xf32>
    %272 = arith.select %266, %264, %271 : vector<128x128xi1>, vector<128x128xf32>
    %273 = arith.truncf %272 : vector<128x128xf32> to vector<128x128xbf16>
    %cst_97 = arith.constant dense<0.000000e+00> : vector<4x128xf32>
    %274 = tpu.matmul %20, %273, %cst_97 {dimension_numbers = #tpu.dot_dimension_numbers<[1], [0], [0], [1], [0, 0, 1, 1], [], []>} : vector<4x128xbf16>, vector<128x128xbf16>, vector<4x128xf32> -> vector<4x128xf32>
    %275 = arith.addf %14, %274 : vector<4x128xf32>
    %276 = vector.extract_strided_slice %18 {offsets = [1920, 0], sizes = [128, 128], strides = [1, 1]} : vector<2048x128xf32> to vector<128x128xf32>
    %c15 = arith.constant 15 : index
    %c0_98 = arith.constant 0 : index
    %277 = vector.load %arg3[%c15, %c0_98] : memref<16x1xf32, #tpu.memory_space<vmem>>, vector<1x1xf32>
    %278 = vector.shape_cast %277 : vector<1x1xf32> to vector<1xf32>
    %279 = vector.shape_cast %278 : vector<1xf32> to vector<1x1xf32>
    %280 = vector.broadcast %279 : vector<1x1xf32> to vector<128x128xf32>
    %281 = arith.addf %276, %280 : vector<128x128xf32>
    %cst_99 = arith.constant 0.000000e+00 : f32
    %282 = vector.broadcast %cst_99 : f32 to vector<128x128xf32>
    %283 = arith.cmpf ogt, %281, %282 : vector<128x128xf32>
    %cst_100 = arith.constant 0.000000e+00 : f32
    %284 = vector.broadcast %cst_100 : f32 to vector<128x128xf32>
    %285 = arith.minimumf %281, %284 : vector<128x128xf32>
    %286 = math.exp %285 : vector<128x128xf32>
    %cst_101 = arith.constant 1.000000e+00 : f32
    %287 = vector.broadcast %cst_101 : f32 to vector<128x128xf32>
    %288 = arith.subf %286, %287 : vector<128x128xf32>
    %289 = arith.select %283, %281, %288 : vector<128x128xi1>, vector<128x128xf32>
    %290 = arith.truncf %289 : vector<128x128xf32> to vector<128x128xbf16>
    %cst_102 = arith.constant dense<0.000000e+00> : vector<4x128xf32>
    %291 = tpu.matmul %20, %290, %cst_102 {dimension_numbers = #tpu.dot_dimension_numbers<[1], [0], [0], [1], [0, 0, 1, 1], [], []>} : vector<4x128xbf16>, vector<128x128xbf16>, vector<4x128xf32> -> vector<4x128xf32>
    %292 = arith.addf %15, %291 : vector<4x128xf32>
    %c128 = arith.constant 128 : index
    %c0_103 = arith.constant 0 : index
    %293 = vector.load %arg1[%c128, %c0_103] : memref<320x128xbf16, #tpu.memory_space<vmem>>, vector<192x128xbf16>
    %c0_104 = arith.constant 0 : index
    %c0_105 = arith.constant 0 : index
    %294 = vector.load %arg2[%c0_104, %c0_105] : memref<2048x192xbf16, #tpu.memory_space<vmem>>, vector<2048x192xbf16>
    %cst_106 = arith.constant dense<0.000000e+00> : vector<2048x128xf32>
    %295 = tpu.matmul %294, %293, %cst_106 {dimension_numbers = #tpu.dot_dimension_numbers<[1], [0], [0], [1], [0, 0, 1, 1], [], []>} : vector<2048x192xbf16>, vector<192x128xbf16>, vector<2048x128xf32> -> vector<2048x128xf32>
    %c1_107 = arith.constant 1 : index
    %c0_108 = arith.constant 0 : index
    %c0_109 = arith.constant 0 : index
    %296 = vector.load %arg4[%c1_107, %c0_108, %c0_109] : memref<2x4x128xbf16, #tpu.memory_space<vmem>>, vector<1x4x128xbf16>
    %297 = vector.shape_cast %296 : vector<1x4x128xbf16> to vector<4x128xbf16>
    %298 = vector.extract_strided_slice %295 {offsets = [0, 0], sizes = [128, 128], strides = [1, 1]} : vector<2048x128xf32> to vector<128x128xf32>
    %c0_110 = arith.constant 0 : index
    %c0_111 = arith.constant 0 : index
    %299 = vector.load %arg3[%c0_110, %c0_111] : memref<16x1xf32, #tpu.memory_space<vmem>>, vector<1x1xf32>
    %300 = vector.shape_cast %299 : vector<1x1xf32> to vector<1xf32>
    %301 = vector.shape_cast %300 : vector<1xf32> to vector<1x1xf32>
    %302 = vector.broadcast %301 : vector<1x1xf32> to vector<128x128xf32>
    %303 = arith.addf %298, %302 : vector<128x128xf32>
    %cst_112 = arith.constant 0.000000e+00 : f32
    %304 = vector.broadcast %cst_112 : f32 to vector<128x128xf32>
    %305 = arith.cmpf ogt, %303, %304 : vector<128x128xf32>
    %cst_113 = arith.constant 0.000000e+00 : f32
    %306 = vector.broadcast %cst_113 : f32 to vector<128x128xf32>
    %307 = arith.minimumf %303, %306 : vector<128x128xf32>
    %308 = math.exp %307 : vector<128x128xf32>
    %cst_114 = arith.constant 1.000000e+00 : f32
    %309 = vector.broadcast %cst_114 : f32 to vector<128x128xf32>
    %310 = arith.subf %308, %309 : vector<128x128xf32>
    %311 = arith.select %305, %303, %310 : vector<128x128xi1>, vector<128x128xf32>
    %312 = arith.truncf %311 : vector<128x128xf32> to vector<128x128xbf16>
    %cst_115 = arith.constant dense<0.000000e+00> : vector<4x128xf32>
    %313 = tpu.matmul %297, %312, %cst_115 {dimension_numbers = #tpu.dot_dimension_numbers<[1], [0], [0], [1], [0, 0, 1, 1], [], []>} : vector<4x128xbf16>, vector<128x128xbf16>, vector<4x128xf32> -> vector<4x128xf32>
    %314 = arith.addf %37, %313 : vector<4x128xf32>
    %315 = vector.extract_strided_slice %295 {offsets = [128, 0], sizes = [128, 128], strides = [1, 1]} : vector<2048x128xf32> to vector<128x128xf32>
    %c1_116 = arith.constant 1 : index
    %c0_117 = arith.constant 0 : index
    %316 = vector.load %arg3[%c1_116, %c0_117] : memref<16x1xf32, #tpu.memory_space<vmem>>, vector<1x1xf32>
    %317 = vector.shape_cast %316 : vector<1x1xf32> to vector<1xf32>
    %318 = vector.shape_cast %317 : vector<1xf32> to vector<1x1xf32>
    %319 = vector.broadcast %318 : vector<1x1xf32> to vector<128x128xf32>
    %320 = arith.addf %315, %319 : vector<128x128xf32>
    %cst_118 = arith.constant 0.000000e+00 : f32
    %321 = vector.broadcast %cst_118 : f32 to vector<128x128xf32>
    %322 = arith.cmpf ogt, %320, %321 : vector<128x128xf32>
    %cst_119 = arith.constant 0.000000e+00 : f32
    %323 = vector.broadcast %cst_119 : f32 to vector<128x128xf32>
    %324 = arith.minimumf %320, %323 : vector<128x128xf32>
    %325 = math.exp %324 : vector<128x128xf32>
    %cst_120 = arith.constant 1.000000e+00 : f32
    %326 = vector.broadcast %cst_120 : f32 to vector<128x128xf32>
    %327 = arith.subf %325, %326 : vector<128x128xf32>
    %328 = arith.select %322, %320, %327 : vector<128x128xi1>, vector<128x128xf32>
    %329 = arith.truncf %328 : vector<128x128xf32> to vector<128x128xbf16>
    %cst_121 = arith.constant dense<0.000000e+00> : vector<4x128xf32>
    %330 = tpu.matmul %297, %329, %cst_121 {dimension_numbers = #tpu.dot_dimension_numbers<[1], [0], [0], [1], [0, 0, 1, 1], [], []>} : vector<4x128xbf16>, vector<128x128xbf16>, vector<4x128xf32> -> vector<4x128xf32>
    %331 = arith.addf %54, %330 : vector<4x128xf32>
    %332 = vector.extract_strided_slice %295 {offsets = [256, 0], sizes = [128, 128], strides = [1, 1]} : vector<2048x128xf32> to vector<128x128xf32>
    %c2_122 = arith.constant 2 : index
    %c0_123 = arith.constant 0 : index
    %333 = vector.load %arg3[%c2_122, %c0_123] : memref<16x1xf32, #tpu.memory_space<vmem>>, vector<1x1xf32>
    %334 = vector.shape_cast %333 : vector<1x1xf32> to vector<1xf32>
    %335 = vector.shape_cast %334 : vector<1xf32> to vector<1x1xf32>
    %336 = vector.broadcast %335 : vector<1x1xf32> to vector<128x128xf32>
    %337 = arith.addf %332, %336 : vector<128x128xf32>
    %cst_124 = arith.constant 0.000000e+00 : f32
    %338 = vector.broadcast %cst_124 : f32 to vector<128x128xf32>
    %339 = arith.cmpf ogt, %337, %338 : vector<128x128xf32>
    %cst_125 = arith.constant 0.000000e+00 : f32
    %340 = vector.broadcast %cst_125 : f32 to vector<128x128xf32>
    %341 = arith.minimumf %337, %340 : vector<128x128xf32>
    %342 = math.exp %341 : vector<128x128xf32>
    %cst_126 = arith.constant 1.000000e+00 : f32
    %343 = vector.broadcast %cst_126 : f32 to vector<128x128xf32>
    %344 = arith.subf %342, %343 : vector<128x128xf32>
    %345 = arith.select %339, %337, %344 : vector<128x128xi1>, vector<128x128xf32>
    %346 = arith.truncf %345 : vector<128x128xf32> to vector<128x128xbf16>
    %cst_127 = arith.constant dense<0.000000e+00> : vector<4x128xf32>
    %347 = tpu.matmul %297, %346, %cst_127 {dimension_numbers = #tpu.dot_dimension_numbers<[1], [0], [0], [1], [0, 0, 1, 1], [], []>} : vector<4x128xbf16>, vector<128x128xbf16>, vector<4x128xf32> -> vector<4x128xf32>
    %348 = arith.addf %71, %347 : vector<4x128xf32>
    %349 = vector.extract_strided_slice %295 {offsets = [384, 0], sizes = [128, 128], strides = [1, 1]} : vector<2048x128xf32> to vector<128x128xf32>
    %c3_128 = arith.constant 3 : index
    %c0_129 = arith.constant 0 : index
    %350 = vector.load %arg3[%c3_128, %c0_129] : memref<16x1xf32, #tpu.memory_space<vmem>>, vector<1x1xf32>
    %351 = vector.shape_cast %350 : vector<1x1xf32> to vector<1xf32>
    %352 = vector.shape_cast %351 : vector<1xf32> to vector<1x1xf32>
    %353 = vector.broadcast %352 : vector<1x1xf32> to vector<128x128xf32>
    %354 = arith.addf %349, %353 : vector<128x128xf32>
    %cst_130 = arith.constant 0.000000e+00 : f32
    %355 = vector.broadcast %cst_130 : f32 to vector<128x128xf32>
    %356 = arith.cmpf ogt, %354, %355 : vector<128x128xf32>
    %cst_131 = arith.constant 0.000000e+00 : f32
    %357 = vector.broadcast %cst_131 : f32 to vector<128x128xf32>
    %358 = arith.minimumf %354, %357 : vector<128x128xf32>
    %359 = math.exp %358 : vector<128x128xf32>
    %cst_132 = arith.constant 1.000000e+00 : f32
    %360 = vector.broadcast %cst_132 : f32 to vector<128x128xf32>
    %361 = arith.subf %359, %360 : vector<128x128xf32>
    %362 = arith.select %356, %354, %361 : vector<128x128xi1>, vector<128x128xf32>
    %363 = arith.truncf %362 : vector<128x128xf32> to vector<128x128xbf16>
    %cst_133 = arith.constant dense<0.000000e+00> : vector<4x128xf32>
    %364 = tpu.matmul %297, %363, %cst_133 {dimension_numbers = #tpu.dot_dimension_numbers<[1], [0], [0], [1], [0, 0, 1, 1], [], []>} : vector<4x128xbf16>, vector<128x128xbf16>, vector<4x128xf32> -> vector<4x128xf32>
    %365 = arith.addf %88, %364 : vector<4x128xf32>
    %366 = vector.extract_strided_slice %295 {offsets = [512, 0], sizes = [128, 128], strides = [1, 1]} : vector<2048x128xf32> to vector<128x128xf32>
    %c4_134 = arith.constant 4 : index
    %c0_135 = arith.constant 0 : index
    %367 = vector.load %arg3[%c4_134, %c0_135] : memref<16x1xf32, #tpu.memory_space<vmem>>, vector<1x1xf32>
    %368 = vector.shape_cast %367 : vector<1x1xf32> to vector<1xf32>
    %369 = vector.shape_cast %368 : vector<1xf32> to vector<1x1xf32>
    %370 = vector.broadcast %369 : vector<1x1xf32> to vector<128x128xf32>
    %371 = arith.addf %366, %370 : vector<128x128xf32>
    %cst_136 = arith.constant 0.000000e+00 : f32
    %372 = vector.broadcast %cst_136 : f32 to vector<128x128xf32>
    %373 = arith.cmpf ogt, %371, %372 : vector<128x128xf32>
    %cst_137 = arith.constant 0.000000e+00 : f32
    %374 = vector.broadcast %cst_137 : f32 to vector<128x128xf32>
    %375 = arith.minimumf %371, %374 : vector<128x128xf32>
    %376 = math.exp %375 : vector<128x128xf32>
    %cst_138 = arith.constant 1.000000e+00 : f32
    %377 = vector.broadcast %cst_138 : f32 to vector<128x128xf32>
    %378 = arith.subf %376, %377 : vector<128x128xf32>
    %379 = arith.select %373, %371, %378 : vector<128x128xi1>, vector<128x128xf32>
    %380 = arith.truncf %379 : vector<128x128xf32> to vector<128x128xbf16>
    %cst_139 = arith.constant dense<0.000000e+00> : vector<4x128xf32>
    %381 = tpu.matmul %297, %380, %cst_139 {dimension_numbers = #tpu.dot_dimension_numbers<[1], [0], [0], [1], [0, 0, 1, 1], [], []>} : vector<4x128xbf16>, vector<128x128xbf16>, vector<4x128xf32> -> vector<4x128xf32>
    %382 = arith.addf %105, %381 : vector<4x128xf32>
    %383 = vector.extract_strided_slice %295 {offsets = [640, 0], sizes = [128, 128], strides = [1, 1]} : vector<2048x128xf32> to vector<128x128xf32>
    %c5_140 = arith.constant 5 : index
    %c0_141 = arith.constant 0 : index
    %384 = vector.load %arg3[%c5_140, %c0_141] : memref<16x1xf32, #tpu.memory_space<vmem>>, vector<1x1xf32>
    %385 = vector.shape_cast %384 : vector<1x1xf32> to vector<1xf32>
    %386 = vector.shape_cast %385 : vector<1xf32> to vector<1x1xf32>
    %387 = vector.broadcast %386 : vector<1x1xf32> to vector<128x128xf32>
    %388 = arith.addf %383, %387 : vector<128x128xf32>
    %cst_142 = arith.constant 0.000000e+00 : f32
    %389 = vector.broadcast %cst_142 : f32 to vector<128x128xf32>
    %390 = arith.cmpf ogt, %388, %389 : vector<128x128xf32>
    %cst_143 = arith.constant 0.000000e+00 : f32
    %391 = vector.broadcast %cst_143 : f32 to vector<128x128xf32>
    %392 = arith.minimumf %388, %391 : vector<128x128xf32>
    %393 = math.exp %392 : vector<128x128xf32>
    %cst_144 = arith.constant 1.000000e+00 : f32
    %394 = vector.broadcast %cst_144 : f32 to vector<128x128xf32>
    %395 = arith.subf %393, %394 : vector<128x128xf32>
    %396 = arith.select %390, %388, %395 : vector<128x128xi1>, vector<128x128xf32>
    %397 = arith.truncf %396 : vector<128x128xf32> to vector<128x128xbf16>
    %cst_145 = arith.constant dense<0.000000e+00> : vector<4x128xf32>
    %398 = tpu.matmul %297, %397, %cst_145 {dimension_numbers = #tpu.dot_dimension_numbers<[1], [0], [0], [1], [0, 0, 1, 1], [], []>} : vector<4x128xbf16>, vector<128x128xbf16>, vector<4x128xf32> -> vector<4x128xf32>
    %399 = arith.addf %122, %398 : vector<4x128xf32>
    %400 = vector.extract_strided_slice %295 {offsets = [768, 0], sizes = [128, 128], strides = [1, 1]} : vector<2048x128xf32> to vector<128x128xf32>
    %c6_146 = arith.constant 6 : index
    %c0_147 = arith.constant 0 : index
    %401 = vector.load %arg3[%c6_146, %c0_147] : memref<16x1xf32, #tpu.memory_space<vmem>>, vector<1x1xf32>
    %402 = vector.shape_cast %401 : vector<1x1xf32> to vector<1xf32>
    %403 = vector.shape_cast %402 : vector<1xf32> to vector<1x1xf32>
    %404 = vector.broadcast %403 : vector<1x1xf32> to vector<128x128xf32>
    %405 = arith.addf %400, %404 : vector<128x128xf32>
    %cst_148 = arith.constant 0.000000e+00 : f32
    %406 = vector.broadcast %cst_148 : f32 to vector<128x128xf32>
    %407 = arith.cmpf ogt, %405, %406 : vector<128x128xf32>
    %cst_149 = arith.constant 0.000000e+00 : f32
    %408 = vector.broadcast %cst_149 : f32 to vector<128x128xf32>
    %409 = arith.minimumf %405, %408 : vector<128x128xf32>
    %410 = math.exp %409 : vector<128x128xf32>
    %cst_150 = arith.constant 1.000000e+00 : f32
    %411 = vector.broadcast %cst_150 : f32 to vector<128x128xf32>
    %412 = arith.subf %410, %411 : vector<128x128xf32>
    %413 = arith.select %407, %405, %412 : vector<128x128xi1>, vector<128x128xf32>
    %414 = arith.truncf %413 : vector<128x128xf32> to vector<128x128xbf16>
    %cst_151 = arith.constant dense<0.000000e+00> : vector<4x128xf32>
    %415 = tpu.matmul %297, %414, %cst_151 {dimension_numbers = #tpu.dot_dimension_numbers<[1], [0], [0], [1], [0, 0, 1, 1], [], []>} : vector<4x128xbf16>, vector<128x128xbf16>, vector<4x128xf32> -> vector<4x128xf32>
    %416 = arith.addf %139, %415 : vector<4x128xf32>
    %417 = vector.extract_strided_slice %295 {offsets = [896, 0], sizes = [128, 128], strides = [1, 1]} : vector<2048x128xf32> to vector<128x128xf32>
    %c7_152 = arith.constant 7 : index
    %c0_153 = arith.constant 0 : index
    %418 = vector.load %arg3[%c7_152, %c0_153] : memref<16x1xf32, #tpu.memory_space<vmem>>, vector<1x1xf32>
    %419 = vector.shape_cast %418 : vector<1x1xf32> to vector<1xf32>
    %420 = vector.shape_cast %419 : vector<1xf32> to vector<1x1xf32>
    %421 = vector.broadcast %420 : vector<1x1xf32> to vector<128x128xf32>
    %422 = arith.addf %417, %421 : vector<128x128xf32>
    %cst_154 = arith.constant 0.000000e+00 : f32
    %423 = vector.broadcast %cst_154 : f32 to vector<128x128xf32>
    %424 = arith.cmpf ogt, %422, %423 : vector<128x128xf32>
    %cst_155 = arith.constant 0.000000e+00 : f32
    %425 = vector.broadcast %cst_155 : f32 to vector<128x128xf32>
    %426 = arith.minimumf %422, %425 : vector<128x128xf32>
    %427 = math.exp %426 : vector<128x128xf32>
    %cst_156 = arith.constant 1.000000e+00 : f32
    %428 = vector.broadcast %cst_156 : f32 to vector<128x128xf32>
    %429 = arith.subf %427, %428 : vector<128x128xf32>
    %430 = arith.select %424, %422, %429 : vector<128x128xi1>, vector<128x128xf32>
    %431 = arith.truncf %430 : vector<128x128xf32> to vector<128x128xbf16>
    %cst_157 = arith.constant dense<0.000000e+00> : vector<4x128xf32>
    %432 = tpu.matmul %297, %431, %cst_157 {dimension_numbers = #tpu.dot_dimension_numbers<[1], [0], [0], [1], [0, 0, 1, 1], [], []>} : vector<4x128xbf16>, vector<128x128xbf16>, vector<4x128xf32> -> vector<4x128xf32>
    %433 = arith.addf %156, %432 : vector<4x128xf32>
    %434 = vector.extract_strided_slice %295 {offsets = [1024, 0], sizes = [128, 128], strides = [1, 1]} : vector<2048x128xf32> to vector<128x128xf32>
    %c8_158 = arith.constant 8 : index
    %c0_159 = arith.constant 0 : index
    %435 = vector.load %arg3[%c8_158, %c0_159] : memref<16x1xf32, #tpu.memory_space<vmem>>, vector<1x1xf32>
    %436 = vector.shape_cast %435 : vector<1x1xf32> to vector<1xf32>
    %437 = vector.shape_cast %436 : vector<1xf32> to vector<1x1xf32>
    %438 = vector.broadcast %437 : vector<1x1xf32> to vector<128x128xf32>
    %439 = arith.addf %434, %438 : vector<128x128xf32>
    %cst_160 = arith.constant 0.000000e+00 : f32
    %440 = vector.broadcast %cst_160 : f32 to vector<128x128xf32>
    %441 = arith.cmpf ogt, %439, %440 : vector<128x128xf32>
    %cst_161 = arith.constant 0.000000e+00 : f32
    %442 = vector.broadcast %cst_161 : f32 to vector<128x128xf32>
    %443 = arith.minimumf %439, %442 : vector<128x128xf32>
    %444 = math.exp %443 : vector<128x128xf32>
    %cst_162 = arith.constant 1.000000e+00 : f32
    %445 = vector.broadcast %cst_162 : f32 to vector<128x128xf32>
    %446 = arith.subf %444, %445 : vector<128x128xf32>
    %447 = arith.select %441, %439, %446 : vector<128x128xi1>, vector<128x128xf32>
    %448 = arith.truncf %447 : vector<128x128xf32> to vector<128x128xbf16>
    %cst_163 = arith.constant dense<0.000000e+00> : vector<4x128xf32>
    %449 = tpu.matmul %297, %448, %cst_163 {dimension_numbers = #tpu.dot_dimension_numbers<[1], [0], [0], [1], [0, 0, 1, 1], [], []>} : vector<4x128xbf16>, vector<128x128xbf16>, vector<4x128xf32> -> vector<4x128xf32>
    %450 = arith.addf %173, %449 : vector<4x128xf32>
    %451 = vector.extract_strided_slice %295 {offsets = [1152, 0], sizes = [128, 128], strides = [1, 1]} : vector<2048x128xf32> to vector<128x128xf32>
    %c9_164 = arith.constant 9 : index
    %c0_165 = arith.constant 0 : index
    %452 = vector.load %arg3[%c9_164, %c0_165] : memref<16x1xf32, #tpu.memory_space<vmem>>, vector<1x1xf32>
    %453 = vector.shape_cast %452 : vector<1x1xf32> to vector<1xf32>
    %454 = vector.shape_cast %453 : vector<1xf32> to vector<1x1xf32>
    %455 = vector.broadcast %454 : vector<1x1xf32> to vector<128x128xf32>
    %456 = arith.addf %451, %455 : vector<128x128xf32>
    %cst_166 = arith.constant 0.000000e+00 : f32
    %457 = vector.broadcast %cst_166 : f32 to vector<128x128xf32>
    %458 = arith.cmpf ogt, %456, %457 : vector<128x128xf32>
    %cst_167 = arith.constant 0.000000e+00 : f32
    %459 = vector.broadcast %cst_167 : f32 to vector<128x128xf32>
    %460 = arith.minimumf %456, %459 : vector<128x128xf32>
    %461 = math.exp %460 : vector<128x128xf32>
    %cst_168 = arith.constant 1.000000e+00 : f32
    %462 = vector.broadcast %cst_168 : f32 to vector<128x128xf32>
    %463 = arith.subf %461, %462 : vector<128x128xf32>
    %464 = arith.select %458, %456, %463 : vector<128x128xi1>, vector<128x128xf32>
    %465 = arith.truncf %464 : vector<128x128xf32> to vector<128x128xbf16>
    %cst_169 = arith.constant dense<0.000000e+00> : vector<4x128xf32>
    %466 = tpu.matmul %297, %465, %cst_169 {dimension_numbers = #tpu.dot_dimension_numbers<[1], [0], [0], [1], [0, 0, 1, 1], [], []>} : vector<4x128xbf16>, vector<128x128xbf16>, vector<4x128xf32> -> vector<4x128xf32>
    %467 = arith.addf %190, %466 : vector<4x128xf32>
    %468 = vector.extract_strided_slice %295 {offsets = [1280, 0], sizes = [128, 128], strides = [1, 1]} : vector<2048x128xf32> to vector<128x128xf32>
    %c10_170 = arith.constant 10 : index
    %c0_171 = arith.constant 0 : index
    %469 = vector.load %arg3[%c10_170, %c0_171] : memref<16x1xf32, #tpu.memory_space<vmem>>, vector<1x1xf32>
    %470 = vector.shape_cast %469 : vector<1x1xf32> to vector<1xf32>
    %471 = vector.shape_cast %470 : vector<1xf32> to vector<1x1xf32>
    %472 = vector.broadcast %471 : vector<1x1xf32> to vector<128x128xf32>
    %473 = arith.addf %468, %472 : vector<128x128xf32>
    %cst_172 = arith.constant 0.000000e+00 : f32
    %474 = vector.broadcast %cst_172 : f32 to vector<128x128xf32>
    %475 = arith.cmpf ogt, %473, %474 : vector<128x128xf32>
    %cst_173 = arith.constant 0.000000e+00 : f32
    %476 = vector.broadcast %cst_173 : f32 to vector<128x128xf32>
    %477 = arith.minimumf %473, %476 : vector<128x128xf32>
    %478 = math.exp %477 : vector<128x128xf32>
    %cst_174 = arith.constant 1.000000e+00 : f32
    %479 = vector.broadcast %cst_174 : f32 to vector<128x128xf32>
    %480 = arith.subf %478, %479 : vector<128x128xf32>
    %481 = arith.select %475, %473, %480 : vector<128x128xi1>, vector<128x128xf32>
    %482 = arith.truncf %481 : vector<128x128xf32> to vector<128x128xbf16>
    %cst_175 = arith.constant dense<0.000000e+00> : vector<4x128xf32>
    %483 = tpu.matmul %297, %482, %cst_175 {dimension_numbers = #tpu.dot_dimension_numbers<[1], [0], [0], [1], [0, 0, 1, 1], [], []>} : vector<4x128xbf16>, vector<128x128xbf16>, vector<4x128xf32> -> vector<4x128xf32>
    %484 = arith.addf %207, %483 : vector<4x128xf32>
    %485 = vector.extract_strided_slice %295 {offsets = [1408, 0], sizes = [128, 128], strides = [1, 1]} : vector<2048x128xf32> to vector<128x128xf32>
    %c11_176 = arith.constant 11 : index
    %c0_177 = arith.constant 0 : index
    %486 = vector.load %arg3[%c11_176, %c0_177] : memref<16x1xf32, #tpu.memory_space<vmem>>, vector<1x1xf32>
    %487 = vector.shape_cast %486 : vector<1x1xf32> to vector<1xf32>
    %488 = vector.shape_cast %487 : vector<1xf32> to vector<1x1xf32>
    %489 = vector.broadcast %488 : vector<1x1xf32> to vector<128x128xf32>
    %490 = arith.addf %485, %489 : vector<128x128xf32>
    %cst_178 = arith.constant 0.000000e+00 : f32
    %491 = vector.broadcast %cst_178 : f32 to vector<128x128xf32>
    %492 = arith.cmpf ogt, %490, %491 : vector<128x128xf32>
    %cst_179 = arith.constant 0.000000e+00 : f32
    %493 = vector.broadcast %cst_179 : f32 to vector<128x128xf32>
    %494 = arith.minimumf %490, %493 : vector<128x128xf32>
    %495 = math.exp %494 : vector<128x128xf32>
    %cst_180 = arith.constant 1.000000e+00 : f32
    %496 = vector.broadcast %cst_180 : f32 to vector<128x128xf32>
    %497 = arith.subf %495, %496 : vector<128x128xf32>
    %498 = arith.select %492, %490, %497 : vector<128x128xi1>, vector<128x128xf32>
    %499 = arith.truncf %498 : vector<128x128xf32> to vector<128x128xbf16>
    %cst_181 = arith.constant dense<0.000000e+00> : vector<4x128xf32>
    %500 = tpu.matmul %297, %499, %cst_181 {dimension_numbers = #tpu.dot_dimension_numbers<[1], [0], [0], [1], [0, 0, 1, 1], [], []>} : vector<4x128xbf16>, vector<128x128xbf16>, vector<4x128xf32> -> vector<4x128xf32>
    %501 = arith.addf %224, %500 : vector<4x128xf32>
    %502 = vector.extract_strided_slice %295 {offsets = [1536, 0], sizes = [128, 128], strides = [1, 1]} : vector<2048x128xf32> to vector<128x128xf32>
    %c12_182 = arith.constant 12 : index
    %c0_183 = arith.constant 0 : index
    %503 = vector.load %arg3[%c12_182, %c0_183] : memref<16x1xf32, #tpu.memory_space<vmem>>, vector<1x1xf32>
    %504 = vector.shape_cast %503 : vector<1x1xf32> to vector<1xf32>
    %505 = vector.shape_cast %504 : vector<1xf32> to vector<1x1xf32>
    %506 = vector.broadcast %505 : vector<1x1xf32> to vector<128x128xf32>
    %507 = arith.addf %502, %506 : vector<128x128xf32>
    %cst_184 = arith.constant 0.000000e+00 : f32
    %508 = vector.broadcast %cst_184 : f32 to vector<128x128xf32>
    %509 = arith.cmpf ogt, %507, %508 : vector<128x128xf32>
    %cst_185 = arith.constant 0.000000e+00 : f32
    %510 = vector.broadcast %cst_185 : f32 to vector<128x128xf32>
    %511 = arith.minimumf %507, %510 : vector<128x128xf32>
    %512 = math.exp %511 : vector<128x128xf32>
    %cst_186 = arith.constant 1.000000e+00 : f32
    %513 = vector.broadcast %cst_186 : f32 to vector<128x128xf32>
    %514 = arith.subf %512, %513 : vector<128x128xf32>
    %515 = arith.select %509, %507, %514 : vector<128x128xi1>, vector<128x128xf32>
    %516 = arith.truncf %515 : vector<128x128xf32> to vector<128x128xbf16>
    %cst_187 = arith.constant dense<0.000000e+00> : vector<4x128xf32>
    %517 = tpu.matmul %297, %516, %cst_187 {dimension_numbers = #tpu.dot_dimension_numbers<[1], [0], [0], [1], [0, 0, 1, 1], [], []>} : vector<4x128xbf16>, vector<128x128xbf16>, vector<4x128xf32> -> vector<4x128xf32>
    %518 = arith.addf %241, %517 : vector<4x128xf32>
    %519 = vector.extract_strided_slice %295 {offsets = [1664, 0], sizes = [128, 128], strides = [1, 1]} : vector<2048x128xf32> to vector<128x128xf32>
    %c13_188 = arith.constant 13 : index
    %c0_189 = arith.constant 0 : index
    %520 = vector.load %arg3[%c13_188, %c0_189] : memref<16x1xf32, #tpu.memory_space<vmem>>, vector<1x1xf32>
    %521 = vector.shape_cast %520 : vector<1x1xf32> to vector<1xf32>
    %522 = vector.shape_cast %521 : vector<1xf32> to vector<1x1xf32>
    %523 = vector.broadcast %522 : vector<1x1xf32> to vector<128x128xf32>
    %524 = arith.addf %519, %523 : vector<128x128xf32>
    %cst_190 = arith.constant 0.000000e+00 : f32
    %525 = vector.broadcast %cst_190 : f32 to vector<128x128xf32>
    %526 = arith.cmpf ogt, %524, %525 : vector<128x128xf32>
    %cst_191 = arith.constant 0.000000e+00 : f32
    %527 = vector.broadcast %cst_191 : f32 to vector<128x128xf32>
    %528 = arith.minimumf %524, %527 : vector<128x128xf32>
    %529 = math.exp %528 : vector<128x128xf32>
    %cst_192 = arith.constant 1.000000e+00 : f32
    %530 = vector.broadcast %cst_192 : f32 to vector<128x128xf32>
    %531 = arith.subf %529, %530 : vector<128x128xf32>
    %532 = arith.select %526, %524, %531 : vector<128x128xi1>, vector<128x128xf32>
    %533 = arith.truncf %532 : vector<128x128xf32> to vector<128x128xbf16>
    %cst_193 = arith.constant dense<0.000000e+00> : vector<4x128xf32>
    %534 = tpu.matmul %297, %533, %cst_193 {dimension_numbers = #tpu.dot_dimension_numbers<[1], [0], [0], [1], [0, 0, 1, 1], [], []>} : vector<4x128xbf16>, vector<128x128xbf16>, vector<4x128xf32> -> vector<4x128xf32>
    %535 = arith.addf %258, %534 : vector<4x128xf32>
    %536 = vector.extract_strided_slice %295 {offsets = [1792, 0], sizes = [128, 128], strides = [1, 1]} : vector<2048x128xf32> to vector<128x128xf32>
    %c14_194 = arith.constant 14 : index
    %c0_195 = arith.constant 0 : index
    %537 = vector.load %arg3[%c14_194, %c0_195] : memref<16x1xf32, #tpu.memory_space<vmem>>, vector<1x1xf32>
    %538 = vector.shape_cast %537 : vector<1x1xf32> to vector<1xf32>
    %539 = vector.shape_cast %538 : vector<1xf32> to vector<1x1xf32>
    %540 = vector.broadcast %539 : vector<1x1xf32> to vector<128x128xf32>
    %541 = arith.addf %536, %540 : vector<128x128xf32>
    %cst_196 = arith.constant 0.000000e+00 : f32
    %542 = vector.broadcast %cst_196 : f32 to vector<128x128xf32>
    %543 = arith.cmpf ogt, %541, %542 : vector<128x128xf32>
    %cst_197 = arith.constant 0.000000e+00 : f32
    %544 = vector.broadcast %cst_197 : f32 to vector<128x128xf32>
    %545 = arith.minimumf %541, %544 : vector<128x128xf32>
    %546 = math.exp %545 : vector<128x128xf32>
    %cst_198 = arith.constant 1.000000e+00 : f32
    %547 = vector.broadcast %cst_198 : f32 to vector<128x128xf32>
    %548 = arith.subf %546, %547 : vector<128x128xf32>
    %549 = arith.select %543, %541, %548 : vector<128x128xi1>, vector<128x128xf32>
    %550 = arith.truncf %549 : vector<128x128xf32> to vector<128x128xbf16>
    %cst_199 = arith.constant dense<0.000000e+00> : vector<4x128xf32>
    %551 = tpu.matmul %297, %550, %cst_199 {dimension_numbers = #tpu.dot_dimension_numbers<[1], [0], [0], [1], [0, 0, 1, 1], [], []>} : vector<4x128xbf16>, vector<128x128xbf16>, vector<4x128xf32> -> vector<4x128xf32>
    %552 = arith.addf %275, %551 : vector<4x128xf32>
    %553 = vector.extract_strided_slice %295 {offsets = [1920, 0], sizes = [128, 128], strides = [1, 1]} : vector<2048x128xf32> to vector<128x128xf32>
    %c15_200 = arith.constant 15 : index
    %c0_201 = arith.constant 0 : index
    %554 = vector.load %arg3[%c15_200, %c0_201] : memref<16x1xf32, #tpu.memory_space<vmem>>, vector<1x1xf32>
    %555 = vector.shape_cast %554 : vector<1x1xf32> to vector<1xf32>
    %556 = vector.shape_cast %555 : vector<1xf32> to vector<1x1xf32>
    %557 = vector.broadcast %556 : vector<1x1xf32> to vector<128x128xf32>
    %558 = arith.addf %553, %557 : vector<128x128xf32>
    %cst_202 = arith.constant 0.000000e+00 : f32
    %559 = vector.broadcast %cst_202 : f32 to vector<128x128xf32>
    %560 = arith.cmpf ogt, %558, %559 : vector<128x128xf32>
    %cst_203 = arith.constant 0.000000e+00 : f32
    %561 = vector.broadcast %cst_203 : f32 to vector<128x128xf32>
    %562 = arith.minimumf %558, %561 : vector<128x128xf32>
    %563 = math.exp %562 : vector<128x128xf32>
    %cst_204 = arith.constant 1.000000e+00 : f32
    %564 = vector.broadcast %cst_204 : f32 to vector<128x128xf32>
    %565 = arith.subf %563, %564 : vector<128x128xf32>
    %566 = arith.select %560, %558, %565 : vector<128x128xi1>, vector<128x128xf32>
    %567 = arith.truncf %566 : vector<128x128xf32> to vector<128x128xbf16>
    %cst_205 = arith.constant dense<0.000000e+00> : vector<4x128xf32>
    %568 = tpu.matmul %297, %567, %cst_205 {dimension_numbers = #tpu.dot_dimension_numbers<[1], [0], [0], [1], [0, 0, 1, 1], [], []>} : vector<4x128xbf16>, vector<128x128xbf16>, vector<4x128xf32> -> vector<4x128xf32>
    %569 = arith.addf %292, %568 : vector<4x128xf32>
    %570 = tpu.concatenate %314, %331, %348, %365, %382, %399, %416, %433, %450, %467, %484, %501, %518, %535, %552, %569 in 0 : vector<4x128xf32>, vector<4x128xf32>, vector<4x128xf32>, vector<4x128xf32>, vector<4x128xf32>, vector<4x128xf32>, vector<4x128xf32>, vector<4x128xf32>, vector<4x128xf32>, vector<4x128xf32>, vector<4x128xf32>, vector<4x128xf32>, vector<4x128xf32>, vector<4x128xf32>, vector<4x128xf32>, vector<4x128xf32> -> vector<64x128xf32>
    %c0_206 = arith.constant 0 : index
    %c0_207 = arith.constant 0 : index
    %571 = vector.load %arg5[%c0_206, %c0_207] : memref<80x64xbf16, #tpu.memory_space<vmem>>, vector<80x64xbf16>
    %572 = arith.truncf %570 : vector<64x128xf32> to vector<64x128xbf16>
    %cst_208 = arith.constant dense<0.000000e+00> : vector<80x128xf32>
    %573 = tpu.matmul %571, %572, %cst_208 {dimension_numbers = #tpu.dot_dimension_numbers<[1], [0], [0], [1], [0, 0, 1, 1], [], []>} : vector<80x64xbf16>, vector<64x128xbf16>, vector<80x128xf32> -> vector<80x128xf32>
    %cst_209 = arith.constant 0.000000e+00 : f32
    %574 = vector.broadcast %cst_209 : f32 to vector<80x128xf32>
    %575 = arith.cmpf ogt, %573, %574 : vector<80x128xf32>
    %cst_210 = arith.constant 0.000000e+00 : f32
    %576 = vector.broadcast %cst_210 : f32 to vector<80x128xf32>
    %577 = arith.minimumf %573, %576 : vector<80x128xf32>
    %578 = math.exp %577 : vector<80x128xf32>
    %cst_211 = arith.constant 1.000000e+00 : f32
    %579 = vector.broadcast %cst_211 : f32 to vector<80x128xf32>
    %580 = arith.subf %578, %579 : vector<80x128xf32>
    %581 = arith.select %575, %573, %580 : vector<80x128xi1>, vector<80x128xf32>
    %c0_212 = arith.constant 0 : index
    %c0_213 = arith.constant 0 : index
    %582 = vector.load %arg6[%c0_212, %c0_213] : memref<1x80xbf16, #tpu.memory_space<vmem>>, vector<1x80xbf16>
    %583 = arith.truncf %581 : vector<80x128xf32> to vector<80x128xbf16>
    %cst_214 = arith.constant dense<0.000000e+00> : vector<1x128xf32>
    %584 = tpu.matmul %582, %583, %cst_214 {dimension_numbers = #tpu.dot_dimension_numbers<[1], [0], [0], [1], [0, 0, 1, 1], [], []>} : vector<1x80xbf16>, vector<80x128xbf16>, vector<1x128xf32> -> vector<1x128xf32>
    %c0_215 = arith.constant 0 : index
    %c0_216 = arith.constant 0 : index
    %585 = vector.load %arg7[%c0_215, %c0_216] : memref<1x1xf32, #tpu.memory_space<vmem>>, vector<1x1xf32>
    %586 = vector.broadcast %585 : vector<1x1xf32> to vector<1x128xf32>
    %587 = arith.addf %584, %586 : vector<1x128xf32>
    %c0_217 = arith.constant 0 : index
    %c0_218 = arith.constant 0 : index
    %588 = vector.load %arg8[%c0_217, %c0_218] : memref<1x128xf32, #tpu.memory_space<vmem>>, vector<1x128xf32>
    tpu.vector_store %arg8[%c0_217, %c0_218], %587 {strides = array<i32>} : memref<1x128xf32, #tpu.memory_space<vmem>>, vector<1x128xf32>,
    return
  }
  func.func @transform_0(%arg0: i32) -> (i32, i32) {
    %c0_i32 = arith.constant 0 : i32
    %c0_i32_0 = arith.constant 0 : i32
    return %c0_i32, %arg0 : i32, i32
  }
  func.func @transform_1(%arg0: i32) -> (i32, i32) {
    %c0_i32 = arith.constant 0 : i32
    %c0_i32_0 = arith.constant 0 : i32
    %c0_i32_1 = arith.constant 0 : i32
    return %c0_i32, %c0_i32_0 : i32, i32
  }
  func.func @transform_2(%arg0: i32) -> (i32, i32) {
    %c0_i32 = arith.constant 0 : i32
    %c0_i32_0 = arith.constant 0 : i32
    %c0_i32_1 = arith.constant 0 : i32
    return %c0_i32, %c0_i32_0 : i32, i32
  }
  func.func @transform_3(%arg0: i32) -> (i32, i32, i32) {
    %c0_i32 = arith.constant 0 : i32
    %c0_i32_0 = arith.constant 0 : i32
    %c0_i32_1 = arith.constant 0 : i32
    %c0_i32_2 = arith.constant 0 : i32
    return %c0_i32, %c0_i32_0, %c0_i32_1 : i32, i32, i32
  }
  func.func @transform_4(%arg0: i32) -> (i32, i32) {
    %c0_i32 = arith.constant 0 : i32
    %c0_i32_0 = arith.constant 0 : i32
    %c0_i32_1 = arith.constant 0 : i32
    return %c0_i32, %c0_i32_0 : i32, i32
  }
  func.func @transform_5(%arg0: i32) -> (i32, i32) {
    %c0_i32 = arith.constant 0 : i32
    %c0_i32_0 = arith.constant 0 : i32
    %c0_i32_1 = arith.constant 0 : i32
    return %c0_i32, %c0_i32_0 : i32, i32
  }
  func.func @transform_6(%arg0: i32) -> (i32, i32) {
    %c0_i32 = arith.constant 0 : i32
    %c0_i32_0 = arith.constant 0 : i32
    %c0_i32_1 = arith.constant 0 : i32
    return %c0_i32, %c0_i32_0 : i32, i32
  }
  func.func @transform_7(%arg0: i32) -> (i32, i32) {
    %c0_i32 = arith.constant 0 : i32
    %c0_i32_0 = arith.constant 0 : i32
    return %c0_i32, %arg0 : i32, i32
  }
}

</mosaic_0001>

<llo_original>
// kernel: forward.1
$region0: #{forward.1}
  #allocation0 [shape = 'u32[]', space=smem, size = 0x4, offset = 0x4, fixed_abs, tag = 'smem constant byte address 0x4 - core index']
  #allocation1 [shape = 'u32[72,128]{1,0:T(1,128)}', space=vmem, size = 0x9000, scoped, tag = 'internal scratch']
  #allocation2 [shape = 'f32[1,1]{1,0:T(1,128)S(1)}', space=vmem, size = 0x200, scoped, tag = 'scoped memory for forward.1']
  %s0 = inlined_call_operand.vmem [shape: bf16[320,128], index: 0, kind: input, shape index: {}]
  %s1 = inlined_call_operand.hbm [shape: bf16[2048,192], index: 1, kind: input, shape index: {}]
  %s2 = inlined_call_operand.vmem [shape: f32[16,1], index: 2, kind: input, shape index: {}]
  %s3 = inlined_call_operand.vmem [shape: bf16[2,4,128], index: 3, kind: input, shape index: {}]
  %s4 = inlined_call_operand.vmem [shape: bf16[80,64], index: 4, kind: input, shape index: {}]
  %s5 = inlined_call_operand.vmem [shape: bf16[1,80], index: 5, kind: input, shape index: {}]
  %s6 = inlined_call_operand.<no memory space> [shape: f32[1,1], index: 6, kind: input, shape index: {}]
  %s7 = inlined_call_operand.vmem [shape: f32[1,128], index: 7, kind: output, shape index: {}]
  %s8 = sld [smem:[#allocation0]]
  $region42: #{forward.1} parent=0
    _
  %s10 = ssub.s32 1, %s8
  %s11 = scalar_select 0, %s10, %s8
  %v12 = vstv %s6
  %13 = vst [vmem:[#allocation2] sm:$0x1] %v12
  $region1: #{forward.1} parent=0
    #allocation3 [shape = 'u8[1048576]{0}', space=vmem, size = 0x100000, scoped, tag = 'input window, operand 1, single buffered']
    #allocation4 [shape = 's32[1]{0}', space=sflag, size = 0x4, scoped, tag = 'scoped memory for forward.1']
    %14 = vsyncpa [#allocation4], 0
    // Predicated region
    $region2: #{forward.1} parent=1 // pred_check
      _
    $region3: #{forward.1} parent=1 // pred_check_branch
      %16 = sbr.rel (0) target = $region5
    $region4: #{forward.1} parent=1 // pred_region
      _
    $region5: #{forward.1} parent=1 // pred_fallthru
      _
    // Predicated region
    $region6: #{forward.1} parent=1 // pred_check
      _
    $region7: #{forward.1} parent=1 // pred_check_branch
      %18 = sbr.rel (0) target = $region9
    $region8: #{forward.1} parent=1 // pred_region
      %20 = vsyncadd [#allocation4], 0
      %s21 = sshll.u32 %s1, 4
      %s22 = int_to_ptr.hbm [resolvable:$true] %s21
      %s23 = sshll.u32 [#allocation3], 4
      %s24 = int_to_ptr.vmem [resolvable:$true] %s23
      %29 = dma.hbm_to_vmem [thread:$0]  %s22, 32768, %s24, [#allocation4], 128, 128, 8
    $region9: #{forward.1} parent=1 // pred_fallthru
      _
    // Predicated region
    $region10: #{forward.1} parent=1 // pred_check
      _
    $region11: #{forward.1} parent=1 // pred_check_branch
      %31 = sbr.rel (0) target = $region13
    $region12: #{forward.1} parent=1 // pred_region
      _
    $region13: #{forward.1} parent=1 // pred_fallthru
      _
    // Predicated region
    $region14: #{forward.1} parent=1 // pred_check
      _
    $region15: #{forward.1} parent=1 // pred_check_branch
      %33 = sbr.rel (0) target = $region17
    $region16: #{forward.1} parent=1 // pred_region
      _
    $region17: #{forward.1} parent=1 // pred_fallthru
      _
    // Predicated region
    $region18: #{forward.1} parent=1 // pred_check
      _
    $region19: #{forward.1} parent=1 // pred_check_branch
      %35 = sbr.rel (0) target = $region21
    $region20: #{forward.1} parent=1 // pred_region
      _
    $region21: #{forward.1} parent=1 // pred_fallthru
      _
    // Predicated region
    $region22: #{forward.1} parent=1 // pred_check
      _
    $region23: #{forward.1} parent=1 // pred_check_branch
      %37 = sbr.rel (0) target = $region25
    $region24: #{forward.1} parent=1 // pred_region
      _
    $region25: #{forward.1} parent=1 // pred_fallthru
      _
    // Predicated region
    $region26: #{forward.1} parent=1 // pred_check
      _
    $region27: #{forward.1} parent=1 // pred_check_branch
      %39 = sbr.rel (0) target = $region29
    $region28: #{forward.1} parent=1 // pred_region
      _
    $region29: #{forward.1} parent=1 // pred_fallthru
      _
    // Predicated region
    $region30: #{forward.1} parent=1 // pred_check
      _
    $region31: #{forward.1} parent=1 // pred_check_branch
      %41 = sbr.rel (0) target = $region33
    $region32: #{forward.1} parent=1 // pred_region
      %43 = dma.done [#allocation4], 32768
    $region33: #{forward.1} parent=1 // pred_fallthru
      _
    %v45 = vld [vmem:[%s0] sm:$0xf]
    %v46 = vld [vmem:[%s0 + $0x4] sm:$0xf]
    %v47 = vld [vmem:[%s0 + $0x8] sm:$0xf]
    %v48 = vld [vmem:[%s0 + $0xc] sm:$0xf]
    %v49 = vld [vmem:[%s0 + $0x10] sm:$0xf]
    %v50 = vld [vmem:[%s0 + $0x14] sm:$0xf]
    %v51 = vld [vmem:[%s0 + $0x18] sm:$0xf]
    %v52 = vld [vmem:[%s0 + $0x1c] sm:$0xf]
    %v53 = vld [vmem:[%s0 + $0x20] sm:$0xf]
    %v54 = vld [vmem:[%s0 + $0x24] sm:$0xf]
    %v55 = vld [vmem:[%s0 + $0x28] sm:$0xf]
    %v56 = vld [vmem:[%s0 + $0x2c] sm:$0xf]
    %v57 = vld [vmem:[%s0 + $0x30] sm:$0xf]
    %v58 = vld [vmem:[%s0 + $0x34] sm:$0xf]
    %v59 = vld [vmem:[%s0 + $0x38] sm:$0xf]
    %v60 = vld [vmem:[%s0 + $0x3c] sm:$0xf]
    %v61 = vld [vmem:[%s0 + $0x40] sm:$0xf]
    %v62 = vld [vmem:[%s0 + $0x44] sm:$0xf]
    %v63 = vld [vmem:[%s0 + $0x48] sm:$0xf]
    %v64 = vld [vmem:[%s0 + $0x4c] sm:$0xf]
    %v65 = vld [vmem:[%s0 + $0x50] sm:$0xf]
    %v66 = vld [vmem:[%s0 + $0x54] sm:$0xf]
    %v67 = vld [vmem:[%s0 + $0x58] sm:$0xf]
    %v68 = vld [vmem:[%s0 + $0x5c] sm:$0xf]
    %v69 = vld [vmem:[#allocation3] sm:$0xff]
    %v70 = vld [vmem:[#allocation3 + $0x8] sm:$0xff]
    %v71 = vld [vmem:[#allocation3 + $0x10] sm:$0xff]
    %v72 = vld [vmem:[#allocation3 + $0x18] sm:$0xff]
    %v73 = vld [vmem:[#allocation3 + $0x20] sm:$0xff]
    %v74 = vld [vmem:[#allocation3 + $0x28] sm:$0xff]
    %v75 = vld [vmem:[#allocation3 + $0x30] sm:$0xff]
    %v76 = vld [vmem:[#allocation3 + $0x38] sm:$0xff]
    %v77 = vld [vmem:[#allocation3 + $0x40] sm:$0xff]
    %v78 = vld [vmem:[#allocation3 + $0x48] sm:$0xff]
    %v79 = vld [vmem:[#allocation3 + $0x50] sm:$0xff]
    %v80 = vld [vmem:[#allocation3 + $0x58] sm:$0xff]
    %v81 = vld [vmem:[#allocation3 + $0x60] sm:$0xff]
    %v82 = vld [vmem:[#allocation3 + $0x68] sm:$0xff]
    %v83 = vld [vmem:[#allocation3 + $0x70] sm:$0xff]
    %v84 = vld [vmem:[#allocation3 + $0x78] sm:$0xff]
    %v85 = vld [vmem:[#allocation3 + $0x80] sm:$0xff]
    %v86 = vld [vmem:[#allocation3 + $0x88] sm:$0xff]
    %v87 = vld [vmem:[#allocation3 + $0x90] sm:$0xff]
    %v88 = vld [vmem:[#allocation3 + $0x98] sm:$0xff]
    %v89 = vld [vmem:[#allocation3 + $0xa0] sm:$0xff]
    %v90 = vld [vmem:[#allocation3 + $0xa8] sm:$0xff]
    %v91 = vld [vmem:[#allocation3 + $0xb0] sm:$0xff]
    %v92 = vld [vmem:[#allocation3 + $0xb8] sm:$0xff]
    %v93 = vld [vmem:[#allocation3 + $0xc0] sm:$0xff]
    %v94 = vld [vmem:[#allocation3 + $0xc8] sm:$0xff]
    %v95 = vld [vmem:[#allocation3 + $0xd0] sm:$0xff]
    %v96 = vld [vmem:[#allocation3 + $0xd8] sm:$0xff]
    %v97 = vld [vmem:[#allocation3 + $0xe0] sm:$0xff]
    %v98 = vld [vmem:[#allocation3 + $0xe8] sm:$0xff]
    %v99 = vld [vmem:[#allocation3 + $0xf0] sm:$0xff]
    %v100 = vld [vmem:[#allocation3 + $0xf8] sm:$0xff]
    %v101 = vld [vmem:[#allocation3 + $0x100] sm:$0xff]
    %v102 = vld [vmem:[#allocation3 + $0x108] sm:$0xff]
    %v103 = vld [vmem:[#allocation3 + $0x110] sm:$0xff]
    %v104 = vld [vmem:[#allocation3 + $0x118] sm:$0xff]
    %v105 = vld [vmem:[#allocation3 + $0x120] sm:$0xff]
    %v106 = vld [vmem:[#allocation3 + $0x128] sm:$0xff]
    %v107 = vld [vmem:[#allocation3 + $0x130] sm:$0xff]
    %v108 = vld [vmem:[#allocation3 + $0x138] sm:$0xff]
    %v109 = vld [vmem:[#allocation3 + $0x140] sm:$0xff]
    %v110 = vld [vmem:[#allocation3 + $0x148] sm:$0xff]
    %v111 = vld [vmem:[#allocation3 + $0x150] sm:$0xff]
    %v112 = vld [vmem:[#allocation3 + $0x158] sm:$0xff]
    %v113 = vld [vmem:[#allocation3 + $0x160] sm:$0xff]
    %v114 = vld [vmem:[#allocation3 + $0x168] sm:$0xff]
    %v115 = vld [vmem:[#allocation3 + $0x170] sm:$0xff]
    %v116 = vld [vmem:[#allocation3 + $0x178] sm:$0xff]
    %v117 = vld [vmem:[#allocation3 + $0x180] sm:$0xff]
    %v118 = vld [vmem:[#allocation3 + $0x188] sm:$0xff]
    %v119 = vld [vmem:[#allocation3 + $0x190] sm:$0xff]
    %v120 = vld [vmem:[#allocation3 + $0x198] sm:$0xff]
    %v121 = vld [vmem:[#allocation3 + $0x1a0] sm:$0xff]
    %v122 = vld [vmem:[#allocation3 + $0x1a8] sm:$0xff]
    %v123 = vld [vmem:[#allocation3 + $0x1b0] sm:$0xff]
    %v124 = vld [vmem:[#allocation3 + $0x1b8] sm:$0xff]
    %v125 = vld [vmem:[#allocation3 + $0x1c0] sm:$0xff]
    %v126 = vld [vmem:[#allocation3 + $0x1c8] sm:$0xff]
    %v127 = vld [vmem:[#allocation3 + $0x1d0] sm:$0xff]
    %v128 = vld [vmem:[#allocation3 + $0x1d8] sm:$0xff]
    %v129 = vld [vmem:[#allocation3 + $0x1e0] sm:$0xff]
    %v130 = vld [vmem:[#allocation3 + $0x1e8] sm:$0xff]
    %v131 = vld [vmem:[#allocation3 + $0x1f0] sm:$0xff]
    %v132 = vld [vmem:[#allocation3 + $0x1f8] sm:$0xff]
    %v133 = vld [vmem:[#allocation3 + $0x200] sm:$0xff]
    %v134 = vld [vmem:[#allocation3 + $0x208] sm:$0xff]
    %v135 = vld [vmem:[#allocation3 + $0x210] sm:$0xff]
    %v136 = vld [vmem:[#allocation3 + $0x218] sm:$0xff]
    %v137 = vld [vmem:[#allocation3 + $0x220] sm:$0xff]
    %v138 = vld [vmem:[#allocation3 + $0x228] sm:$0xff]
    %v139 = vld [vmem:[#allocation3 + $0x230] sm:$0xff]
    %v140 = vld [vmem:[#allocation3 + $0x238] sm:$0xff]
    %v141 = vld [vmem:[#allocation3 + $0x240] sm:$0xff]
    %v142 = vld [vmem:[#allocation3 + $0x248] sm:$0xff]
    %v143 = vld [vmem:[#allocation3 + $0x250] sm:$0xff]
    %v144 = vld [vmem:[#allocation3 + $0x258] sm:$0xff]
    %v145 = vld [vmem:[#allocation3 + $0x260] sm:$0xff]
    %v146 = vld [vmem:[#allocation3 + $0x268] sm:$0xff]
    %v147 = vld [vmem:[#allocation3 + $0x270] sm:$0xff]
    %v148 = vld [vmem:[#allocation3 + $0x278] sm:$0xff]
    %v149 = vld [vmem:[#allocation3 + $0x280] sm:$0xff]
    %v150 = vld [vmem:[#allocation3 + $0x288] sm:$0xff]
    %v151 = vld [vmem:[#allocation3 + $0x290] sm:$0xff]
    %v152 = vld [vmem:[#allocation3 + $0x298] sm:$0xff]
    %v153 = vld [vmem:[#allocation3 + $0x2a0] sm:$0xff]
    %v154 = vld [vmem:[#allocation3 + $0x2a8] sm:$0xff]
    %v155 = vld [vmem:[#allocation3 + $0x2b0] sm:$0xff]
    %v156 = vld [vmem:[#allocation3 + $0x2b8] sm:$0xff]
    %v157 = vld [vmem:[#allocation3 + $0x2c0] sm:$0xff]
    %v158 = vld [vmem:[#allocation3 + $0x2c8] sm:$0xff]
    %v159 = vld [vmem:[#allocation3 + $0x2d0] sm:$0xff]
    %v160 = vld [vmem:[#allocation3 + $0x2d8] sm:$0xff]
    %v161 = vld [vmem:[#allocation3 + $0x2e0] sm:$0xff]
    %v162 = vld [vmem:[#allocation3 + $0x2e8] sm:$0xff]
    %v163 = vld [vmem:[#allocation3 + $0x2f0] sm:$0xff]
    %v164 = vld [vmem:[#allocation3 + $0x2f8] sm:$0xff]
    %v165 = vld [vmem:[#allocation3 + $0x300] sm:$0xff]
    %v166 = vld [vmem:[#allocation3 + $0x308] sm:$0xff]
    %v167 = vld [vmem:[#allocation3 + $0x310] sm:$0xff]
    %v168 = vld [vmem:[#allocation3 + $0x318] sm:$0xff]
    %v169 = vld [vmem:[#allocation3 + $0x320] sm:$0xff]
    %v170 = vld [vmem:[#allocation3 + $0x328] sm:$0xff]
    %v171 = vld [vmem:[#allocation3 + $0x330] sm:$0xff]
    %v172 = vld [vmem:[#allocation3 + $0x338] sm:$0xff]
    %v173 = vld [vmem:[#allocation3 + $0x340] sm:$0xff]
    %v174 = vld [vmem:[#allocation3 + $0x348] sm:$0xff]
    %v175 = vld [vmem:[#allocation3 + $0x350] sm:$0xff]
    %v176 = vld [vmem:[#allocation3 + $0x358] sm:$0xff]
    %v177 = vld [vmem:[#allocation3 + $0x360] sm:$0xff]
    %v178 = vld [vmem:[#allocation3 + $0x368] sm:$0xff]
    %v179 = vld [vmem:[#allocation3 + $0x370] sm:$0xff]
    %v180 = vld [vmem:[#allocation3 + $0x378] sm:$0xff]
    %v181 = vld [vmem:[#allocation3 + $0x380] sm:$0xff]
    %v182 = vld [vmem:[#allocation3 + $0x388] sm:$0xff]
    %v183 = vld [vmem:[#allocation3 + $0x390] sm:$0xff]
    %v184 = vld [vmem:[#allocation3 + $0x398] sm:$0xff]
    %v185 = vld [vmem:[#allocation3 + $0x3a0] sm:$0xff]
    %v186 = vld [vmem:[#allocation3 + $0x3a8] sm:$0xff]
    %v187 = vld [vmem:[#allocation3 + $0x3b0] sm:$0xff]
    %v188 = vld [vmem:[#allocation3 + $0x3b8] sm:$0xff]
    %v189 = vld [vmem:[#allocation3 + $0x3c0] sm:$0xff]
    %v190 = vld [vmem:[#allocation3 + $0x3c8] sm:$0xff]
    %v191 = vld [vmem:[#allocation3 + $0x3d0] sm:$0xff]
    %v192 = vld [vmem:[#allocation3 + $0x3d8] sm:$0xff]
    %v193 = vld [vmem:[#allocation3 + $0x3e0] sm:$0xff]
    %v194 = vld [vmem:[#allocation3 + $0x3e8] sm:$0xff]
    %v195 = vld [vmem:[#allocation3 + $0x3f0] sm:$0xff]
    %v196 = vld [vmem:[#allocation3 + $0x3f8] sm:$0xff]
    %v197 = vld [vmem:[#allocation3 + $0x400] sm:$0xff]
    %v198 = vld [vmem:[#allocation3 + $0x408] sm:$0xff]
    %v199 = vld [vmem:[#allocation3 + $0x410] sm:$0xff]
    %v200 = vld [vmem:[#allocation3 + $0x418] sm:$0xff]
    %v201 = vld [vmem:[#allocation3 + $0x420] sm:$0xff]
    %v202 = vld [vmem:[#allocation3 + $0x428] sm:$0xff]
    %v203 = vld [vmem:[#allocation3 + $0x430] sm:$0xff]
    %v204 = vld [vmem:[#allocation3 + $0x438] sm:$0xff]
    %v205 = vld [vmem:[#allocation3 + $0x440] sm:$0xff]
    %v206 = vld [vmem:[#allocation3 + $0x448] sm:$0xff]
    %v207 = vld [vmem:[#allocation3 + $0x450] sm:$0xff]
    %v208 = vld [vmem:[#allocation3 + $0x458] sm:$0xff]
    %v209 = vld [vmem:[#allocation3 + $0x460] sm:$0xff]
    %v210 = vld [vmem:[#allocation3 + $0x468] sm:$0xff]
    %v211 = vld [vmem:[#allocation3 + $0x470] sm:$0xff]
    %v212 = vld [vmem:[#allocation3 + $0x478] sm:$0xff]
    %v213 = vld [vmem:[#allocation3 + $0x480] sm:$0xff]
    %v214 = vld [vmem:[#allocation3 + $0x488] sm:$0xff]
    %v215 = vld [vmem:[#allocation3 + $0x490] sm:$0xff]
    %v216 = vld [vmem:[#allocation3 + $0x498] sm:$0xff]
    %v217 = vld [vmem:[#allocation3 + $0x4a0] sm:$0xff]
    %v218 = vld [vmem:[#allocation3 + $0x4a8] sm:$0xff]
    %v219 = vld [vmem:[#allocation3 + $0x4b0] sm:$0xff]
    %v220 = vld [vmem:[#allocation3 + $0x4b8] sm:$0xff]
    %v221 = vld [vmem:[#allocation3 + $0x4c0] sm:$0xff]
    %v222 = vld [vmem:[#allocation3 + $0x4c8] sm:$0xff]
    %v223 = vld [vmem:[#allocation3 + $0x4d0] sm:$0xff]
    %v224 = vld [vmem:[#allocation3 + $0x4d8] sm:$0xff]
    %v225 = vld [vmem:[#allocation3 + $0x4e0] sm:$0xff]
    %v226 = vld [vmem:[#allocation3 + $0x4e8] sm:$0xff]
    %v227 = vld [vmem:[#allocation3 + $0x4f0] sm:$0xff]
    %v228 = vld [vmem:[#allocation3 + $0x4f8] sm:$0xff]
    %v229 = vld [vmem:[#allocation3 + $0x500] sm:$0xff]
    %v230 = vld [vmem:[#allocation3 + $0x508] sm:$0xff]
    %v231 = vld [vmem:[#allocation3 + $0x510] sm:$0xff]
    %v232 = vld [vmem:[#allocation3 + $0x518] sm:$0xff]
    %v233 = vld [vmem:[#allocation3 + $0x520] sm:$0xff]
    %v234 = vld [vmem:[#allocation3 + $0x528] sm:$0xff]
    %v235 = vld [vmem:[#allocation3 + $0x530] sm:$0xff]
    %v236 = vld [vmem:[#allocation3 + $0x538] sm:$0xff]
    %v237 = vld [vmem:[#allocation3 + $0x540] sm:$0xff]
    %v238 = vld [vmem:[#allocation3 + $0x548] sm:$0xff]
    %v239 = vld [vmem:[#allocation3 + $0x550] sm:$0xff]
    %v240 = vld [vmem:[#allocation3 + $0x558] sm:$0xff]
    %v241 = vld [vmem:[#allocation3 + $0x560] sm:$0xff]
    %v242 = vld [vmem:[#allocation3 + $0x568] sm:$0xff]
    %v243 = vld [vmem:[#allocation3 + $0x570] sm:$0xff]
    %v244 = vld [vmem:[#allocation3 + $0x578] sm:$0xff]
    %v245 = vld [vmem:[#allocation3 + $0x580] sm:$0xff]
    %v246 = vld [vmem:[#allocation3 + $0x588] sm:$0xff]
    %v247 = vld [vmem:[#allocation3 + $0x590] sm:$0xff]
    %v248 = vld [vmem:[#allocation3 + $0x598] sm:$0xff]
    %v249 = vld [vmem:[#allocation3 + $0x5a0] sm:$0xff]
    %v250 = vld [vmem:[#allocation3 + $0x5a8] sm:$0xff]
    %v251 = vld [vmem:[#allocation3 + $0x5b0] sm:$0xff]
    %v252 = vld [vmem:[#allocation3 + $0x5b8] sm:$0xff]
    %v253 = vld [vmem:[#allocation3 + $0x5c0] sm:$0xff]
    %v254 = vld [vmem:[#allocation3 + $0x5c8] sm:$0xff]
    %v255 = vld [vmem:[#allocation3 + $0x5d0] sm:$0xff]
    %v256 = vld [vmem:[#allocation3 + $0x5d8] sm:$0xff]
    %v257 = vld [vmem:[#allocation3 + $0x5e0] sm:$0xff]
    %v258 = vld [vmem:[#allocation3 + $0x5e8] sm:$0xff]
    %v259 = vld [vmem:[#allocation3 + $0x5f0] sm:$0xff]
    %v260 = vld [vmem:[#allocation3 + $0x5f8] sm:$0xff]
    %v261 = vld [vmem:[#allocation3 + $0x600] sm:$0xff]
    %v262 = vld [vmem:[#allocation3 + $0x608] sm:$0xff]
    %v263 = vld [vmem:[#allocation3 + $0x610] sm:$0xff]
    %v264 = vld [vmem:[#allocation3 + $0x618] sm:$0xff]
    %v265 = vld [vmem:[#allocation3 + $0x620] sm:$0xff]
    %v266 = vld [vmem:[#allocation3 + $0x628] sm:$0xff]
    %v267 = vld [vmem:[#allocation3 + $0x630] sm:$0xff]
    %v268 = vld [vmem:[#allocation3 + $0x638] sm:$0xff]
    %v269 = vld [vmem:[#allocation3 + $0x640] sm:$0xff]
    %v270 = vld [vmem:[#allocation3 + $0x648] sm:$0xff]
    %v271 = vld [vmem:[#allocation3 + $0x650] sm:$0xff]
    %v272 = vld [vmem:[#allocation3 + $0x658] sm:$0xff]
    %v273 = vld [vmem:[#allocation3 + $0x660] sm:$0xff]
    %v274 = vld [vmem:[#allocation3 + $0x668] sm:$0xff]
    %v275 = vld [vmem:[#allocation3 + $0x670] sm:$0xff]
    %v276 = vld [vmem:[#allocation3 + $0x678] sm:$0xff]
    %v277 = vld [vmem:[#allocation3 + $0x680] sm:$0xff]
    %v278 = vld [vmem:[#allocation3 + $0x688] sm:$0xff]
    %v279 = vld [vmem:[#allocation3 + $0x690] sm:$0xff]
    %v280 = vld [vmem:[#allocation3 + $0x698] sm:$0xff]
    %v281 = vld [vmem:[#allocation3 + $0x6a0] sm:$0xff]
    %v282 = vld [vmem:[#allocation3 + $0x6a8] sm:$0xff]
    %v283 = vld [vmem:[#allocation3 + $0x6b0] sm:$0xff]
    %v284 = vld [vmem:[#allocation3 + $0x6b8] sm:$0xff]
    %v285 = vld [vmem:[#allocation3 + $0x6c0] sm:$0xff]
    %v286 = vld [vmem:[#allocation3 + $0x6c8] sm:$0xff]
    %v287 = vld [vmem:[#allocation3 + $0x6d0] sm:$0xff]
    %v288 = vld [vmem:[#allocation3 + $0x6d8] sm:$0xff]
    %v289 = vld [vmem:[#allocation3 + $0x6e0] sm:$0xff]
    %v290 = vld [vmem:[#allocation3 + $0x6e8] sm:$0xff]
    %v291 = vld [vmem:[#allocation3 + $0x6f0] sm:$0xff]
    %v292 = vld [vmem:[#allocation3 + $0x6f8] sm:$0xff]
    %v293 = vld [vmem:[#allocation3 + $0x700] sm:$0xff]
    %v294 = vld [vmem:[#allocation3 + $0x708] sm:$0xff]
    %v295 = vld [vmem:[#allocation3 + $0x710] sm:$0xff]
    %v296 = vld [vmem:[#allocation3 + $0x718] sm:$0xff]
    %v297 = vld [vmem:[#allocation3 + $0x720] sm:$0xff]
    %v298 = vld [vmem:[#allocation3 + $0x728] sm:$0xff]
    %v299 = vld [vmem:[#allocation3 + $0x730] sm:$0xff]
    %v300 = vld [vmem:[#allocation3 + $0x738] sm:$0xff]
    %v301 = vld [vmem:[#allocation3 + $0x740] sm:$0xff]
    %v302 = vld [vmem:[#allocation3 + $0x748] sm:$0xff]
    %v303 = vld [vmem:[#allocation3 + $0x750] sm:$0xff]
    %v304 = vld [vmem:[#allocation3 + $0x758] sm:$0xff]
    %v305 = vld [vmem:[#allocation3 + $0x760] sm:$0xff]
    %v306 = vld [vmem:[#allocation3 + $0x768] sm:$0xff]
    %v307 = vld [vmem:[#allocation3 + $0x770] sm:$0xff]
    %v308 = vld [vmem:[#allocation3 + $0x778] sm:$0xff]
    %v309 = vld [vmem:[#allocation3 + $0x780] sm:$0xff]
    %v310 = vld [vmem:[#allocation3 + $0x788] sm:$0xff]
    %v311 = vld [vmem:[#allocation3 + $0x790] sm:$0xff]
    %v312 = vld [vmem:[#allocation3 + $0x798] sm:$0xff]
    %v313 = vld [vmem:[#allocation3 + $0x7a0] sm:$0xff]
    %v314 = vld [vmem:[#allocation3 + $0x7a8] sm:$0xff]
    %v315 = vld [vmem:[#allocation3 + $0x7b0] sm:$0xff]
    %v316 = vld [vmem:[#allocation3 + $0x7b8] sm:$0xff]
    %v317 = vld [vmem:[#allocation3 + $0x7c0] sm:$0xff]
    %v318 = vld [vmem:[#allocation3 + $0x7c8] sm:$0xff]
    %v319 = vld [vmem:[#allocation3 + $0x7d0] sm:$0xff]
    %v320 = vld [vmem:[#allocation3 + $0x7d8] sm:$0xff]
    %v321 = vld [vmem:[#allocation3 + $0x7e0] sm:$0xff]
    %v322 = vld [vmem:[#allocation3 + $0x7e8] sm:$0xff]
    %v323 = vld [vmem:[#allocation3 + $0x7f0] sm:$0xff]
    %v324 = vld [vmem:[#allocation3 + $0x7f8] sm:$0xff]
    %v581 = vunpack.c.l.b16 %v69
    %v582 = vunpack.c.h.b16 %v69
    %v583 = vunpack.c.l.b16 %v70
    %v584 = vunpack.c.h.b16 %v70
    %v585 = vunpack.c.l.b16 %v71
    %v586 = vunpack.c.h.b16 %v71
    %v587 = vunpack.c.l.b16 %v72
    %v588 = vunpack.c.h.b16 %v72
    %v589 = vunpack.c.l.b16 %v73
    %v590 = vunpack.c.h.b16 %v73
    %v591 = vunpack.c.l.b16 %v74
    %v592 = vunpack.c.h.b16 %v74
    %v593 = vunpack.c.l.b16 %v75
    %v594 = vunpack.c.h.b16 %v75
    %v595 = vunpack.c.l.b16 %v76
    %v596 = vunpack.c.h.b16 %v76
    %v597 = vunpack.c.l.b16 %v77
    %v598 = vunpack.c.h.b16 %v77
    %v599 = vunpack.c.l.b16 %v78
    %v600 = vunpack.c.h.b16 %v78
    %v601 = vunpack.c.l.b16 %v79
    %v602 = vunpack.c.h.b16 %v79
    %v603 = vunpack.c.l.b16 %v80
    %v604 = vunpack.c.h.b16 %v80
    %v605 = vunpack.c.l.b16 %v81
    %v606 = vunpack.c.h.b16 %v81
    %v607 = vunpack.c.l.b16 %v82
    %v608 = vunpack.c.h.b16 %v82
    %v609 = vunpack.c.l.b16 %v83
    %v610 = vunpack.c.h.b16 %v83
    %v611 = vunpack.c.l.b16 %v84
    %v612 = vunpack.c.h.b16 %v84
    %v613 = vunpack.c.l.b16 %v85
    %v614 = vunpack.c.h.b16 %v85
    %v615 = vunpack.c.l.b16 %v86
    %v616 = vunpack.c.h.b16 %v86
    %v617 = vunpack.c.l.b16 %v87
    %v618 = vunpack.c.h.b16 %v87
    %v619 = vunpack.c.l.b16 %v88
    %v620 = vunpack.c.h.b16 %v88
    %v621 = vunpack.c.l.b16 %v89
    %v622 = vunpack.c.h.b16 %v89
    %v623 = vunpack.c.l.b16 %v90
    %v624 = vunpack.c.h.b16 %v90
    %v625 = vunpack.c.l.b16 %v91
    %v626 = vunpack.c.h.b16 %v91
    %v627 = vunpack.c.l.b16 %v92
    %v628 = vunpack.c.h.b16 %v92
    %v629 = vunpack.c.l.b16 %v93
    %v630 = vunpack.c.h.b16 %v93
    %v631 = vunpack.c.l.b16 %v94
    %v632 = vunpack.c.h.b16 %v94
    %v633 = vunpack.c.l.b16 %v95
    %v634 = vunpack.c.h.b16 %v95
    %v635 = vunpack.c.l.b16 %v96
    %v636 = vunpack.c.h.b16 %v96
    %v637 = vunpack.c.l.b16 %v97
    %v638 = vunpack.c.h.b16 %v97
    %v639 = vunpack.c.l.b16 %v98
    %v640 = vunpack.c.h.b16 %v98
    %v641 = vunpack.c.l.b16 %v99
    %v642 = vunpack.c.h.b16 %v99
    %v643 = vunpack.c.l.b16 %v100
    %v644 = vunpack.c.h.b16 %v100
    %v645 = vunpack.c.l.b16 %v101
    %v646 = vunpack.c.h.b16 %v101
    %v647 = vunpack.c.l.b16 %v102
    %v648 = vunpack.c.h.b16 %v102
    %v649 = vunpack.c.l.b16 %v103
    %v650 = vunpack.c.h.b16 %v103
    %v651 = vunpack.c.l.b16 %v104
    %v652 = vunpack.c.h.b16 %v104
    %v653 = vunpack.c.l.b16 %v105
    %v654 = vunpack.c.h.b16 %v105
    %v655 = vunpack.c.l.b16 %v106
    %v656 = vunpack.c.h.b16 %v106
    %v657 = vunpack.c.l.b16 %v107
    %v658 = vunpack.c.h.b16 %v107
    %v659 = vunpack.c.l.b16 %v108
    %v660 = vunpack.c.h.b16 %v108
    %v661 = vunpack.c.l.b16 %v109
    %v662 = vunpack.c.h.b16 %v109
    %v663 = vunpack.c.l.b16 %v110
    %v664 = vunpack.c.h.b16 %v110
    %v665 = vunpack.c.l.b16 %v111
    %v666 = vunpack.c.h.b16 %v111
    %v667 = vunpack.c.l.b16 %v112
    %v668 = vunpack.c.h.b16 %v112
    %v669 = vunpack.c.l.b16 %v113
    %v670 = vunpack.c.h.b16 %v113
    %v671 = vunpack.c.l.b16 %v114
    %v672 = vunpack.c.h.b16 %v114
    %v673 = vunpack.c.l.b16 %v115
    %v674 = vunpack.c.h.b16 %v115
    %v675 = vunpack.c.l.b16 %v116
    %v676 = vunpack.c.h.b16 %v116
    %v677 = vunpack.c.l.b16 %v117
    %v678 = vunpack.c.h.b16 %v117
    %v679 = vunpack.c.l.b16 %v118
    %v680 = vunpack.c.h.b16 %v118
    %v681 = vunpack.c.l.b16 %v119
    %v682 = vunpack.c.h.b16 %v119
    %v683 = vunpack.c.l.b16 %v120
    %v684 = vunpack.c.h.b16 %v120
    %v685 = vunpack.c.l.b16 %v121
    %v686 = vunpack.c.h.b16 %v121
    %v687 = vunpack.c.l.b16 %v122
    %v688 = vunpack.c.h.b16 %v122
    %v689 = vunpack.c.l.b16 %v123
    %v690 = vunpack.c.h.b16 %v123
    %v691 = vunpack.c.l.b16 %v124
    %v692 = vunpack.c.h.b16 %v124
    %v693 = vunpack.c.l.b16 %v125
    %v694 = vunpack.c.h.b16 %v125
    %v695 = vunpack.c.l.b16 %v126
    %v696 = vunpack.c.h.b16 %v126
    %v697 = vunpack.c.l.b16 %v127
    %v698 = vunpack.c.h.b16 %v127
    %v699 = vunpack.c.l.b16 %v128
    %v700 = vunpack.c.h.b16 %v128
    %v701 = vunpack.c.l.b16 %v129
    %v702 = vunpack.c.h.b16 %v129
    %v703 = vunpack.c.l.b16 %v130
    %v704 = vunpack.c.h.b16 %v130
    %v705 = vunpack.c.l.b16 %v131
    %v706 = vunpack.c.h.b16 %v131
    %v707 = vunpack.c.l.b16 %v132
    %v708 = vunpack.c.h.b16 %v132
    %v709 = vunpack.c.l.b16 %v133
    %v710 = vunpack.c.h.b16 %v133
    %v711 = vunpack.c.l.b16 %v134
    %v712 = vunpack.c.h.b16 %v134
    %v713 = vunpack.c.l.b16 %v135
    %v714 = vunpack.c.h.b16 %v135
    %v715 = vunpack.c.l.b16 %v136
    %v716 = vunpack.c.h.b16 %v136
    %v717 = vunpack.c.l.b16 %v137
    %v718 = vunpack.c.h.b16 %v137
    %v719 = vunpack.c.l.b16 %v138
    %v720 = vunpack.c.h.b16 %v138
    %v721 = vunpack.c.l.b16 %v139
    %v722 = vunpack.c.h.b16 %v139
    %v723 = vunpack.c.l.b16 %v140
    %v724 = vunpack.c.h.b16 %v140
    %v725 = vunpack.c.l.b16 %v141
    %v726 = vunpack.c.h.b16 %v141
    %v727 = vunpack.c.l.b16 %v142
    %v728 = vunpack.c.h.b16 %v142
    %v729 = vunpack.c.l.b16 %v143
    %v730 = vunpack.c.h.b16 %v143
    %v731 = vunpack.c.l.b16 %v144
    %v732 = vunpack.c.h.b16 %v144
    %v733 = vunpack.c.l.b16 %v145
    %v734 = vunpack.c.h.b16 %v145
    %v735 = vunpack.c.l.b16 %v146
    %v736 = vunpack.c.h.b16 %v146
    %v737 = vunpack.c.l.b16 %v147
    %v738 = vunpack.c.h.b16 %v147
    %v739 = vunpack.c.l.b16 %v148
    %v740 = vunpack.c.h.b16 %v148
    %v741 = vunpack.c.l.b16 %v149
    %v742 = vunpack.c.h.b16 %v149
    %v743 = vunpack.c.l.b16 %v150
    %v744 = vunpack.c.h.b16 %v150
    %v745 = vunpack.c.l.b16 %v151
    %v746 = vunpack.c.h.b16 %v151
    %v747 = vunpack.c.l.b16 %v152
    %v748 = vunpack.c.h.b16 %v152
    %v749 = vunpack.c.l.b16 %v153
    %v750 = vunpack.c.h.b16 %v153
    %v751 = vunpack.c.l.b16 %v154
    %v752 = vunpack.c.h.b16 %v154
    %v753 = vunpack.c.l.b16 %v155
    %v754 = vunpack.c.h.b16 %v155
    %v755 = vunpack.c.l.b16 %v156
    %v756 = vunpack.c.h.b16 %v156
    %v757 = vunpack.c.l.b16 %v157
    %v758 = vunpack.c.h.b16 %v157
    %v759 = vunpack.c.l.b16 %v158
    %v760 = vunpack.c.h.b16 %v158
    %v761 = vunpack.c.l.b16 %v159
    %v762 = vunpack.c.h.b16 %v159
    %v763 = vunpack.c.l.b16 %v160
    %v764 = vunpack.c.h.b16 %v160
    %v765 = vunpack.c.l.b16 %v161
    %v766 = vunpack.c.h.b16 %v161
    %v767 = vunpack.c.l.b16 %v162
    %v768 = vunpack.c.h.b16 %v162
    %v769 = vunpack.c.l.b16 %v163
    %v770 = vunpack.c.h.b16 %v163
    %v771 = vunpack.c.l.b16 %v164
    %v772 = vunpack.c.h.b16 %v164
    %v773 = vunpack.c.l.b16 %v165
    %v774 = vunpack.c.h.b16 %v165
    %v775 = vunpack.c.l.b16 %v166
    %v776 = vunpack.c.h.b16 %v166
    %v777 = vunpack.c.l.b16 %v167
    %v778 = vunpack.c.h.b16 %v167
    %v779 = vunpack.c.l.b16 %v168
    %v780 = vunpack.c.h.b16 %v168
    %v781 = vunpack.c.l.b16 %v169
    %v782 = vunpack.c.h.b16 %v169
    %v783 = vunpack.c.l.b16 %v170
    %v784 = vunpack.c.h.b16 %v170
    %v785 = vunpack.c.l.b16 %v171
    %v786 = vunpack.c.h.b16 %v171
    %v787 = vunpack.c.l.b16 %v172
    %v788 = vunpack.c.h.b16 %v172
    %v789 = vunpack.c.l.b16 %v173
    %v790 = vunpack.c.h.b16 %v173
    %v791 = vunpack.c.l.b16 %v174
    %v792 = vunpack.c.h.b16 %v174
    %v793 = vunpack.c.l.b16 %v175
    %v794 = vunpack.c.h.b16 %v175
    %v795 = vunpack.c.l.b16 %v176
    %v796 = vunpack.c.h.b16 %v176
    %v797 = vunpack.c.l.b16 %v177
    %v798 = vunpack.c.h.b16 %v177
    %v799 = vunpack.c.l.b16 %v178
    %v800 = vunpack.c.h.b16 %v178
    %v801 = vunpack.c.l.b16 %v179
    %v802 = vunpack.c.h.b16 %v179
    %v803 = vunpack.c.l.b16 %v180
    %v804 = vunpack.c.h.b16 %v180
    %v805 = vunpack.c.l.b16 %v181
    %v806 = vunpack.c.h.b16 %v181
    %v807 = vunpack.c.l.b16 %v182
    %v808 = vunpack.c.h.b16 %v182
    %v809 = vunpack.c.l.b16 %v183
    %v810 = vunpack.c.h.b16 %v183
    %v811 = vunpack.c.l.b16 %v184
    %v812 = vunpack.c.h.b16 %v184
    %v813 = vunpack.c.l.b16 %v185
    %v814 = vunpack.c.h.b16 %v185
    %v815 = vunpack.c.l.b16 %v186
    %v816 = vunpack.c.h.b16 %v186
    %v817 = vunpack.c.l.b16 %v187
    %v818 = vunpack.c.h.b16 %v187
    %v819 = vunpack.c.l.b16 %v188
    %v820 = vunpack.c.h.b16 %v188
    %v821 = vunpack.c.l.b16 %v189
    %v822 = vunpack.c.h.b16 %v189
    %v823 = vunpack.c.l.b16 %v190
    %v824 = vunpack.c.h.b16 %v190
    %v825 = vunpack.c.l.b16 %v191
    %v826 = vunpack.c.h.b16 %v191
    %v827 = vunpack.c.l.b16 %v192
    %v828 = vunpack.c.h.b16 %v192
    %v829 = vunpack.c.l.b16 %v193
    %v830 = vunpack.c.h.b16 %v193
    %v831 = vunpack.c.l.b16 %v194
    %v832 = vunpack.c.h.b16 %v194
    %v833 = vunpack.c.l.b16 %v195
    %v834 = vunpack.c.h.b16 %v195
    %v835 = vunpack.c.l.b16 %v196
    %v836 = vunpack.c.h.b16 %v196
    %v837 = vunpack.c.l.b16 %v197
    %v838 = vunpack.c.h.b16 %v197
    %v839 = vunpack.c.l.b16 %v198
    %v840 = vunpack.c.h.b16 %v198
    %v841 = vunpack.c.l.b16 %v199
    %v842 = vunpack.c.h.b16 %v199
    %v843 = vunpack.c.l.b16 %v200
    %v844 = vunpack.c.h.b16 %v200
    %v845 = vunpack.c.l.b16 %v201
    %v846 = vunpack.c.h.b16 %v201
    %v847 = vunpack.c.l.b16 %v202
    %v848 = vunpack.c.h.b16 %v202
    %v849 = vunpack.c.l.b16 %v203
    %v850 = vunpack.c.h.b16 %v203
    %v851 = vunpack.c.l.b16 %v204
    %v852 = vunpack.c.h.b16 %v204
    %v853 = vunpack.c.l.b16 %v205
    %v854 = vunpack.c.h.b16 %v205
    %v855 = vunpack.c.l.b16 %v206
    %v856 = vunpack.c.h.b16 %v206
    %v857 = vunpack.c.l.b16 %v207
    %v858 = vunpack.c.h.b16 %v207
    %v859 = vunpack.c.l.b16 %v208
    %v860 = vunpack.c.h.b16 %v208
    %v861 = vunpack.c.l.b16 %v209
    %v862 = vunpack.c.h.b16 %v209
    %v863 = vunpack.c.l.b16 %v210
    %v864 = vunpack.c.h.b16 %v210
    %v865 = vunpack.c.l.b16 %v211
    %v866 = vunpack.c.h.b16 %v211
    %v867 = vunpack.c.l.b16 %v212
    %v868 = vunpack.c.h.b16 %v212
    %v869 = vunpack.c.l.b16 %v213
    %v870 = vunpack.c.h.b16 %v213
    %v871 = vunpack.c.l.b16 %v214
    %v872 = vunpack.c.h.b16 %v214
    %v873 = vunpack.c.l.b16 %v215
    %v874 = vunpack.c.h.b16 %v215
    %v875 = vunpack.c.l.b16 %v216
    %v876 = vunpack.c.h.b16 %v216
    %v877 = vunpack.c.l.b16 %v217
    %v878 = vunpack.c.h.b16 %v217
    %v879 = vunpack.c.l.b16 %v218
    %v880 = vunpack.c.h.b16 %v218
    %v881 = vunpack.c.l.b16 %v219
    %v882 = vunpack.c.h.b16 %v219
    %v883 = vunpack.c.l.b16 %v220
    %v884 = vunpack.c.h.b16 %v220
    %v885 = vunpack.c.l.b16 %v221
    %v886 = vunpack.c.h.b16 %v221
    %v887 = vunpack.c.l.b16 %v222
    %v888 = vunpack.c.h.b16 %v222
    %v889 = vunpack.c.l.b16 %v223
    %v890 = vunpack.c.h.b16 %v223
    %v891 = vunpack.c.l.b16 %v224
    %v892 = vunpack.c.h.b16 %v224
    %v893 = vunpack.c.l.b16 %v225
    %v894 = vunpack.c.h.b16 %v225
    %v895 = vunpack.c.l.b16 %v226
    %v896 = vunpack.c.h.b16 %v226
    %v897 = vunpack.c.l.b16 %v227
    %v898 = vunpack.c.h.b16 %v227
    %v899 = vunpack.c.l.b16 %v228
    %v900 = vunpack.c.h.b16 %v228
    %v901 = vunpack.c.l.b16 %v229
    %v902 = vunpack.c.h.b16 %v229
    %v903 = vunpack.c.l.b16 %v230
    %v904 = vunpack.c.h.b16 %v230
    %v905 = vunpack.c.l.b16 %v231
    %v906 = vunpack.c.h.b16 %v231
    %v907 = vunpack.c.l.b16 %v232
    %v908 = vunpack.c.h.b16 %v232
    %v909 = vunpack.c.l.b16 %v233
    %v910 = vunpack.c.h.b16 %v233
    %v911 = vunpack.c.l.b16 %v234
    %v912 = vunpack.c.h.b16 %v234
    %v913 = vunpack.c.l.b16 %v235
    %v914 = vunpack.c.h.b16 %v235
    %v915 = vunpack.c.l.b16 %v236
    %v916 = vunpack.c.h.b16 %v236
    %v917 = vunpack.c.l.b16 %v237
    %v918 = vunpack.c.h.b16 %v237
    %v919 = vunpack.c.l.b16 %v238
    %v920 = vunpack.c.h.b16 %v238
    %v921 = vunpack.c.l.b16 %v239
    %v922 = vunpack.c.h.b16 %v239
    %v923 = vunpack.c.l.b16 %v240
    %v924 = vunpack.c.h.b16 %v240
    %v925 = vunpack.c.l.b16 %v241
    %v926 = vunpack.c.h.b16 %v241
    %v927 = vunpack.c.l.b16 %v242
    %v928 = vunpack.c.h.b16 %v242
    %v929 = vunpack.c.l.b16 %v243
    %v930 = vunpack.c.h.b16 %v243
    %v931 = vunpack.c.l.b16 %v244
    %v932 = vunpack.c.h.b16 %v244
    %v933 = vunpack.c.l.b16 %v245
    %v934 = vunpack.c.h.b16 %v245
    %v935 = vunpack.c.l.b16 %v246
    %v936 = vunpack.c.h.b16 %v246
    %v937 = vunpack.c.l.b16 %v247
    %v938 = vunpack.c.h.b16 %v247
    %v939 = vunpack.c.l.b16 %v248
    %v940 = vunpack.c.h.b16 %v248
    %v941 = vunpack.c.l.b16 %v249
    %v942 = vunpack.c.h.b16 %v249
    %v943 = vunpack.c.l.b16 %v250
    %v944 = vunpack.c.h.b16 %v250
    %v945 = vunpack.c.l.b16 %v251
    %v946 = vunpack.c.h.b16 %v251
    %v947 = vunpack.c.l.b16 %v252
    %v948 = vunpack.c.h.b16 %v252
    %v949 = vunpack.c.l.b16 %v253
    %v950 = vunpack.c.h.b16 %v253
    %v951 = vunpack.c.l.b16 %v254
    %v952 = vunpack.c.h.b16 %v254
    %v953 = vunpack.c.l.b16 %v255
    %v954 = vunpack.c.h.b16 %v255
    %v955 = vunpack.c.l.b16 %v256
    %v956 = vunpack.c.h.b16 %v256
    %v957 = vunpack.c.l.b16 %v257
    %v958 = vunpack.c.h.b16 %v257
    %v959 = vunpack.c.l.b16 %v258
    %v960 = vunpack.c.h.b16 %v258
    %v961 = vunpack.c.l.b16 %v259
    %v962 = vunpack.c.h.b16 %v259
    %v963 = vunpack.c.l.b16 %v260
    %v964 = vunpack.c.h.b16 %v260
    %v965 = vunpack.c.l.b16 %v261
    %v966 = vunpack.c.h.b16 %v261
    %v967 = vunpack.c.l.b16 %v262
    %v968 = vunpack.c.h.b16 %v262
    %v969 = vunpack.c.l.b16 %v263
    %v970 = vunpack.c.h.b16 %v263
    %v971 = vunpack.c.l.b16 %v264
    %v972 = vunpack.c.h.b16 %v264
    %v973 = vunpack.c.l.b16 %v265
    %v974 = vunpack.c.h.b16 %v265
    %v975 = vunpack.c.l.b16 %v266
    %v976 = vunpack.c.h.b16 %v266
    %v977 = vunpack.c.l.b16 %v267
    %v978 = vunpack.c.h.b16 %v267
    %v979 = vunpack.c.l.b16 %v268
    %v980 = vunpack.c.h.b16 %v268
    %v981 = vunpack.c.l.b16 %v269
    %v982 = vunpack.c.h.b16 %v269
    %v983 = vunpack.c.l.b16 %v270
    %v984 = vunpack.c.h.b16 %v270
    %v985 = vunpack.c.l.b16 %v271
    %v986 = vunpack.c.h.b16 %v271
    %v987 = vunpack.c.l.b16 %v272
    %v988 = vunpack.c.h.b16 %v272
    %v989 = vunpack.c.l.b16 %v273
    %v990 = vunpack.c.h.b16 %v273
    %v991 = vunpack.c.l.b16 %v274
    %v992 = vunpack.c.h.b16 %v274
    %v993 = vunpack.c.l.b16 %v275
    %v994 = vunpack.c.h.b16 %v275
    %v995 = vunpack.c.l.b16 %v276
    %v996 = vunpack.c.h.b16 %v276
    %v997 = vunpack.c.l.b16 %v277
    %v998 = vunpack.c.h.b16 %v277
    %v999 = vunpack.c.l.b16 %v278
    %v1000 = vunpack.c.h.b16 %v278
    %v1001 = vunpack.c.l.b16 %v279
    %v1002 = vunpack.c.h.b16 %v279
    %v1003 = vunpack.c.l.b16 %v280
    %v1004 = vunpack.c.h.b16 %v280
    %v1005 = vunpack.c.l.b16 %v281
    %v1006 = vunpack.c.h.b16 %v281
    %v1007 = vunpack.c.l.b16 %v282
    %v1008 = vunpack.c.h.b16 %v282
    %v1009 = vunpack.c.l.b16 %v283
    %v1010 = vunpack.c.h.b16 %v283
    %v1011 = vunpack.c.l.b16 %v284
    %v1012 = vunpack.c.h.b16 %v284
    %v1013 = vunpack.c.l.b16 %v285
    %v1014 = vunpack.c.h.b16 %v285
    %v1015 = vunpack.c.l.b16 %v286
    %v1016 = vunpack.c.h.b16 %v286
    %v1017 = vunpack.c.l.b16 %v287
    %v1018 = vunpack.c.h.b16 %v287
    %v1019 = vunpack.c.l.b16 %v288
    %v1020 = vunpack.c.h.b16 %v288
    %v1021 = vunpack.c.l.b16 %v289
    %v1022 = vunpack.c.h.b16 %v289
    %v1023 = vunpack.c.l.b16 %v290
    %v1024 = vunpack.c.h.b16 %v290
    %v1025 = vunpack.c.l.b16 %v291
    %v1026 = vunpack.c.h.b16 %v291
    %v1027 = vunpack.c.l.b16 %v292
    %v1028 = vunpack.c.h.b16 %v292
    %v1029 = vunpack.c.l.b16 %v293
    %v1030 = vunpack.c.h.b16 %v293
    %v1031 = vunpack.c.l.b16 %v294
    %v1032 = vunpack.c.h.b16 %v294
    %v1033 = vunpack.c.l.b16 %v295
    %v1034 = vunpack.c.h.b16 %v295
    %v1035 = vunpack.c.l.b16 %v296
    %v1036 = vunpack.c.h.b16 %v296
    %v1037 = vunpack.c.l.b16 %v297
    %v1038 = vunpack.c.h.b16 %v297
    %v1039 = vunpack.c.l.b16 %v298
    %v1040 = vunpack.c.h.b16 %v298
    %v1041 = vunpack.c.l.b16 %v299
    %v1042 = vunpack.c.h.b16 %v299
    %v1043 = vunpack.c.l.b16 %v300
    %v1044 = vunpack.c.h.b16 %v300
    %v1045 = vunpack.c.l.b16 %v301
    %v1046 = vunpack.c.h.b16 %v301
    %v1047 = vunpack.c.l.b16 %v302
    %v1048 = vunpack.c.h.b16 %v302
    %v1049 = vunpack.c.l.b16 %v303
    %v1050 = vunpack.c.h.b16 %v303
    %v1051 = vunpack.c.l.b16 %v304
    %v1052 = vunpack.c.h.b16 %v304
    %v1053 = vunpack.c.l.b16 %v305
    %v1054 = vunpack.c.h.b16 %v305
    %v1055 = vunpack.c.l.b16 %v306
    %v1056 = vunpack.c.h.b16 %v306
    %v1057 = vunpack.c.l.b16 %v307
    %v1058 = vunpack.c.h.b16 %v307
    %v1059 = vunpack.c.l.b16 %v308
    %v1060 = vunpack.c.h.b16 %v308
    %v1061 = vunpack.c.l.b16 %v309
    %v1062 = vunpack.c.h.b16 %v309
    %v1063 = vunpack.c.l.b16 %v310
    %v1064 = vunpack.c.h.b16 %v310
    %v1065 = vunpack.c.l.b16 %v311
    %v1066 = vunpack.c.h.b16 %v311
    %v1067 = vunpack.c.l.b16 %v312
    %v1068 = vunpack.c.h.b16 %v312
    %v1069 = vunpack.c.l.b16 %v313
    %v1070 = vunpack.c.h.b16 %v313
    %v1071 = vunpack.c.l.b16 %v314
    %v1072 = vunpack.c.h.b16 %v314
    %v1073 = vunpack.c.l.b16 %v315
    %v1074 = vunpack.c.h.b16 %v315
    %v1075 = vunpack.c.l.b16 %v316
    %v1076 = vunpack.c.h.b16 %v316
    %v1077 = vunpack.c.l.b16 %v317
    %v1078 = vunpack.c.h.b16 %v317
    %v1079 = vunpack.c.l.b16 %v318
    %v1080 = vunpack.c.h.b16 %v318
    %v1081 = vunpack.c.l.b16 %v319
    %v1082 = vunpack.c.h.b16 %v319
    %v1083 = vunpack.c.l.b16 %v320
    %v1084 = vunpack.c.h.b16 %v320
    %v1085 = vunpack.c.l.b16 %v321
    %v1086 = vunpack.c.h.b16 %v321
    %v1087 = vunpack.c.l.b16 %v322
    %v1088 = vunpack.c.h.b16 %v322
    %v1089 = vunpack.c.l.b16 %v323
    %v1090 = vunpack.c.h.b16 %v323
    %v1091 = vunpack.c.l.b16 %v324
    %v1092 = vunpack.c.h.b16 %v324
    %v1093 = vpack.c.b16 %v583, %v581
    %v1094 = vpack.c.b16 %v584, %v582
    %v1095 = vpack.c.b16 %v587, %v585
    %v1096 = vpack.c.b16 %v588, %v586
    %v1097 = vpack.c.b16 %v591, %v589
    %v1098 = vpack.c.b16 %v592, %v590
    %v1099 = vpack.c.b16 %v595, %v593
    %v1100 = vpack.c.b16 %v596, %v594
    %v1101 = vpack.c.b16 %v599, %v597
    %v1102 = vpack.c.b16 %v600, %v598
    %v1103 = vpack.c.b16 %v603, %v601
    %v1104 = vpack.c.b16 %v604, %v602
    %v1105 = vpack.c.b16 %v607, %v605
    %v1106 = vpack.c.b16 %v608, %v606
    %v1107 = vpack.c.b16 %v611, %v609
    %v1108 = vpack.c.b16 %v612, %v610
    %v1109 = vpack.c.b16 %v615, %v613
    %v1110 = vpack.c.b16 %v616, %v614
    %v1111 = vpack.c.b16 %v619, %v617
    %v1112 = vpack.c.b16 %v620, %v618
    %v1113 = vpack.c.b16 %v623, %v621
    %v1114 = vpack.c.b16 %v624, %v622
    %v1115 = vpack.c.b16 %v627, %v625
    %v1116 = vpack.c.b16 %v628, %v626
    %v1117 = vpack.c.b16 %v631, %v629
    %v1118 = vpack.c.b16 %v632, %v630
    %v1119 = vpack.c.b16 %v635, %v633
    %v1120 = vpack.c.b16 %v636, %v634
    %v1121 = vpack.c.b16 %v639, %v637
    %v1122 = vpack.c.b16 %v640, %v638
    %v1123 = vpack.c.b16 %v643, %v641
    %v1124 = vpack.c.b16 %v644, %v642
    %v1125 = vpack.c.b16 %v647, %v645
    %v1126 = vpack.c.b16 %v648, %v646
    %v1127 = vpack.c.b16 %v651, %v649
    %v1128 = vpack.c.b16 %v652, %v650
    %v1129 = vpack.c.b16 %v655, %v653
    %v1130 = vpack.c.b16 %v656, %v654
    %v1131 = vpack.c.b16 %v659, %v657
    %v1132 = vpack.c.b16 %v660, %v658
    %v1133 = vpack.c.b16 %v663, %v661
    %v1134 = vpack.c.b16 %v664, %v662
    %v1135 = vpack.c.b16 %v667, %v665
    %v1136 = vpack.c.b16 %v668, %v666
    %v1137 = vpack.c.b16 %v671, %v669
    %v1138 = vpack.c.b16 %v672, %v670
    %v1139 = vpack.c.b16 %v675, %v673
    %v1140 = vpack.c.b16 %v676, %v674
    %v1141 = vpack.c.b16 %v679, %v677
    %v1142 = vpack.c.b16 %v680, %v678
    %v1143 = vpack.c.b16 %v683, %v681
    %v1144 = vpack.c.b16 %v684, %v682
    %v1145 = vpack.c.b16 %v687, %v685
    %v1146 = vpack.c.b16 %v688, %v686
    %v1147 = vpack.c.b16 %v691, %v689
    %v1148 = vpack.c.b16 %v692, %v690
    %v1149 = vpack.c.b16 %v695, %v693
    %v1150 = vpack.c.b16 %v696, %v694
    %v1151 = vpack.c.b16 %v699, %v697
    %v1152 = vpack.c.b16 %v700, %v698
    %v1153 = vpack.c.b16 %v703, %v701
    %v1154 = vpack.c.b16 %v704, %v702
    %v1155 = vpack.c.b16 %v707, %v705
    %v1156 = vpack.c.b16 %v708, %v706
    %v1157 = vpack.c.b16 %v711, %v709
    %v1158 = vpack.c.b16 %v712, %v710
    %v1159 = vpack.c.b16 %v715, %v713
    %v1160 = vpack.c.b16 %v716, %v714
    %v1161 = vpack.c.b16 %v719, %v717
    %v1162 = vpack.c.b16 %v720, %v718
    %v1163 = vpack.c.b16 %v723, %v721
    %v1164 = vpack.c.b16 %v724, %v722
    %v1165 = vpack.c.b16 %v727, %v725
    %v1166 = vpack.c.b16 %v728, %v726
    %v1167 = vpack.c.b16 %v731, %v729
    %v1168 = vpack.c.b16 %v732, %v730
    %v1169 = vpack.c.b16 %v735, %v733
    %v1170 = vpack.c.b16 %v736, %v734
    %v1171 = vpack.c.b16 %v739, %v737
    %v1172 = vpack.c.b16 %v740, %v738
    %v1173 = vpack.c.b16 %v743, %v741
    %v1174 = vpack.c.b16 %v744, %v742
    %v1175 = vpack.c.b16 %v747, %v745
    %v1176 = vpack.c.b16 %v748, %v746
    %v1177 = vpack.c.b16 %v751, %v749
    %v1178 = vpack.c.b16 %v752, %v750
    %v1179 = vpack.c.b16 %v755, %v753
    %v1180 = vpack.c.b16 %v756, %v754
    %v1181 = vpack.c.b16 %v759, %v757
    %v1182 = vpack.c.b16 %v760, %v758
    %v1183 = vpack.c.b16 %v763, %v761
    %v1184 = vpack.c.b16 %v764, %v762
    %v1185 = vpack.c.b16 %v767, %v765
    %v1186 = vpack.c.b16 %v768, %v766
    %v1187 = vpack.c.b16 %v771, %v769
    %v1188 = vpack.c.b16 %v772, %v770
    %v1189 = vpack.c.b16 %v775, %v773
    %v1190 = vpack.c.b16 %v776, %v774
    %v1191 = vpack.c.b16 %v779, %v777
    %v1192 = vpack.c.b16 %v780, %v778
    %v1193 = vpack.c.b16 %v783, %v781
    %v1194 = vpack.c.b16 %v784, %v782
    %v1195 = vpack.c.b16 %v787, %v785
    %v1196 = vpack.c.b16 %v788, %v786
    %v1197 = vpack.c.b16 %v791, %v789
    %v1198 = vpack.c.b16 %v792, %v790
    %v1199 = vpack.c.b16 %v795, %v793
    %v1200 = vpack.c.b16 %v796, %v794
    %v1201 = vpack.c.b16 %v799, %v797
    %v1202 = vpack.c.b16 %v800, %v798
    %v1203 = vpack.c.b16 %v803, %v801
    %v1204 = vpack.c.b16 %v804, %v802
    %v1205 = vpack.c.b16 %v807, %v805
    %v1206 = vpack.c.b16 %v808, %v806
    %v1207 = vpack.c.b16 %v811, %v809
    %v1208 = vpack.c.b16 %v812, %v810
    %v1209 = vpack.c.b16 %v815, %v813
    %v1210 = vpack.c.b16 %v816, %v814
    %v1211 = vpack.c.b16 %v819, %v817
    %v1212 = vpack.c.b16 %v820, %v818
    %v1213 = vpack.c.b16 %v823, %v821
    %v1214 = vpack.c.b16 %v824, %v822
    %v1215 = vpack.c.b16 %v827, %v825
    %v1216 = vpack.c.b16 %v828, %v826
    %v1217 = vpack.c.b16 %v831, %v829
    %v1218 = vpack.c.b16 %v832, %v830
    %v1219 = vpack.c.b16 %v835, %v833
    %v1220 = vpack.c.b16 %v836, %v834
    %v1221 = vpack.c.b16 %v839, %v837
    %v1222 = vpack.c.b16 %v840, %v838
    %v1223 = vpack.c.b16 %v843, %v841
    %v1224 = vpack.c.b16 %v844, %v842
    %v1225 = vpack.c.b16 %v847, %v845
    %v1226 = vpack.c.b16 %v848, %v846
    %v1227 = vpack.c.b16 %v851, %v849
    %v1228 = vpack.c.b16 %v852, %v850
    %v1229 = vpack.c.b16 %v855, %v853
    %v1230 = vpack.c.b16 %v856, %v854
    %v1231 = vpack.c.b16 %v859, %v857
    %v1232 = vpack.c.b16 %v860, %v858
    %v1233 = vpack.c.b16 %v863, %v861
    %v1234 = vpack.c.b16 %v864, %v862
    %v1235 = vpack.c.b16 %v867, %v865
    %v1236 = vpack.c.b16 %v868, %v866
    %v1237 = vpack.c.b16 %v871, %v869
    %v1238 = vpack.c.b16 %v872, %v870
    %v1239 = vpack.c.b16 %v875, %v873
    %v1240 = vpack.c.b16 %v876, %v874
    %v1241 = vpack.c.b16 %v879, %v877
    %v1242 = vpack.c.b16 %v880, %v878
    %v1243 = vpack.c.b16 %v883, %v881
    %v1244 = vpack.c.b16 %v884, %v882
    %v1245 = vpack.c.b16 %v887, %v885
    %v1246 = vpack.c.b16 %v888, %v886
    %v1247 = vpack.c.b16 %v891, %v889
    %v1248 = vpack.c.b16 %v892, %v890
    %v1249 = vpack.c.b16 %v895, %v893
    %v1250 = vpack.c.b16 %v896, %v894
    %v1251 = vpack.c.b16 %v899, %v897
    %v1252 = vpack.c.b16 %v900, %v898
    %v1253 = vpack.c.b16 %v903, %v901
    %v1254 = vpack.c.b16 %v904, %v902
    %v1255 = vpack.c.b16 %v907, %v905
    %v1256 = vpack.c.b16 %v908, %v906
    %v1257 = vpack.c.b16 %v911, %v909
    %v1258 = vpack.c.b16 %v912, %v910
    %v1259 = vpack.c.b16 %v915, %v913
    %v1260 = vpack.c.b16 %v916, %v914
    %v1261 = vpack.c.b16 %v919, %v917
    %v1262 = vpack.c.b16 %v920, %v918
    %v1263 = vpack.c.b16 %v923, %v921
    %v1264 = vpack.c.b16 %v924, %v922
    %v1265 = vpack.c.b16 %v927, %v925
    %v1266 = vpack.c.b16 %v928, %v926
    %v1267 = vpack.c.b16 %v931, %v929
    %v1268 = vpack.c.b16 %v932, %v930
    %v1269 = vpack.c.b16 %v935, %v933
    %v1270 = vpack.c.b16 %v936, %v934
    %v1271 = vpack.c.b16 %v939, %v937
    %v1272 = vpack.c.b16 %v940, %v938
    %v1273 = vpack.c.b16 %v943, %v941
    %v1274 = vpack.c.b16 %v944, %v942
    %v1275 = vpack.c.b16 %v947, %v945
    %v1276 = vpack.c.b16 %v948, %v946
    %v1277 = vpack.c.b16 %v951, %v949
    %v1278 = vpack.c.b16 %v952, %v950
    %v1279 = vpack.c.b16 %v955, %v953
    %v1280 = vpack.c.b16 %v956, %v954
    %v1281 = vpack.c.b16 %v959, %v957
    %v1282 = vpack.c.b16 %v960, %v958
    %v1283 = vpack.c.b16 %v963, %v961
    %v1284 = vpack.c.b16 %v964, %v962
    %v1285 = vpack.c.b16 %v967, %v965
    %v1286 = vpack.c.b16 %v968, %v966
    %v1287 = vpack.c.b16 %v971, %v969
    %v1288 = vpack.c.b16 %v972, %v970
    %v1289 = vpack.c.b16 %v975, %v973
    %v1290 = vpack.c.b16 %v976, %v974
    %v1291 = vpack.c.b16 %v979, %v977
    %v1292 = vpack.c.b16 %v980, %v978
    %v1293 = vpack.c.b16 %v983, %v981
    %v1294 = vpack.c.b16 %v984, %v982
    %v1295 = vpack.c.b16 %v987, %v985
    %v1296 = vpack.c.b16 %v988, %v986
    %v1297 = vpack.c.b16 %v991, %v989
    %v1298 = vpack.c.b16 %v992, %v990
    %v1299 = vpack.c.b16 %v995, %v993
    %v1300 = vpack.c.b16 %v996, %v994
    %v1301 = vpack.c.b16 %v999, %v997
    %v1302 = vpack.c.b16 %v1000, %v998
    %v1303 = vpack.c.b16 %v1003, %v1001
    %v1304 = vpack.c.b16 %v1004, %v1002
    %v1305 = vpack.c.b16 %v1007, %v1005
    %v1306 = vpack.c.b16 %v1008, %v1006
    %v1307 = vpack.c.b16 %v1011, %v1009
    %v1308 = vpack.c.b16 %v1012, %v1010
    %v1309 = vpack.c.b16 %v1015, %v1013
    %v1310 = vpack.c.b16 %v1016, %v1014
    %v1311 = vpack.c.b16 %v1019, %v1017
    %v1312 = vpack.c.b16 %v1020, %v1018
    %v1313 = vpack.c.b16 %v1023, %v1021
    %v1314 = vpack.c.b16 %v1024, %v1022
    %v1315 = vpack.c.b16 %v1027, %v1025
    %v1316 = vpack.c.b16 %v1028, %v1026
    %v1317 = vpack.c.b16 %v1031, %v1029
    %v1318 = vpack.c.b16 %v1032, %v1030
    %v1319 = vpack.c.b16 %v1035, %v1033
    %v1320 = vpack.c.b16 %v1036, %v1034
    %v1321 = vpack.c.b16 %v1039, %v1037
    %v1322 = vpack.c.b16 %v1040, %v1038
    %v1323 = vpack.c.b16 %v1043, %v1041
    %v1324 = vpack.c.b16 %v1044, %v1042
    %v1325 = vpack.c.b16 %v1047, %v1045
    %v1326 = vpack.c.b16 %v1048, %v1046
    %v1327 = vpack.c.b16 %v1051, %v1049
    %v1328 = vpack.c.b16 %v1052, %v1050
    %v1329 = vpack.c.b16 %v1055, %v1053
    %v1330 = vpack.c.b16 %v1056, %v1054
    %v1331 = vpack.c.b16 %v1059, %v1057
    %v1332 = vpack.c.b16 %v1060, %v1058
    %v1333 = vpack.c.b16 %v1063, %v1061
    %v1334 = vpack.c.b16 %v1064, %v1062
    %v1335 = vpack.c.b16 %v1067, %v1065
    %v1336 = vpack.c.b16 %v1068, %v1066
    %v1337 = vpack.c.b16 %v1071, %v1069
    %v1338 = vpack.c.b16 %v1072, %v1070
    %v1339 = vpack.c.b16 %v1075, %v1073
    %v1340 = vpack.c.b16 %v1076, %v1074
    %v1341 = vpack.c.b16 %v1079, %v1077
    %v1342 = vpack.c.b16 %v1080, %v1078
    %v1343 = vpack.c.b16 %v1083, %v1081
    %v1344 = vpack.c.b16 %v1084, %v1082
    %v1345 = vpack.c.b16 %v1087, %v1085
    %v1346 = vpack.c.b16 %v1088, %v1086
    %v1347 = vpack.c.b16 %v1091, %v1089
    %v1348 = vpack.c.b16 %v1092, %v1090
    %v1501 = vunpack.c.l.b16 %v45
    %v1502 = vunpack.c.l.b16 %v46
    %v1503 = vunpack.c.l.b16 %v47
    %v1504 = vunpack.c.l.b16 %v48
    %v1505 = vunpack.c.l.b16 %v49
    %v1506 = vunpack.c.l.b16 %v50
    %v1507 = vunpack.c.l.b16 %v51
    %v1508 = vunpack.c.l.b16 %v52
    %v1509 = vunpack.c.l.b16 %v53
    %v1510 = vunpack.c.l.b16 %v54
    %v1511 = vunpack.c.l.b16 %v55
    %v1512 = vunpack.c.l.b16 %v56
    %v1513 = vunpack.c.l.b16 %v57
    %v1514 = vunpack.c.l.b16 %v58
    %v1515 = vunpack.c.l.b16 %v59
    %v1516 = vunpack.c.l.b16 %v60
    %v1517 = vunpack.c.l.b16 %v61
    %v1518 = vunpack.c.l.b16 %v62
    %v1519 = vunpack.c.l.b16 %v63
    %v1520 = vunpack.c.l.b16 %v64
    %v1521 = vunpack.c.l.b16 %v65
    %v1522 = vunpack.c.l.b16 %v66
    %v1523 = vunpack.c.l.b16 %v67
    %v1524 = vunpack.c.l.b16 %v68
    %v1525 = vpack.c.b16 %v1502, %v1501
    %v1526 = vpack.c.b16 %v1504, %v1503
    %v1527 = vpack.c.b16 %v1506, %v1505
    %v1528 = vpack.c.b16 %v1508, %v1507
    %v1529 = vpack.c.b16 %v1510, %v1509
    %v1530 = vpack.c.b16 %v1512, %v1511
    %v1531 = vpack.c.b16 %v1514, %v1513
    %v1532 = vpack.c.b16 %v1516, %v1515
    %v1533 = vpack.c.b16 %v1518, %v1517
    %v1534 = vpack.c.b16 %v1520, %v1519
    %v1535 = vpack.c.b16 %v1522, %v1521
    %v1536 = vpack.c.b16 %v1524, %v1523
    %vm1549 = vcmask 523264
    %v1551 = vsel %vm1549, %v1094, 0
    %v1554 = vsel %vm1549, %v1096, 0
    %v1557 = vsel %vm1549, %v1098, 0
    %v1560 = vsel %vm1549, %v1100, 0
    %v1563 = vsel %vm1549, %v1102, 0
    %v1566 = vsel %vm1549, %v1104, 0
    %v1569 = vsel %vm1549, %v1106, 0
    %v1572 = vsel %vm1549, %v1108, 0
    %v1575 = vsel %vm1549, %v1110, 0
    %v1578 = vsel %vm1549, %v1112, 0
    %v1581 = vsel %vm1549, %v1114, 0
    %v1584 = vsel %vm1549, %v1116, 0
    %v1587 = vsel %vm1549, %v1118, 0
    %v1590 = vsel %vm1549, %v1120, 0
    %v1593 = vsel %vm1549, %v1122, 0
    %v1596 = vsel %vm1549, %v1124, 0
    %v1599 = vsel %vm1549, %v1126, 0
    %v1602 = vsel %vm1549, %v1128, 0
    %v1605 = vsel %vm1549, %v1130, 0
    %v1608 = vsel %vm1549, %v1132, 0
    %v1611 = vsel %vm1549, %v1134, 0
    %v1614 = vsel %vm1549, %v1136, 0
    %v1617 = vsel %vm1549, %v1138, 0
    %v1620 = vsel %vm1549, %v1140, 0
    %v1623 = vsel %vm1549, %v1142, 0
    %v1626 = vsel %vm1549, %v1144, 0
    %v1629 = vsel %vm1549, %v1146, 0
    %v1632 = vsel %vm1549, %v1148, 0
    %v1635 = vsel %vm1549, %v1150, 0
    %v1638 = vsel %vm1549, %v1152, 0
    %v1641 = vsel %vm1549, %v1154, 0
    %v1644 = vsel %vm1549, %v1156, 0
    %v1647 = vsel %vm1549, %v1158, 0
    %v1650 = vsel %vm1549, %v1160, 0
    %v1653 = vsel %vm1549, %v1162, 0
    %v1656 = vsel %vm1549, %v1164, 0
    %v1659 = vsel %vm1549, %v1166, 0
    %v1662 = vsel %vm1549, %v1168, 0
    %v1665 = vsel %vm1549, %v1170, 0
    %v1668 = vsel %vm1549, %v1172, 0
    %v1671 = vsel %vm1549, %v1174, 0
    %v1674 = vsel %vm1549, %v1176, 0
    %v1677 = vsel %vm1549, %v1178, 0
    %v1680 = vsel %vm1549, %v1180, 0
    %v1683 = vsel %vm1549, %v1182, 0
    %v1686 = vsel %vm1549, %v1184, 0
    %v1689 = vsel %vm1549, %v1186, 0
    %v1692 = vsel %vm1549, %v1188, 0
    %v1695 = vsel %vm1549, %v1190, 0
    %v1698 = vsel %vm1549, %v1192, 0
    %v1701 = vsel %vm1549, %v1194, 0
    %v1704 = vsel %vm1549, %v1196, 0
    %v1707 = vsel %vm1549, %v1198, 0
    %v1710 = vsel %vm1549, %v1200, 0
    %v1713 = vsel %vm1549, %v1202, 0
    %v1716 = vsel %vm1549, %v1204, 0
    %v1719 = vsel %vm1549, %v1206, 0
    %v1722 = vsel %vm1549, %v1208, 0
    %v1725 = vsel %vm1549, %v1210, 0
    %v1728 = vsel %vm1549, %v1212, 0
    %v1731 = vsel %vm1549, %v1214, 0
    %v1734 = vsel %vm1549, %v1216, 0
    %v1737 = vsel %vm1549, %v1218, 0
    %v1740 = vsel %vm1549, %v1220, 0
    %v1743 = vsel %vm1549, %v1222, 0
    %v1746 = vsel %vm1549, %v1224, 0
    %v1749 = vsel %vm1549, %v1226, 0
    %v1752 = vsel %vm1549, %v1228, 0
    %v1755 = vsel %vm1549, %v1230, 0
    %v1758 = vsel %vm1549, %v1232, 0
    %v1761 = vsel %vm1549, %v1234, 0
    %v1764 = vsel %vm1549, %v1236, 0
    %v1767 = vsel %vm1549, %v1238, 0
    %v1770 = vsel %vm1549, %v1240, 0
    %v1773 = vsel %vm1549, %v1242, 0
    %v1776 = vsel %vm1549, %v1244, 0
    %v1779 = vsel %vm1549, %v1246, 0
    %v1782 = vsel %vm1549, %v1248, 0
    %v1785 = vsel %vm1549, %v1250, 0
    %v1788 = vsel %vm1549, %v1252, 0
    %v1791 = vsel %vm1549, %v1254, 0
    %v1794 = vsel %vm1549, %v1256, 0
    %v1797 = vsel %vm1549, %v1258, 0
    %v1800 = vsel %vm1549, %v1260, 0
    %v1803 = vsel %vm1549, %v1262, 0
    %v1806 = vsel %vm1549, %v1264, 0
    %v1809 = vsel %vm1549, %v1266, 0
    %v1812 = vsel %vm1549, %v1268, 0
    %v1815 = vsel %vm1549, %v1270, 0
    %v1818 = vsel %vm1549, %v1272, 0
    %v1821 = vsel %vm1549, %v1274, 0
    %v1824 = vsel %vm1549, %v1276, 0
    %v1827 = vsel %vm1549, %v1278, 0
    %v1830 = vsel %vm1549, %v1280, 0
    %v1833 = vsel %vm1549, %v1282, 0
    %v1836 = vsel %vm1549, %v1284, 0
    %v1839 = vsel %vm1549, %v1286, 0
    %v1842 = vsel %vm1549, %v1288, 0
    %v1845 = vsel %vm1549, %v1290, 0
    %v1848 = vsel %vm1549, %v1292, 0
    %v1851 = vsel %vm1549, %v1294, 0
    %v1854 = vsel %vm1549, %v1296, 0
    %v1857 = vsel %vm1549, %v1298, 0
    %v1860 = vsel %vm1549, %v1300, 0
    %v1863 = vsel %vm1549, %v1302, 0
    %v1866 = vsel %vm1549, %v1304, 0
    %v1869 = vsel %vm1549, %v1306, 0
    %v1872 = vsel %vm1549, %v1308, 0
    %v1875 = vsel %vm1549, %v1310, 0
    %v1878 = vsel %vm1549, %v1312, 0
    %v1881 = vsel %vm1549, %v1314, 0
    %v1884 = vsel %vm1549, %v1316, 0
    %v1887 = vsel %vm1549, %v1318, 0
    %v1890 = vsel %vm1549, %v1320, 0
    %v1893 = vsel %vm1549, %v1322, 0
    %v1896 = vsel %vm1549, %v1324, 0
    %v1899 = vsel %vm1549, %v1326, 0
    %v1902 = vsel %vm1549, %v1328, 0
    %v1905 = vsel %vm1549, %v1330, 0
    %v1908 = vsel %vm1549, %v1332, 0
    %v1911 = vsel %vm1549, %v1334, 0
    %v1914 = vsel %vm1549, %v1336, 0
    %v1917 = vsel %vm1549, %v1338, 0
    %v1920 = vsel %vm1549, %v1340, 0
    %v1923 = vsel %vm1549, %v1342, 0
    %v1926 = vsel %vm1549, %v1344, 0
    %v1929 = vsel %vm1549, %v1346, 0
    %v1932 = vsel %vm1549, %v1348, 0
    %1934 = vmatpush.bf16.msra.mxu0 %v1532
    %1935 = vmatpush.bf16.msra.mxu0 %v1531
    %1936 = vmatpush.bf16.msra.mxu0 %v1530
    %1937 = vmatpush.bf16.msra.mxu0 %v1529
    %1938 = vmatpush.bf16.msra.mxu0 %v1528
    %1939 = vmatpush.bf16.msra.mxu0 %v1527
    %1940 = vmatpush.bf16.msra.mxu0 %v1526
    %1941 = vmatpush.bf16.msra.mxu0 %v1525
    %1942 = vmatmul.bf16.gmra.mxu0 %v1093
    %v1943 = vpop.f32.mrf.mxu0
    %v1944 = vadd.f32 0.0, %v1943
    %v1945 = vpop.f32.mrf.mxu0
    %v1946 = vadd.f32 0.0, %v1945
    %1947 = vmatmul.bf16.gmra.mxu0 %v1095
    %v1948 = vpop.f32.mrf.mxu0
    %v1949 = vadd.f32 0.0, %v1948
    %v1950 = vpop.f32.mrf.mxu0
    %v1951 = vadd.f32 0.0, %v1950
    %1952 = vmatmul.bf16.gmra.mxu0 %v1097
    %v1953 = vpop.f32.mrf.mxu0
    %v1954 = vadd.f32 0.0, %v1953
    %v1955 = vpop.f32.mrf.mxu0
    %v1956 = vadd.f32 0.0, %v1955
    %1957 = vmatmul.bf16.gmra.mxu0 %v1099
    %v1958 = vpop.f32.mrf.mxu0
    %v1959 = vadd.f32 0.0, %v1958
    %v1960 = vpop.f32.mrf.mxu0
    %v1961 = vadd.f32 0.0, %v1960
    %1962 = vmatmul.bf16.gmra.mxu0 %v1101
    %v1963 = vpop.f32.mrf.mxu0
    %v1964 = vadd.f32 0.0, %v1963
    %v1965 = vpop.f32.mrf.mxu0
    %v1966 = vadd.f32 0.0, %v1965
    %1967 = vmatmul.bf16.gmra.mxu0 %v1103
    %v1968 = vpop.f32.mrf.mxu0
    %v1969 = vadd.f32 0.0, %v1968
    %v1970 = vpop.f32.mrf.mxu0
    %v1971 = vadd.f32 0.0, %v1970
    %1972 = vmatmul.bf16.gmra.mxu0 %v1105
    %v1973 = vpop.f32.mrf.mxu0
    %v1974 = vadd.f32 0.0, %v1973
    %v1975 = vpop.f32.mrf.mxu0
    %v1976 = vadd.f32 0.0, %v1975
    %1977 = vmatmul.bf16.gmra.mxu0 %v1107
    %v1978 = vpop.f32.mrf.mxu0
    %v1979 = vadd.f32 0.0, %v1978
    %v1980 = vpop.f32.mrf.mxu0
    %v1981 = vadd.f32 0.0, %v1980
    %1982 = vmatmul.bf16.gmra.mxu0 %v1109
    %v1983 = vpop.f32.mrf.mxu0
    %v1984 = vadd.f32 0.0, %v1983
    %v1985 = vpop.f32.mrf.mxu0
    %v1986 = vadd.f32 0.0, %v1985
    %1987 = vmatmul.bf16.gmra.mxu0 %v1111
    %v1988 = vpop.f32.mrf.mxu0
    %v1989 = vadd.f32 0.0, %v1988
    %v1990 = vpop.f32.mrf.mxu0
    %v1991 = vadd.f32 0.0, %v1990
    %1992 = vmatmul.bf16.gmra.mxu0 %v1113
    %v1993 = vpop.f32.mrf.mxu0
    %v1994 = vadd.f32 0.0, %v1993
    %v1995 = vpop.f32.mrf.mxu0
    %v1996 = vadd.f32 0.0, %v1995
    %1997 = vmatmul.bf16.gmra.mxu0 %v1115
    %v1998 = vpop.f32.mrf.mxu0
    %v1999 = vadd.f32 0.0, %v1998
    %v2000 = vpop.f32.mrf.mxu0
    %v2001 = vadd.f32 0.0, %v2000
    %2002 = vmatmul.bf16.gmra.mxu0 %v1117
    %v2003 = vpop.f32.mrf.mxu0
    %v2004 = vadd.f32 0.0, %v2003
    %v2005 = vpop.f32.mrf.mxu0
    %v2006 = vadd.f32 0.0, %v2005
    %2007 = vmatmul.bf16.gmra.mxu0 %v1119
    %v2008 = vpop.f32.mrf.mxu0
    %v2009 = vadd.f32 0.0, %v2008
    %v2010 = vpop.f32.mrf.mxu0
    %v2011 = vadd.f32 0.0, %v2010
    %2012 = vmatmul.bf16.gmra.mxu0 %v1121
    %v2013 = vpop.f32.mrf.mxu0
    %v2014 = vadd.f32 0.0, %v2013
    %v2015 = vpop.f32.mrf.mxu0
    %v2016 = vadd.f32 0.0, %v2015
    %2017 = vmatmul.bf16.gmra.mxu0 %v1123
    %v2018 = vpop.f32.mrf.mxu0
    %v2019 = vadd.f32 0.0, %v2018
    %v2020 = vpop.f32.mrf.mxu0
    %v2021 = vadd.f32 0.0, %v2020
    %2022 = vmatmul.bf16.gmra.mxu0 %v1125
    %v2023 = vpop.f32.mrf.mxu0
    %v2024 = vadd.f32 0.0, %v2023
    %v2025 = vpop.f32.mrf.mxu0
    %v2026 = vadd.f32 0.0, %v2025
    %2027 = vmatmul.bf16.gmra.mxu0 %v1127
    %v2028 = vpop.f32.mrf.mxu0
    %v2029 = vadd.f32 0.0, %v2028
    %v2030 = vpop.f32.mrf.mxu0
    %v2031 = vadd.f32 0.0, %v2030
    %2032 = vmatmul.bf16.gmra.mxu0 %v1129
    %v2033 = vpop.f32.mrf.mxu0
    %v2034 = vadd.f32 0.0, %v2033
    %v2035 = vpop.f32.mrf.mxu0
    %v2036 = vadd.f32 0.0, %v2035
    %2037 = vmatmul.bf16.gmra.mxu0 %v1131
    %v2038 = vpop.f32.mrf.mxu0
    %v2039 = vadd.f32 0.0, %v2038
    %v2040 = vpop.f32.mrf.mxu0
    %v2041 = vadd.f32 0.0, %v2040
    %2042 = vmatmul.bf16.gmra.mxu0 %v1133
    %v2043 = vpop.f32.mrf.mxu0
    %v2044 = vadd.f32 0.0, %v2043
    %v2045 = vpop.f32.mrf.mxu0
    %v2046 = vadd.f32 0.0, %v2045
    %2047 = vmatmul.bf16.gmra.mxu0 %v1135
    %v2048 = vpop.f32.mrf.mxu0
    %v2049 = vadd.f32 0.0, %v2048
    %v2050 = vpop.f32.mrf.mxu0
    %v2051 = vadd.f32 0.0, %v2050
    %2052 = vmatmul.bf16.gmra.mxu0 %v1137
    %v2053 = vpop.f32.mrf.mxu0
    %v2054 = vadd.f32 0.0, %v2053
    %v2055 = vpop.f32.mrf.mxu0
    %v2056 = vadd.f32 0.0, %v2055
    %2057 = vmatmul.bf16.gmra.mxu0 %v1139
    %v2058 = vpop.f32.mrf.mxu0
    %v2059 = vadd.f32 0.0, %v2058
    %v2060 = vpop.f32.mrf.mxu0
    %v2061 = vadd.f32 0.0, %v2060
    %2062 = vmatmul.bf16.gmra.mxu0 %v1141
    %v2063 = vpop.f32.mrf.mxu0
    %v2064 = vadd.f32 0.0, %v2063
    %v2065 = vpop.f32.mrf.mxu0
    %v2066 = vadd.f32 0.0, %v2065
    %2067 = vmatmul.bf16.gmra.mxu0 %v1143
    %v2068 = vpop.f32.mrf.mxu0
    %v2069 = vadd.f32 0.0, %v2068
    %v2070 = vpop.f32.mrf.mxu0
    %v2071 = vadd.f32 0.0, %v2070
    %2072 = vmatmul.bf16.gmra.mxu0 %v1145
    %v2073 = vpop.f32.mrf.mxu0
    %v2074 = vadd.f32 0.0, %v2073
    %v2075 = vpop.f32.mrf.mxu0
    %v2076 = vadd.f32 0.0, %v2075
    %2077 = vmatmul.bf16.gmra.mxu0 %v1147
    %v2078 = vpop.f32.mrf.mxu0
    %v2079 = vadd.f32 0.0, %v2078
    %v2080 = vpop.f32.mrf.mxu0
    %v2081 = vadd.f32 0.0, %v2080
    %2082 = vmatmul.bf16.gmra.mxu0 %v1149
    %v2083 = vpop.f32.mrf.mxu0
    %v2084 = vadd.f32 0.0, %v2083
    %v2085 = vpop.f32.mrf.mxu0
    %v2086 = vadd.f32 0.0, %v2085
    %2087 = vmatmul.bf16.gmra.mxu0 %v1151
    %v2088 = vpop.f32.mrf.mxu0
    %v2089 = vadd.f32 0.0, %v2088
    %v2090 = vpop.f32.mrf.mxu0
    %v2091 = vadd.f32 0.0, %v2090
    %2092 = vmatmul.bf16.gmra.mxu0 %v1153
    %v2093 = vpop.f32.mrf.mxu0
    %v2094 = vadd.f32 0.0, %v2093
    %v2095 = vpop.f32.mrf.mxu0
    %v2096 = vadd.f32 0.0, %v2095
    %2097 = vmatmul.bf16.gmra.mxu0 %v1155
    %v2098 = vpop.f32.mrf.mxu0
    %v2099 = vadd.f32 0.0, %v2098
    %v2100 = vpop.f32.mrf.mxu0
    %v2101 = vadd.f32 0.0, %v2100
    %2102 = vmatmul.bf16.gmra.mxu0 %v1157
    %v2103 = vpop.f32.mrf.mxu0
    %v2104 = vadd.f32 0.0, %v2103
    %v2105 = vpop.f32.mrf.mxu0
    %v2106 = vadd.f32 0.0, %v2105
    %2107 = vmatmul.bf16.gmra.mxu0 %v1159
    %v2108 = vpop.f32.mrf.mxu0
    %v2109 = vadd.f32 0.0, %v2108
    %v2110 = vpop.f32.mrf.mxu0
    %v2111 = vadd.f32 0.0, %v2110
    %2112 = vmatmul.bf16.gmra.mxu0 %v1161
    %v2113 = vpop.f32.mrf.mxu0
    %v2114 = vadd.f32 0.0, %v2113
    %v2115 = vpop.f32.mrf.mxu0
    %v2116 = vadd.f32 0.0, %v2115
    %2117 = vmatmul.bf16.gmra.mxu0 %v1163
    %v2118 = vpop.f32.mrf.mxu0
    %v2119 = vadd.f32 0.0, %v2118
    %v2120 = vpop.f32.mrf.mxu0
    %v2121 = vadd.f32 0.0, %v2120
    %2122 = vmatmul.bf16.gmra.mxu0 %v1165
    %v2123 = vpop.f32.mrf.mxu0
    %v2124 = vadd.f32 0.0, %v2123
    %v2125 = vpop.f32.mrf.mxu0
    %v2126 = vadd.f32 0.0, %v2125
    %2127 = vmatmul.bf16.gmra.mxu0 %v1167
    %v2128 = vpop.f32.mrf.mxu0
    %v2129 = vadd.f32 0.0, %v2128
    %v2130 = vpop.f32.mrf.mxu0
    %v2131 = vadd.f32 0.0, %v2130
    %2132 = vmatmul.bf16.gmra.mxu0 %v1169
    %v2133 = vpop.f32.mrf.mxu0
    %v2134 = vadd.f32 0.0, %v2133
    %v2135 = vpop.f32.mrf.mxu0
    %v2136 = vadd.f32 0.0, %v2135
    %2137 = vmatmul.bf16.gmra.mxu0 %v1171
    %v2138 = vpop.f32.mrf.mxu0
    %v2139 = vadd.f32 0.0, %v2138
    %v2140 = vpop.f32.mrf.mxu0
    %v2141 = vadd.f32 0.0, %v2140
    %2142 = vmatmul.bf16.gmra.mxu0 %v1173
    %v2143 = vpop.f32.mrf.mxu0
    %v2144 = vadd.f32 0.0, %v2143
    %v2145 = vpop.f32.mrf.mxu0
    %v2146 = vadd.f32 0.0, %v2145
    %2147 = vmatmul.bf16.gmra.mxu0 %v1175
    %v2148 = vpop.f32.mrf.mxu0
    %v2149 = vadd.f32 0.0, %v2148
    %v2150 = vpop.f32.mrf.mxu0
    %v2151 = vadd.f32 0.0, %v2150
    %2152 = vmatmul.bf16.gmra.mxu0 %v1177
    %v2153 = vpop.f32.mrf.mxu0
    %v2154 = vadd.f32 0.0, %v2153
    %v2155 = vpop.f32.mrf.mxu0
    %v2156 = vadd.f32 0.0, %v2155
    %2157 = vmatmul.bf16.gmra.mxu0 %v1179
    %v2158 = vpop.f32.mrf.mxu0
    %v2159 = vadd.f32 0.0, %v2158
    %v2160 = vpop.f32.mrf.mxu0
    %v2161 = vadd.f32 0.0, %v2160
    %2162 = vmatmul.bf16.gmra.mxu0 %v1181
    %v2163 = vpop.f32.mrf.mxu0
    %v2164 = vadd.f32 0.0, %v2163
    %v2165 = vpop.f32.mrf.mxu0
    %v2166 = vadd.f32 0.0, %v2165
    %2167 = vmatmul.bf16.gmra.mxu0 %v1183
    %v2168 = vpop.f32.mrf.mxu0
    %v2169 = vadd.f32 0.0, %v2168
    %v2170 = vpop.f32.mrf.mxu0
    %v2171 = vadd.f32 0.0, %v2170
    %2172 = vmatmul.bf16.gmra.mxu0 %v1185
    %v2173 = vpop.f32.mrf.mxu0
    %v2174 = vadd.f32 0.0, %v2173
    %v2175 = vpop.f32.mrf.mxu0
    %v2176 = vadd.f32 0.0, %v2175
    %2177 = vmatmul.bf16.gmra.mxu0 %v1187
    %v2178 = vpop.f32.mrf.mxu0
    %v2179 = vadd.f32 0.0, %v2178
    %v2180 = vpop.f32.mrf.mxu0
    %v2181 = vadd.f32 0.0, %v2180
    %2182 = vmatmul.bf16.gmra.mxu0 %v1189
    %v2183 = vpop.f32.mrf.mxu0
    %v2184 = vadd.f32 0.0, %v2183
    %v2185 = vpop.f32.mrf.mxu0
    %v2186 = vadd.f32 0.0, %v2185
    %2187 = vmatmul.bf16.gmra.mxu0 %v1191
    %v2188 = vpop.f32.mrf.mxu0
    %v2189 = vadd.f32 0.0, %v2188
    %v2190 = vpop.f32.mrf.mxu0
    %v2191 = vadd.f32 0.0, %v2190
    %2192 = vmatmul.bf16.gmra.mxu0 %v1193
    %v2193 = vpop.f32.mrf.mxu0
    %v2194 = vadd.f32 0.0, %v2193
    %v2195 = vpop.f32.mrf.mxu0
    %v2196 = vadd.f32 0.0, %v2195
    %2197 = vmatmul.bf16.gmra.mxu0 %v1195
    %v2198 = vpop.f32.mrf.mxu0
    %v2199 = vadd.f32 0.0, %v2198
    %v2200 = vpop.f32.mrf.mxu0
    %v2201 = vadd.f32 0.0, %v2200
    %2202 = vmatmul.bf16.gmra.mxu0 %v1197
    %v2203 = vpop.f32.mrf.mxu0
    %v2204 = vadd.f32 0.0, %v2203
    %v2205 = vpop.f32.mrf.mxu0
    %v2206 = vadd.f32 0.0, %v2205
    %2207 = vmatmul.bf16.gmra.mxu0 %v1199
    %v2208 = vpop.f32.mrf.mxu0
    %v2209 = vadd.f32 0.0, %v2208
    %v2210 = vpop.f32.mrf.mxu0
    %v2211 = vadd.f32 0.0, %v2210
    %2212 = vmatmul.bf16.gmra.mxu0 %v1201
    %v2213 = vpop.f32.mrf.mxu0
    %v2214 = vadd.f32 0.0, %v2213
    %v2215 = vpop.f32.mrf.mxu0
    %v2216 = vadd.f32 0.0, %v2215
    %2217 = vmatmul.bf16.gmra.mxu0 %v1203
    %v2218 = vpop.f32.mrf.mxu0
    %v2219 = vadd.f32 0.0, %v2218
    %v2220 = vpop.f32.mrf.mxu0
    %v2221 = vadd.f32 0.0, %v2220
    %2222 = vmatmul.bf16.gmra.mxu0 %v1205
    %v2223 = vpop.f32.mrf.mxu0
    %v2224 = vadd.f32 0.0, %v2223
    %v2225 = vpop.f32.mrf.mxu0
    %v2226 = vadd.f32 0.0, %v2225
    %2227 = vmatmul.bf16.gmra.mxu0 %v1207
    %v2228 = vpop.f32.mrf.mxu0
    %v2229 = vadd.f32 0.0, %v2228
    %v2230 = vpop.f32.mrf.mxu0
    %v2231 = vadd.f32 0.0, %v2230
    %2232 = vmatmul.bf16.gmra.mxu0 %v1209
    %v2233 = vpop.f32.mrf.mxu0
    %v2234 = vadd.f32 0.0, %v2233
    %v2235 = vpop.f32.mrf.mxu0
    %v2236 = vadd.f32 0.0, %v2235
    %2237 = vmatmul.bf16.gmra.mxu0 %v1211
    %v2238 = vpop.f32.mrf.mxu0
    %v2239 = vadd.f32 0.0, %v2238
    %v2240 = vpop.f32.mrf.mxu0
    %v2241 = vadd.f32 0.0, %v2240
    %2242 = vmatmul.bf16.gmra.mxu0 %v1213
    %v2243 = vpop.f32.mrf.mxu0
    %v2244 = vadd.f32 0.0, %v2243
    %v2245 = vpop.f32.mrf.mxu0
    %v2246 = vadd.f32 0.0, %v2245
    %2247 = vmatmul.bf16.gmra.mxu0 %v1215
    %v2248 = vpop.f32.mrf.mxu0
    %v2249 = vadd.f32 0.0, %v2248
    %v2250 = vpop.f32.mrf.mxu0
    %v2251 = vadd.f32 0.0, %v2250
    %2252 = vmatmul.bf16.gmra.mxu0 %v1217
    %v2253 = vpop.f32.mrf.mxu0
    %v2254 = vadd.f32 0.0, %v2253
    %v2255 = vpop.f32.mrf.mxu0
    %v2256 = vadd.f32 0.0, %v2255
    %2257 = vmatmul.bf16.gmra.mxu0 %v1219
    %v2258 = vpop.f32.mrf.mxu0
    %v2259 = vadd.f32 0.0, %v2258
    %v2260 = vpop.f32.mrf.mxu0
    %v2261 = vadd.f32 0.0, %v2260
    %2262 = vmatmul.bf16.gmra.mxu0 %v1221
    %v2263 = vpop.f32.mrf.mxu0
    %v2264 = vadd.f32 0.0, %v2263
    %v2265 = vpop.f32.mrf.mxu0
    %v2266 = vadd.f32 0.0, %v2265
    %2267 = vmatmul.bf16.gmra.mxu0 %v1223
    %v2268 = vpop.f32.mrf.mxu0
    %v2269 = vadd.f32 0.0, %v2268
    %v2270 = vpop.f32.mrf.mxu0
    %v2271 = vadd.f32 0.0, %v2270
    %2272 = vmatmul.bf16.gmra.mxu0 %v1225
    %v2273 = vpop.f32.mrf.mxu0
    %v2274 = vadd.f32 0.0, %v2273
    %v2275 = vpop.f32.mrf.mxu0
    %v2276 = vadd.f32 0.0, %v2275
    %2277 = vmatmul.bf16.gmra.mxu0 %v1227
    %v2278 = vpop.f32.mrf.mxu0
    %v2279 = vadd.f32 0.0, %v2278
    %v2280 = vpop.f32.mrf.mxu0
    %v2281 = vadd.f32 0.0, %v2280
    %2282 = vmatmul.bf16.gmra.mxu0 %v1229
    %v2283 = vpop.f32.mrf.mxu0
    %v2284 = vadd.f32 0.0, %v2283
    %v2285 = vpop.f32.mrf.mxu0
    %v2286 = vadd.f32 0.0, %v2285
    %2287 = vmatmul.bf16.gmra.mxu0 %v1231
    %v2288 = vpop.f32.mrf.mxu0
    %v2289 = vadd.f32 0.0, %v2288
    %v2290 = vpop.f32.mrf.mxu0
    %v2291 = vadd.f32 0.0, %v2290
    %2292 = vmatmul.bf16.gmra.mxu0 %v1233
    %v2293 = vpop.f32.mrf.mxu0
    %v2294 = vadd.f32 0.0, %v2293
    %v2295 = vpop.f32.mrf.mxu0
    %v2296 = vadd.f32 0.0, %v2295
    %2297 = vmatmul.bf16.gmra.mxu0 %v1235
    %v2298 = vpop.f32.mrf.mxu0
    %v2299 = vadd.f32 0.0, %v2298
    %v2300 = vpop.f32.mrf.mxu0
    %v2301 = vadd.f32 0.0, %v2300
    %2302 = vmatmul.bf16.gmra.mxu0 %v1237
    %v2303 = vpop.f32.mrf.mxu0
    %v2304 = vadd.f32 0.0, %v2303
    %v2305 = vpop.f32.mrf.mxu0
    %v2306 = vadd.f32 0.0, %v2305
    %2307 = vmatmul.bf16.gmra.mxu0 %v1239
    %v2308 = vpop.f32.mrf.mxu0
    %v2309 = vadd.f32 0.0, %v2308
    %v2310 = vpop.f32.mrf.mxu0
    %v2311 = vadd.f32 0.0, %v2310
    %2312 = vmatmul.bf16.gmra.mxu0 %v1241
    %v2313 = vpop.f32.mrf.mxu0
    %v2314 = vadd.f32 0.0, %v2313
    %v2315 = vpop.f32.mrf.mxu0
    %v2316 = vadd.f32 0.0, %v2315
    %2317 = vmatmul.bf16.gmra.mxu0 %v1243
    %v2318 = vpop.f32.mrf.mxu0
    %v2319 = vadd.f32 0.0, %v2318
    %v2320 = vpop.f32.mrf.mxu0
    %v2321 = vadd.f32 0.0, %v2320
    %2322 = vmatmul.bf16.gmra.mxu0 %v1245
    %v2323 = vpop.f32.mrf.mxu0
    %v2324 = vadd.f32 0.0, %v2323
    %v2325 = vpop.f32.mrf.mxu0
    %v2326 = vadd.f32 0.0, %v2325
    %2327 = vmatmul.bf16.gmra.mxu0 %v1247
    %v2328 = vpop.f32.mrf.mxu0
    %v2329 = vadd.f32 0.0, %v2328
    %v2330 = vpop.f32.mrf.mxu0
    %v2331 = vadd.f32 0.0, %v2330
    %2332 = vmatmul.bf16.gmra.mxu0 %v1249
    %v2333 = vpop.f32.mrf.mxu0
    %v2334 = vadd.f32 0.0, %v2333
    %v2335 = vpop.f32.mrf.mxu0
    %v2336 = vadd.f32 0.0, %v2335
    %2337 = vmatmul.bf16.gmra.mxu0 %v1251
    %v2338 = vpop.f32.mrf.mxu0
    %v2339 = vadd.f32 0.0, %v2338
    %v2340 = vpop.f32.mrf.mxu0
    %v2341 = vadd.f32 0.0, %v2340
    %2342 = vmatmul.bf16.gmra.mxu0 %v1253
    %v2343 = vpop.f32.mrf.mxu0
    %v2344 = vadd.f32 0.0, %v2343
    %v2345 = vpop.f32.mrf.mxu0
    %v2346 = vadd.f32 0.0, %v2345
    %2347 = vmatmul.bf16.gmra.mxu0 %v1255
    %v2348 = vpop.f32.mrf.mxu0
    %v2349 = vadd.f32 0.0, %v2348
    %v2350 = vpop.f32.mrf.mxu0
    %v2351 = vadd.f32 0.0, %v2350
    %2352 = vmatmul.bf16.gmra.mxu0 %v1257
    %v2353 = vpop.f32.mrf.mxu0
    %v2354 = vadd.f32 0.0, %v2353
    %v2355 = vpop.f32.mrf.mxu0
    %v2356 = vadd.f32 0.0, %v2355
    %2357 = vmatmul.bf16.gmra.mxu0 %v1259
    %v2358 = vpop.f32.mrf.mxu0
    %v2359 = vadd.f32 0.0, %v2358
    %v2360 = vpop.f32.mrf.mxu0
    %v2361 = vadd.f32 0.0, %v2360
    %2362 = vmatmul.bf16.gmra.mxu0 %v1261
    %v2363 = vpop.f32.mrf.mxu0
    %v2364 = vadd.f32 0.0, %v2363
    %v2365 = vpop.f32.mrf.mxu0
    %v2366 = vadd.f32 0.0, %v2365
    %2367 = vmatmul.bf16.gmra.mxu0 %v1263
    %v2368 = vpop.f32.mrf.mxu0
    %v2369 = vadd.f32 0.0, %v2368
    %v2370 = vpop.f32.mrf.mxu0
    %v2371 = vadd.f32 0.0, %v2370
    %2372 = vmatmul.bf16.gmra.mxu0 %v1265
    %v2373 = vpop.f32.mrf.mxu0
    %v2374 = vadd.f32 0.0, %v2373
    %v2375 = vpop.f32.mrf.mxu0
    %v2376 = vadd.f32 0.0, %v2375
    %2377 = vmatmul.bf16.gmra.mxu0 %v1267
    %v2378 = vpop.f32.mrf.mxu0
    %v2379 = vadd.f32 0.0, %v2378
    %v2380 = vpop.f32.mrf.mxu0
    %v2381 = vadd.f32 0.0, %v2380
    %2382 = vmatmul.bf16.gmra.mxu0 %v1269
    %v2383 = vpop.f32.mrf.mxu0
    %v2384 = vadd.f32 0.0, %v2383
    %v2385 = vpop.f32.mrf.mxu0
    %v2386 = vadd.f32 0.0, %v2385
    %2387 = vmatmul.bf16.gmra.mxu0 %v1271
    %v2388 = vpop.f32.mrf.mxu0
    %v2389 = vadd.f32 0.0, %v2388
    %v2390 = vpop.f32.mrf.mxu0
    %v2391 = vadd.f32 0.0, %v2390
    %2392 = vmatmul.bf16.gmra.mxu0 %v1273
    %v2393 = vpop.f32.mrf.mxu0
    %v2394 = vadd.f32 0.0, %v2393
    %v2395 = vpop.f32.mrf.mxu0
    %v2396 = vadd.f32 0.0, %v2395
    %2397 = vmatmul.bf16.gmra.mxu0 %v1275
    %v2398 = vpop.f32.mrf.mxu0
    %v2399 = vadd.f32 0.0, %v2398
    %v2400 = vpop.f32.mrf.mxu0
    %v2401 = vadd.f32 0.0, %v2400
    %2402 = vmatmul.bf16.gmra.mxu0 %v1277
    %v2403 = vpop.f32.mrf.mxu0
    %v2404 = vadd.f32 0.0, %v2403
    %v2405 = vpop.f32.mrf.mxu0
    %v2406 = vadd.f32 0.0, %v2405
    %2407 = vmatmul.bf16.gmra.mxu0 %v1279
    %v2408 = vpop.f32.mrf.mxu0
    %v2409 = vadd.f32 0.0, %v2408
    %v2410 = vpop.f32.mrf.mxu0
    %v2411 = vadd.f32 0.0, %v2410
    %2412 = vmatmul.bf16.gmra.mxu0 %v1281
    %v2413 = vpop.f32.mrf.mxu0
    %v2414 = vadd.f32 0.0, %v2413
    %v2415 = vpop.f32.mrf.mxu0
    %v2416 = vadd.f32 0.0, %v2415
    %2417 = vmatmul.bf16.gmra.mxu0 %v1283
    %v2418 = vpop.f32.mrf.mxu0
    %v2419 = vadd.f32 0.0, %v2418
    %v2420 = vpop.f32.mrf.mxu0
    %v2421 = vadd.f32 0.0, %v2420
    %2422 = vmatmul.bf16.gmra.mxu0 %v1285
    %v2423 = vpop.f32.mrf.mxu0
    %v2424 = vadd.f32 0.0, %v2423
    %v2425 = vpop.f32.mrf.mxu0
    %v2426 = vadd.f32 0.0, %v2425
    %2427 = vmatmul.bf16.gmra.mxu0 %v1287
    %v2428 = vpop.f32.mrf.mxu0
    %v2429 = vadd.f32 0.0, %v2428
    %v2430 = vpop.f32.mrf.mxu0
    %v2431 = vadd.f32 0.0, %v2430
    %2432 = vmatmul.bf16.gmra.mxu0 %v1289
    %v2433 = vpop.f32.mrf.mxu0
    %v2434 = vadd.f32 0.0, %v2433
    %v2435 = vpop.f32.mrf.mxu0
    %v2436 = vadd.f32 0.0, %v2435
    %2437 = vmatmul.bf16.gmra.mxu0 %v1291
    %v2438 = vpop.f32.mrf.mxu0
    %v2439 = vadd.f32 0.0, %v2438
    %v2440 = vpop.f32.mrf.mxu0
    %v2441 = vadd.f32 0.0, %v2440
    %2442 = vmatmul.bf16.gmra.mxu0 %v1293
    %v2443 = vpop.f32.mrf.mxu0
    %v2444 = vadd.f32 0.0, %v2443
    %v2445 = vpop.f32.mrf.mxu0
    %v2446 = vadd.f32 0.0, %v2445
    %2447 = vmatmul.bf16.gmra.mxu0 %v1295
    %v2448 = vpop.f32.mrf.mxu0
    %v2449 = vadd.f32 0.0, %v2448
    %v2450 = vpop.f32.mrf.mxu0
    %v2451 = vadd.f32 0.0, %v2450
    %2452 = vmatmul.bf16.gmra.mxu0 %v1297
    %v2453 = vpop.f32.mrf.mxu0
    %v2454 = vadd.f32 0.0, %v2453
    %v2455 = vpop.f32.mrf.mxu0
    %v2456 = vadd.f32 0.0, %v2455
    %2457 = vmatmul.bf16.gmra.mxu0 %v1299
    %v2458 = vpop.f32.mrf.mxu0
    %v2459 = vadd.f32 0.0, %v2458
    %v2460 = vpop.f32.mrf.mxu0
    %v2461 = vadd.f32 0.0, %v2460
    %2462 = vmatmul.bf16.gmra.mxu0 %v1301
    %v2463 = vpop.f32.mrf.mxu0
    %v2464 = vadd.f32 0.0, %v2463
    %v2465 = vpop.f32.mrf.mxu0
    %v2466 = vadd.f32 0.0, %v2465
    %2467 = vmatmul.bf16.gmra.mxu0 %v1303
    %v2468 = vpop.f32.mrf.mxu0
    %v2469 = vadd.f32 0.0, %v2468
    %v2470 = vpop.f32.mrf.mxu0
    %v2471 = vadd.f32 0.0, %v2470
    %2472 = vmatmul.bf16.gmra.mxu0 %v1305
    %v2473 = vpop.f32.mrf.mxu0
    %v2474 = vadd.f32 0.0, %v2473
    %v2475 = vpop.f32.mrf.mxu0
    %v2476 = vadd.f32 0.0, %v2475
    %2477 = vmatmul.bf16.gmra.mxu0 %v1307
    %v2478 = vpop.f32.mrf.mxu0
    %v2479 = vadd.f32 0.0, %v2478
    %v2480 = vpop.f32.mrf.mxu0
    %v2481 = vadd.f32 0.0, %v2480
    %2482 = vmatmul.bf16.gmra.mxu0 %v1309
    %v2483 = vpop.f32.mrf.mxu0
    %v2484 = vadd.f32 0.0, %v2483
    %v2485 = vpop.f32.mrf.mxu0
    %v2486 = vadd.f32 0.0, %v2485
    %2487 = vmatmul.bf16.gmra.mxu0 %v1311
    %v2488 = vpop.f32.mrf.mxu0
    %v2489 = vadd.f32 0.0, %v2488
    %v2490 = vpop.f32.mrf.mxu0
    %v2491 = vadd.f32 0.0, %v2490
    %2492 = vmatmul.bf16.gmra.mxu0 %v1313
    %v2493 = vpop.f32.mrf.mxu0
    %v2494 = vadd.f32 0.0, %v2493
    %v2495 = vpop.f32.mrf.mxu0
    %v2496 = vadd.f32 0.0, %v2495
    %2497 = vmatmul.bf16.gmra.mxu0 %v1315
    %v2498 = vpop.f32.mrf.mxu0
    %v2499 = vadd.f32 0.0, %v2498
    %v2500 = vpop.f32.mrf.mxu0
    %v2501 = vadd.f32 0.0, %v2500
    %2502 = vmatmul.bf16.gmra.mxu0 %v1317
    %v2503 = vpop.f32.mrf.mxu0
    %v2504 = vadd.f32 0.0, %v2503
    %v2505 = vpop.f32.mrf.mxu0
    %v2506 = vadd.f32 0.0, %v2505
    %2507 = vmatmul.bf16.gmra.mxu0 %v1319
    %v2508 = vpop.f32.mrf.mxu0
    %v2509 = vadd.f32 0.0, %v2508
    %v2510 = vpop.f32.mrf.mxu0
    %v2511 = vadd.f32 0.0, %v2510
    %2512 = vmatmul.bf16.gmra.mxu0 %v1321
    %v2513 = vpop.f32.mrf.mxu0
    %v2514 = vadd.f32 0.0, %v2513
    %v2515 = vpop.f32.mrf.mxu0
    %v2516 = vadd.f32 0.0, %v2515
    %2517 = vmatmul.bf16.gmra.mxu0 %v1323
    %v2518 = vpop.f32.mrf.mxu0
    %v2519 = vadd.f32 0.0, %v2518
    %v2520 = vpop.f32.mrf.mxu0
    %v2521 = vadd.f32 0.0, %v2520
    %2522 = vmatmul.bf16.gmra.mxu0 %v1325
    %v2523 = vpop.f32.mrf.mxu0
    %v2524 = vadd.f32 0.0, %v2523
    %v2525 = vpop.f32.mrf.mxu0
    %v2526 = vadd.f32 0.0, %v2525
    %2527 = vmatmul.bf16.gmra.mxu0 %v1327
    %v2528 = vpop.f32.mrf.mxu0
    %v2529 = vadd.f32 0.0, %v2528
    %v2530 = vpop.f32.mrf.mxu0
    %v2531 = vadd.f32 0.0, %v2530
    %2532 = vmatmul.bf16.gmra.mxu0 %v1329
    %v2533 = vpop.f32.mrf.mxu0
    %v2534 = vadd.f32 0.0, %v2533
    %v2535 = vpop.f32.mrf.mxu0
    %v2536 = vadd.f32 0.0, %v2535
    %2537 = vmatmul.bf16.gmra.mxu0 %v1331
    %v2538 = vpop.f32.mrf.mxu0
    %v2539 = vadd.f32 0.0, %v2538
    %v2540 = vpop.f32.mrf.mxu0
    %v2541 = vadd.f32 0.0, %v2540
    %2542 = vmatmul.bf16.gmra.mxu0 %v1333
    %v2543 = vpop.f32.mrf.mxu0
    %v2544 = vadd.f32 0.0, %v2543
    %v2545 = vpop.f32.mrf.mxu0
    %v2546 = vadd.f32 0.0, %v2545
    %2547 = vmatmul.bf16.gmra.mxu0 %v1335
    %v2548 = vpop.f32.mrf.mxu0
    %v2549 = vadd.f32 0.0, %v2548
    %v2550 = vpop.f32.mrf.mxu0
    %v2551 = vadd.f32 0.0, %v2550
    %2552 = vmatmul.bf16.gmra.mxu0 %v1337
    %v2553 = vpop.f32.mrf.mxu0
    %v2554 = vadd.f32 0.0, %v2553
    %v2555 = vpop.f32.mrf.mxu0
    %v2556 = vadd.f32 0.0, %v2555
    %2557 = vmatmul.bf16.gmra.mxu0 %v1339
    %v2558 = vpop.f32.mrf.mxu0
    %v2559 = vadd.f32 0.0, %v2558
    %v2560 = vpop.f32.mrf.mxu0
    %v2561 = vadd.f32 0.0, %v2560
    %2562 = vmatmul.bf16.gmra.mxu0 %v1341
    %v2563 = vpop.f32.mrf.mxu0
    %v2564 = vadd.f32 0.0, %v2563
    %v2565 = vpop.f32.mrf.mxu0
    %v2566 = vadd.f32 0.0, %v2565
    %2567 = vmatmul.bf16.gmra.mxu0 %v1343
    %v2568 = vpop.f32.mrf.mxu0
    %v2569 = vadd.f32 0.0, %v2568
    %v2570 = vpop.f32.mrf.mxu0
    %v2571 = vadd.f32 0.0, %v2570
    %2572 = vmatmul.bf16.gmra.mxu0 %v1345
    %v2573 = vpop.f32.mrf.mxu0
    %v2574 = vadd.f32 0.0, %v2573
    %v2575 = vpop.f32.mrf.mxu0
    %v2576 = vadd.f32 0.0, %v2575
    %2577 = vmatmul.bf16.gmra.mxu0 %v1347
    %v2578 = vpop.f32.mrf.mxu0
    %v2579 = vadd.f32 0.0, %v2578
    %v2580 = vpop.f32.mrf.mxu0
    %v2581 = vadd.f32 0.0, %v2580
    %2582 = vdwg.mxu0
    %2583 = vmatpush.bf16.msra.mxu0 0
    %2584 = vmatpush.bf16.msra.mxu0 0
    %2585 = vmatpush.bf16.msra.mxu0 0
    %2586 = vmatpush.bf16.msra.mxu0 0
    %2587 = vmatpush.bf16.msra.mxu0 %v1536
    %2588 = vmatpush.bf16.msra.mxu0 %v1535
    %2589 = vmatpush.bf16.msra.mxu0 %v1534
    %2590 = vmatpush.bf16.msra.mxu0 %v1533
    %2591 = vmatmul.bf16.gmra.mxu0 %v1551
    %v2592 = vpop.f32.mrf.mxu0
    %v2593 = vadd.f32 %v1944, %v2592
    %v2594 = vpop.f32.mrf.mxu0
    %v2595 = vadd.f32 %v1946, %v2594
    %2596 = vmatmul.bf16.gmra.mxu0 %v1554
    %v2597 = vpop.f32.mrf.mxu0
    %v2598 = vadd.f32 %v1949, %v2597
    %v2599 = vpop.f32.mrf.mxu0
    %v2600 = vadd.f32 %v1951, %v2599
    %2601 = vmatmul.bf16.gmra.mxu0 %v1557
    %v2602 = vpop.f32.mrf.mxu0
    %v2603 = vadd.f32 %v1954, %v2602
    %v2604 = vpop.f32.mrf.mxu0
    %v2605 = vadd.f32 %v1956, %v2604
    %2606 = vmatmul.bf16.gmra.mxu0 %v1560
    %v2607 = vpop.f32.mrf.mxu0
    %v2608 = vadd.f32 %v1959, %v2607
    %v2609 = vpop.f32.mrf.mxu0
    %v2610 = vadd.f32 %v1961, %v2609
    %2611 = vmatmul.bf16.gmra.mxu0 %v1563
    %v2612 = vpop.f32.mrf.mxu0
    %v2613 = vadd.f32 %v1964, %v2612
    %v2614 = vpop.f32.mrf.mxu0
    %v2615 = vadd.f32 %v1966, %v2614
    %2616 = vmatmul.bf16.gmra.mxu0 %v1566
    %v2617 = vpop.f32.mrf.mxu0
    %v2618 = vadd.f32 %v1969, %v2617
    %v2619 = vpop.f32.mrf.mxu0
    %v2620 = vadd.f32 %v1971, %v2619
    %2621 = vmatmul.bf16.gmra.mxu0 %v1569
    %v2622 = vpop.f32.mrf.mxu0
    %v2623 = vadd.f32 %v1974, %v2622
    %v2624 = vpop.f32.mrf.mxu0
    %v2625 = vadd.f32 %v1976, %v2624
    %2626 = vmatmul.bf16.gmra.mxu0 %v1572
    %v2627 = vpop.f32.mrf.mxu0
    %v2628 = vadd.f32 %v1979, %v2627
    %v2629 = vpop.f32.mrf.mxu0
    %v2630 = vadd.f32 %v1981, %v2629
    %2631 = vmatmul.bf16.gmra.mxu0 %v1575
    %v2632 = vpop.f32.mrf.mxu0
    %v2633 = vadd.f32 %v1984, %v2632
    %v2634 = vpop.f32.mrf.mxu0
    %v2635 = vadd.f32 %v1986, %v2634
    %2636 = vmatmul.bf16.gmra.mxu0 %v1578
    %v2637 = vpop.f32.mrf.mxu0
    %v2638 = vadd.f32 %v1989, %v2637
    %v2639 = vpop.f32.mrf.mxu0
    %v2640 = vadd.f32 %v1991, %v2639
    %2641 = vmatmul.bf16.gmra.mxu0 %v1581
    %v2642 = vpop.f32.mrf.mxu0
    %v2643 = vadd.f32 %v1994, %v2642
    %v2644 = vpop.f32.mrf.mxu0
    %v2645 = vadd.f32 %v1996, %v2644
    %2646 = vmatmul.bf16.gmra.mxu0 %v1584
    %v2647 = vpop.f32.mrf.mxu0
    %v2648 = vadd.f32 %v1999, %v2647
    %v2649 = vpop.f32.mrf.mxu0
    %v2650 = vadd.f32 %v2001, %v2649
    %2651 = vmatmul.bf16.gmra.mxu0 %v1587
    %v2652 = vpop.f32.mrf.mxu0
    %v2653 = vadd.f32 %v2004, %v2652
    %v2654 = vpop.f32.mrf.mxu0
    %v2655 = vadd.f32 %v2006, %v2654
    %2656 = vmatmul.bf16.gmra.mxu0 %v1590
    %v2657 = vpop.f32.mrf.mxu0
    %v2658 = vadd.f32 %v2009, %v2657
    %v2659 = vpop.f32.mrf.mxu0
    %v2660 = vadd.f32 %v2011, %v2659
    %2661 = vmatmul.bf16.gmra.mxu0 %v1593
    %v2662 = vpop.f32.mrf.mxu0
    %v2663 = vadd.f32 %v2014, %v2662
    %v2664 = vpop.f32.mrf.mxu0
    %v2665 = vadd.f32 %v2016, %v2664
    %2666 = vmatmul.bf16.gmra.mxu0 %v1596
    %v2667 = vpop.f32.mrf.mxu0
    %v2668 = vadd.f32 %v2019, %v2667
    %v2669 = vpop.f32.mrf.mxu0
    %v2670 = vadd.f32 %v2021, %v2669
    %2671 = vmatmul.bf16.gmra.mxu0 %v1599
    %v2672 = vpop.f32.mrf.mxu0
    %v2673 = vadd.f32 %v2024, %v2672
    %v2674 = vpop.f32.mrf.mxu0
    %v2675 = vadd.f32 %v2026, %v2674
    %2676 = vmatmul.bf16.gmra.mxu0 %v1602
    %v2677 = vpop.f32.mrf.mxu0
    %v2678 = vadd.f32 %v2029, %v2677
    %v2679 = vpop.f32.mrf.mxu0
    %v2680 = vadd.f32 %v2031, %v2679
    %2681 = vmatmul.bf16.gmra.mxu0 %v1605
    %v2682 = vpop.f32.mrf.mxu0
    %v2683 = vadd.f32 %v2034, %v2682
    %v2684 = vpop.f32.mrf.mxu0
    %v2685 = vadd.f32 %v2036, %v2684
    %2686 = vmatmul.bf16.gmra.mxu0 %v1608
    %v2687 = vpop.f32.mrf.mxu0
    %v2688 = vadd.f32 %v2039, %v2687
    %v2689 = vpop.f32.mrf.mxu0
    %v2690 = vadd.f32 %v2041, %v2689
    %2691 = vmatmul.bf16.gmra.mxu0 %v1611
    %v2692 = vpop.f32.mrf.mxu0
    %v2693 = vadd.f32 %v2044, %v2692
    %v2694 = vpop.f32.mrf.mxu0
    %v2695 = vadd.f32 %v2046, %v2694
    %2696 = vmatmul.bf16.gmra.mxu0 %v1614
    %v2697 = vpop.f32.mrf.mxu0
    %v2698 = vadd.f32 %v2049, %v2697
    %v2699 = vpop.f32.mrf.mxu0
    %v2700 = vadd.f32 %v2051, %v2699
    %2701 = vmatmul.bf16.gmra.mxu0 %v1617
    %v2702 = vpop.f32.mrf.mxu0
    %v2703 = vadd.f32 %v2054, %v2702
    %v2704 = vpop.f32.mrf.mxu0
    %v2705 = vadd.f32 %v2056, %v2704
    %2706 = vmatmul.bf16.gmra.mxu0 %v1620
    %v2707 = vpop.f32.mrf.mxu0
    %v2708 = vadd.f32 %v2059, %v2707
    %v2709 = vpop.f32.mrf.mxu0
    %v2710 = vadd.f32 %v2061, %v2709
    %2711 = vmatmul.bf16.gmra.mxu0 %v1623
    %v2712 = vpop.f32.mrf.mxu0
    %v2713 = vadd.f32 %v2064, %v2712
    %v2714 = vpop.f32.mrf.mxu0
    %v2715 = vadd.f32 %v2066, %v2714
    %2716 = vmatmul.bf16.gmra.mxu0 %v1626
    %v2717 = vpop.f32.mrf.mxu0
    %v2718 = vadd.f32 %v2069, %v2717
    %v2719 = vpop.f32.mrf.mxu0
    %v2720 = vadd.f32 %v2071, %v2719
    %2721 = vmatmul.bf16.gmra.mxu0 %v1629
    %v2722 = vpop.f32.mrf.mxu0
    %v2723 = vadd.f32 %v2074, %v2722
    %v2724 = vpop.f32.mrf.mxu0
    %v2725 = vadd.f32 %v2076, %v2724
    %2726 = vmatmul.bf16.gmra.mxu0 %v1632
    %v2727 = vpop.f32.mrf.mxu0
    %v2728 = vadd.f32 %v2079, %v2727
    %v2729 = vpop.f32.mrf.mxu0
    %v2730 = vadd.f32 %v2081, %v2729
    %2731 = vmatmul.bf16.gmra.mxu0 %v1635
    %v2732 = vpop.f32.mrf.mxu0
    %v2733 = vadd.f32 %v2084, %v2732
    %v2734 = vpop.f32.mrf.mxu0
    %v2735 = vadd.f32 %v2086, %v2734
    %2736 = vmatmul.bf16.gmra.mxu0 %v1638
    %v2737 = vpop.f32.mrf.mxu0
    %v2738 = vadd.f32 %v2089, %v2737
    %v2739 = vpop.f32.mrf.mxu0
    %v2740 = vadd.f32 %v2091, %v2739
    %2741 = vmatmul.bf16.gmra.mxu0 %v1641
    %v2742 = vpop.f32.mrf.mxu0
    %v2743 = vadd.f32 %v2094, %v2742
    %v2744 = vpop.f32.mrf.mxu0
    %v2745 = vadd.f32 %v2096, %v2744
    %2746 = vmatmul.bf16.gmra.mxu0 %v1644
    %v2747 = vpop.f32.mrf.mxu0
    %v2748 = vadd.f32 %v2099, %v2747
    %v2749 = vpop.f32.mrf.mxu0
    %v2750 = vadd.f32 %v2101, %v2749
    %2751 = vmatmul.bf16.gmra.mxu0 %v1647
    %v2752 = vpop.f32.mrf.mxu0
    %v2753 = vadd.f32 %v2104, %v2752
    %v2754 = vpop.f32.mrf.mxu0
    %v2755 = vadd.f32 %v2106, %v2754
    %2756 = vmatmul.bf16.gmra.mxu0 %v1650
    %v2757 = vpop.f32.mrf.mxu0
    %v2758 = vadd.f32 %v2109, %v2757
    %v2759 = vpop.f32.mrf.mxu0
    %v2760 = vadd.f32 %v2111, %v2759
    %2761 = vmatmul.bf16.gmra.mxu0 %v1653
    %v2762 = vpop.f32.mrf.mxu0
    %v2763 = vadd.f32 %v2114, %v2762
    %v2764 = vpop.f32.mrf.mxu0
    %v2765 = vadd.f32 %v2116, %v2764
    %2766 = vmatmul.bf16.gmra.mxu0 %v1656
    %v2767 = vpop.f32.mrf.mxu0
    %v2768 = vadd.f32 %v2119, %v2767
    %v2769 = vpop.f32.mrf.mxu0
    %v2770 = vadd.f32 %v2121, %v2769
    %2771 = vmatmul.bf16.gmra.mxu0 %v1659
    %v2772 = vpop.f32.mrf.mxu0
    %v2773 = vadd.f32 %v2124, %v2772
    %v2774 = vpop.f32.mrf.mxu0
    %v2775 = vadd.f32 %v2126, %v2774
    %2776 = vmatmul.bf16.gmra.mxu0 %v1662
    %v2777 = vpop.f32.mrf.mxu0
    %v2778 = vadd.f32 %v2129, %v2777
    %v2779 = vpop.f32.mrf.mxu0
    %v2780 = vadd.f32 %v2131, %v2779
    %2781 = vmatmul.bf16.gmra.mxu0 %v1665
    %v2782 = vpop.f32.mrf.mxu0
    %v2783 = vadd.f32 %v2134, %v2782
    %v2784 = vpop.f32.mrf.mxu0
    %v2785 = vadd.f32 %v2136, %v2784
    %2786 = vmatmul.bf16.gmra.mxu0 %v1668
    %v2787 = vpop.f32.mrf.mxu0
    %v2788 = vadd.f32 %v2139, %v2787
    %v2789 = vpop.f32.mrf.mxu0
    %v2790 = vadd.f32 %v2141, %v2789
    %2791 = vmatmul.bf16.gmra.mxu0 %v1671
    %v2792 = vpop.f32.mrf.mxu0
    %v2793 = vadd.f32 %v2144, %v2792
    %v2794 = vpop.f32.mrf.mxu0
    %v2795 = vadd.f32 %v2146, %v2794
    %2796 = vmatmul.bf16.gmra.mxu0 %v1674
    %v2797 = vpop.f32.mrf.mxu0
    %v2798 = vadd.f32 %v2149, %v2797
    %v2799 = vpop.f32.mrf.mxu0
    %v2800 = vadd.f32 %v2151, %v2799
    %2801 = vmatmul.bf16.gmra.mxu0 %v1677
    %v2802 = vpop.f32.mrf.mxu0
    %v2803 = vadd.f32 %v2154, %v2802
    %v2804 = vpop.f32.mrf.mxu0
    %v2805 = vadd.f32 %v2156, %v2804
    %2806 = vmatmul.bf16.gmra.mxu0 %v1680
    %v2807 = vpop.f32.mrf.mxu0
    %v2808 = vadd.f32 %v2159, %v2807
    %v2809 = vpop.f32.mrf.mxu0
    %v2810 = vadd.f32 %v2161, %v2809
    %2811 = vmatmul.bf16.gmra.mxu0 %v1683
    %v2812 = vpop.f32.mrf.mxu0
    %v2813 = vadd.f32 %v2164, %v2812
    %v2814 = vpop.f32.mrf.mxu0
    %v2815 = vadd.f32 %v2166, %v2814
    %2816 = vmatmul.bf16.gmra.mxu0 %v1686
    %v2817 = vpop.f32.mrf.mxu0
    %v2818 = vadd.f32 %v2169, %v2817
    %v2819 = vpop.f32.mrf.mxu0
    %v2820 = vadd.f32 %v2171, %v2819
    %2821 = vmatmul.bf16.gmra.mxu0 %v1689
    %v2822 = vpop.f32.mrf.mxu0
    %v2823 = vadd.f32 %v2174, %v2822
    %v2824 = vpop.f32.mrf.mxu0
    %v2825 = vadd.f32 %v2176, %v2824
    %2826 = vmatmul.bf16.gmra.mxu0 %v1692
    %v2827 = vpop.f32.mrf.mxu0
    %v2828 = vadd.f32 %v2179, %v2827
    %v2829 = vpop.f32.mrf.mxu0
    %v2830 = vadd.f32 %v2181, %v2829
    %2831 = vmatmul.bf16.gmra.mxu0 %v1695
    %v2832 = vpop.f32.mrf.mxu0
    %v2833 = vadd.f32 %v2184, %v2832
    %v2834 = vpop.f32.mrf.mxu0
    %v2835 = vadd.f32 %v2186, %v2834
    %2836 = vmatmul.bf16.gmra.mxu0 %v1698
    %v2837 = vpop.f32.mrf.mxu0
    %v2838 = vadd.f32 %v2189, %v2837
    %v2839 = vpop.f32.mrf.mxu0
    %v2840 = vadd.f32 %v2191, %v2839
    %2841 = vmatmul.bf16.gmra.mxu0 %v1701
    %v2842 = vpop.f32.mrf.mxu0
    %v2843 = vadd.f32 %v2194, %v2842
    %v2844 = vpop.f32.mrf.mxu0
    %v2845 = vadd.f32 %v2196, %v2844
    %2846 = vmatmul.bf16.gmra.mxu0 %v1704
    %v2847 = vpop.f32.mrf.mxu0
    %v2848 = vadd.f32 %v2199, %v2847
    %v2849 = vpop.f32.mrf.mxu0
    %v2850 = vadd.f32 %v2201, %v2849
    %2851 = vmatmul.bf16.gmra.mxu0 %v1707
    %v2852 = vpop.f32.mrf.mxu0
    %v2853 = vadd.f32 %v2204, %v2852
    %v2854 = vpop.f32.mrf.mxu0
    %v2855 = vadd.f32 %v2206, %v2854
    %2856 = vmatmul.bf16.gmra.mxu0 %v1710
    %v2857 = vpop.f32.mrf.mxu0
    %v2858 = vadd.f32 %v2209, %v2857
    %v2859 = vpop.f32.mrf.mxu0
    %v2860 = vadd.f32 %v2211, %v2859
    %2861 = vmatmul.bf16.gmra.mxu0 %v1713
    %v2862 = vpop.f32.mrf.mxu0
    %v2863 = vadd.f32 %v2214, %v2862
    %v2864 = vpop.f32.mrf.mxu0
    %v2865 = vadd.f32 %v2216, %v2864
    %2866 = vmatmul.bf16.gmra.mxu0 %v1716
    %v2867 = vpop.f32.mrf.mxu0
    %v2868 = vadd.f32 %v2219, %v2867
    %v2869 = vpop.f32.mrf.mxu0
    %v2870 = vadd.f32 %v2221, %v2869
    %2871 = vmatmul.bf16.gmra.mxu0 %v1719
    %v2872 = vpop.f32.mrf.mxu0
    %v2873 = vadd.f32 %v2224, %v2872
    %v2874 = vpop.f32.mrf.mxu0
    %v2875 = vadd.f32 %v2226, %v2874
    %2876 = vmatmul.bf16.gmra.mxu0 %v1722
    %v2877 = vpop.f32.mrf.mxu0
    %v2878 = vadd.f32 %v2229, %v2877
    %v2879 = vpop.f32.mrf.mxu0
    %v2880 = vadd.f32 %v2231, %v2879
    %2881 = vmatmul.bf16.gmra.mxu0 %v1725
    %v2882 = vpop.f32.mrf.mxu0
    %v2883 = vadd.f32 %v2234, %v2882
    %v2884 = vpop.f32.mrf.mxu0
    %v2885 = vadd.f32 %v2236, %v2884
    %2886 = vmatmul.bf16.gmra.mxu0 %v1728
    %v2887 = vpop.f32.mrf.mxu0
    %v2888 = vadd.f32 %v2239, %v2887
    %v2889 = vpop.f32.mrf.mxu0
    %v2890 = vadd.f32 %v2241, %v2889
    %2891 = vmatmul.bf16.gmra.mxu0 %v1731
    %v2892 = vpop.f32.mrf.mxu0
    %v2893 = vadd.f32 %v2244, %v2892
    %v2894 = vpop.f32.mrf.mxu0
    %v2895 = vadd.f32 %v2246, %v2894
    %2896 = vmatmul.bf16.gmra.mxu0 %v1734
    %v2897 = vpop.f32.mrf.mxu0
    %v2898 = vadd.f32 %v2249, %v2897
    %v2899 = vpop.f32.mrf.mxu0
    %v2900 = vadd.f32 %v2251, %v2899
    %2901 = vmatmul.bf16.gmra.mxu0 %v1737
    %v2902 = vpop.f32.mrf.mxu0
    %v2903 = vadd.f32 %v2254, %v2902
    %v2904 = vpop.f32.mrf.mxu0
    %v2905 = vadd.f32 %v2256, %v2904
    %2906 = vmatmul.bf16.gmra.mxu0 %v1740
    %v2907 = vpop.f32.mrf.mxu0
    %v2908 = vadd.f32 %v2259, %v2907
    %v2909 = vpop.f32.mrf.mxu0
    %v2910 = vadd.f32 %v2261, %v2909
    %2911 = vmatmul.bf16.gmra.mxu0 %v1743
    %v2912 = vpop.f32.mrf.mxu0
    %v2913 = vadd.f32 %v2264, %v2912
    %v2914 = vpop.f32.mrf.mxu0
    %v2915 = vadd.f32 %v2266, %v2914
    %2916 = vmatmul.bf16.gmra.mxu0 %v1746
    %v2917 = vpop.f32.mrf.mxu0
    %v2918 = vadd.f32 %v2269, %v2917
    %v2919 = vpop.f32.mrf.mxu0
    %v2920 = vadd.f32 %v2271, %v2919
    %2921 = vmatmul.bf16.gmra.mxu0 %v1749
    %v2922 = vpop.f32.mrf.mxu0
    %v2923 = vadd.f32 %v2274, %v2922
    %v2924 = vpop.f32.mrf.mxu0
    %v2925 = vadd.f32 %v2276, %v2924
    %2926 = vmatmul.bf16.gmra.mxu0 %v1752
    %v2927 = vpop.f32.mrf.mxu0
    %v2928 = vadd.f32 %v2279, %v2927
    %v2929 = vpop.f32.mrf.mxu0
    %v2930 = vadd.f32 %v2281, %v2929
    %2931 = vmatmul.bf16.gmra.mxu0 %v1755
    %v2932 = vpop.f32.mrf.mxu0
    %v2933 = vadd.f32 %v2284, %v2932
    %v2934 = vpop.f32.mrf.mxu0
    %v2935 = vadd.f32 %v2286, %v2934
    %2936 = vmatmul.bf16.gmra.mxu0 %v1758
    %v2937 = vpop.f32.mrf.mxu0
    %v2938 = vadd.f32 %v2289, %v2937
    %v2939 = vpop.f32.mrf.mxu0
    %v2940 = vadd.f32 %v2291, %v2939
    %2941 = vmatmul.bf16.gmra.mxu0 %v1761
    %v2942 = vpop.f32.mrf.mxu0
    %v2943 = vadd.f32 %v2294, %v2942
    %v2944 = vpop.f32.mrf.mxu0
    %v2945 = vadd.f32 %v2296, %v2944
    %2946 = vmatmul.bf16.gmra.mxu0 %v1764
    %v2947 = vpop.f32.mrf.mxu0
    %v2948 = vadd.f32 %v2299, %v2947
    %v2949 = vpop.f32.mrf.mxu0
    %v2950 = vadd.f32 %v2301, %v2949
    %2951 = vmatmul.bf16.gmra.mxu0 %v1767
    %v2952 = vpop.f32.mrf.mxu0
    %v2953 = vadd.f32 %v2304, %v2952
    %v2954 = vpop.f32.mrf.mxu0
    %v2955 = vadd.f32 %v2306, %v2954
    %2956 = vmatmul.bf16.gmra.mxu0 %v1770
    %v2957 = vpop.f32.mrf.mxu0
    %v2958 = vadd.f32 %v2309, %v2957
    %v2959 = vpop.f32.mrf.mxu0
    %v2960 = vadd.f32 %v2311, %v2959
    %2961 = vmatmul.bf16.gmra.mxu0 %v1773
    %v2962 = vpop.f32.mrf.mxu0
    %v2963 = vadd.f32 %v2314, %v2962
    %v2964 = vpop.f32.mrf.mxu0
    %v2965 = vadd.f32 %v2316, %v2964
    %2966 = vmatmul.bf16.gmra.mxu0 %v1776
    %v2967 = vpop.f32.mrf.mxu0
    %v2968 = vadd.f32 %v2319, %v2967
    %v2969 = vpop.f32.mrf.mxu0
    %v2970 = vadd.f32 %v2321, %v2969
    %2971 = vmatmul.bf16.gmra.mxu0 %v1779
    %v2972 = vpop.f32.mrf.mxu0
    %v2973 = vadd.f32 %v2324, %v2972
    %v2974 = vpop.f32.mrf.mxu0
    %v2975 = vadd.f32 %v2326, %v2974
    %2976 = vmatmul.bf16.gmra.mxu0 %v1782
    %v2977 = vpop.f32.mrf.mxu0
    %v2978 = vadd.f32 %v2329, %v2977
    %v2979 = vpop.f32.mrf.mxu0
    %v2980 = vadd.f32 %v2331, %v2979
    %2981 = vmatmul.bf16.gmra.mxu0 %v1785
    %v2982 = vpop.f32.mrf.mxu0
    %v2983 = vadd.f32 %v2334, %v2982
    %v2984 = vpop.f32.mrf.mxu0
    %v2985 = vadd.f32 %v2336, %v2984
    %2986 = vmatmul.bf16.gmra.mxu0 %v1788
    %v2987 = vpop.f32.mrf.mxu0
    %v2988 = vadd.f32 %v2339, %v2987
    %v2989 = vpop.f32.mrf.mxu0
    %v2990 = vadd.f32 %v2341, %v2989
    %2991 = vmatmul.bf16.gmra.mxu0 %v1791
    %v2992 = vpop.f32.mrf.mxu0
    %v2993 = vadd.f32 %v2344, %v2992
    %v2994 = vpop.f32.mrf.mxu0
    %v2995 = vadd.f32 %v2346, %v2994
    %2996 = vmatmul.bf16.gmra.mxu0 %v1794
    %v2997 = vpop.f32.mrf.mxu0
    %v2998 = vadd.f32 %v2349, %v2997
    %v2999 = vpop.f32.mrf.mxu0
    %v3000 = vadd.f32 %v2351, %v2999
    %3001 = vmatmul.bf16.gmra.mxu0 %v1797
    %v3002 = vpop.f32.mrf.mxu0
    %v3003 = vadd.f32 %v2354, %v3002
    %v3004 = vpop.f32.mrf.mxu0
    %v3005 = vadd.f32 %v2356, %v3004
    %3006 = vmatmul.bf16.gmra.mxu0 %v1800
    %v3007 = vpop.f32.mrf.mxu0
    %v3008 = vadd.f32 %v2359, %v3007
    %v3009 = vpop.f32.mrf.mxu0
    %v3010 = vadd.f32 %v2361, %v3009
    %3011 = vmatmul.bf16.gmra.mxu0 %v1803
    %v3012 = vpop.f32.mrf.mxu0
    %v3013 = vadd.f32 %v2364, %v3012
    %v3014 = vpop.f32.mrf.mxu0
    %v3015 = vadd.f32 %v2366, %v3014
    %3016 = vmatmul.bf16.gmra.mxu0 %v1806
    %v3017 = vpop.f32.mrf.mxu0
    %v3018 = vadd.f32 %v2369, %v3017
    %v3019 = vpop.f32.mrf.mxu0
    %v3020 = vadd.f32 %v2371, %v3019
    %3021 = vmatmul.bf16.gmra.mxu0 %v1809
    %v3022 = vpop.f32.mrf.mxu0
    %v3023 = vadd.f32 %v2374, %v3022
    %v3024 = vpop.f32.mrf.mxu0
    %v3025 = vadd.f32 %v2376, %v3024
    %3026 = vmatmul.bf16.gmra.mxu0 %v1812
    %v3027 = vpop.f32.mrf.mxu0
    %v3028 = vadd.f32 %v2379, %v3027
    %v3029 = vpop.f32.mrf.mxu0
    %v3030 = vadd.f32 %v2381, %v3029
    %3031 = vmatmul.bf16.gmra.mxu0 %v1815
    %v3032 = vpop.f32.mrf.mxu0
    %v3033 = vadd.f32 %v2384, %v3032
    %v3034 = vpop.f32.mrf.mxu0
    %v3035 = vadd.f32 %v2386, %v3034
    %3036 = vmatmul.bf16.gmra.mxu0 %v1818
    %v3037 = vpop.f32.mrf.mxu0
    %v3038 = vadd.f32 %v2389, %v3037
    %v3039 = vpop.f32.mrf.mxu0
    %v3040 = vadd.f32 %v2391, %v3039
    %3041 = vmatmul.bf16.gmra.mxu0 %v1821
    %v3042 = vpop.f32.mrf.mxu0
    %v3043 = vadd.f32 %v2394, %v3042
    %v3044 = vpop.f32.mrf.mxu0
    %v3045 = vadd.f32 %v2396, %v3044
    %3046 = vmatmul.bf16.gmra.mxu0 %v1824
    %v3047 = vpop.f32.mrf.mxu0
    %v3048 = vadd.f32 %v2399, %v3047
    %v3049 = vpop.f32.mrf.mxu0
    %v3050 = vadd.f32 %v2401, %v3049
    %3051 = vmatmul.bf16.gmra.mxu0 %v1827
    %v3052 = vpop.f32.mrf.mxu0
    %v3053 = vadd.f32 %v2404, %v3052
    %v3054 = vpop.f32.mrf.mxu0
    %v3055 = vadd.f32 %v2406, %v3054
    %3056 = vmatmul.bf16.gmra.mxu0 %v1830
    %v3057 = vpop.f32.mrf.mxu0
    %v3058 = vadd.f32 %v2409, %v3057
    %v3059 = vpop.f32.mrf.mxu0
    %v3060 = vadd.f32 %v2411, %v3059
    %3061 = vmatmul.bf16.gmra.mxu0 %v1833
    %v3062 = vpop.f32.mrf.mxu0
    %v3063 = vadd.f32 %v2414, %v3062
    %v3064 = vpop.f32.mrf.mxu0
    %v3065 = vadd.f32 %v2416, %v3064
    %3066 = vmatmul.bf16.gmra.mxu0 %v1836
    %v3067 = vpop.f32.mrf.mxu0
    %v3068 = vadd.f32 %v2419, %v3067
    %v3069 = vpop.f32.mrf.mxu0
    %v3070 = vadd.f32 %v2421, %v3069
    %3071 = vmatmul.bf16.gmra.mxu0 %v1839
    %v3072 = vpop.f32.mrf.mxu0
    %v3073 = vadd.f32 %v2424, %v3072
    %v3074 = vpop.f32.mrf.mxu0
    %v3075 = vadd.f32 %v2426, %v3074
    %3076 = vmatmul.bf16.gmra.mxu0 %v1842
    %v3077 = vpop.f32.mrf.mxu0
    %v3078 = vadd.f32 %v2429, %v3077
    %v3079 = vpop.f32.mrf.mxu0
    %v3080 = vadd.f32 %v2431, %v3079
    %3081 = vmatmul.bf16.gmra.mxu0 %v1845
    %v3082 = vpop.f32.mrf.mxu0
    %v3083 = vadd.f32 %v2434, %v3082
    %v3084 = vpop.f32.mrf.mxu0
    %v3085 = vadd.f32 %v2436, %v3084
    %3086 = vmatmul.bf16.gmra.mxu0 %v1848
    %v3087 = vpop.f32.mrf.mxu0
    %v3088 = vadd.f32 %v2439, %v3087
    %v3089 = vpop.f32.mrf.mxu0
    %v3090 = vadd.f32 %v2441, %v3089
    %3091 = vmatmul.bf16.gmra.mxu0 %v1851
    %v3092 = vpop.f32.mrf.mxu0
    %v3093 = vadd.f32 %v2444, %v3092
    %v3094 = vpop.f32.mrf.mxu0
    %v3095 = vadd.f32 %v2446, %v3094
    %3096 = vmatmul.bf16.gmra.mxu0 %v1854
    %v3097 = vpop.f32.mrf.mxu0
    %v3098 = vadd.f32 %v2449, %v3097
    %v3099 = vpop.f32.mrf.mxu0
    %v3100 = vadd.f32 %v2451, %v3099
    %3101 = vmatmul.bf16.gmra.mxu0 %v1857
    %v3102 = vpop.f32.mrf.mxu0
    %v3103 = vadd.f32 %v2454, %v3102
    %v3104 = vpop.f32.mrf.mxu0
    %v3105 = vadd.f32 %v2456, %v3104
    %3106 = vmatmul.bf16.gmra.mxu0 %v1860
    %v3107 = vpop.f32.mrf.mxu0
    %v3108 = vadd.f32 %v2459, %v3107
    %v3109 = vpop.f32.mrf.mxu0
    %v3110 = vadd.f32 %v2461, %v3109
    %3111 = vmatmul.bf16.gmra.mxu0 %v1863
    %v3112 = vpop.f32.mrf.mxu0
    %v3113 = vadd.f32 %v2464, %v3112
    %v3114 = vpop.f32.mrf.mxu0
    %v3115 = vadd.f32 %v2466, %v3114
    %3116 = vmatmul.bf16.gmra.mxu0 %v1866
    %v3117 = vpop.f32.mrf.mxu0
    %v3118 = vadd.f32 %v2469, %v3117
    %v3119 = vpop.f32.mrf.mxu0
    %v3120 = vadd.f32 %v2471, %v3119
    %3121 = vmatmul.bf16.gmra.mxu0 %v1869
    %v3122 = vpop.f32.mrf.mxu0
    %v3123 = vadd.f32 %v2474, %v3122
    %v3124 = vpop.f32.mrf.mxu0
    %v3125 = vadd.f32 %v2476, %v3124
    %3126 = vmatmul.bf16.gmra.mxu0 %v1872
    %v3127 = vpop.f32.mrf.mxu0
    %v3128 = vadd.f32 %v2479, %v3127
    %v3129 = vpop.f32.mrf.mxu0
    %v3130 = vadd.f32 %v2481, %v3129
    %3131 = vmatmul.bf16.gmra.mxu0 %v1875
    %v3132 = vpop.f32.mrf.mxu0
    %v3133 = vadd.f32 %v2484, %v3132
    %v3134 = vpop.f32.mrf.mxu0
    %v3135 = vadd.f32 %v2486, %v3134
    %3136 = vmatmul.bf16.gmra.mxu0 %v1878
    %v3137 = vpop.f32.mrf.mxu0
    %v3138 = vadd.f32 %v2489, %v3137
    %v3139 = vpop.f32.mrf.mxu0
    %v3140 = vadd.f32 %v2491, %v3139
    %3141 = vmatmul.bf16.gmra.mxu0 %v1881
    %v3142 = vpop.f32.mrf.mxu0
    %v3143 = vadd.f32 %v2494, %v3142
    %v3144 = vpop.f32.mrf.mxu0
    %v3145 = vadd.f32 %v2496, %v3144
    %3146 = vmatmul.bf16.gmra.mxu0 %v1884
    %v3147 = vpop.f32.mrf.mxu0
    %v3148 = vadd.f32 %v2499, %v3147
    %v3149 = vpop.f32.mrf.mxu0
    %v3150 = vadd.f32 %v2501, %v3149
    %3151 = vmatmul.bf16.gmra.mxu0 %v1887
    %v3152 = vpop.f32.mrf.mxu0
    %v3153 = vadd.f32 %v2504, %v3152
    %v3154 = vpop.f32.mrf.mxu0
    %v3155 = vadd.f32 %v2506, %v3154
    %3156 = vmatmul.bf16.gmra.mxu0 %v1890
    %v3157 = vpop.f32.mrf.mxu0
    %v3158 = vadd.f32 %v2509, %v3157
    %v3159 = vpop.f32.mrf.mxu0
    %v3160 = vadd.f32 %v2511, %v3159
    %3161 = vmatmul.bf16.gmra.mxu0 %v1893
    %v3162 = vpop.f32.mrf.mxu0
    %v3163 = vadd.f32 %v2514, %v3162
    %v3164 = vpop.f32.mrf.mxu0
    %v3165 = vadd.f32 %v2516, %v3164
    %3166 = vmatmul.bf16.gmra.mxu0 %v1896
    %v3167 = vpop.f32.mrf.mxu0
    %v3168 = vadd.f32 %v2519, %v3167
    %v3169 = vpop.f32.mrf.mxu0
    %v3170 = vadd.f32 %v2521, %v3169
    %3171 = vmatmul.bf16.gmra.mxu0 %v1899
    %v3172 = vpop.f32.mrf.mxu0
    %v3173 = vadd.f32 %v2524, %v3172
    %v3174 = vpop.f32.mrf.mxu0
    %v3175 = vadd.f32 %v2526, %v3174
    %3176 = vmatmul.bf16.gmra.mxu0 %v1902
    %v3177 = vpop.f32.mrf.mxu0
    %v3178 = vadd.f32 %v2529, %v3177
    %v3179 = vpop.f32.mrf.mxu0
    %v3180 = vadd.f32 %v2531, %v3179
    %3181 = vmatmul.bf16.gmra.mxu0 %v1905
    %v3182 = vpop.f32.mrf.mxu0
    %v3183 = vadd.f32 %v2534, %v3182
    %v3184 = vpop.f32.mrf.mxu0
    %v3185 = vadd.f32 %v2536, %v3184
    %3186 = vmatmul.bf16.gmra.mxu0 %v1908
    %v3187 = vpop.f32.mrf.mxu0
    %v3188 = vadd.f32 %v2539, %v3187
    %v3189 = vpop.f32.mrf.mxu0
    %v3190 = vadd.f32 %v2541, %v3189
    %3191 = vmatmul.bf16.gmra.mxu0 %v1911
    %v3192 = vpop.f32.mrf.mxu0
    %v3193 = vadd.f32 %v2544, %v3192
    %v3194 = vpop.f32.mrf.mxu0
    %v3195 = vadd.f32 %v2546, %v3194
    %3196 = vmatmul.bf16.gmra.mxu0 %v1914
    %v3197 = vpop.f32.mrf.mxu0
    %v3198 = vadd.f32 %v2549, %v3197
    %v3199 = vpop.f32.mrf.mxu0
    %v3200 = vadd.f32 %v2551, %v3199
    %3201 = vmatmul.bf16.gmra.mxu0 %v1917
    %v3202 = vpop.f32.mrf.mxu0
    %v3203 = vadd.f32 %v2554, %v3202
    %v3204 = vpop.f32.mrf.mxu0
    %v3205 = vadd.f32 %v2556, %v3204
    %3206 = vmatmul.bf16.gmra.mxu0 %v1920
    %v3207 = vpop.f32.mrf.mxu0
    %v3208 = vadd.f32 %v2559, %v3207
    %v3209 = vpop.f32.mrf.mxu0
    %v3210 = vadd.f32 %v2561, %v3209
    %3211 = vmatmul.bf16.gmra.mxu0 %v1923
    %v3212 = vpop.f32.mrf.mxu0
    %v3213 = vadd.f32 %v2564, %v3212
    %v3214 = vpop.f32.mrf.mxu0
    %v3215 = vadd.f32 %v2566, %v3214
    %3216 = vmatmul.bf16.gmra.mxu0 %v1926
    %v3217 = vpop.f32.mrf.mxu0
    %v3218 = vadd.f32 %v2569, %v3217
    %v3219 = vpop.f32.mrf.mxu0
    %v3220 = vadd.f32 %v2571, %v3219
    %3221 = vmatmul.bf16.gmra.mxu0 %v1929
    %v3222 = vpop.f32.mrf.mxu0
    %v3223 = vadd.f32 %v2574, %v3222
    %v3224 = vpop.f32.mrf.mxu0
    %v3225 = vadd.f32 %v2576, %v3224
    %3226 = vmatmul.bf16.gmra.mxu0 %v1932
    %v3227 = vpop.f32.mrf.mxu0
    %v3228 = vadd.f32 %v2579, %v3227
    %v3229 = vpop.f32.mrf.mxu0
    %v3230 = vadd.f32 %v2581, %v3229
    %3231 = vdwg.mxu0
    %v3232 = vld [vmem:[%s3] sm:$0x3]
    %v3233 = vld [vmem:[%s2] sm:$0x1]
    %s3235 = vtos %v3233
    %v3236 = vstv %s3235
    %v3238 = vadd.f32 %v2593, %v3236
    %v3239 = vadd.f32 %v2595, %v3236
    %v3240 = vadd.f32 %v2598, %v3236
    %v3241 = vadd.f32 %v2600, %v3236
    %v3242 = vadd.f32 %v2603, %v3236
    %v3243 = vadd.f32 %v2605, %v3236
    %v3244 = vadd.f32 %v2608, %v3236
    %v3245 = vadd.f32 %v2610, %v3236
    %v3246 = vadd.f32 %v2613, %v3236
    %v3247 = vadd.f32 %v2615, %v3236
    %v3248 = vadd.f32 %v2618, %v3236
    %v3249 = vadd.f32 %v2620, %v3236
    %v3250 = vadd.f32 %v2623, %v3236
    %v3251 = vadd.f32 %v2625, %v3236
    %v3252 = vadd.f32 %v2628, %v3236
    %v3253 = vadd.f32 %v2630, %v3236
    %vm3254 = vcmp.gt.f32.partialorder %v3238, 0.0
    %vm3255 = vcmp.gt.f32.partialorder %v3239, 0.0
    %vm3256 = vcmp.gt.f32.partialorder %v3240, 0.0
    %vm3257 = vcmp.gt.f32.partialorder %v3241, 0.0
    %vm3258 = vcmp.gt.f32.partialorder %v3242, 0.0
    %vm3259 = vcmp.gt.f32.partialorder %v3243, 0.0
    %vm3260 = vcmp.gt.f32.partialorder %v3244, 0.0
    %vm3261 = vcmp.gt.f32.partialorder %v3245, 0.0
    %vm3262 = vcmp.gt.f32.partialorder %v3246, 0.0
    %vm3263 = vcmp.gt.f32.partialorder %v3247, 0.0
    %vm3264 = vcmp.gt.f32.partialorder %v3248, 0.0
    %vm3265 = vcmp.gt.f32.partialorder %v3249, 0.0
    %vm3266 = vcmp.gt.f32.partialorder %v3250, 0.0
    %vm3267 = vcmp.gt.f32.partialorder %v3251, 0.0
    %vm3268 = vcmp.gt.f32.partialorder %v3252, 0.0
    %vm3269 = vcmp.gt.f32.partialorder %v3253, 0.0
    %v3270 = vmin.f32 %v3238, 0.0
    %v3271 = vmin.f32 %v3239, 0.0
    %v3272 = vmin.f32 %v3240, 0.0
    %v3273 = vmin.f32 %v3241, 0.0
    %v3274 = vmin.f32 %v3242, 0.0
    %v3275 = vmin.f32 %v3243, 0.0
    %v3276 = vmin.f32 %v3244, 0.0
    %v3277 = vmin.f32 %v3245, 0.0
    %v3278 = vmin.f32 %v3246, 0.0
    %v3279 = vmin.f32 %v3247, 0.0
    %v3280 = vmin.f32 %v3248, 0.0
    %v3281 = vmin.f32 %v3249, 0.0
    %v3282 = vmin.f32 %v3250, 0.0
    %v3283 = vmin.f32 %v3251, 0.0
    %v3284 = vmin.f32 %v3252, 0.0
    %v3285 = vmin.f32 %v3253, 0.0
    %v3286 = vmul.f32 %v3270, 1.442695
    %v3287 = vpow.pop %v3286
    %v3288 = vmul.f32 %v3271, 1.442695
    %v3289 = vpow.pop %v3288
    %v3290 = vmul.f32 %v3272, 1.442695
    %v3291 = vpow.pop %v3290
    %v3292 = vmul.f32 %v3273, 1.442695
    %v3293 = vpow.pop %v3292
    %v3294 = vmul.f32 %v3274, 1.442695
    %v3295 = vpow.pop %v3294
    %v3296 = vmul.f32 %v3275, 1.442695
    %v3297 = vpow.pop %v3296
    %v3298 = vmul.f32 %v3276, 1.442695
    %v3299 = vpow.pop %v3298
    %v3300 = vmul.f32 %v3277, 1.442695
    %v3301 = vpow.pop %v3300
    %v3302 = vmul.f32 %v3278, 1.442695
    %v3303 = vpow.pop %v3302
    %v3304 = vmul.f32 %v3279, 1.442695
    %v3305 = vpow.pop %v3304
    %v3306 = vmul.f32 %v3280, 1.442695
    %v3307 = vpow.pop %v3306
    %v3308 = vmul.f32 %v3281, 1.442695
    %v3309 = vpow.pop %v3308
    %v3310 = vmul.f32 %v3282, 1.442695
    %v3311 = vpow.pop %v3310
    %v3312 = vmul.f32 %v3283, 1.442695
    %v3313 = vpow.pop %v3312
    %v3314 = vmul.f32 %v3284, 1.442695
    %v3315 = vpow.pop %v3314
    %v3316 = vmul.f32 %v3285, 1.442695
    %v3317 = vpow.pop %v3316
    %v3318 = vsub.f32 %v3287, 1.0
    %v3319 = vsub.f32 %v3289, 1.0
    %v3320 = vsub.f32 %v3291, 1.0
    %v3321 = vsub.f32 %v3293, 1.0
    %v3322 = vsub.f32 %v3295, 1.0
    %v3323 = vsub.f32 %v3297, 1.0
    %v3324 = vsub.f32 %v3299, 1.0
    %v3325 = vsub.f32 %v3301, 1.0
    %v3326 = vsub.f32 %v3303, 1.0
    %v3327 = vsub.f32 %v3305, 1.0
    %v3328 = vsub.f32 %v3307, 1.0
    %v3329 = vsub.f32 %v3309, 1.0
    %v3330 = vsub.f32 %v3311, 1.0
    %v3331 = vsub.f32 %v3313, 1.0
    %v3332 = vsub.f32 %v3315, 1.0
    %v3333 = vsub.f32 %v3317, 1.0
    %v3334 = vsel %vm3254, %v3238, %v3318
    %v3335 = vsel %vm3255, %v3239, %v3319
    %v3336 = vsel %vm3256, %v3240, %v3320
    %v3337 = vsel %vm3257, %v3241, %v3321
    %v3338 = vsel %vm3258, %v3242, %v3322
    %v3339 = vsel %vm3259, %v3243, %v3323
    %v3340 = vsel %vm3260, %v3244, %v3324
    %v3341 = vsel %vm3261, %v3245, %v3325
    %v3342 = vsel %vm3262, %v3246, %v3326
    %v3343 = vsel %vm3263, %v3247, %v3327
    %v3344 = vsel %vm3264, %v3248, %v3328
    %v3345 = vsel %vm3265, %v3249, %v3329
    %v3346 = vsel %vm3266, %v3250, %v3330
    %v3347 = vsel %vm3267, %v3251, %v3331
    %v3348 = vsel %vm3268, %v3252, %v3332
    %v3349 = vsel %vm3269, %v3253, %v3333
    %v3350 = vpack.c.bf16 %v3335, %v3334
    %v3351 = vpack.c.bf16 %v3337, %v3336
    %v3352 = vpack.c.bf16 %v3339, %v3338
    %v3353 = vpack.c.bf16 %v3341, %v3340
    %v3354 = vpack.c.bf16 %v3343, %v3342
    %v3355 = vpack.c.bf16 %v3345, %v3344
    %v3356 = vpack.c.bf16 %v3347, %v3346
    %v3357 = vpack.c.bf16 %v3349, %v3348
    %v3358 = vld [vmem:[%s2 + $0x1] sm:$0x1]
    %s3360 = vtos %v3358
    %v3361 = vstv %s3360
    %v3363 = vadd.f32 %v2633, %v3361
    %v3364 = vadd.f32 %v2635, %v3361
    %v3365 = vadd.f32 %v2638, %v3361
    %v3366 = vadd.f32 %v2640, %v3361
    %v3367 = vadd.f32 %v2643, %v3361
    %v3368 = vadd.f32 %v2645, %v3361
    %v3369 = vadd.f32 %v2648, %v3361
    %v3370 = vadd.f32 %v2650, %v3361
    %v3371 = vadd.f32 %v2653, %v3361
    %v3372 = vadd.f32 %v2655, %v3361
    %v3373 = vadd.f32 %v2658, %v3361
    %v3374 = vadd.f32 %v2660, %v3361
    %v3375 = vadd.f32 %v2663, %v3361
    %v3376 = vadd.f32 %v2665, %v3361
    %v3377 = vadd.f32 %v2668, %v3361
    %v3378 = vadd.f32 %v2670, %v3361
    %vm3379 = vcmp.gt.f32.partialorder %v3363, 0.0
    %vm3380 = vcmp.gt.f32.partialorder %v3364, 0.0
    %vm3381 = vcmp.gt.f32.partialorder %v3365, 0.0
    %vm3382 = vcmp.gt.f32.partialorder %v3366, 0.0
    %vm3383 = vcmp.gt.f32.partialorder %v3367, 0.0
    %vm3384 = vcmp.gt.f32.partialorder %v3368, 0.0
    %vm3385 = vcmp.gt.f32.partialorder %v3369, 0.0
    %vm3386 = vcmp.gt.f32.partialorder %v3370, 0.0
    %vm3387 = vcmp.gt.f32.partialorder %v3371, 0.0
    %vm3388 = vcmp.gt.f32.partialorder %v3372, 0.0
    %vm3389 = vcmp.gt.f32.partialorder %v3373, 0.0
    %vm3390 = vcmp.gt.f32.partialorder %v3374, 0.0
    %vm3391 = vcmp.gt.f32.partialorder %v3375, 0.0
    %vm3392 = vcmp.gt.f32.partialorder %v3376, 0.0
    %vm3393 = vcmp.gt.f32.partialorder %v3377, 0.0
    %vm3394 = vcmp.gt.f32.partialorder %v3378, 0.0
    %v3395 = vmin.f32 %v3363, 0.0
    %v3396 = vmin.f32 %v3364, 0.0
    %v3397 = vmin.f32 %v3365, 0.0
    %v3398 = vmin.f32 %v3366, 0.0
    %v3399 = vmin.f32 %v3367, 0.0
    %v3400 = vmin.f32 %v3368, 0.0
    %v3401 = vmin.f32 %v3369, 0.0
    %v3402 = vmin.f32 %v3370, 0.0
    %v3403 = vmin.f32 %v3371, 0.0
    %v3404 = vmin.f32 %v3372, 0.0
    %v3405 = vmin.f32 %v3373, 0.0
    %v3406 = vmin.f32 %v3374, 0.0
    %v3407 = vmin.f32 %v3375, 0.0
    %v3408 = vmin.f32 %v3376, 0.0
    %v3409 = vmin.f32 %v3377, 0.0
    %v3410 = vmin.f32 %v3378, 0.0
    %v3411 = vmul.f32 %v3395, 1.442695
    %v3412 = vpow.pop %v3411
    %v3413 = vmul.f32 %v3396, 1.442695
    %v3414 = vpow.pop %v3413
    %v3415 = vmul.f32 %v3397, 1.442695
    %v3416 = vpow.pop %v3415
    %v3417 = vmul.f32 %v3398, 1.442695
    %v3418 = vpow.pop %v3417
    %v3419 = vmul.f32 %v3399, 1.442695
    %v3420 = vpow.pop %v3419
    %v3421 = vmul.f32 %v3400, 1.442695
    %v3422 = vpow.pop %v3421
    %v3423 = vmul.f32 %v3401, 1.442695
    %v3424 = vpow.pop %v3423
    %v3425 = vmul.f32 %v3402, 1.442695
    %v3426 = vpow.pop %v3425
    %v3427 = vmul.f32 %v3403, 1.442695
    %v3428 = vpow.pop %v3427
    %v3429 = vmul.f32 %v3404, 1.442695
    %v3430 = vpow.pop %v3429
    %v3431 = vmul.f32 %v3405, 1.442695
    %v3432 = vpow.pop %v3431
    %v3433 = vmul.f32 %v3406, 1.442695
    %v3434 = vpow.pop %v3433
    %v3435 = vmul.f32 %v3407, 1.442695
    %v3436 = vpow.pop %v3435
    %v3437 = vmul.f32 %v3408, 1.442695
    %v3438 = vpow.pop %v3437
    %v3439 = vmul.f32 %v3409, 1.442695
    %v3440 = vpow.pop %v3439
    %v3441 = vmul.f32 %v3410, 1.442695
    %v3442 = vpow.pop %v3441
    %v3443 = vsub.f32 %v3412, 1.0
    %v3444 = vsub.f32 %v3414, 1.0
    %v3445 = vsub.f32 %v3416, 1.0
    %v3446 = vsub.f32 %v3418, 1.0
    %v3447 = vsub.f32 %v3420, 1.0
    %v3448 = vsub.f32 %v3422, 1.0
    %v3449 = vsub.f32 %v3424, 1.0
    %v3450 = vsub.f32 %v3426, 1.0
    %v3451 = vsub.f32 %v3428, 1.0
    %v3452 = vsub.f32 %v3430, 1.0
    %v3453 = vsub.f32 %v3432, 1.0
    %v3454 = vsub.f32 %v3434, 1.0
    %v3455 = vsub.f32 %v3436, 1.0
    %v3456 = vsub.f32 %v3438, 1.0
    %v3457 = vsub.f32 %v3440, 1.0
    %v3458 = vsub.f32 %v3442, 1.0
    %v3459 = vsel %vm3379, %v3363, %v3443
    %v3460 = vsel %vm3380, %v3364, %v3444
    %v3461 = vsel %vm3381, %v3365, %v3445
    %v3462 = vsel %vm3382, %v3366, %v3446
    %v3463 = vsel %vm3383, %v3367, %v3447
    %v3464 = vsel %vm3384, %v3368, %v3448
    %v3465 = vsel %vm3385, %v3369, %v3449
    %v3466 = vsel %vm3386, %v3370, %v3450
    %v3467 = vsel %vm3387, %v3371, %v3451
    %v3468 = vsel %vm3388, %v3372, %v3452
    %v3469 = vsel %vm3389, %v3373, %v3453
    %v3470 = vsel %vm3390, %v3374, %v3454
    %v3471 = vsel %vm3391, %v3375, %v3455
    %v3472 = vsel %vm3392, %v3376, %v3456
    %v3473 = vsel %vm3393, %v3377, %v3457
    %v3474 = vsel %vm3394, %v3378, %v3458
    %v3475 = vpack.c.bf16 %v3460, %v3459
    %v3476 = vpack.c.bf16 %v3462, %v3461
    %v3477 = vpack.c.bf16 %v3464, %v3463
    %v3478 = vpack.c.bf16 %v3466, %v3465
    %v3479 = vpack.c.bf16 %v3468, %v3467
    %v3480 = vpack.c.bf16 %v3470, %v3469
    %v3481 = vpack.c.bf16 %v3472, %v3471
    %v3482 = vpack.c.bf16 %v3474, %v3473
    %v3483 = vld [vmem:[%s2 + $0x2] sm:$0x1]
    %s3485 = vtos %v3483
    %v3486 = vstv %s3485
    %v3488 = vadd.f32 %v2673, %v3486
    %v3489 = vadd.f32 %v2675, %v3486
    %v3490 = vadd.f32 %v2678, %v3486
    %v3491 = vadd.f32 %v2680, %v3486
    %v3492 = vadd.f32 %v2683, %v3486
    %v3493 = vadd.f32 %v2685, %v3486
    %v3494 = vadd.f32 %v2688, %v3486
    %v3495 = vadd.f32 %v2690, %v3486
    %v3496 = vadd.f32 %v2693, %v3486
    %v3497 = vadd.f32 %v2695, %v3486
    %v3498 = vadd.f32 %v2698, %v3486
    %v3499 = vadd.f32 %v2700, %v3486
    %v3500 = vadd.f32 %v2703, %v3486
    %v3501 = vadd.f32 %v2705, %v3486
    %v3502 = vadd.f32 %v2708, %v3486
    %v3503 = vadd.f32 %v2710, %v3486
    %vm3504 = vcmp.gt.f32.partialorder %v3488, 0.0
    %vm3505 = vcmp.gt.f32.partialorder %v3489, 0.0
    %vm3506 = vcmp.gt.f32.partialorder %v3490, 0.0
    %vm3507 = vcmp.gt.f32.partialorder %v3491, 0.0
    %vm3508 = vcmp.gt.f32.partialorder %v3492, 0.0
    %vm3509 = vcmp.gt.f32.partialorder %v3493, 0.0
    %vm3510 = vcmp.gt.f32.partialorder %v3494, 0.0
    %vm3511 = vcmp.gt.f32.partialorder %v3495, 0.0
    %vm3512 = vcmp.gt.f32.partialorder %v3496, 0.0
    %vm3513 = vcmp.gt.f32.partialorder %v3497, 0.0
    %vm3514 = vcmp.gt.f32.partialorder %v3498, 0.0
    %vm3515 = vcmp.gt.f32.partialorder %v3499, 0.0
    %vm3516 = vcmp.gt.f32.partialorder %v3500, 0.0
    %vm3517 = vcmp.gt.f32.partialorder %v3501, 0.0
    %vm3518 = vcmp.gt.f32.partialorder %v3502, 0.0
    %vm3519 = vcmp.gt.f32.partialorder %v3503, 0.0
    %v3520 = vmin.f32 %v3488, 0.0
    %v3521 = vmin.f32 %v3489, 0.0
    %v3522 = vmin.f32 %v3490, 0.0
    %v3523 = vmin.f32 %v3491, 0.0
    %v3524 = vmin.f32 %v3492, 0.0
    %v3525 = vmin.f32 %v3493, 0.0
    %v3526 = vmin.f32 %v3494, 0.0
    %v3527 = vmin.f32 %v3495, 0.0
    %v3528 = vmin.f32 %v3496, 0.0
    %v3529 = vmin.f32 %v3497, 0.0
    %v3530 = vmin.f32 %v3498, 0.0
    %v3531 = vmin.f32 %v3499, 0.0
    %v3532 = vmin.f32 %v3500, 0.0
    %v3533 = vmin.f32 %v3501, 0.0
    %v3534 = vmin.f32 %v3502, 0.0
    %v3535 = vmin.f32 %v3503, 0.0
    %v3536 = vmul.f32 %v3520, 1.442695
    %v3537 = vpow.pop %v3536
    %v3538 = vmul.f32 %v3521, 1.442695
    %v3539 = vpow.pop %v3538
    %v3540 = vmul.f32 %v3522, 1.442695
    %v3541 = vpow.pop %v3540
    %v3542 = vmul.f32 %v3523, 1.442695
    %v3543 = vpow.pop %v3542
    %v3544 = vmul.f32 %v3524, 1.442695
    %v3545 = vpow.pop %v3544
    %v3546 = vmul.f32 %v3525, 1.442695
    %v3547 = vpow.pop %v3546
    %v3548 = vmul.f32 %v3526, 1.442695
    %v3549 = vpow.pop %v3548
    %v3550 = vmul.f32 %v3527, 1.442695
    %v3551 = vpow.pop %v3550
    %v3552 = vmul.f32 %v3528, 1.442695
    %v3553 = vpow.pop %v3552
    %v3554 = vmul.f32 %v3529, 1.442695
    %v3555 = vpow.pop %v3554
    %v3556 = vmul.f32 %v3530, 1.442695
    %v3557 = vpow.pop %v3556
    %v3558 = vmul.f32 %v3531, 1.442695
    %v3559 = vpow.pop %v3558
    %v3560 = vmul.f32 %v3532, 1.442695
    %v3561 = vpow.pop %v3560
    %v3562 = vmul.f32 %v3533, 1.442695
    %v3563 = vpow.pop %v3562
    %v3564 = vmul.f32 %v3534, 1.442695
    %v3565 = vpow.pop %v3564
    %v3566 = vmul.f32 %v3535, 1.442695
    %v3567 = vpow.pop %v3566
    %v3568 = vsub.f32 %v3537, 1.0
    %v3569 = vsub.f32 %v3539, 1.0
    %v3570 = vsub.f32 %v3541, 1.0
    %v3571 = vsub.f32 %v3543, 1.0
    %v3572 = vsub.f32 %v3545, 1.0
    %v3573 = vsub.f32 %v3547, 1.0
    %v3574 = vsub.f32 %v3549, 1.0
    %v3575 = vsub.f32 %v3551, 1.0
    %v3576 = vsub.f32 %v3553, 1.0
    %v3577 = vsub.f32 %v3555, 1.0
    %v3578 = vsub.f32 %v3557, 1.0
    %v3579 = vsub.f32 %v3559, 1.0
    %v3580 = vsub.f32 %v3561, 1.0
    %v3581 = vsub.f32 %v3563, 1.0
    %v3582 = vsub.f32 %v3565, 1.0
    %v3583 = vsub.f32 %v3567, 1.0
    %v3584 = vsel %vm3504, %v3488, %v3568
    %v3585 = vsel %vm3505, %v3489, %v3569
    %v3586 = vsel %vm3506, %v3490, %v3570
    %v3587 = vsel %vm3507, %v3491, %v3571
    %v3588 = vsel %vm3508, %v3492, %v3572
    %v3589 = vsel %vm3509, %v3493, %v3573
    %v3590 = vsel %vm3510, %v3494, %v3574
    %v3591 = vsel %vm3511, %v3495, %v3575
    %v3592 = vsel %vm3512, %v3496, %v3576
    %v3593 = vsel %vm3513, %v3497, %v3577
    %v3594 = vsel %vm3514, %v3498, %v3578
    %v3595 = vsel %vm3515, %v3499, %v3579
    %v3596 = vsel %vm3516, %v3500, %v3580
    %v3597 = vsel %vm3517, %v3501, %v3581
    %v3598 = vsel %vm3518, %v3502, %v3582
    %v3599 = vsel %vm3519, %v3503, %v3583
    %v3600 = vpack.c.bf16 %v3585, %v3584
    %v3601 = vpack.c.bf16 %v3587, %v3586
    %v3602 = vpack.c.bf16 %v3589, %v3588
    %v3603 = vpack.c.bf16 %v3591, %v3590
    %v3604 = vpack.c.bf16 %v3593, %v3592
    %v3605 = vpack.c.bf16 %v3595, %v3594
    %v3606 = vpack.c.bf16 %v3597, %v3596
    %v3607 = vpack.c.bf16 %v3599, %v3598
    %v3608 = vld [vmem:[%s2 + $0x3] sm:$0x1]
    %s3610 = vtos %v3608
    %v3611 = vstv %s3610
    %v3613 = vadd.f32 %v2713, %v3611
    %v3614 = vadd.f32 %v2715, %v3611
    %v3615 = vadd.f32 %v2718, %v3611
    %v3616 = vadd.f32 %v2720, %v3611
    %v3617 = vadd.f32 %v2723, %v3611
    %v3618 = vadd.f32 %v2725, %v3611
    %v3619 = vadd.f32 %v2728, %v3611
    %v3620 = vadd.f32 %v2730, %v3611
    %v3621 = vadd.f32 %v2733, %v3611
    %v3622 = vadd.f32 %v2735, %v3611
    %v3623 = vadd.f32 %v2738, %v3611
    %v3624 = vadd.f32 %v2740, %v3611
    %v3625 = vadd.f32 %v2743, %v3611
    %v3626 = vadd.f32 %v2745, %v3611
    %v3627 = vadd.f32 %v2748, %v3611
    %v3628 = vadd.f32 %v2750, %v3611
    %vm3629 = vcmp.gt.f32.partialorder %v3613, 0.0
    %vm3630 = vcmp.gt.f32.partialorder %v3614, 0.0
    %vm3631 = vcmp.gt.f32.partialorder %v3615, 0.0
    %vm3632 = vcmp.gt.f32.partialorder %v3616, 0.0
    %vm3633 = vcmp.gt.f32.partialorder %v3617, 0.0
    %vm3634 = vcmp.gt.f32.partialorder %v3618, 0.0
    %vm3635 = vcmp.gt.f32.partialorder %v3619, 0.0
    %vm3636 = vcmp.gt.f32.partialorder %v3620, 0.0
    %vm3637 = vcmp.gt.f32.partialorder %v3621, 0.0
    %vm3638 = vcmp.gt.f32.partialorder %v3622, 0.0
    %vm3639 = vcmp.gt.f32.partialorder %v3623, 0.0
    %vm3640 = vcmp.gt.f32.partialorder %v3624, 0.0
    %vm3641 = vcmp.gt.f32.partialorder %v3625, 0.0
    %vm3642 = vcmp.gt.f32.partialorder %v3626, 0.0
    %vm3643 = vcmp.gt.f32.partialorder %v3627, 0.0
    %vm3644 = vcmp.gt.f32.partialorder %v3628, 0.0
    %v3645 = vmin.f32 %v3613, 0.0
    %v3646 = vmin.f32 %v3614, 0.0
    %v3647 = vmin.f32 %v3615, 0.0
    %v3648 = vmin.f32 %v3616, 0.0
    %v3649 = vmin.f32 %v3617, 0.0
    %v3650 = vmin.f32 %v3618, 0.0
    %v3651 = vmin.f32 %v3619, 0.0
    %v3652 = vmin.f32 %v3620, 0.0
    %v3653 = vmin.f32 %v3621, 0.0
    %v3654 = vmin.f32 %v3622, 0.0
    %v3655 = vmin.f32 %v3623, 0.0
    %v3656 = vmin.f32 %v3624, 0.0
    %v3657 = vmin.f32 %v3625, 0.0
    %v3658 = vmin.f32 %v3626, 0.0
    %v3659 = vmin.f32 %v3627, 0.0
    %v3660 = vmin.f32 %v3628, 0.0
    %v3661 = vmul.f32 %v3645, 1.442695
    %v3662 = vpow.pop %v3661
    %v3663 = vmul.f32 %v3646, 1.442695
    %v3664 = vpow.pop %v3663
    %v3665 = vmul.f32 %v3647, 1.442695
    %v3666 = vpow.pop %v3665
    %v3667 = vmul.f32 %v3648, 1.442695
    %v3668 = vpow.pop %v3667
    %v3669 = vmul.f32 %v3649, 1.442695
    %v3670 = vpow.pop %v3669
    %v3671 = vmul.f32 %v3650, 1.442695
    %v3672 = vpow.pop %v3671
    %v3673 = vmul.f32 %v3651, 1.442695
    %v3674 = vpow.pop %v3673
    %v3675 = vmul.f32 %v3652, 1.442695
    %v3676 = vpow.pop %v3675
    %v3677 = vmul.f32 %v3653, 1.442695
    %v3678 = vpow.pop %v3677
    %v3679 = vmul.f32 %v3654, 1.442695
    %v3680 = vpow.pop %v3679
    %v3681 = vmul.f32 %v3655, 1.442695
    %v3682 = vpow.pop %v3681
    %v3683 = vmul.f32 %v3656, 1.442695
    %v3684 = vpow.pop %v3683
    %v3685 = vmul.f32 %v3657, 1.442695
    %v3686 = vpow.pop %v3685
    %v3687 = vmul.f32 %v3658, 1.442695
    %v3688 = vpow.pop %v3687
    %v3689 = vmul.f32 %v3659, 1.442695
    %v3690 = vpow.pop %v3689
    %v3691 = vmul.f32 %v3660, 1.442695
    %v3692 = vpow.pop %v3691
    %v3693 = vsub.f32 %v3662, 1.0
    %v3694 = vsub.f32 %v3664, 1.0
    %v3695 = vsub.f32 %v3666, 1.0
    %v3696 = vsub.f32 %v3668, 1.0
    %v3697 = vsub.f32 %v3670, 1.0
    %v3698 = vsub.f32 %v3672, 1.0
    %v3699 = vsub.f32 %v3674, 1.0
    %v3700 = vsub.f32 %v3676, 1.0
    %v3701 = vsub.f32 %v3678, 1.0
    %v3702 = vsub.f32 %v3680, 1.0
    %v3703 = vsub.f32 %v3682, 1.0
    %v3704 = vsub.f32 %v3684, 1.0
    %v3705 = vsub.f32 %v3686, 1.0
    %v3706 = vsub.f32 %v3688, 1.0
    %v3707 = vsub.f32 %v3690, 1.0
    %v3708 = vsub.f32 %v3692, 1.0
    %v3709 = vsel %vm3629, %v3613, %v3693
    %v3710 = vsel %vm3630, %v3614, %v3694
    %v3711 = vsel %vm3631, %v3615, %v3695
    %v3712 = vsel %vm3632, %v3616, %v3696
    %v3713 = vsel %vm3633, %v3617, %v3697
    %v3714 = vsel %vm3634, %v3618, %v3698
    %v3715 = vsel %vm3635, %v3619, %v3699
    %v3716 = vsel %vm3636, %v3620, %v3700
    %v3717 = vsel %vm3637, %v3621, %v3701
    %v3718 = vsel %vm3638, %v3622, %v3702
    %v3719 = vsel %vm3639, %v3623, %v3703
    %v3720 = vsel %vm3640, %v3624, %v3704
    %v3721 = vsel %vm3641, %v3625, %v3705
    %v3722 = vsel %vm3642, %v3626, %v3706
    %v3723 = vsel %vm3643, %v3627, %v3707
    %v3724 = vsel %vm3644, %v3628, %v3708
    %v3725 = vpack.c.bf16 %v3710, %v3709
    %v3726 = vpack.c.bf16 %v3712, %v3711
    %v3727 = vpack.c.bf16 %v3714, %v3713
    %v3728 = vpack.c.bf16 %v3716, %v3715
    %v3729 = vpack.c.bf16 %v3718, %v3717
    %v3730 = vpack.c.bf16 %v3720, %v3719
    %v3731 = vpack.c.bf16 %v3722, %v3721
    %v3732 = vpack.c.bf16 %v3724, %v3723
    %v3733 = vld [vmem:[%s2 + $0x4] sm:$0x1]
    %s3735 = vtos %v3733
    %v3736 = vstv %s3735
    %v3738 = vadd.f32 %v2753, %v3736
    %v3739 = vadd.f32 %v2755, %v3736
    %v3740 = vadd.f32 %v2758, %v3736
    %v3741 = vadd.f32 %v2760, %v3736
    %v3742 = vadd.f32 %v2763, %v3736
    %v3743 = vadd.f32 %v2765, %v3736
    %v3744 = vadd.f32 %v2768, %v3736
    %v3745 = vadd.f32 %v2770, %v3736
    %v3746 = vadd.f32 %v2773, %v3736
    %v3747 = vadd.f32 %v2775, %v3736
    %v3748 = vadd.f32 %v2778, %v3736
    %v3749 = vadd.f32 %v2780, %v3736
    %v3750 = vadd.f32 %v2783, %v3736
    %v3751 = vadd.f32 %v2785, %v3736
    %v3752 = vadd.f32 %v2788, %v3736
    %v3753 = vadd.f32 %v2790, %v3736
    %vm3754 = vcmp.gt.f32.partialorder %v3738, 0.0
    %vm3755 = vcmp.gt.f32.partialorder %v3739, 0.0
    %vm3756 = vcmp.gt.f32.partialorder %v3740, 0.0
    %vm3757 = vcmp.gt.f32.partialorder %v3741, 0.0
    %vm3758 = vcmp.gt.f32.partialorder %v3742, 0.0
    %vm3759 = vcmp.gt.f32.partialorder %v3743, 0.0
    %vm3760 = vcmp.gt.f32.partialorder %v3744, 0.0
    %vm3761 = vcmp.gt.f32.partialorder %v3745, 0.0
    %vm3762 = vcmp.gt.f32.partialorder %v3746, 0.0
    %vm3763 = vcmp.gt.f32.partialorder %v3747, 0.0
    %vm3764 = vcmp.gt.f32.partialorder %v3748, 0.0
    %vm3765 = vcmp.gt.f32.partialorder %v3749, 0.0
    %vm3766 = vcmp.gt.f32.partialorder %v3750, 0.0
    %vm3767 = vcmp.gt.f32.partialorder %v3751, 0.0
    %vm3768 = vcmp.gt.f32.partialorder %v3752, 0.0
    %vm3769 = vcmp.gt.f32.partialorder %v3753, 0.0
    %v3770 = vmin.f32 %v3738, 0.0
    %v3771 = vmin.f32 %v3739, 0.0
    %v3772 = vmin.f32 %v3740, 0.0
    %v3773 = vmin.f32 %v3741, 0.0
    %v3774 = vmin.f32 %v3742, 0.0
    %v3775 = vmin.f32 %v3743, 0.0
    %v3776 = vmin.f32 %v3744, 0.0
    %v3777 = vmin.f32 %v3745, 0.0
    %v3778 = vmin.f32 %v3746, 0.0
    %v3779 = vmin.f32 %v3747, 0.0
    %v3780 = vmin.f32 %v3748, 0.0
    %v3781 = vmin.f32 %v3749, 0.0
    %v3782 = vmin.f32 %v3750, 0.0
    %v3783 = vmin.f32 %v3751, 0.0
    %v3784 = vmin.f32 %v3752, 0.0
    %v3785 = vmin.f32 %v3753, 0.0
    %v3786 = vmul.f32 %v3770, 1.442695
    %v3787 = vpow.pop %v3786
    %v3788 = vmul.f32 %v3771, 1.442695
    %v3789 = vpow.pop %v3788
    %v3790 = vmul.f32 %v3772, 1.442695
    %v3791 = vpow.pop %v3790
    %v3792 = vmul.f32 %v3773, 1.442695
    %v3793 = vpow.pop %v3792
    %v3794 = vmul.f32 %v3774, 1.442695
    %v3795 = vpow.pop %v3794
    %v3796 = vmul.f32 %v3775, 1.442695
    %v3797 = vpow.pop %v3796
    %v3798 = vmul.f32 %v3776, 1.442695
    %v3799 = vpow.pop %v3798
    %v3800 = vmul.f32 %v3777, 1.442695
    %v3801 = vpow.pop %v3800
    %v3802 = vmul.f32 %v3778, 1.442695
    %v3803 = vpow.pop %v3802
    %v3804 = vmul.f32 %v3779, 1.442695
    %v3805 = vpow.pop %v3804
    %v3806 = vmul.f32 %v3780, 1.442695
    %v3807 = vpow.pop %v3806
    %v3808 = vmul.f32 %v3781, 1.442695
    %v3809 = vpow.pop %v3808
    %v3810 = vmul.f32 %v3782, 1.442695
    %v3811 = vpow.pop %v3810
    %v3812 = vmul.f32 %v3783, 1.442695
    %v3813 = vpow.pop %v3812
    %v3814 = vmul.f32 %v3784, 1.442695
    %v3815 = vpow.pop %v3814
    %v3816 = vmul.f32 %v3785, 1.442695
    %v3817 = vpow.pop %v3816
    %v3818 = vsub.f32 %v3787, 1.0
    %v3819 = vsub.f32 %v3789, 1.0
    %v3820 = vsub.f32 %v3791, 1.0
    %v3821 = vsub.f32 %v3793, 1.0
    %v3822 = vsub.f32 %v3795, 1.0
    %v3823 = vsub.f32 %v3797, 1.0
    %v3824 = vsub.f32 %v3799, 1.0
    %v3825 = vsub.f32 %v3801, 1.0
    %v3826 = vsub.f32 %v3803, 1.0
    %v3827 = vsub.f32 %v3805, 1.0
    %v3828 = vsub.f32 %v3807, 1.0
    %v3829 = vsub.f32 %v3809, 1.0
    %v3830 = vsub.f32 %v3811, 1.0
    %v3831 = vsub.f32 %v3813, 1.0
    %v3832 = vsub.f32 %v3815, 1.0
    %v3833 = vsub.f32 %v3817, 1.0
    %v3834 = vsel %vm3754, %v3738, %v3818
    %v3835 = vsel %vm3755, %v3739, %v3819
    %v3836 = vsel %vm3756, %v3740, %v3820
    %v3837 = vsel %vm3757, %v3741, %v3821
    %v3838 = vsel %vm3758, %v3742, %v3822
    %v3839 = vsel %vm3759, %v3743, %v3823
    %v3840 = vsel %vm3760, %v3744, %v3824
    %v3841 = vsel %vm3761, %v3745, %v3825
    %v3842 = vsel %vm3762, %v3746, %v3826
    %v3843 = vsel %vm3763, %v3747, %v3827
    %v3844 = vsel %vm3764, %v3748, %v3828
    %v3845 = vsel %vm3765, %v3749, %v3829
    %v3846 = vsel %vm3766, %v3750, %v3830
    %v3847 = vsel %vm3767, %v3751, %v3831
    %v3848 = vsel %vm3768, %v3752, %v3832
    %v3849 = vsel %vm3769, %v3753, %v3833
    %v3850 = vpack.c.bf16 %v3835, %v3834
    %v3851 = vpack.c.bf16 %v3837, %v3836
    %v3852 = vpack.c.bf16 %v3839, %v3838
    %v3853 = vpack.c.bf16 %v3841, %v3840
    %v3854 = vpack.c.bf16 %v3843, %v3842
    %v3855 = vpack.c.bf16 %v3845, %v3844
    %v3856 = vpack.c.bf16 %v3847, %v3846
    %v3857 = vpack.c.bf16 %v3849, %v3848
    %v3858 = vld [vmem:[%s2 + $0x5] sm:$0x1]
    %s3860 = vtos %v3858
    %v3861 = vstv %s3860
    %v3863 = vadd.f32 %v2793, %v3861
    %v3864 = vadd.f32 %v2795, %v3861
    %v3865 = vadd.f32 %v2798, %v3861
    %v3866 = vadd.f32 %v2800, %v3861
    %v3867 = vadd.f32 %v2803, %v3861
    %v3868 = vadd.f32 %v2805, %v3861
    %v3869 = vadd.f32 %v2808, %v3861
    %v3870 = vadd.f32 %v2810, %v3861
    %v3871 = vadd.f32 %v2813, %v3861
    %v3872 = vadd.f32 %v2815, %v3861
    %v3873 = vadd.f32 %v2818, %v3861
    %v3874 = vadd.f32 %v2820, %v3861
    %v3875 = vadd.f32 %v2823, %v3861
    %v3876 = vadd.f32 %v2825, %v3861
    %v3877 = vadd.f32 %v2828, %v3861
    %v3878 = vadd.f32 %v2830, %v3861
    %vm3879 = vcmp.gt.f32.partialorder %v3863, 0.0
    %vm3880 = vcmp.gt.f32.partialorder %v3864, 0.0
    %vm3881 = vcmp.gt.f32.partialorder %v3865, 0.0
    %vm3882 = vcmp.gt.f32.partialorder %v3866, 0.0
    %vm3883 = vcmp.gt.f32.partialorder %v3867, 0.0
    %vm3884 = vcmp.gt.f32.partialorder %v3868, 0.0
    %vm3885 = vcmp.gt.f32.partialorder %v3869, 0.0
    %vm3886 = vcmp.gt.f32.partialorder %v3870, 0.0
    %vm3887 = vcmp.gt.f32.partialorder %v3871, 0.0
    %vm3888 = vcmp.gt.f32.partialorder %v3872, 0.0
    %vm3889 = vcmp.gt.f32.partialorder %v3873, 0.0
    %vm3890 = vcmp.gt.f32.partialorder %v3874, 0.0
    %vm3891 = vcmp.gt.f32.partialorder %v3875, 0.0
    %vm3892 = vcmp.gt.f32.partialorder %v3876, 0.0
    %vm3893 = vcmp.gt.f32.partialorder %v3877, 0.0
    %vm3894 = vcmp.gt.f32.partialorder %v3878, 0.0
    %v3895 = vmin.f32 %v3863, 0.0
    %v3896 = vmin.f32 %v3864, 0.0
    %v3897 = vmin.f32 %v3865, 0.0
    %v3898 = vmin.f32 %v3866, 0.0
    %v3899 = vmin.f32 %v3867, 0.0
    %v3900 = vmin.f32 %v3868, 0.0
    %v3901 = vmin.f32 %v3869, 0.0
    %v3902 = vmin.f32 %v3870, 0.0
    %v3903 = vmin.f32 %v3871, 0.0
    %v3904 = vmin.f32 %v3872, 0.0
    %v3905 = vmin.f32 %v3873, 0.0
    %v3906 = vmin.f32 %v3874, 0.0
    %v3907 = vmin.f32 %v3875, 0.0
    %v3908 = vmin.f32 %v3876, 0.0
    %v3909 = vmin.f32 %v3877, 0.0
    %v3910 = vmin.f32 %v3878, 0.0
    %v3911 = vmul.f32 %v3895, 1.442695
    %v3912 = vpow.pop %v3911
    %v3913 = vmul.f32 %v3896, 1.442695
    %v3914 = vpow.pop %v3913
    %v3915 = vmul.f32 %v3897, 1.442695
    %v3916 = vpow.pop %v3915
    %v3917 = vmul.f32 %v3898, 1.442695
    %v3918 = vpow.pop %v3917
    %v3919 = vmul.f32 %v3899, 1.442695
    %v3920 = vpow.pop %v3919
    %v3921 = vmul.f32 %v3900, 1.442695
    %v3922 = vpow.pop %v3921
    %v3923 = vmul.f32 %v3901, 1.442695
    %v3924 = vpow.pop %v3923
    %v3925 = vmul.f32 %v3902, 1.442695
    %v3926 = vpow.pop %v3925
    %v3927 = vmul.f32 %v3903, 1.442695
    %v3928 = vpow.pop %v3927
    %v3929 = vmul.f32 %v3904, 1.442695
    %v3930 = vpow.pop %v3929
    %v3931 = vmul.f32 %v3905, 1.442695
    %v3932 = vpow.pop %v3931
    %v3933 = vmul.f32 %v3906, 1.442695
    %v3934 = vpow.pop %v3933
    %v3935 = vmul.f32 %v3907, 1.442695
    %v3936 = vpow.pop %v3935
    %v3937 = vmul.f32 %v3908, 1.442695
    %v3938 = vpow.pop %v3937
    %v3939 = vmul.f32 %v3909, 1.442695
    %v3940 = vpow.pop %v3939
    %v3941 = vmul.f32 %v3910, 1.442695
    %v3942 = vpow.pop %v3941
    %v3943 = vsub.f32 %v3912, 1.0
    %v3944 = vsub.f32 %v3914, 1.0
    %v3945 = vsub.f32 %v3916, 1.0
    %v3946 = vsub.f32 %v3918, 1.0
    %v3947 = vsub.f32 %v3920, 1.0
    %v3948 = vsub.f32 %v3922, 1.0
    %v3949 = vsub.f32 %v3924, 1.0
    %v3950 = vsub.f32 %v3926, 1.0
    %v3951 = vsub.f32 %v3928, 1.0
    %v3952 = vsub.f32 %v3930, 1.0
    %v3953 = vsub.f32 %v3932, 1.0
    %v3954 = vsub.f32 %v3934, 1.0
    %v3955 = vsub.f32 %v3936, 1.0
    %v3956 = vsub.f32 %v3938, 1.0
    %v3957 = vsub.f32 %v3940, 1.0
    %v3958 = vsub.f32 %v3942, 1.0
    %v3959 = vsel %vm3879, %v3863, %v3943
    %v3960 = vsel %vm3880, %v3864, %v3944
    %v3961 = vsel %vm3881, %v3865, %v3945
    %v3962 = vsel %vm3882, %v3866, %v3946
    %v3963 = vsel %vm3883, %v3867, %v3947
    %v3964 = vsel %vm3884, %v3868, %v3948
    %v3965 = vsel %vm3885, %v3869, %v3949
    %v3966 = vsel %vm3886, %v3870, %v3950
    %v3967 = vsel %vm3887, %v3871, %v3951
    %v3968 = vsel %vm3888, %v3872, %v3952
    %v3969 = vsel %vm3889, %v3873, %v3953
    %v3970 = vsel %vm3890, %v3874, %v3954
    %v3971 = vsel %vm3891, %v3875, %v3955
    %v3972 = vsel %vm3892, %v3876, %v3956
    %v3973 = vsel %vm3893, %v3877, %v3957
    %v3974 = vsel %vm3894, %v3878, %v3958
    %v3975 = vpack.c.bf16 %v3960, %v3959
    %v3976 = vpack.c.bf16 %v3962, %v3961
    %v3977 = vpack.c.bf16 %v3964, %v3963
    %v3978 = vpack.c.bf16 %v3966, %v3965
    %v3979 = vpack.c.bf16 %v3968, %v3967
    %v3980 = vpack.c.bf16 %v3970, %v3969
    %v3981 = vpack.c.bf16 %v3972, %v3971
    %v3982 = vpack.c.bf16 %v3974, %v3973
    %v3983 = vld [vmem:[%s2 + $0x6] sm:$0x1]
    %s3985 = vtos %v3983
    %v3986 = vstv %s3985
    %v3988 = vadd.f32 %v2833, %v3986
    %v3989 = vadd.f32 %v2835, %v3986
    %v3990 = vadd.f32 %v2838, %v3986
    %v3991 = vadd.f32 %v2840, %v3986
    %v3992 = vadd.f32 %v2843, %v3986
    %v3993 = vadd.f32 %v2845, %v3986
    %v3994 = vadd.f32 %v2848, %v3986
    %v3995 = vadd.f32 %v2850, %v3986
    %v3996 = vadd.f32 %v2853, %v3986
    %v3997 = vadd.f32 %v2855, %v3986
    %v3998 = vadd.f32 %v2858, %v3986
    %v3999 = vadd.f32 %v2860, %v3986
    %v4000 = vadd.f32 %v2863, %v3986
    %v4001 = vadd.f32 %v2865, %v3986
    %v4002 = vadd.f32 %v2868, %v3986
    %v4003 = vadd.f32 %v2870, %v3986
    %vm4004 = vcmp.gt.f32.partialorder %v3988, 0.0
    %vm4005 = vcmp.gt.f32.partialorder %v3989, 0.0
    %vm4006 = vcmp.gt.f32.partialorder %v3990, 0.0
    %vm4007 = vcmp.gt.f32.partialorder %v3991, 0.0
    %vm4008 = vcmp.gt.f32.partialorder %v3992, 0.0
    %vm4009 = vcmp.gt.f32.partialorder %v3993, 0.0
    %vm4010 = vcmp.gt.f32.partialorder %v3994, 0.0
    %vm4011 = vcmp.gt.f32.partialorder %v3995, 0.0
    %vm4012 = vcmp.gt.f32.partialorder %v3996, 0.0
    %vm4013 = vcmp.gt.f32.partialorder %v3997, 0.0
    %vm4014 = vcmp.gt.f32.partialorder %v3998, 0.0
    %vm4015 = vcmp.gt.f32.partialorder %v3999, 0.0
    %vm4016 = vcmp.gt.f32.partialorder %v4000, 0.0
    %vm4017 = vcmp.gt.f32.partialorder %v4001, 0.0
    %vm4018 = vcmp.gt.f32.partialorder %v4002, 0.0
    %vm4019 = vcmp.gt.f32.partialorder %v4003, 0.0
    %v4020 = vmin.f32 %v3988, 0.0
    %v4021 = vmin.f32 %v3989, 0.0
    %v4022 = vmin.f32 %v3990, 0.0
    %v4023 = vmin.f32 %v3991, 0.0
    %v4024 = vmin.f32 %v3992, 0.0
    %v4025 = vmin.f32 %v3993, 0.0
    %v4026 = vmin.f32 %v3994, 0.0
    %v4027 = vmin.f32 %v3995, 0.0
    %v4028 = vmin.f32 %v3996, 0.0
    %v4029 = vmin.f32 %v3997, 0.0
    %v4030 = vmin.f32 %v3998, 0.0
    %v4031 = vmin.f32 %v3999, 0.0
    %v4032 = vmin.f32 %v4000, 0.0
    %v4033 = vmin.f32 %v4001, 0.0
    %v4034 = vmin.f32 %v4002, 0.0
    %v4035 = vmin.f32 %v4003, 0.0
    %v4036 = vmul.f32 %v4020, 1.442695
    %v4037 = vpow.pop %v4036
    %v4038 = vmul.f32 %v4021, 1.442695
    %v4039 = vpow.pop %v4038
    %v4040 = vmul.f32 %v4022, 1.442695
    %v4041 = vpow.pop %v4040
    %v4042 = vmul.f32 %v4023, 1.442695
    %v4043 = vpow.pop %v4042
    %v4044 = vmul.f32 %v4024, 1.442695
    %v4045 = vpow.pop %v4044
    %v4046 = vmul.f32 %v4025, 1.442695
    %v4047 = vpow.pop %v4046
    %v4048 = vmul.f32 %v4026, 1.442695
    %v4049 = vpow.pop %v4048
    %v4050 = vmul.f32 %v4027, 1.442695
    %v4051 = vpow.pop %v4050
    %v4052 = vmul.f32 %v4028, 1.442695
    %v4053 = vpow.pop %v4052
    %v4054 = vmul.f32 %v4029, 1.442695
    %v4055 = vpow.pop %v4054
    %v4056 = vmul.f32 %v4030, 1.442695
    %v4057 = vpow.pop %v4056
    %v4058 = vmul.f32 %v4031, 1.442695
    %v4059 = vpow.pop %v4058
    %v4060 = vmul.f32 %v4032, 1.442695
    %v4061 = vpow.pop %v4060
    %v4062 = vmul.f32 %v4033, 1.442695
    %v4063 = vpow.pop %v4062
    %v4064 = vmul.f32 %v4034, 1.442695
    %v4065 = vpow.pop %v4064
    %v4066 = vmul.f32 %v4035, 1.442695
    %v4067 = vpow.pop %v4066
    %v4068 = vsub.f32 %v4037, 1.0
    %v4069 = vsub.f32 %v4039, 1.0
    %v4070 = vsub.f32 %v4041, 1.0
    %v4071 = vsub.f32 %v4043, 1.0
    %v4072 = vsub.f32 %v4045, 1.0
    %v4073 = vsub.f32 %v4047, 1.0
    %v4074 = vsub.f32 %v4049, 1.0
    %v4075 = vsub.f32 %v4051, 1.0
    %v4076 = vsub.f32 %v4053, 1.0
    %v4077 = vsub.f32 %v4055, 1.0
    %v4078 = vsub.f32 %v4057, 1.0
    %v4079 = vsub.f32 %v4059, 1.0
    %v4080 = vsub.f32 %v4061, 1.0
    %v4081 = vsub.f32 %v4063, 1.0
    %v4082 = vsub.f32 %v4065, 1.0
    %v4083 = vsub.f32 %v4067, 1.0
    %v4084 = vsel %vm4004, %v3988, %v4068
    %v4085 = vsel %vm4005, %v3989, %v4069
    %v4086 = vsel %vm4006, %v3990, %v4070
    %v4087 = vsel %vm4007, %v3991, %v4071
    %v4088 = vsel %vm4008, %v3992, %v4072
    %v4089 = vsel %vm4009, %v3993, %v4073
    %v4090 = vsel %vm4010, %v3994, %v4074
    %v4091 = vsel %vm4011, %v3995, %v4075
    %v4092 = vsel %vm4012, %v3996, %v4076
    %v4093 = vsel %vm4013, %v3997, %v4077
    %v4094 = vsel %vm4014, %v3998, %v4078
    %v4095 = vsel %vm4015, %v3999, %v4079
    %v4096 = vsel %vm4016, %v4000, %v4080
    %v4097 = vsel %vm4017, %v4001, %v4081
    %v4098 = vsel %vm4018, %v4002, %v4082
    %v4099 = vsel %vm4019, %v4003, %v4083
    %v4100 = vpack.c.bf16 %v4085, %v4084
    %v4101 = vpack.c.bf16 %v4087, %v4086
    %v4102 = vpack.c.bf16 %v4089, %v4088
    %v4103 = vpack.c.bf16 %v4091, %v4090
    %v4104 = vpack.c.bf16 %v4093, %v4092
    %v4105 = vpack.c.bf16 %v4095, %v4094
    %v4106 = vpack.c.bf16 %v4097, %v4096
    %v4107 = vpack.c.bf16 %v4099, %v4098
    %v4108 = vld [vmem:[%s2 + $0x7] sm:$0x1]
    %s4110 = vtos %v4108
    %v4111 = vstv %s4110
    %v4113 = vadd.f32 %v2873, %v4111
    %v4114 = vadd.f32 %v2875, %v4111
    %v4115 = vadd.f32 %v2878, %v4111
    %v4116 = vadd.f32 %v2880, %v4111
    %v4117 = vadd.f32 %v2883, %v4111
    %v4118 = vadd.f32 %v2885, %v4111
    %v4119 = vadd.f32 %v2888, %v4111
    %v4120 = vadd.f32 %v2890, %v4111
    %v4121 = vadd.f32 %v2893, %v4111
    %v4122 = vadd.f32 %v2895, %v4111
    %v4123 = vadd.f32 %v2898, %v4111
    %v4124 = vadd.f32 %v2900, %v4111
    %v4125 = vadd.f32 %v2903, %v4111
    %v4126 = vadd.f32 %v2905, %v4111
    %v4127 = vadd.f32 %v2908, %v4111
    %v4128 = vadd.f32 %v2910, %v4111
    %vm4129 = vcmp.gt.f32.partialorder %v4113, 0.0
    %vm4130 = vcmp.gt.f32.partialorder %v4114, 0.0
    %vm4131 = vcmp.gt.f32.partialorder %v4115, 0.0
    %vm4132 = vcmp.gt.f32.partialorder %v4116, 0.0
    %vm4133 = vcmp.gt.f32.partialorder %v4117, 0.0
    %vm4134 = vcmp.gt.f32.partialorder %v4118, 0.0
    %vm4135 = vcmp.gt.f32.partialorder %v4119, 0.0
    %vm4136 = vcmp.gt.f32.partialorder %v4120, 0.0
    %vm4137 = vcmp.gt.f32.partialorder %v4121, 0.0
    %vm4138 = vcmp.gt.f32.partialorder %v4122, 0.0
    %vm4139 = vcmp.gt.f32.partialorder %v4123, 0.0
    %vm4140 = vcmp.gt.f32.partialorder %v4124, 0.0
    %vm4141 = vcmp.gt.f32.partialorder %v4125, 0.0
    %vm4142 = vcmp.gt.f32.partialorder %v4126, 0.0
    %vm4143 = vcmp.gt.f32.partialorder %v4127, 0.0
    %vm4144 = vcmp.gt.f32.partialorder %v4128, 0.0
    %v4145 = vmin.f32 %v4113, 0.0
    %v4146 = vmin.f32 %v4114, 0.0
    %v4147 = vmin.f32 %v4115, 0.0
    %v4148 = vmin.f32 %v4116, 0.0
    %v4149 = vmin.f32 %v4117, 0.0
    %v4150 = vmin.f32 %v4118, 0.0
    %v4151 = vmin.f32 %v4119, 0.0
    %v4152 = vmin.f32 %v4120, 0.0
    %v4153 = vmin.f32 %v4121, 0.0
    %v4154 = vmin.f32 %v4122, 0.0
    %v4155 = vmin.f32 %v4123, 0.0
    %v4156 = vmin.f32 %v4124, 0.0
    %v4157 = vmin.f32 %v4125, 0.0
    %v4158 = vmin.f32 %v4126, 0.0
    %v4159 = vmin.f32 %v4127, 0.0
    %v4160 = vmin.f32 %v4128, 0.0
    %v4161 = vmul.f32 %v4145, 1.442695
    %v4162 = vpow.pop %v4161
    %v4163 = vmul.f32 %v4146, 1.442695
    %v4164 = vpow.pop %v4163
    %v4165 = vmul.f32 %v4147, 1.442695
    %v4166 = vpow.pop %v4165
    %v4167 = vmul.f32 %v4148, 1.442695
    %v4168 = vpow.pop %v4167
    %v4169 = vmul.f32 %v4149, 1.442695
    %v4170 = vpow.pop %v4169
    %v4171 = vmul.f32 %v4150, 1.442695
    %v4172 = vpow.pop %v4171
    %v4173 = vmul.f32 %v4151, 1.442695
    %v4174 = vpow.pop %v4173
    %v4175 = vmul.f32 %v4152, 1.442695
    %v4176 = vpow.pop %v4175
    %v4177 = vmul.f32 %v4153, 1.442695
    %v4178 = vpow.pop %v4177
    %v4179 = vmul.f32 %v4154, 1.442695
    %v4180 = vpow.pop %v4179
    %v4181 = vmul.f32 %v4155, 1.442695
    %v4182 = vpow.pop %v4181
    %v4183 = vmul.f32 %v4156, 1.442695
    %v4184 = vpow.pop %v4183
    %v4185 = vmul.f32 %v4157, 1.442695
    %v4186 = vpow.pop %v4185
    %v4187 = vmul.f32 %v4158, 1.442695
    %v4188 = vpow.pop %v4187
    %v4189 = vmul.f32 %v4159, 1.442695
    %v4190 = vpow.pop %v4189
    %v4191 = vmul.f32 %v4160, 1.442695
    %v4192 = vpow.pop %v4191
    %v4193 = vsub.f32 %v4162, 1.0
    %v4194 = vsub.f32 %v4164, 1.0
    %v4195 = vsub.f32 %v4166, 1.0
    %v4196 = vsub.f32 %v4168, 1.0
    %v4197 = vsub.f32 %v4170, 1.0
    %v4198 = vsub.f32 %v4172, 1.0
    %v4199 = vsub.f32 %v4174, 1.0
    %v4200 = vsub.f32 %v4176, 1.0
    %v4201 = vsub.f32 %v4178, 1.0
    %v4202 = vsub.f32 %v4180, 1.0
    %v4203 = vsub.f32 %v4182, 1.0
    %v4204 = vsub.f32 %v4184, 1.0
    %v4205 = vsub.f32 %v4186, 1.0
    %v4206 = vsub.f32 %v4188, 1.0
    %v4207 = vsub.f32 %v4190, 1.0
    %v4208 = vsub.f32 %v4192, 1.0
    %v4209 = vsel %vm4129, %v4113, %v4193
    %v4210 = vsel %vm4130, %v4114, %v4194
    %v4211 = vsel %vm4131, %v4115, %v4195
    %v4212 = vsel %vm4132, %v4116, %v4196
    %v4213 = vsel %vm4133, %v4117, %v4197
    %v4214 = vsel %vm4134, %v4118, %v4198
    %v4215 = vsel %vm4135, %v4119, %v4199
    %v4216 = vsel %vm4136, %v4120, %v4200
    %v4217 = vsel %vm4137, %v4121, %v4201
    %v4218 = vsel %vm4138, %v4122, %v4202
    %v4219 = vsel %vm4139, %v4123, %v4203
    %v4220 = vsel %vm4140, %v4124, %v4204
    %v4221 = vsel %vm4141, %v4125, %v4205
    %v4222 = vsel %vm4142, %v4126, %v4206
    %v4223 = vsel %vm4143, %v4127, %v4207
    %v4224 = vsel %vm4144, %v4128, %v4208
    %v4225 = vpack.c.bf16 %v4210, %v4209
    %v4226 = vpack.c.bf16 %v4212, %v4211
    %v4227 = vpack.c.bf16 %v4214, %v4213
    %v4228 = vpack.c.bf16 %v4216, %v4215
    %v4229 = vpack.c.bf16 %v4218, %v4217
    %v4230 = vpack.c.bf16 %v4220, %v4219
    %v4231 = vpack.c.bf16 %v4222, %v4221
    %v4232 = vpack.c.bf16 %v4224, %v4223
    %v4233 = vld [vmem:[%s2 + $0x8] sm:$0x1]
    %s4235 = vtos %v4233
    %v4236 = vstv %s4235
    %v4238 = vadd.f32 %v2913, %v4236
    %v4239 = vadd.f32 %v2915, %v4236
    %v4240 = vadd.f32 %v2918, %v4236
    %v4241 = vadd.f32 %v2920, %v4236
    %v4242 = vadd.f32 %v2923, %v4236
    %v4243 = vadd.f32 %v2925, %v4236
    %v4244 = vadd.f32 %v2928, %v4236
    %v4245 = vadd.f32 %v2930, %v4236
    %v4246 = vadd.f32 %v2933, %v4236
    %v4247 = vadd.f32 %v2935, %v4236
    %v4248 = vadd.f32 %v2938, %v4236
    %v4249 = vadd.f32 %v2940, %v4236
    %v4250 = vadd.f32 %v2943, %v4236
    %v4251 = vadd.f32 %v2945, %v4236
    %v4252 = vadd.f32 %v2948, %v4236
    %v4253 = vadd.f32 %v2950, %v4236
    %vm4254 = vcmp.gt.f32.partialorder %v4238, 0.0
    %vm4255 = vcmp.gt.f32.partialorder %v4239, 0.0
    %vm4256 = vcmp.gt.f32.partialorder %v4240, 0.0
    %vm4257 = vcmp.gt.f32.partialorder %v4241, 0.0
    %vm4258 = vcmp.gt.f32.partialorder %v4242, 0.0
    %vm4259 = vcmp.gt.f32.partialorder %v4243, 0.0
    %vm4260 = vcmp.gt.f32.partialorder %v4244, 0.0
    %vm4261 = vcmp.gt.f32.partialorder %v4245, 0.0
    %vm4262 = vcmp.gt.f32.partialorder %v4246, 0.0
    %vm4263 = vcmp.gt.f32.partialorder %v4247, 0.0
    %vm4264 = vcmp.gt.f32.partialorder %v4248, 0.0
    %vm4265 = vcmp.gt.f32.partialorder %v4249, 0.0
    %vm4266 = vcmp.gt.f32.partialorder %v4250, 0.0
    %vm4267 = vcmp.gt.f32.partialorder %v4251, 0.0
    %vm4268 = vcmp.gt.f32.partialorder %v4252, 0.0
    %vm4269 = vcmp.gt.f32.partialorder %v4253, 0.0
    %v4270 = vmin.f32 %v4238, 0.0
    %v4271 = vmin.f32 %v4239, 0.0
    %v4272 = vmin.f32 %v4240, 0.0
    %v4273 = vmin.f32 %v4241, 0.0
    %v4274 = vmin.f32 %v4242, 0.0
    %v4275 = vmin.f32 %v4243, 0.0
    %v4276 = vmin.f32 %v4244, 0.0
    %v4277 = vmin.f32 %v4245, 0.0
    %v4278 = vmin.f32 %v4246, 0.0
    %v4279 = vmin.f32 %v4247, 0.0
    %v4280 = vmin.f32 %v4248, 0.0
    %v4281 = vmin.f32 %v4249, 0.0
    %v4282 = vmin.f32 %v4250, 0.0
    %v4283 = vmin.f32 %v4251, 0.0
    %v4284 = vmin.f32 %v4252, 0.0
    %v4285 = vmin.f32 %v4253, 0.0
    %v4286 = vmul.f32 %v4270, 1.442695
    %v4287 = vpow.pop %v4286
    %v4288 = vmul.f32 %v4271, 1.442695
    %v4289 = vpow.pop %v4288
    %v4290 = vmul.f32 %v4272, 1.442695
    %v4291 = vpow.pop %v4290
    %v4292 = vmul.f32 %v4273, 1.442695
    %v4293 = vpow.pop %v4292
    %v4294 = vmul.f32 %v4274, 1.442695
    %v4295 = vpow.pop %v4294
    %v4296 = vmul.f32 %v4275, 1.442695
    %v4297 = vpow.pop %v4296
    %v4298 = vmul.f32 %v4276, 1.442695
    %v4299 = vpow.pop %v4298
    %v4300 = vmul.f32 %v4277, 1.442695
    %v4301 = vpow.pop %v4300
    %v4302 = vmul.f32 %v4278, 1.442695
    %v4303 = vpow.pop %v4302
    %v4304 = vmul.f32 %v4279, 1.442695
    %v4305 = vpow.pop %v4304
    %v4306 = vmul.f32 %v4280, 1.442695
    %v4307 = vpow.pop %v4306
    %v4308 = vmul.f32 %v4281, 1.442695
    %v4309 = vpow.pop %v4308
    %v4310 = vmul.f32 %v4282, 1.442695
    %v4311 = vpow.pop %v4310
    %v4312 = vmul.f32 %v4283, 1.442695
    %v4313 = vpow.pop %v4312
    %v4314 = vmul.f32 %v4284, 1.442695
    %v4315 = vpow.pop %v4314
    %v4316 = vmul.f32 %v4285, 1.442695
    %v4317 = vpow.pop %v4316
    %v4318 = vsub.f32 %v4287, 1.0
    %v4319 = vsub.f32 %v4289, 1.0
    %v4320 = vsub.f32 %v4291, 1.0
    %v4321 = vsub.f32 %v4293, 1.0
    %v4322 = vsub.f32 %v4295, 1.0
    %v4323 = vsub.f32 %v4297, 1.0
    %v4324 = vsub.f32 %v4299, 1.0
    %v4325 = vsub.f32 %v4301, 1.0
    %v4326 = vsub.f32 %v4303, 1.0
    %v4327 = vsub.f32 %v4305, 1.0
    %v4328 = vsub.f32 %v4307, 1.0
    %v4329 = vsub.f32 %v4309, 1.0
    %v4330 = vsub.f32 %v4311, 1.0
    %v4331 = vsub.f32 %v4313, 1.0
    %v4332 = vsub.f32 %v4315, 1.0
    %v4333 = vsub.f32 %v4317, 1.0
    %v4334 = vsel %vm4254, %v4238, %v4318
    %v4335 = vsel %vm4255, %v4239, %v4319
    %v4336 = vsel %vm4256, %v4240, %v4320
    %v4337 = vsel %vm4257, %v4241, %v4321
    %v4338 = vsel %vm4258, %v4242, %v4322
    %v4339 = vsel %vm4259, %v4243, %v4323
    %v4340 = vsel %vm4260, %v4244, %v4324
    %v4341 = vsel %vm4261, %v4245, %v4325
    %v4342 = vsel %vm4262, %v4246, %v4326
    %v4343 = vsel %vm4263, %v4247, %v4327
    %v4344 = vsel %vm4264, %v4248, %v4328
    %v4345 = vsel %vm4265, %v4249, %v4329
    %v4346 = vsel %vm4266, %v4250, %v4330
    %v4347 = vsel %vm4267, %v4251, %v4331
    %v4348 = vsel %vm4268, %v4252, %v4332
    %v4349 = vsel %vm4269, %v4253, %v4333
    %v4350 = vpack.c.bf16 %v4335, %v4334
    %v4351 = vpack.c.bf16 %v4337, %v4336
    %v4352 = vpack.c.bf16 %v4339, %v4338
    %v4353 = vpack.c.bf16 %v4341, %v4340
    %v4354 = vpack.c.bf16 %v4343, %v4342
    %v4355 = vpack.c.bf16 %v4345, %v4344
    %v4356 = vpack.c.bf16 %v4347, %v4346
    %v4357 = vpack.c.bf16 %v4349, %v4348
    %v4358 = vld [vmem:[%s2 + $0x9] sm:$0x1]
    %s4360 = vtos %v4358
    %v4361 = vstv %s4360
    %v4363 = vadd.f32 %v2953, %v4361
    %v4364 = vadd.f32 %v2955, %v4361
    %v4365 = vadd.f32 %v2958, %v4361
    %v4366 = vadd.f32 %v2960, %v4361
    %v4367 = vadd.f32 %v2963, %v4361
    %v4368 = vadd.f32 %v2965, %v4361
    %v4369 = vadd.f32 %v2968, %v4361
    %v4370 = vadd.f32 %v2970, %v4361
    %v4371 = vadd.f32 %v2973, %v4361
    %v4372 = vadd.f32 %v2975, %v4361
    %v4373 = vadd.f32 %v2978, %v4361
    %v4374 = vadd.f32 %v2980, %v4361
    %v4375 = vadd.f32 %v2983, %v4361
    %v4376 = vadd.f32 %v2985, %v4361
    %v4377 = vadd.f32 %v2988, %v4361
    %v4378 = vadd.f32 %v2990, %v4361
    %vm4379 = vcmp.gt.f32.partialorder %v4363, 0.0
    %vm4380 = vcmp.gt.f32.partialorder %v4364, 0.0
    %vm4381 = vcmp.gt.f32.partialorder %v4365, 0.0
    %vm4382 = vcmp.gt.f32.partialorder %v4366, 0.0
    %vm4383 = vcmp.gt.f32.partialorder %v4367, 0.0
    %vm4384 = vcmp.gt.f32.partialorder %v4368, 0.0
    %vm4385 = vcmp.gt.f32.partialorder %v4369, 0.0
    %vm4386 = vcmp.gt.f32.partialorder %v4370, 0.0
    %vm4387 = vcmp.gt.f32.partialorder %v4371, 0.0
    %vm4388 = vcmp.gt.f32.partialorder %v4372, 0.0
    %vm4389 = vcmp.gt.f32.partialorder %v4373, 0.0
    %vm4390 = vcmp.gt.f32.partialorder %v4374, 0.0
    %vm4391 = vcmp.gt.f32.partialorder %v4375, 0.0
    %vm4392 = vcmp.gt.f32.partialorder %v4376, 0.0
    %vm4393 = vcmp.gt.f32.partialorder %v4377, 0.0
    %vm4394 = vcmp.gt.f32.partialorder %v4378, 0.0
    %v4395 = vmin.f32 %v4363, 0.0
    %v4396 = vmin.f32 %v4364, 0.0
    %v4397 = vmin.f32 %v4365, 0.0
    %v4398 = vmin.f32 %v4366, 0.0
    %v4399 = vmin.f32 %v4367, 0.0
    %v4400 = vmin.f32 %v4368, 0.0
    %v4401 = vmin.f32 %v4369, 0.0
    %v4402 = vmin.f32 %v4370, 0.0
    %v4403 = vmin.f32 %v4371, 0.0
    %v4404 = vmin.f32 %v4372, 0.0
    %v4405 = vmin.f32 %v4373, 0.0
    %v4406 = vmin.f32 %v4374, 0.0
    %v4407 = vmin.f32 %v4375, 0.0
    %v4408 = vmin.f32 %v4376, 0.0
    %v4409 = vmin.f32 %v4377, 0.0
    %v4410 = vmin.f32 %v4378, 0.0
    %v4411 = vmul.f32 %v4395, 1.442695
    %v4412 = vpow.pop %v4411
    %v4413 = vmul.f32 %v4396, 1.442695
    %v4414 = vpow.pop %v4413
    %v4415 = vmul.f32 %v4397, 1.442695
    %v4416 = vpow.pop %v4415
    %v4417 = vmul.f32 %v4398, 1.442695
    %v4418 = vpow.pop %v4417
    %v4419 = vmul.f32 %v4399, 1.442695
    %v4420 = vpow.pop %v4419
    %v4421 = vmul.f32 %v4400, 1.442695
    %v4422 = vpow.pop %v4421
    %v4423 = vmul.f32 %v4401, 1.442695
    %v4424 = vpow.pop %v4423
    %v4425 = vmul.f32 %v4402, 1.442695
    %v4426 = vpow.pop %v4425
    %v4427 = vmul.f32 %v4403, 1.442695
    %v4428 = vpow.pop %v4427
    %v4429 = vmul.f32 %v4404, 1.442695
    %v4430 = vpow.pop %v4429
    %v4431 = vmul.f32 %v4405, 1.442695
    %v4432 = vpow.pop %v4431
    %v4433 = vmul.f32 %v4406, 1.442695
    %v4434 = vpow.pop %v4433
    %v4435 = vmul.f32 %v4407, 1.442695
    %v4436 = vpow.pop %v4435
    %v4437 = vmul.f32 %v4408, 1.442695
    %v4438 = vpow.pop %v4437
    %v4439 = vmul.f32 %v4409, 1.442695
    %v4440 = vpow.pop %v4439
    %v4441 = vmul.f32 %v4410, 1.442695
    %v4442 = vpow.pop %v4441
    %v4443 = vsub.f32 %v4412, 1.0
    %v4444 = vsub.f32 %v4414, 1.0
    %v4445 = vsub.f32 %v4416, 1.0
    %v4446 = vsub.f32 %v4418, 1.0
    %v4447 = vsub.f32 %v4420, 1.0
    %v4448 = vsub.f32 %v4422, 1.0
    %v4449 = vsub.f32 %v4424, 1.0
    %v4450 = vsub.f32 %v4426, 1.0
    %v4451 = vsub.f32 %v4428, 1.0
    %v4452 = vsub.f32 %v4430, 1.0
    %v4453 = vsub.f32 %v4432, 1.0
    %v4454 = vsub.f32 %v4434, 1.0
    %v4455 = vsub.f32 %v4436, 1.0
    %v4456 = vsub.f32 %v4438, 1.0
    %v4457 = vsub.f32 %v4440, 1.0
    %v4458 = vsub.f32 %v4442, 1.0
    %v4459 = vsel %vm4379, %v4363, %v4443
    %v4460 = vsel %vm4380, %v4364, %v4444
    %v4461 = vsel %vm4381, %v4365, %v4445
    %v4462 = vsel %vm4382, %v4366, %v4446
    %v4463 = vsel %vm4383, %v4367, %v4447
    %v4464 = vsel %vm4384, %v4368, %v4448
    %v4465 = vsel %vm4385, %v4369, %v4449
    %v4466 = vsel %vm4386, %v4370, %v4450
    %v4467 = vsel %vm4387, %v4371, %v4451
    %v4468 = vsel %vm4388, %v4372, %v4452
    %v4469 = vsel %vm4389, %v4373, %v4453
    %v4470 = vsel %vm4390, %v4374, %v4454
    %v4471 = vsel %vm4391, %v4375, %v4455
    %v4472 = vsel %vm4392, %v4376, %v4456
    %v4473 = vsel %vm4393, %v4377, %v4457
    %v4474 = vsel %vm4394, %v4378, %v4458
    %v4475 = vpack.c.bf16 %v4460, %v4459
    %v4476 = vpack.c.bf16 %v4462, %v4461
    %v4477 = vpack.c.bf16 %v4464, %v4463
    %v4478 = vpack.c.bf16 %v4466, %v4465
    %v4479 = vpack.c.bf16 %v4468, %v4467
    %v4480 = vpack.c.bf16 %v4470, %v4469
    %v4481 = vpack.c.bf16 %v4472, %v4471
    %v4482 = vpack.c.bf16 %v4474, %v4473
    %v4483 = vld [vmem:[%s2 + $0xa] sm:$0x1]
    %s4485 = vtos %v4483
    %v4486 = vstv %s4485
    %v4488 = vadd.f32 %v2993, %v4486
    %v4489 = vadd.f32 %v2995, %v4486
    %v4490 = vadd.f32 %v2998, %v4486
    %v4491 = vadd.f32 %v3000, %v4486
    %v4492 = vadd.f32 %v3003, %v4486
    %v4493 = vadd.f32 %v3005, %v4486
    %v4494 = vadd.f32 %v3008, %v4486
    %v4495 = vadd.f32 %v3010, %v4486
    %v4496 = vadd.f32 %v3013, %v4486
    %v4497 = vadd.f32 %v3015, %v4486
    %v4498 = vadd.f32 %v3018, %v4486
    %v4499 = vadd.f32 %v3020, %v4486
    %v4500 = vadd.f32 %v3023, %v4486
    %v4501 = vadd.f32 %v3025, %v4486
    %v4502 = vadd.f32 %v3028, %v4486
    %v4503 = vadd.f32 %v3030, %v4486
    %vm4504 = vcmp.gt.f32.partialorder %v4488, 0.0
    %vm4505 = vcmp.gt.f32.partialorder %v4489, 0.0
    %vm4506 = vcmp.gt.f32.partialorder %v4490, 0.0
    %vm4507 = vcmp.gt.f32.partialorder %v4491, 0.0
    %vm4508 = vcmp.gt.f32.partialorder %v4492, 0.0
    %vm4509 = vcmp.gt.f32.partialorder %v4493, 0.0
    %vm4510 = vcmp.gt.f32.partialorder %v4494, 0.0
    %vm4511 = vcmp.gt.f32.partialorder %v4495, 0.0
    %vm4512 = vcmp.gt.f32.partialorder %v4496, 0.0
    %vm4513 = vcmp.gt.f32.partialorder %v4497, 0.0
    %vm4514 = vcmp.gt.f32.partialorder %v4498, 0.0
    %vm4515 = vcmp.gt.f32.partialorder %v4499, 0.0
    %vm4516 = vcmp.gt.f32.partialorder %v4500, 0.0
    %vm4517 = vcmp.gt.f32.partialorder %v4501, 0.0
    %vm4518 = vcmp.gt.f32.partialorder %v4502, 0.0
    %vm4519 = vcmp.gt.f32.partialorder %v4503, 0.0
    %v4520 = vmin.f32 %v4488, 0.0
    %v4521 = vmin.f32 %v4489, 0.0
    %v4522 = vmin.f32 %v4490, 0.0
    %v4523 = vmin.f32 %v4491, 0.0
    %v4524 = vmin.f32 %v4492, 0.0
    %v4525 = vmin.f32 %v4493, 0.0
    %v4526 = vmin.f32 %v4494, 0.0
    %v4527 = vmin.f32 %v4495, 0.0
    %v4528 = vmin.f32 %v4496, 0.0
    %v4529 = vmin.f32 %v4497, 0.0
    %v4530 = vmin.f32 %v4498, 0.0
    %v4531 = vmin.f32 %v4499, 0.0
    %v4532 = vmin.f32 %v4500, 0.0
    %v4533 = vmin.f32 %v4501, 0.0
    %v4534 = vmin.f32 %v4502, 0.0
    %v4535 = vmin.f32 %v4503, 0.0
    %v4536 = vmul.f32 %v4520, 1.442695
    %v4537 = vpow.pop %v4536
    %v4538 = vmul.f32 %v4521, 1.442695
    %v4539 = vpow.pop %v4538
    %v4540 = vmul.f32 %v4522, 1.442695
    %v4541 = vpow.pop %v4540
    %v4542 = vmul.f32 %v4523, 1.442695
    %v4543 = vpow.pop %v4542
    %v4544 = vmul.f32 %v4524, 1.442695
    %v4545 = vpow.pop %v4544
    %v4546 = vmul.f32 %v4525, 1.442695
    %v4547 = vpow.pop %v4546
    %v4548 = vmul.f32 %v4526, 1.442695
    %v4549 = vpow.pop %v4548
    %v4550 = vmul.f32 %v4527, 1.442695
    %v4551 = vpow.pop %v4550
    %v4552 = vmul.f32 %v4528, 1.442695
    %v4553 = vpow.pop %v4552
    %v4554 = vmul.f32 %v4529, 1.442695
    %v4555 = vpow.pop %v4554
    %v4556 = vmul.f32 %v4530, 1.442695
    %v4557 = vpow.pop %v4556
    %v4558 = vmul.f32 %v4531, 1.442695
    %v4559 = vpow.pop %v4558
    %v4560 = vmul.f32 %v4532, 1.442695
    %v4561 = vpow.pop %v4560
    %v4562 = vmul.f32 %v4533, 1.442695
    %v4563 = vpow.pop %v4562
    %v4564 = vmul.f32 %v4534, 1.442695
    %v4565 = vpow.pop %v4564
    %v4566 = vmul.f32 %v4535, 1.442695
    %v4567 = vpow.pop %v4566
    %v4568 = vsub.f32 %v4537, 1.0
    %v4569 = vsub.f32 %v4539, 1.0
    %v4570 = vsub.f32 %v4541, 1.0
    %v4571 = vsub.f32 %v4543, 1.0
    %v4572 = vsub.f32 %v4545, 1.0
    %v4573 = vsub.f32 %v4547, 1.0
    %v4574 = vsub.f32 %v4549, 1.0
    %v4575 = vsub.f32 %v4551, 1.0
    %v4576 = vsub.f32 %v4553, 1.0
    %v4577 = vsub.f32 %v4555, 1.0
    %v4578 = vsub.f32 %v4557, 1.0
    %v4579 = vsub.f32 %v4559, 1.0
    %v4580 = vsub.f32 %v4561, 1.0
    %v4581 = vsub.f32 %v4563, 1.0
    %v4582 = vsub.f32 %v4565, 1.0
    %v4583 = vsub.f32 %v4567, 1.0
    %v4584 = vsel %vm4504, %v4488, %v4568
    %v4585 = vsel %vm4505, %v4489, %v4569
    %v4586 = vsel %vm4506, %v4490, %v4570
    %v4587 = vsel %vm4507, %v4491, %v4571
    %v4588 = vsel %vm4508, %v4492, %v4572
    %v4589 = vsel %vm4509, %v4493, %v4573
    %v4590 = vsel %vm4510, %v4494, %v4574
    %v4591 = vsel %vm4511, %v4495, %v4575
    %v4592 = vsel %vm4512, %v4496, %v4576
    %v4593 = vsel %vm4513, %v4497, %v4577
    %v4594 = vsel %vm4514, %v4498, %v4578
    %v4595 = vsel %vm4515, %v4499, %v4579
    %v4596 = vsel %vm4516, %v4500, %v4580
    %v4597 = vsel %vm4517, %v4501, %v4581
    %v4598 = vsel %vm4518, %v4502, %v4582
    %v4599 = vsel %vm4519, %v4503, %v4583
    %v4600 = vpack.c.bf16 %v4585, %v4584
    %v4601 = vpack.c.bf16 %v4587, %v4586
    %v4602 = vpack.c.bf16 %v4589, %v4588
    %v4603 = vpack.c.bf16 %v4591, %v4590
    %v4604 = vpack.c.bf16 %v4593, %v4592
    %v4605 = vpack.c.bf16 %v4595, %v4594
    %v4606 = vpack.c.bf16 %v4597, %v4596
    %v4607 = vpack.c.bf16 %v4599, %v4598
    %v4608 = vld [vmem:[%s2 + $0xb] sm:$0x1]
    %s4610 = vtos %v4608
    %v4611 = vstv %s4610
    %v4613 = vadd.f32 %v3033, %v4611
    %v4614 = vadd.f32 %v3035, %v4611
    %v4615 = vadd.f32 %v3038, %v4611
    %v4616 = vadd.f32 %v3040, %v4611
    %v4617 = vadd.f32 %v3043, %v4611
    %v4618 = vadd.f32 %v3045, %v4611
    %v4619 = vadd.f32 %v3048, %v4611
    %v4620 = vadd.f32 %v3050, %v4611
    %v4621 = vadd.f32 %v3053, %v4611
    %v4622 = vadd.f32 %v3055, %v4611
    %v4623 = vadd.f32 %v3058, %v4611
    %v4624 = vadd.f32 %v3060, %v4611
    %v4625 = vadd.f32 %v3063, %v4611
    %v4626 = vadd.f32 %v3065, %v4611
    %v4627 = vadd.f32 %v3068, %v4611
    %v4628 = vadd.f32 %v3070, %v4611
    %vm4629 = vcmp.gt.f32.partialorder %v4613, 0.0
    %vm4630 = vcmp.gt.f32.partialorder %v4614, 0.0
    %vm4631 = vcmp.gt.f32.partialorder %v4615, 0.0
    %vm4632 = vcmp.gt.f32.partialorder %v4616, 0.0
    %vm4633 = vcmp.gt.f32.partialorder %v4617, 0.0
    %vm4634 = vcmp.gt.f32.partialorder %v4618, 0.0
    %vm4635 = vcmp.gt.f32.partialorder %v4619, 0.0
    %vm4636 = vcmp.gt.f32.partialorder %v4620, 0.0
    %vm4637 = vcmp.gt.f32.partialorder %v4621, 0.0
    %vm4638 = vcmp.gt.f32.partialorder %v4622, 0.0
    %vm4639 = vcmp.gt.f32.partialorder %v4623, 0.0
    %vm4640 = vcmp.gt.f32.partialorder %v4624, 0.0
    %vm4641 = vcmp.gt.f32.partialorder %v4625, 0.0
    %vm4642 = vcmp.gt.f32.partialorder %v4626, 0.0
    %vm4643 = vcmp.gt.f32.partialorder %v4627, 0.0
    %vm4644 = vcmp.gt.f32.partialorder %v4628, 0.0
    %v4645 = vmin.f32 %v4613, 0.0
    %v4646 = vmin.f32 %v4614, 0.0
    %v4647 = vmin.f32 %v4615, 0.0
    %v4648 = vmin.f32 %v4616, 0.0
    %v4649 = vmin.f32 %v4617, 0.0
    %v4650 = vmin.f32 %v4618, 0.0
    %v4651 = vmin.f32 %v4619, 0.0
    %v4652 = vmin.f32 %v4620, 0.0
    %v4653 = vmin.f32 %v4621, 0.0
    %v4654 = vmin.f32 %v4622, 0.0
    %v4655 = vmin.f32 %v4623, 0.0
    %v4656 = vmin.f32 %v4624, 0.0
    %v4657 = vmin.f32 %v4625, 0.0
    %v4658 = vmin.f32 %v4626, 0.0
    %v4659 = vmin.f32 %v4627, 0.0
    %v4660 = vmin.f32 %v4628, 0.0
    %v4661 = vmul.f32 %v4645, 1.442695
    %v4662 = vpow.pop %v4661
    %v4663 = vmul.f32 %v4646, 1.442695
    %v4664 = vpow.pop %v4663
    %v4665 = vmul.f32 %v4647, 1.442695
    %v4666 = vpow.pop %v4665
    %v4667 = vmul.f32 %v4648, 1.442695
    %v4668 = vpow.pop %v4667
    %v4669 = vmul.f32 %v4649, 1.442695
    %v4670 = vpow.pop %v4669
    %v4671 = vmul.f32 %v4650, 1.442695
    %v4672 = vpow.pop %v4671
    %v4673 = vmul.f32 %v4651, 1.442695
    %v4674 = vpow.pop %v4673
    %v4675 = vmul.f32 %v4652, 1.442695
    %v4676 = vpow.pop %v4675
    %v4677 = vmul.f32 %v4653, 1.442695
    %v4678 = vpow.pop %v4677
    %v4679 = vmul.f32 %v4654, 1.442695
    %v4680 = vpow.pop %v4679
    %v4681 = vmul.f32 %v4655, 1.442695
    %v4682 = vpow.pop %v4681
    %v4683 = vmul.f32 %v4656, 1.442695
    %v4684 = vpow.pop %v4683
    %v4685 = vmul.f32 %v4657, 1.442695
    %v4686 = vpow.pop %v4685
    %v4687 = vmul.f32 %v4658, 1.442695
    %v4688 = vpow.pop %v4687
    %v4689 = vmul.f32 %v4659, 1.442695
    %v4690 = vpow.pop %v4689
    %v4691 = vmul.f32 %v4660, 1.442695
    %v4692 = vpow.pop %v4691
    %v4693 = vsub.f32 %v4662, 1.0
    %v4694 = vsub.f32 %v4664, 1.0
    %v4695 = vsub.f32 %v4666, 1.0
    %v4696 = vsub.f32 %v4668, 1.0
    %v4697 = vsub.f32 %v4670, 1.0
    %v4698 = vsub.f32 %v4672, 1.0
    %v4699 = vsub.f32 %v4674, 1.0
    %v4700 = vsub.f32 %v4676, 1.0
    %v4701 = vsub.f32 %v4678, 1.0
    %v4702 = vsub.f32 %v4680, 1.0
    %v4703 = vsub.f32 %v4682, 1.0
    %v4704 = vsub.f32 %v4684, 1.0
    %v4705 = vsub.f32 %v4686, 1.0
    %v4706 = vsub.f32 %v4688, 1.0
    %v4707 = vsub.f32 %v4690, 1.0
    %v4708 = vsub.f32 %v4692, 1.0
    %v4709 = vsel %vm4629, %v4613, %v4693
    %v4710 = vsel %vm4630, %v4614, %v4694
    %v4711 = vsel %vm4631, %v4615, %v4695
    %v4712 = vsel %vm4632, %v4616, %v4696
    %v4713 = vsel %vm4633, %v4617, %v4697
    %v4714 = vsel %vm4634, %v4618, %v4698
    %v4715 = vsel %vm4635, %v4619, %v4699
    %v4716 = vsel %vm4636, %v4620, %v4700
    %v4717 = vsel %vm4637, %v4621, %v4701
    %v4718 = vsel %vm4638, %v4622, %v4702
    %v4719 = vsel %vm4639, %v4623, %v4703
    %v4720 = vsel %vm4640, %v4624, %v4704
    %v4721 = vsel %vm4641, %v4625, %v4705
    %v4722 = vsel %vm4642, %v4626, %v4706
    %v4723 = vsel %vm4643, %v4627, %v4707
    %v4724 = vsel %vm4644, %v4628, %v4708
    %v4725 = vpack.c.bf16 %v4710, %v4709
    %v4726 = vpack.c.bf16 %v4712, %v4711
    %v4727 = vpack.c.bf16 %v4714, %v4713
    %v4728 = vpack.c.bf16 %v4716, %v4715
    %v4729 = vpack.c.bf16 %v4718, %v4717
    %v4730 = vpack.c.bf16 %v4720, %v4719
    %v4731 = vpack.c.bf16 %v4722, %v4721
    %v4732 = vpack.c.bf16 %v4724, %v4723
    %v4733 = vld [vmem:[%s2 + $0xc] sm:$0x1]
    %s4735 = vtos %v4733
    %v4736 = vstv %s4735
    %v4738 = vadd.f32 %v3073, %v4736
    %v4739 = vadd.f32 %v3075, %v4736
    %v4740 = vadd.f32 %v3078, %v4736
    %v4741 = vadd.f32 %v3080, %v4736
    %v4742 = vadd.f32 %v3083, %v4736
    %v4743 = vadd.f32 %v3085, %v4736
    %v4744 = vadd.f32 %v3088, %v4736
    %v4745 = vadd.f32 %v3090, %v4736
    %v4746 = vadd.f32 %v3093, %v4736
    %v4747 = vadd.f32 %v3095, %v4736
    %v4748 = vadd.f32 %v3098, %v4736
    %v4749 = vadd.f32 %v3100, %v4736
    %v4750 = vadd.f32 %v3103, %v4736
    %v4751 = vadd.f32 %v3105, %v4736
    %v4752 = vadd.f32 %v3108, %v4736
    %v4753 = vadd.f32 %v3110, %v4736
    %vm4754 = vcmp.gt.f32.partialorder %v4738, 0.0
    %vm4755 = vcmp.gt.f32.partialorder %v4739, 0.0
    %vm4756 = vcmp.gt.f32.partialorder %v4740, 0.0
    %vm4757 = vcmp.gt.f32.partialorder %v4741, 0.0
    %vm4758 = vcmp.gt.f32.partialorder %v4742, 0.0
    %vm4759 = vcmp.gt.f32.partialorder %v4743, 0.0
    %vm4760 = vcmp.gt.f32.partialorder %v4744, 0.0
    %vm4761 = vcmp.gt.f32.partialorder %v4745, 0.0
    %vm4762 = vcmp.gt.f32.partialorder %v4746, 0.0
    %vm4763 = vcmp.gt.f32.partialorder %v4747, 0.0
    %vm4764 = vcmp.gt.f32.partialorder %v4748, 0.0
    %vm4765 = vcmp.gt.f32.partialorder %v4749, 0.0
    %vm4766 = vcmp.gt.f32.partialorder %v4750, 0.0
    %vm4767 = vcmp.gt.f32.partialorder %v4751, 0.0
    %vm4768 = vcmp.gt.f32.partialorder %v4752, 0.0
    %vm4769 = vcmp.gt.f32.partialorder %v4753, 0.0
    %v4770 = vmin.f32 %v4738, 0.0
    %v4771 = vmin.f32 %v4739, 0.0
    %v4772 = vmin.f32 %v4740, 0.0
    %v4773 = vmin.f32 %v4741, 0.0
    %v4774 = vmin.f32 %v4742, 0.0
    %v4775 = vmin.f32 %v4743, 0.0
    %v4776 = vmin.f32 %v4744, 0.0
    %v4777 = vmin.f32 %v4745, 0.0
    %v4778 = vmin.f32 %v4746, 0.0
    %v4779 = vmin.f32 %v4747, 0.0
    %v4780 = vmin.f32 %v4748, 0.0
    %v4781 = vmin.f32 %v4749, 0.0
    %v4782 = vmin.f32 %v4750, 0.0
    %v4783 = vmin.f32 %v4751, 0.0
    %v4784 = vmin.f32 %v4752, 0.0
    %v4785 = vmin.f32 %v4753, 0.0
    %v4786 = vmul.f32 %v4770, 1.442695
    %v4787 = vpow.pop %v4786
    %v4788 = vmul.f32 %v4771, 1.442695
    %v4789 = vpow.pop %v4788
    %v4790 = vmul.f32 %v4772, 1.442695
    %v4791 = vpow.pop %v4790
    %v4792 = vmul.f32 %v4773, 1.442695
    %v4793 = vpow.pop %v4792
    %v4794 = vmul.f32 %v4774, 1.442695
    %v4795 = vpow.pop %v4794
    %v4796 = vmul.f32 %v4775, 1.442695
    %v4797 = vpow.pop %v4796
    %v4798 = vmul.f32 %v4776, 1.442695
    %v4799 = vpow.pop %v4798
    %v4800 = vmul.f32 %v4777, 1.442695
    %v4801 = vpow.pop %v4800
    %v4802 = vmul.f32 %v4778, 1.442695
    %v4803 = vpow.pop %v4802
    %v4804 = vmul.f32 %v4779, 1.442695
    %v4805 = vpow.pop %v4804
    %v4806 = vmul.f32 %v4780, 1.442695
    %v4807 = vpow.pop %v4806
    %v4808 = vmul.f32 %v4781, 1.442695
    %v4809 = vpow.pop %v4808
    %v4810 = vmul.f32 %v4782, 1.442695
    %v4811 = vpow.pop %v4810
    %v4812 = vmul.f32 %v4783, 1.442695
    %v4813 = vpow.pop %v4812
    %v4814 = vmul.f32 %v4784, 1.442695
    %v4815 = vpow.pop %v4814
    %v4816 = vmul.f32 %v4785, 1.442695
    %v4817 = vpow.pop %v4816
    %v4818 = vsub.f32 %v4787, 1.0
    %v4819 = vsub.f32 %v4789, 1.0
    %v4820 = vsub.f32 %v4791, 1.0
    %v4821 = vsub.f32 %v4793, 1.0
    %v4822 = vsub.f32 %v4795, 1.0
    %v4823 = vsub.f32 %v4797, 1.0
    %v4824 = vsub.f32 %v4799, 1.0
    %v4825 = vsub.f32 %v4801, 1.0
    %v4826 = vsub.f32 %v4803, 1.0
    %v4827 = vsub.f32 %v4805, 1.0
    %v4828 = vsub.f32 %v4807, 1.0
    %v4829 = vsub.f32 %v4809, 1.0
    %v4830 = vsub.f32 %v4811, 1.0
    %v4831 = vsub.f32 %v4813, 1.0
    %v4832 = vsub.f32 %v4815, 1.0
    %v4833 = vsub.f32 %v4817, 1.0
    %v4834 = vsel %vm4754, %v4738, %v4818
    %v4835 = vsel %vm4755, %v4739, %v4819
    %v4836 = vsel %vm4756, %v4740, %v4820
    %v4837 = vsel %vm4757, %v4741, %v4821
    %v4838 = vsel %vm4758, %v4742, %v4822
    %v4839 = vsel %vm4759, %v4743, %v4823
    %v4840 = vsel %vm4760, %v4744, %v4824
    %v4841 = vsel %vm4761, %v4745, %v4825
    %v4842 = vsel %vm4762, %v4746, %v4826
    %v4843 = vsel %vm4763, %v4747, %v4827
    %v4844 = vsel %vm4764, %v4748, %v4828
    %v4845 = vsel %vm4765, %v4749, %v4829
    %v4846 = vsel %vm4766, %v4750, %v4830
    %v4847 = vsel %vm4767, %v4751, %v4831
    %v4848 = vsel %vm4768, %v4752, %v4832
    %v4849 = vsel %vm4769, %v4753, %v4833
    %v4850 = vpack.c.bf16 %v4835, %v4834
    %v4851 = vpack.c.bf16 %v4837, %v4836
    %v4852 = vpack.c.bf16 %v4839, %v4838
    %v4853 = vpack.c.bf16 %v4841, %v4840
    %v4854 = vpack.c.bf16 %v4843, %v4842
    %v4855 = vpack.c.bf16 %v4845, %v4844
    %v4856 = vpack.c.bf16 %v4847, %v4846
    %v4857 = vpack.c.bf16 %v4849, %v4848
    %v4858 = vld [vmem:[%s2 + $0xd] sm:$0x1]
    %s4860 = vtos %v4858
    %v4861 = vstv %s4860
    %v4863 = vadd.f32 %v3113, %v4861
    %v4864 = vadd.f32 %v3115, %v4861
    %v4865 = vadd.f32 %v3118, %v4861
    %v4866 = vadd.f32 %v3120, %v4861
    %v4867 = vadd.f32 %v3123, %v4861
    %v4868 = vadd.f32 %v3125, %v4861
    %v4869 = vadd.f32 %v3128, %v4861
    %v4870 = vadd.f32 %v3130, %v4861
    %v4871 = vadd.f32 %v3133, %v4861
    %v4872 = vadd.f32 %v3135, %v4861
    %v4873 = vadd.f32 %v3138, %v4861
    %v4874 = vadd.f32 %v3140, %v4861
    %v4875 = vadd.f32 %v3143, %v4861
    %v4876 = vadd.f32 %v3145, %v4861
    %v4877 = vadd.f32 %v3148, %v4861
    %v4878 = vadd.f32 %v3150, %v4861
    %vm4879 = vcmp.gt.f32.partialorder %v4863, 0.0
    %vm4880 = vcmp.gt.f32.partialorder %v4864, 0.0
    %vm4881 = vcmp.gt.f32.partialorder %v4865, 0.0
    %vm4882 = vcmp.gt.f32.partialorder %v4866, 0.0
    %vm4883 = vcmp.gt.f32.partialorder %v4867, 0.0
    %vm4884 = vcmp.gt.f32.partialorder %v4868, 0.0
    %vm4885 = vcmp.gt.f32.partialorder %v4869, 0.0
    %vm4886 = vcmp.gt.f32.partialorder %v4870, 0.0
    %vm4887 = vcmp.gt.f32.partialorder %v4871, 0.0
    %vm4888 = vcmp.gt.f32.partialorder %v4872, 0.0
    %vm4889 = vcmp.gt.f32.partialorder %v4873, 0.0
    %vm4890 = vcmp.gt.f32.partialorder %v4874, 0.0
    %vm4891 = vcmp.gt.f32.partialorder %v4875, 0.0
    %vm4892 = vcmp.gt.f32.partialorder %v4876, 0.0
    %vm4893 = vcmp.gt.f32.partialorder %v4877, 0.0
    %vm4894 = vcmp.gt.f32.partialorder %v4878, 0.0
    %v4895 = vmin.f32 %v4863, 0.0
    %v4896 = vmin.f32 %v4864, 0.0
    %v4897 = vmin.f32 %v4865, 0.0
    %v4898 = vmin.f32 %v4866, 0.0
    %v4899 = vmin.f32 %v4867, 0.0
    %v4900 = vmin.f32 %v4868, 0.0
    %v4901 = vmin.f32 %v4869, 0.0
    %v4902 = vmin.f32 %v4870, 0.0
    %v4903 = vmin.f32 %v4871, 0.0
    %v4904 = vmin.f32 %v4872, 0.0
    %v4905 = vmin.f32 %v4873, 0.0
    %v4906 = vmin.f32 %v4874, 0.0
    %v4907 = vmin.f32 %v4875, 0.0
    %v4908 = vmin.f32 %v4876, 0.0
    %v4909 = vmin.f32 %v4877, 0.0
    %v4910 = vmin.f32 %v4878, 0.0
    %v4911 = vmul.f32 %v4895, 1.442695
    %v4912 = vpow.pop %v4911
    %v4913 = vmul.f32 %v4896, 1.442695
    %v4914 = vpow.pop %v4913
    %v4915 = vmul.f32 %v4897, 1.442695
    %v4916 = vpow.pop %v4915
    %v4917 = vmul.f32 %v4898, 1.442695
    %v4918 = vpow.pop %v4917
    %v4919 = vmul.f32 %v4899, 1.442695
    %v4920 = vpow.pop %v4919
    %v4921 = vmul.f32 %v4900, 1.442695
    %v4922 = vpow.pop %v4921
    %v4923 = vmul.f32 %v4901, 1.442695
    %v4924 = vpow.pop %v4923
    %v4925 = vmul.f32 %v4902, 1.442695
    %v4926 = vpow.pop %v4925
    %v4927 = vmul.f32 %v4903, 1.442695
    %v4928 = vpow.pop %v4927
    %v4929 = vmul.f32 %v4904, 1.442695
    %v4930 = vpow.pop %v4929
    %v4931 = vmul.f32 %v4905, 1.442695
    %v4932 = vpow.pop %v4931
    %v4933 = vmul.f32 %v4906, 1.442695
    %v4934 = vpow.pop %v4933
    %v4935 = vmul.f32 %v4907, 1.442695
    %v4936 = vpow.pop %v4935
    %v4937 = vmul.f32 %v4908, 1.442695
    %v4938 = vpow.pop %v4937
    %v4939 = vmul.f32 %v4909, 1.442695
    %v4940 = vpow.pop %v4939
    %v4941 = vmul.f32 %v4910, 1.442695
    %v4942 = vpow.pop %v4941
    %v4943 = vsub.f32 %v4912, 1.0
    %v4944 = vsub.f32 %v4914, 1.0
    %v4945 = vsub.f32 %v4916, 1.0
    %v4946 = vsub.f32 %v4918, 1.0
    %v4947 = vsub.f32 %v4920, 1.0
    %v4948 = vsub.f32 %v4922, 1.0
    %v4949 = vsub.f32 %v4924, 1.0
    %v4950 = vsub.f32 %v4926, 1.0
    %v4951 = vsub.f32 %v4928, 1.0
    %v4952 = vsub.f32 %v4930, 1.0
    %v4953 = vsub.f32 %v4932, 1.0
    %v4954 = vsub.f32 %v4934, 1.0
    %v4955 = vsub.f32 %v4936, 1.0
    %v4956 = vsub.f32 %v4938, 1.0
    %v4957 = vsub.f32 %v4940, 1.0
    %v4958 = vsub.f32 %v4942, 1.0
    %v4959 = vsel %vm4879, %v4863, %v4943
    %v4960 = vsel %vm4880, %v4864, %v4944
    %v4961 = vsel %vm4881, %v4865, %v4945
    %v4962 = vsel %vm4882, %v4866, %v4946
    %v4963 = vsel %vm4883, %v4867, %v4947
    %v4964 = vsel %vm4884, %v4868, %v4948
    %v4965 = vsel %vm4885, %v4869, %v4949
    %v4966 = vsel %vm4886, %v4870, %v4950
    %v4967 = vsel %vm4887, %v4871, %v4951
    %v4968 = vsel %vm4888, %v4872, %v4952
    %v4969 = vsel %vm4889, %v4873, %v4953
    %v4970 = vsel %vm4890, %v4874, %v4954
    %v4971 = vsel %vm4891, %v4875, %v4955
    %v4972 = vsel %vm4892, %v4876, %v4956
    %v4973 = vsel %vm4893, %v4877, %v4957
    %v4974 = vsel %vm4894, %v4878, %v4958
    %v4975 = vpack.c.bf16 %v4960, %v4959
    %v4976 = vpack.c.bf16 %v4962, %v4961
    %v4977 = vpack.c.bf16 %v4964, %v4963
    %v4978 = vpack.c.bf16 %v4966, %v4965
    %v4979 = vpack.c.bf16 %v4968, %v4967
    %v4980 = vpack.c.bf16 %v4970, %v4969
    %v4981 = vpack.c.bf16 %v4972, %v4971
    %v4982 = vpack.c.bf16 %v4974, %v4973
    %v4983 = vld [vmem:[%s2 + $0xe] sm:$0x1]
    %s4985 = vtos %v4983
    %v4986 = vstv %s4985
    %v4988 = vadd.f32 %v3153, %v4986
    %v4989 = vadd.f32 %v3155, %v4986
    %v4990 = vadd.f32 %v3158, %v4986
    %v4991 = vadd.f32 %v3160, %v4986
    %v4992 = vadd.f32 %v3163, %v4986
    %v4993 = vadd.f32 %v3165, %v4986
    %v4994 = vadd.f32 %v3168, %v4986
    %v4995 = vadd.f32 %v3170, %v4986
    %v4996 = vadd.f32 %v3173, %v4986
    %v4997 = vadd.f32 %v3175, %v4986
    %v4998 = vadd.f32 %v3178, %v4986
    %v4999 = vadd.f32 %v3180, %v4986
    %v5000 = vadd.f32 %v3183, %v4986
    %v5001 = vadd.f32 %v3185, %v4986
    %v5002 = vadd.f32 %v3188, %v4986
    %v5003 = vadd.f32 %v3190, %v4986
    %vm5004 = vcmp.gt.f32.partialorder %v4988, 0.0
    %vm5005 = vcmp.gt.f32.partialorder %v4989, 0.0
    %vm5006 = vcmp.gt.f32.partialorder %v4990, 0.0
    %vm5007 = vcmp.gt.f32.partialorder %v4991, 0.0
    %vm5008 = vcmp.gt.f32.partialorder %v4992, 0.0
    %vm5009 = vcmp.gt.f32.partialorder %v4993, 0.0
    %vm5010 = vcmp.gt.f32.partialorder %v4994, 0.0
    %vm5011 = vcmp.gt.f32.partialorder %v4995, 0.0
    %vm5012 = vcmp.gt.f32.partialorder %v4996, 0.0
    %vm5013 = vcmp.gt.f32.partialorder %v4997, 0.0
    %vm5014 = vcmp.gt.f32.partialorder %v4998, 0.0
    %vm5015 = vcmp.gt.f32.partialorder %v4999, 0.0
    %vm5016 = vcmp.gt.f32.partialorder %v5000, 0.0
    %vm5017 = vcmp.gt.f32.partialorder %v5001, 0.0
    %vm5018 = vcmp.gt.f32.partialorder %v5002, 0.0
    %vm5019 = vcmp.gt.f32.partialorder %v5003, 0.0
    %v5020 = vmin.f32 %v4988, 0.0
    %v5021 = vmin.f32 %v4989, 0.0
    %v5022 = vmin.f32 %v4990, 0.0
    %v5023 = vmin.f32 %v4991, 0.0
    %v5024 = vmin.f32 %v4992, 0.0
    %v5025 = vmin.f32 %v4993, 0.0
    %v5026 = vmin.f32 %v4994, 0.0
    %v5027 = vmin.f32 %v4995, 0.0
    %v5028 = vmin.f32 %v4996, 0.0
    %v5029 = vmin.f32 %v4997, 0.0
    %v5030 = vmin.f32 %v4998, 0.0
    %v5031 = vmin.f32 %v4999, 0.0
    %v5032 = vmin.f32 %v5000, 0.0
    %v5033 = vmin.f32 %v5001, 0.0
    %v5034 = vmin.f32 %v5002, 0.0
    %v5035 = vmin.f32 %v5003, 0.0
    %v5036 = vmul.f32 %v5020, 1.442695
    %v5037 = vpow.pop %v5036
    %v5038 = vmul.f32 %v5021, 1.442695
    %v5039 = vpow.pop %v5038
    %v5040 = vmul.f32 %v5022, 1.442695
    %v5041 = vpow.pop %v5040
    %v5042 = vmul.f32 %v5023, 1.442695
    %v5043 = vpow.pop %v5042
    %v5044 = vmul.f32 %v5024, 1.442695
    %v5045 = vpow.pop %v5044
    %v5046 = vmul.f32 %v5025, 1.442695
    %v5047 = vpow.pop %v5046
    %v5048 = vmul.f32 %v5026, 1.442695
    %v5049 = vpow.pop %v5048
    %v5050 = vmul.f32 %v5027, 1.442695
    %v5051 = vpow.pop %v5050
    %v5052 = vmul.f32 %v5028, 1.442695
    %v5053 = vpow.pop %v5052
    %v5054 = vmul.f32 %v5029, 1.442695
    %v5055 = vpow.pop %v5054
    %v5056 = vmul.f32 %v5030, 1.442695
    %v5057 = vpow.pop %v5056
    %v5058 = vmul.f32 %v5031, 1.442695
    %v5059 = vpow.pop %v5058
    %v5060 = vmul.f32 %v5032, 1.442695
    %v5061 = vpow.pop %v5060
    %v5062 = vmul.f32 %v5033, 1.442695
    %v5063 = vpow.pop %v5062
    %v5064 = vmul.f32 %v5034, 1.442695
    %v5065 = vpow.pop %v5064
    %v5066 = vmul.f32 %v5035, 1.442695
    %v5067 = vpow.pop %v5066
    %v5068 = vsub.f32 %v5037, 1.0
    %v5069 = vsub.f32 %v5039, 1.0
    %v5070 = vsub.f32 %v5041, 1.0
    %v5071 = vsub.f32 %v5043, 1.0
    %v5072 = vsub.f32 %v5045, 1.0
    %v5073 = vsub.f32 %v5047, 1.0
    %v5074 = vsub.f32 %v5049, 1.0
    %v5075 = vsub.f32 %v5051, 1.0
    %v5076 = vsub.f32 %v5053, 1.0
    %v5077 = vsub.f32 %v5055, 1.0
    %v5078 = vsub.f32 %v5057, 1.0
    %v5079 = vsub.f32 %v5059, 1.0
    %v5080 = vsub.f32 %v5061, 1.0
    %v5081 = vsub.f32 %v5063, 1.0
    %v5082 = vsub.f32 %v5065, 1.0
    %v5083 = vsub.f32 %v5067, 1.0
    %v5084 = vsel %vm5004, %v4988, %v5068
    %v5085 = vsel %vm5005, %v4989, %v5069
    %v5086 = vsel %vm5006, %v4990, %v5070
    %v5087 = vsel %vm5007, %v4991, %v5071
    %v5088 = vsel %vm5008, %v4992, %v5072
    %v5089 = vsel %vm5009, %v4993, %v5073
    %v5090 = vsel %vm5010, %v4994, %v5074
    %v5091 = vsel %vm5011, %v4995, %v5075
    %v5092 = vsel %vm5012, %v4996, %v5076
    %v5093 = vsel %vm5013, %v4997, %v5077
    %v5094 = vsel %vm5014, %v4998, %v5078
    %v5095 = vsel %vm5015, %v4999, %v5079
    %v5096 = vsel %vm5016, %v5000, %v5080
    %v5097 = vsel %vm5017, %v5001, %v5081
    %v5098 = vsel %vm5018, %v5002, %v5082
    %v5099 = vsel %vm5019, %v5003, %v5083
    %v5100 = vpack.c.bf16 %v5085, %v5084
    %v5101 = vpack.c.bf16 %v5087, %v5086
    %v5102 = vpack.c.bf16 %v5089, %v5088
    %v5103 = vpack.c.bf16 %v5091, %v5090
    %v5104 = vpack.c.bf16 %v5093, %v5092
    %v5105 = vpack.c.bf16 %v5095, %v5094
    %v5106 = vpack.c.bf16 %v5097, %v5096
    %v5107 = vpack.c.bf16 %v5099, %v5098
    %v5108 = vld [vmem:[%s2 + $0xf] sm:$0x1]
    %s5110 = vtos %v5108
    %v5111 = vstv %s5110
    %v5113 = vadd.f32 %v3193, %v5111
    %v5114 = vadd.f32 %v3195, %v5111
    %v5115 = vadd.f32 %v3198, %v5111
    %v5116 = vadd.f32 %v3200, %v5111
    %v5117 = vadd.f32 %v3203, %v5111
    %v5118 = vadd.f32 %v3205, %v5111
    %v5119 = vadd.f32 %v3208, %v5111
    %v5120 = vadd.f32 %v3210, %v5111
    %v5121 = vadd.f32 %v3213, %v5111
    %v5122 = vadd.f32 %v3215, %v5111
    %v5123 = vadd.f32 %v3218, %v5111
    %v5124 = vadd.f32 %v3220, %v5111
    %v5125 = vadd.f32 %v3223, %v5111
    %v5126 = vadd.f32 %v3225, %v5111
    %v5127 = vadd.f32 %v3228, %v5111
    %v5128 = vadd.f32 %v3230, %v5111
    %vm5129 = vcmp.gt.f32.partialorder %v5113, 0.0
    %vm5130 = vcmp.gt.f32.partialorder %v5114, 0.0
    %vm5131 = vcmp.gt.f32.partialorder %v5115, 0.0
    %vm5132 = vcmp.gt.f32.partialorder %v5116, 0.0
    %vm5133 = vcmp.gt.f32.partialorder %v5117, 0.0
    %vm5134 = vcmp.gt.f32.partialorder %v5118, 0.0
    %vm5135 = vcmp.gt.f32.partialorder %v5119, 0.0
    %vm5136 = vcmp.gt.f32.partialorder %v5120, 0.0
    %vm5137 = vcmp.gt.f32.partialorder %v5121, 0.0
    %vm5138 = vcmp.gt.f32.partialorder %v5122, 0.0
    %vm5139 = vcmp.gt.f32.partialorder %v5123, 0.0
    %vm5140 = vcmp.gt.f32.partialorder %v5124, 0.0
    %vm5141 = vcmp.gt.f32.partialorder %v5125, 0.0
    %vm5142 = vcmp.gt.f32.partialorder %v5126, 0.0
    %vm5143 = vcmp.gt.f32.partialorder %v5127, 0.0
    %vm5144 = vcmp.gt.f32.partialorder %v5128, 0.0
    %v5145 = vmin.f32 %v5113, 0.0
    %v5146 = vmin.f32 %v5114, 0.0
    %v5147 = vmin.f32 %v5115, 0.0
    %v5148 = vmin.f32 %v5116, 0.0
    %v5149 = vmin.f32 %v5117, 0.0
    %v5150 = vmin.f32 %v5118, 0.0
    %v5151 = vmin.f32 %v5119, 0.0
    %v5152 = vmin.f32 %v5120, 0.0
    %v5153 = vmin.f32 %v5121, 0.0
    %v5154 = vmin.f32 %v5122, 0.0
    %v5155 = vmin.f32 %v5123, 0.0
    %v5156 = vmin.f32 %v5124, 0.0
    %v5157 = vmin.f32 %v5125, 0.0
    %v5158 = vmin.f32 %v5126, 0.0
    %v5159 = vmin.f32 %v5127, 0.0
    %v5160 = vmin.f32 %v5128, 0.0
    %v5161 = vmul.f32 %v5145, 1.442695
    %v5162 = vpow.pop %v5161
    %v5163 = vmul.f32 %v5146, 1.442695
    %v5164 = vpow.pop %v5163
    %v5165 = vmul.f32 %v5147, 1.442695
    %v5166 = vpow.pop %v5165
    %v5167 = vmul.f32 %v5148, 1.442695
    %v5168 = vpow.pop %v5167
    %v5169 = vmul.f32 %v5149, 1.442695
    %v5170 = vpow.pop %v5169
    %v5171 = vmul.f32 %v5150, 1.442695
    %v5172 = vpow.pop %v5171
    %v5173 = vmul.f32 %v5151, 1.442695
    %v5174 = vpow.pop %v5173
    %v5175 = vmul.f32 %v5152, 1.442695
    %v5176 = vpow.pop %v5175
    %v5177 = vmul.f32 %v5153, 1.442695
    %v5178 = vpow.pop %v5177
    %v5179 = vmul.f32 %v5154, 1.442695
    %v5180 = vpow.pop %v5179
    %v5181 = vmul.f32 %v5155, 1.442695
    %v5182 = vpow.pop %v5181
    %v5183 = vmul.f32 %v5156, 1.442695
    %v5184 = vpow.pop %v5183
    %v5185 = vmul.f32 %v5157, 1.442695
    %v5186 = vpow.pop %v5185
    %v5187 = vmul.f32 %v5158, 1.442695
    %v5188 = vpow.pop %v5187
    %v5189 = vmul.f32 %v5159, 1.442695
    %v5190 = vpow.pop %v5189
    %v5191 = vmul.f32 %v5160, 1.442695
    %v5192 = vpow.pop %v5191
    %v5193 = vsub.f32 %v5162, 1.0
    %v5194 = vsub.f32 %v5164, 1.0
    %v5195 = vsub.f32 %v5166, 1.0
    %v5196 = vsub.f32 %v5168, 1.0
    %v5197 = vsub.f32 %v5170, 1.0
    %v5198 = vsub.f32 %v5172, 1.0
    %v5199 = vsub.f32 %v5174, 1.0
    %v5200 = vsub.f32 %v5176, 1.0
    %v5201 = vsub.f32 %v5178, 1.0
    %v5202 = vsub.f32 %v5180, 1.0
    %v5203 = vsub.f32 %v5182, 1.0
    %v5204 = vsub.f32 %v5184, 1.0
    %v5205 = vsub.f32 %v5186, 1.0
    %v5206 = vsub.f32 %v5188, 1.0
    %v5207 = vsub.f32 %v5190, 1.0
    %v5208 = vsub.f32 %v5192, 1.0
    %v5209 = vsel %vm5129, %v5113, %v5193
    %v5210 = vsel %vm5130, %v5114, %v5194
    %v5211 = vsel %vm5131, %v5115, %v5195
    %v5212 = vsel %vm5132, %v5116, %v5196
    %v5213 = vsel %vm5133, %v5117, %v5197
    %v5214 = vsel %vm5134, %v5118, %v5198
    %v5215 = vsel %vm5135, %v5119, %v5199
    %v5216 = vsel %vm5136, %v5120, %v5200
    %v5217 = vsel %vm5137, %v5121, %v5201
    %v5218 = vsel %vm5138, %v5122, %v5202
    %v5219 = vsel %vm5139, %v5123, %v5203
    %v5220 = vsel %vm5140, %v5124, %v5204
    %v5221 = vsel %vm5141, %v5125, %v5205
    %v5222 = vsel %vm5142, %v5126, %v5206
    %v5223 = vsel %vm5143, %v5127, %v5207
    %v5224 = vsel %vm5144, %v5128, %v5208
    %v5225 = vpack.c.bf16 %v5210, %v5209
    %v5226 = vpack.c.bf16 %v5212, %v5211
    %v5227 = vpack.c.bf16 %v5214, %v5213
    %v5228 = vpack.c.bf16 %v5216, %v5215
    %v5229 = vpack.c.bf16 %v5218, %v5217
    %v5230 = vpack.c.bf16 %v5220, %v5219
    %v5231 = vpack.c.bf16 %v5222, %v5221
    %v5232 = vpack.c.bf16 %v5224, %v5223
    %v5233 = vld [vmem:[%s0 + $0x40] sm:$0xf]
    %v5234 = vld [vmem:[%s0 + $0x44] sm:$0xf]
    %v5235 = vld [vmem:[%s0 + $0x48] sm:$0xf]
    %v5236 = vld [vmem:[%s0 + $0x4c] sm:$0xf]
    %v5237 = vld [vmem:[%s0 + $0x50] sm:$0xf]
    %v5238 = vld [vmem:[%s0 + $0x54] sm:$0xf]
    %v5239 = vld [vmem:[%s0 + $0x58] sm:$0xf]
    %v5240 = vld [vmem:[%s0 + $0x5c] sm:$0xf]
    %v5241 = vld [vmem:[%s0 + $0x60] sm:$0xf]
    %v5242 = vld [vmem:[%s0 + $0x64] sm:$0xf]
    %v5243 = vld [vmem:[%s0 + $0x68] sm:$0xf]
    %v5244 = vld [vmem:[%s0 + $0x6c] sm:$0xf]
    %v5245 = vld [vmem:[%s0 + $0x70] sm:$0xf]
    %v5246 = vld [vmem:[%s0 + $0x74] sm:$0xf]
    %v5247 = vld [vmem:[%s0 + $0x78] sm:$0xf]
    %v5248 = vld [vmem:[%s0 + $0x7c] sm:$0xf]
    %v5249 = vld [vmem:[%s0 + $0x80] sm:$0xf]
    %v5250 = vld [vmem:[%s0 + $0x84] sm:$0xf]
    %v5251 = vld [vmem:[%s0 + $0x88] sm:$0xf]
    %v5252 = vld [vmem:[%s0 + $0x8c] sm:$0xf]
    %v5253 = vld [vmem:[%s0 + $0x90] sm:$0xf]
    %v5254 = vld [vmem:[%s0 + $0x94] sm:$0xf]
    %v5255 = vld [vmem:[%s0 + $0x98] sm:$0xf]
    %v5256 = vld [vmem:[%s0 + $0x9c] sm:$0xf]
    %v5281 = vunpack.c.l.b16 %v5233
    %v5282 = vunpack.c.l.b16 %v5234
    %v5283 = vunpack.c.l.b16 %v5235
    %v5284 = vunpack.c.l.b16 %v5236
    %v5285 = vunpack.c.l.b16 %v5237
    %v5286 = vunpack.c.l.b16 %v5238
    %v5287 = vunpack.c.l.b16 %v5239
    %v5288 = vunpack.c.l.b16 %v5240
    %v5289 = vunpack.c.l.b16 %v5241
    %v5290 = vunpack.c.l.b16 %v5242
    %v5291 = vunpack.c.l.b16 %v5243
    %v5292 = vunpack.c.l.b16 %v5244
    %v5293 = vunpack.c.l.b16 %v5245
    %v5294 = vunpack.c.l.b16 %v5246
    %v5295 = vunpack.c.l.b16 %v5247
    %v5296 = vunpack.c.l.b16 %v5248
    %v5297 = vunpack.c.l.b16 %v5249
    %v5298 = vunpack.c.l.b16 %v5250
    %v5299 = vunpack.c.l.b16 %v5251
    %v5300 = vunpack.c.l.b16 %v5252
    %v5301 = vunpack.c.l.b16 %v5253
    %v5302 = vunpack.c.l.b16 %v5254
    %v5303 = vunpack.c.l.b16 %v5255
    %v5304 = vunpack.c.l.b16 %v5256
    %v5305 = vpack.c.b16 %v5282, %v5281
    %v5306 = vpack.c.b16 %v5284, %v5283
    %v5307 = vpack.c.b16 %v5286, %v5285
    %v5308 = vpack.c.b16 %v5288, %v5287
    %v5309 = vpack.c.b16 %v5290, %v5289
    %v5310 = vpack.c.b16 %v5292, %v5291
    %v5311 = vpack.c.b16 %v5294, %v5293
    %v5312 = vpack.c.b16 %v5296, %v5295
    %v5313 = vpack.c.b16 %v5298, %v5297
    %v5314 = vpack.c.b16 %v5300, %v5299
    %v5315 = vpack.c.b16 %v5302, %v5301
    %v5316 = vpack.c.b16 %v5304, %v5303
    %5329 = vmatpush.bf16.msra.mxu0 %v5312
    %5330 = vmatpush.bf16.msra.mxu0 %v5311
    %5331 = vmatpush.bf16.msra.mxu0 %v5310
    %5332 = vmatpush.bf16.msra.mxu0 %v5309
    %5333 = vmatpush.bf16.msra.mxu0 %v5308
    %5334 = vmatpush.bf16.msra.mxu0 %v5307
    %5335 = vmatpush.bf16.msra.mxu0 %v5306
    %5336 = vmatpush.bf16.msra.mxu0 %v5305
    %5337 = vmatmul.bf16.gmra.mxu0 %v1093
    %v5338 = vpop.f32.mrf.mxu0
    %v5339 = vadd.f32 0.0, %v5338
    %v5340 = vpop.f32.mrf.mxu0
    %v5341 = vadd.f32 0.0, %v5340
    %5342 = vmatmul.bf16.gmra.mxu0 %v1095
    %v5343 = vpop.f32.mrf.mxu0
    %v5344 = vadd.f32 0.0, %v5343
    %v5345 = vpop.f32.mrf.mxu0
    %v5346 = vadd.f32 0.0, %v5345
    %5347 = vmatmul.bf16.gmra.mxu0 %v1097
    %v5348 = vpop.f32.mrf.mxu0
    %v5349 = vadd.f32 0.0, %v5348
    %v5350 = vpop.f32.mrf.mxu0
    %v5351 = vadd.f32 0.0, %v5350
    %5352 = vmatmul.bf16.gmra.mxu0 %v1099
    %v5353 = vpop.f32.mrf.mxu0
    %v5354 = vadd.f32 0.0, %v5353
    %v5355 = vpop.f32.mrf.mxu0
    %v5356 = vadd.f32 0.0, %v5355
    %5357 = vmatmul.bf16.gmra.mxu0 %v1101
    %v5358 = vpop.f32.mrf.mxu0
    %v5359 = vadd.f32 0.0, %v5358
    %v5360 = vpop.f32.mrf.mxu0
    %v5361 = vadd.f32 0.0, %v5360
    %5362 = vmatmul.bf16.gmra.mxu0 %v1103
    %v5363 = vpop.f32.mrf.mxu0
    %v5364 = vadd.f32 0.0, %v5363
    %v5365 = vpop.f32.mrf.mxu0
    %v5366 = vadd.f32 0.0, %v5365
    %5367 = vmatmul.bf16.gmra.mxu0 %v1105
    %v5368 = vpop.f32.mrf.mxu0
    %v5369 = vadd.f32 0.0, %v5368
    %v5370 = vpop.f32.mrf.mxu0
    %v5371 = vadd.f32 0.0, %v5370
    %5372 = vmatmul.bf16.gmra.mxu0 %v1107
    %v5373 = vpop.f32.mrf.mxu0
    %v5374 = vadd.f32 0.0, %v5373
    %v5375 = vpop.f32.mrf.mxu0
    %v5376 = vadd.f32 0.0, %v5375
    %5377 = vmatmul.bf16.gmra.mxu0 %v1109
    %v5378 = vpop.f32.mrf.mxu0
    %v5379 = vadd.f32 0.0, %v5378
    %v5380 = vpop.f32.mrf.mxu0
    %v5381 = vadd.f32 0.0, %v5380
    %5382 = vmatmul.bf16.gmra.mxu0 %v1111
    %v5383 = vpop.f32.mrf.mxu0
    %v5384 = vadd.f32 0.0, %v5383
    %v5385 = vpop.f32.mrf.mxu0
    %v5386 = vadd.f32 0.0, %v5385
    %5387 = vmatmul.bf16.gmra.mxu0 %v1113
    %v5388 = vpop.f32.mrf.mxu0
    %v5389 = vadd.f32 0.0, %v5388
    %v5390 = vpop.f32.mrf.mxu0
    %v5391 = vadd.f32 0.0, %v5390
    %5392 = vmatmul.bf16.gmra.mxu0 %v1115
    %v5393 = vpop.f32.mrf.mxu0
    %v5394 = vadd.f32 0.0, %v5393
    %v5395 = vpop.f32.mrf.mxu0
    %v5396 = vadd.f32 0.0, %v5395
    %5397 = vmatmul.bf16.gmra.mxu0 %v1117
    %v5398 = vpop.f32.mrf.mxu0
    %v5399 = vadd.f32 0.0, %v5398
    %v5400 = vpop.f32.mrf.mxu0
    %v5401 = vadd.f32 0.0, %v5400
    %5402 = vmatmul.bf16.gmra.mxu0 %v1119
    %v5403 = vpop.f32.mrf.mxu0
    %v5404 = vadd.f32 0.0, %v5403
    %v5405 = vpop.f32.mrf.mxu0
    %v5406 = vadd.f32 0.0, %v5405
    %5407 = vmatmul.bf16.gmra.mxu0 %v1121
    %v5408 = vpop.f32.mrf.mxu0
    %v5409 = vadd.f32 0.0, %v5408
    %v5410 = vpop.f32.mrf.mxu0
    %v5411 = vadd.f32 0.0, %v5410
    %5412 = vmatmul.bf16.gmra.mxu0 %v1123
    %v5413 = vpop.f32.mrf.mxu0
    %v5414 = vadd.f32 0.0, %v5413
    %v5415 = vpop.f32.mrf.mxu0
    %v5416 = vadd.f32 0.0, %v5415
    %5417 = vmatmul.bf16.gmra.mxu0 %v1125
    %v5418 = vpop.f32.mrf.mxu0
    %v5419 = vadd.f32 0.0, %v5418
    %v5420 = vpop.f32.mrf.mxu0
    %v5421 = vadd.f32 0.0, %v5420
    %5422 = vmatmul.bf16.gmra.mxu0 %v1127
    %v5423 = vpop.f32.mrf.mxu0
    %v5424 = vadd.f32 0.0, %v5423
    %v5425 = vpop.f32.mrf.mxu0
    %v5426 = vadd.f32 0.0, %v5425
    %5427 = vmatmul.bf16.gmra.mxu0 %v1129
    %v5428 = vpop.f32.mrf.mxu0
    %v5429 = vadd.f32 0.0, %v5428
    %v5430 = vpop.f32.mrf.mxu0
    %v5431 = vadd.f32 0.0, %v5430
    %5432 = vmatmul.bf16.gmra.mxu0 %v1131
    %v5433 = vpop.f32.mrf.mxu0
    %v5434 = vadd.f32 0.0, %v5433
    %v5435 = vpop.f32.mrf.mxu0
    %v5436 = vadd.f32 0.0, %v5435
    %5437 = vmatmul.bf16.gmra.mxu0 %v1133
    %v5438 = vpop.f32.mrf.mxu0
    %v5439 = vadd.f32 0.0, %v5438
    %v5440 = vpop.f32.mrf.mxu0
    %v5441 = vadd.f32 0.0, %v5440
    %5442 = vmatmul.bf16.gmra.mxu0 %v1135
    %v5443 = vpop.f32.mrf.mxu0
    %v5444 = vadd.f32 0.0, %v5443
    %v5445 = vpop.f32.mrf.mxu0
    %v5446 = vadd.f32 0.0, %v5445
    %5447 = vmatmul.bf16.gmra.mxu0 %v1137
    %v5448 = vpop.f32.mrf.mxu0
    %v5449 = vadd.f32 0.0, %v5448
    %v5450 = vpop.f32.mrf.mxu0
    %v5451 = vadd.f32 0.0, %v5450
    %5452 = vmatmul.bf16.gmra.mxu0 %v1139
    %v5453 = vpop.f32.mrf.mxu0
    %v5454 = vadd.f32 0.0, %v5453
    %v5455 = vpop.f32.mrf.mxu0
    %v5456 = vadd.f32 0.0, %v5455
    %5457 = vmatmul.bf16.gmra.mxu0 %v1141
    %v5458 = vpop.f32.mrf.mxu0
    %v5459 = vadd.f32 0.0, %v5458
    %v5460 = vpop.f32.mrf.mxu0
    %v5461 = vadd.f32 0.0, %v5460
    %5462 = vmatmul.bf16.gmra.mxu0 %v1143
    %v5463 = vpop.f32.mrf.mxu0
    %v5464 = vadd.f32 0.0, %v5463
    %v5465 = vpop.f32.mrf.mxu0
    %v5466 = vadd.f32 0.0, %v5465
    %5467 = vmatmul.bf16.gmra.mxu0 %v1145
    %v5468 = vpop.f32.mrf.mxu0
    %v5469 = vadd.f32 0.0, %v5468
    %v5470 = vpop.f32.mrf.mxu0
    %v5471 = vadd.f32 0.0, %v5470
    %5472 = vmatmul.bf16.gmra.mxu0 %v1147
    %v5473 = vpop.f32.mrf.mxu0
    %v5474 = vadd.f32 0.0, %v5473
    %v5475 = vpop.f32.mrf.mxu0
    %v5476 = vadd.f32 0.0, %v5475
    %5477 = vmatmul.bf16.gmra.mxu0 %v1149
    %v5478 = vpop.f32.mrf.mxu0
    %v5479 = vadd.f32 0.0, %v5478
    %v5480 = vpop.f32.mrf.mxu0
    %v5481 = vadd.f32 0.0, %v5480
    %5482 = vmatmul.bf16.gmra.mxu0 %v1151
    %v5483 = vpop.f32.mrf.mxu0
    %v5484 = vadd.f32 0.0, %v5483
    %v5485 = vpop.f32.mrf.mxu0
    %v5486 = vadd.f32 0.0, %v5485
    %5487 = vmatmul.bf16.gmra.mxu0 %v1153
    %v5488 = vpop.f32.mrf.mxu0
    %v5489 = vadd.f32 0.0, %v5488
    %v5490 = vpop.f32.mrf.mxu0
    %v5491 = vadd.f32 0.0, %v5490
    %5492 = vmatmul.bf16.gmra.mxu0 %v1155
    %v5493 = vpop.f32.mrf.mxu0
    %v5494 = vadd.f32 0.0, %v5493
    %v5495 = vpop.f32.mrf.mxu0
    %v5496 = vadd.f32 0.0, %v5495
    %5497 = vmatmul.bf16.gmra.mxu0 %v1157
    %v5498 = vpop.f32.mrf.mxu0
    %v5499 = vadd.f32 0.0, %v5498
    %v5500 = vpop.f32.mrf.mxu0
    %v5501 = vadd.f32 0.0, %v5500
    %5502 = vmatmul.bf16.gmra.mxu0 %v1159
    %v5503 = vpop.f32.mrf.mxu0
    %v5504 = vadd.f32 0.0, %v5503
    %v5505 = vpop.f32.mrf.mxu0
    %v5506 = vadd.f32 0.0, %v5505
    %5507 = vmatmul.bf16.gmra.mxu0 %v1161
    %v5508 = vpop.f32.mrf.mxu0
    %v5509 = vadd.f32 0.0, %v5508
    %v5510 = vpop.f32.mrf.mxu0
    %v5511 = vadd.f32 0.0, %v5510
    %5512 = vmatmul.bf16.gmra.mxu0 %v1163
    %v5513 = vpop.f32.mrf.mxu0
    %v5514 = vadd.f32 0.0, %v5513
    %v5515 = vpop.f32.mrf.mxu0
    %v5516 = vadd.f32 0.0, %v5515
    %5517 = vmatmul.bf16.gmra.mxu0 %v1165
    %v5518 = vpop.f32.mrf.mxu0
    %v5519 = vadd.f32 0.0, %v5518
    %v5520 = vpop.f32.mrf.mxu0
    %v5521 = vadd.f32 0.0, %v5520
    %5522 = vmatmul.bf16.gmra.mxu0 %v1167
    %v5523 = vpop.f32.mrf.mxu0
    %v5524 = vadd.f32 0.0, %v5523
    %v5525 = vpop.f32.mrf.mxu0
    %v5526 = vadd.f32 0.0, %v5525
    %5527 = vmatmul.bf16.gmra.mxu0 %v1169
    %v5528 = vpop.f32.mrf.mxu0
    %v5529 = vadd.f32 0.0, %v5528
    %v5530 = vpop.f32.mrf.mxu0
    %v5531 = vadd.f32 0.0, %v5530
    %5532 = vmatmul.bf16.gmra.mxu0 %v1171
    %v5533 = vpop.f32.mrf.mxu0
    %v5534 = vadd.f32 0.0, %v5533
    %v5535 = vpop.f32.mrf.mxu0
    %v5536 = vadd.f32 0.0, %v5535
    %5537 = vmatmul.bf16.gmra.mxu0 %v1173
    %v5538 = vpop.f32.mrf.mxu0
    %v5539 = vadd.f32 0.0, %v5538
    %v5540 = vpop.f32.mrf.mxu0
    %v5541 = vadd.f32 0.0, %v5540
    %5542 = vmatmul.bf16.gmra.mxu0 %v1175
    %v5543 = vpop.f32.mrf.mxu0
    %v5544 = vadd.f32 0.0, %v5543
    %v5545 = vpop.f32.mrf.mxu0
    %v5546 = vadd.f32 0.0, %v5545
    %5547 = vmatmul.bf16.gmra.mxu0 %v1177
    %v5548 = vpop.f32.mrf.mxu0
    %v5549 = vadd.f32 0.0, %v5548
    %v5550 = vpop.f32.mrf.mxu0
    %v5551 = vadd.f32 0.0, %v5550
    %5552 = vmatmul.bf16.gmra.mxu0 %v1179
    %v5553 = vpop.f32.mrf.mxu0
    %v5554 = vadd.f32 0.0, %v5553
    %v5555 = vpop.f32.mrf.mxu0
    %v5556 = vadd.f32 0.0, %v5555
    %5557 = vmatmul.bf16.gmra.mxu0 %v1181
    %v5558 = vpop.f32.mrf.mxu0
    %v5559 = vadd.f32 0.0, %v5558
    %v5560 = vpop.f32.mrf.mxu0
    %v5561 = vadd.f32 0.0, %v5560
    %5562 = vmatmul.bf16.gmra.mxu0 %v1183
    %v5563 = vpop.f32.mrf.mxu0
    %v5564 = vadd.f32 0.0, %v5563
    %v5565 = vpop.f32.mrf.mxu0
    %v5566 = vadd.f32 0.0, %v5565
    %5567 = vmatmul.bf16.gmra.mxu0 %v1185
    %v5568 = vpop.f32.mrf.mxu0
    %v5569 = vadd.f32 0.0, %v5568
    %v5570 = vpop.f32.mrf.mxu0
    %v5571 = vadd.f32 0.0, %v5570
    %5572 = vmatmul.bf16.gmra.mxu0 %v1187
    %v5573 = vpop.f32.mrf.mxu0
    %v5574 = vadd.f32 0.0, %v5573
    %v5575 = vpop.f32.mrf.mxu0
    %v5576 = vadd.f32 0.0, %v5575
    %5577 = vmatmul.bf16.gmra.mxu0 %v1189
    %v5578 = vpop.f32.mrf.mxu0
    %v5579 = vadd.f32 0.0, %v5578
    %v5580 = vpop.f32.mrf.mxu0
    %v5581 = vadd.f32 0.0, %v5580
    %5582 = vmatmul.bf16.gmra.mxu0 %v1191
    %v5583 = vpop.f32.mrf.mxu0
    %v5584 = vadd.f32 0.0, %v5583
    %v5585 = vpop.f32.mrf.mxu0
    %v5586 = vadd.f32 0.0, %v5585
    %5587 = vmatmul.bf16.gmra.mxu0 %v1193
    %v5588 = vpop.f32.mrf.mxu0
    %v5589 = vadd.f32 0.0, %v5588
    %v5590 = vpop.f32.mrf.mxu0
    %v5591 = vadd.f32 0.0, %v5590
    %5592 = vmatmul.bf16.gmra.mxu0 %v1195
    %v5593 = vpop.f32.mrf.mxu0
    %v5594 = vadd.f32 0.0, %v5593
    %v5595 = vpop.f32.mrf.mxu0
    %v5596 = vadd.f32 0.0, %v5595
    %5597 = vmatmul.bf16.gmra.mxu0 %v1197
    %v5598 = vpop.f32.mrf.mxu0
    %v5599 = vadd.f32 0.0, %v5598
    %v5600 = vpop.f32.mrf.mxu0
    %v5601 = vadd.f32 0.0, %v5600
    %5602 = vmatmul.bf16.gmra.mxu0 %v1199
    %v5603 = vpop.f32.mrf.mxu0
    %v5604 = vadd.f32 0.0, %v5603
    %v5605 = vpop.f32.mrf.mxu0
    %v5606 = vadd.f32 0.0, %v5605
    %5607 = vmatmul.bf16.gmra.mxu0 %v1201
    %v5608 = vpop.f32.mrf.mxu0
    %v5609 = vadd.f32 0.0, %v5608
    %v5610 = vpop.f32.mrf.mxu0
    %v5611 = vadd.f32 0.0, %v5610
    %5612 = vmatmul.bf16.gmra.mxu0 %v1203
    %v5613 = vpop.f32.mrf.mxu0
    %v5614 = vadd.f32 0.0, %v5613
    %v5615 = vpop.f32.mrf.mxu0
    %v5616 = vadd.f32 0.0, %v5615
    %5617 = vmatmul.bf16.gmra.mxu0 %v1205
    %v5618 = vpop.f32.mrf.mxu0
    %v5619 = vadd.f32 0.0, %v5618
    %v5620 = vpop.f32.mrf.mxu0
    %v5621 = vadd.f32 0.0, %v5620
    %5622 = vmatmul.bf16.gmra.mxu0 %v1207
    %v5623 = vpop.f32.mrf.mxu0
    %v5624 = vadd.f32 0.0, %v5623
    %v5625 = vpop.f32.mrf.mxu0
    %v5626 = vadd.f32 0.0, %v5625
    %5627 = vmatmul.bf16.gmra.mxu0 %v1209
    %v5628 = vpop.f32.mrf.mxu0
    %v5629 = vadd.f32 0.0, %v5628
    %v5630 = vpop.f32.mrf.mxu0
    %v5631 = vadd.f32 0.0, %v5630
    %5632 = vmatmul.bf16.gmra.mxu0 %v1211
    %v5633 = vpop.f32.mrf.mxu0
    %v5634 = vadd.f32 0.0, %v5633
    %v5635 = vpop.f32.mrf.mxu0
    %v5636 = vadd.f32 0.0, %v5635
    %5637 = vmatmul.bf16.gmra.mxu0 %v1213
    %v5638 = vpop.f32.mrf.mxu0
    %v5639 = vadd.f32 0.0, %v5638
    %v5640 = vpop.f32.mrf.mxu0
    %v5641 = vadd.f32 0.0, %v5640
    %5642 = vmatmul.bf16.gmra.mxu0 %v1215
    %v5643 = vpop.f32.mrf.mxu0
    %v5644 = vadd.f32 0.0, %v5643
    %v5645 = vpop.f32.mrf.mxu0
    %v5646 = vadd.f32 0.0, %v5645
    %5647 = vmatmul.bf16.gmra.mxu0 %v1217
    %v5648 = vpop.f32.mrf.mxu0
    %v5649 = vadd.f32 0.0, %v5648
    %v5650 = vpop.f32.mrf.mxu0
    %v5651 = vadd.f32 0.0, %v5650
    %5652 = vmatmul.bf16.gmra.mxu0 %v1219
    %v5653 = vpop.f32.mrf.mxu0
    %v5654 = vadd.f32 0.0, %v5653
    %v5655 = vpop.f32.mrf.mxu0
    %v5656 = vadd.f32 0.0, %v5655
    %5657 = vmatmul.bf16.gmra.mxu0 %v1221
    %v5658 = vpop.f32.mrf.mxu0
    %v5659 = vadd.f32 0.0, %v5658
    %v5660 = vpop.f32.mrf.mxu0
    %v5661 = vadd.f32 0.0, %v5660
    %5662 = vmatmul.bf16.gmra.mxu0 %v1223
    %v5663 = vpop.f32.mrf.mxu0
    %v5664 = vadd.f32 0.0, %v5663
    %v5665 = vpop.f32.mrf.mxu0
    %v5666 = vadd.f32 0.0, %v5665
    %5667 = vmatmul.bf16.gmra.mxu0 %v1225
    %v5668 = vpop.f32.mrf.mxu0
    %v5669 = vadd.f32 0.0, %v5668
    %v5670 = vpop.f32.mrf.mxu0
    %v5671 = vadd.f32 0.0, %v5670
    %5672 = vmatmul.bf16.gmra.mxu0 %v1227
    %v5673 = vpop.f32.mrf.mxu0
    %v5674 = vadd.f32 0.0, %v5673
    %v5675 = vpop.f32.mrf.mxu0
    %v5676 = vadd.f32 0.0, %v5675
    %5677 = vmatmul.bf16.gmra.mxu0 %v1229
    %v5678 = vpop.f32.mrf.mxu0
    %v5679 = vadd.f32 0.0, %v5678
    %v5680 = vpop.f32.mrf.mxu0
    %v5681 = vadd.f32 0.0, %v5680
    %5682 = vmatmul.bf16.gmra.mxu0 %v1231
    %v5683 = vpop.f32.mrf.mxu0
    %v5684 = vadd.f32 0.0, %v5683
    %v5685 = vpop.f32.mrf.mxu0
    %v5686 = vadd.f32 0.0, %v5685
    %5687 = vmatmul.bf16.gmra.mxu0 %v1233
    %v5688 = vpop.f32.mrf.mxu0
    %v5689 = vadd.f32 0.0, %v5688
    %v5690 = vpop.f32.mrf.mxu0
    %v5691 = vadd.f32 0.0, %v5690
    %5692 = vmatmul.bf16.gmra.mxu0 %v1235
    %v5693 = vpop.f32.mrf.mxu0
    %v5694 = vadd.f32 0.0, %v5693
    %v5695 = vpop.f32.mrf.mxu0
    %v5696 = vadd.f32 0.0, %v5695
    %5697 = vmatmul.bf16.gmra.mxu0 %v1237
    %v5698 = vpop.f32.mrf.mxu0
    %v5699 = vadd.f32 0.0, %v5698
    %v5700 = vpop.f32.mrf.mxu0
    %v5701 = vadd.f32 0.0, %v5700
    %5702 = vmatmul.bf16.gmra.mxu0 %v1239
    %v5703 = vpop.f32.mrf.mxu0
    %v5704 = vadd.f32 0.0, %v5703
    %v5705 = vpop.f32.mrf.mxu0
    %v5706 = vadd.f32 0.0, %v5705
    %5707 = vmatmul.bf16.gmra.mxu0 %v1241
    %v5708 = vpop.f32.mrf.mxu0
    %v5709 = vadd.f32 0.0, %v5708
    %v5710 = vpop.f32.mrf.mxu0
    %v5711 = vadd.f32 0.0, %v5710
    %5712 = vmatmul.bf16.gmra.mxu0 %v1243
    %v5713 = vpop.f32.mrf.mxu0
    %v5714 = vadd.f32 0.0, %v5713
    %v5715 = vpop.f32.mrf.mxu0
    %v5716 = vadd.f32 0.0, %v5715
    %5717 = vmatmul.bf16.gmra.mxu0 %v1245
    %v5718 = vpop.f32.mrf.mxu0
    %v5719 = vadd.f32 0.0, %v5718
    %v5720 = vpop.f32.mrf.mxu0
    %v5721 = vadd.f32 0.0, %v5720
    %5722 = vmatmul.bf16.gmra.mxu0 %v1247
    %v5723 = vpop.f32.mrf.mxu0
    %v5724 = vadd.f32 0.0, %v5723
    %v5725 = vpop.f32.mrf.mxu0
    %v5726 = vadd.f32 0.0, %v5725
    %5727 = vmatmul.bf16.gmra.mxu0 %v1249
    %v5728 = vpop.f32.mrf.mxu0
    %v5729 = vadd.f32 0.0, %v5728
    %v5730 = vpop.f32.mrf.mxu0
    %v5731 = vadd.f32 0.0, %v5730
    %5732 = vmatmul.bf16.gmra.mxu0 %v1251
    %v5733 = vpop.f32.mrf.mxu0
    %v5734 = vadd.f32 0.0, %v5733
    %v5735 = vpop.f32.mrf.mxu0
    %v5736 = vadd.f32 0.0, %v5735
    %5737 = vmatmul.bf16.gmra.mxu0 %v1253
    %v5738 = vpop.f32.mrf.mxu0
    %v5739 = vadd.f32 0.0, %v5738
    %v5740 = vpop.f32.mrf.mxu0
    %v5741 = vadd.f32 0.0, %v5740
    %5742 = vmatmul.bf16.gmra.mxu0 %v1255
    %v5743 = vpop.f32.mrf.mxu0
    %v5744 = vadd.f32 0.0, %v5743
    %v5745 = vpop.f32.mrf.mxu0
    %v5746 = vadd.f32 0.0, %v5745
    %5747 = vmatmul.bf16.gmra.mxu0 %v1257
    %v5748 = vpop.f32.mrf.mxu0
    %v5749 = vadd.f32 0.0, %v5748
    %v5750 = vpop.f32.mrf.mxu0
    %v5751 = vadd.f32 0.0, %v5750
    %5752 = vmatmul.bf16.gmra.mxu0 %v1259
    %v5753 = vpop.f32.mrf.mxu0
    %v5754 = vadd.f32 0.0, %v5753
    %v5755 = vpop.f32.mrf.mxu0
    %v5756 = vadd.f32 0.0, %v5755
    %5757 = vmatmul.bf16.gmra.mxu0 %v1261
    %v5758 = vpop.f32.mrf.mxu0
    %v5759 = vadd.f32 0.0, %v5758
    %v5760 = vpop.f32.mrf.mxu0
    %v5761 = vadd.f32 0.0, %v5760
    %5762 = vmatmul.bf16.gmra.mxu0 %v1263
    %v5763 = vpop.f32.mrf.mxu0
    %v5764 = vadd.f32 0.0, %v5763
    %v5765 = vpop.f32.mrf.mxu0
    %v5766 = vadd.f32 0.0, %v5765
    %5767 = vmatmul.bf16.gmra.mxu0 %v1265
    %v5768 = vpop.f32.mrf.mxu0
    %v5769 = vadd.f32 0.0, %v5768
    %v5770 = vpop.f32.mrf.mxu0
    %v5771 = vadd.f32 0.0, %v5770
    %5772 = vmatmul.bf16.gmra.mxu0 %v1267
    %v5773 = vpop.f32.mrf.mxu0
    %v5774 = vadd.f32 0.0, %v5773
    %v5775 = vpop.f32.mrf.mxu0
    %v5776 = vadd.f32 0.0, %v5775
    %5777 = vmatmul.bf16.gmra.mxu0 %v1269
    %v5778 = vpop.f32.mrf.mxu0
    %v5779 = vadd.f32 0.0, %v5778
    %v5780 = vpop.f32.mrf.mxu0
    %v5781 = vadd.f32 0.0, %v5780
    %5782 = vmatmul.bf16.gmra.mxu0 %v1271
    %v5783 = vpop.f32.mrf.mxu0
    %v5784 = vadd.f32 0.0, %v5783
    %v5785 = vpop.f32.mrf.mxu0
    %v5786 = vadd.f32 0.0, %v5785
    %5787 = vmatmul.bf16.gmra.mxu0 %v1273
    %v5788 = vpop.f32.mrf.mxu0
    %v5789 = vadd.f32 0.0, %v5788
    %v5790 = vpop.f32.mrf.mxu0
    %v5791 = vadd.f32 0.0, %v5790
    %5792 = vmatmul.bf16.gmra.mxu0 %v1275
    %v5793 = vpop.f32.mrf.mxu0
    %v5794 = vadd.f32 0.0, %v5793
    %v5795 = vpop.f32.mrf.mxu0
    %v5796 = vadd.f32 0.0, %v5795
    %5797 = vmatmul.bf16.gmra.mxu0 %v1277
    %v5798 = vpop.f32.mrf.mxu0
    %v5799 = vadd.f32 0.0, %v5798
    %v5800 = vpop.f32.mrf.mxu0
    %v5801 = vadd.f32 0.0, %v5800
    %5802 = vmatmul.bf16.gmra.mxu0 %v1279
    %v5803 = vpop.f32.mrf.mxu0
    %v5804 = vadd.f32 0.0, %v5803
    %v5805 = vpop.f32.mrf.mxu0
    %v5806 = vadd.f32 0.0, %v5805
    %5807 = vmatmul.bf16.gmra.mxu0 %v1281
    %v5808 = vpop.f32.mrf.mxu0
    %v5809 = vadd.f32 0.0, %v5808
    %v5810 = vpop.f32.mrf.mxu0
    %v5811 = vadd.f32 0.0, %v5810
    %5812 = vmatmul.bf16.gmra.mxu0 %v1283
    %v5813 = vpop.f32.mrf.mxu0
    %v5814 = vadd.f32 0.0, %v5813
    %v5815 = vpop.f32.mrf.mxu0
    %v5816 = vadd.f32 0.0, %v5815
    %5817 = vmatmul.bf16.gmra.mxu0 %v1285
    %v5818 = vpop.f32.mrf.mxu0
    %v5819 = vadd.f32 0.0, %v5818
    %v5820 = vpop.f32.mrf.mxu0
    %v5821 = vadd.f32 0.0, %v5820
    %5822 = vmatmul.bf16.gmra.mxu0 %v1287
    %v5823 = vpop.f32.mrf.mxu0
    %v5824 = vadd.f32 0.0, %v5823
    %v5825 = vpop.f32.mrf.mxu0
    %v5826 = vadd.f32 0.0, %v5825
    %5827 = vmatmul.bf16.gmra.mxu0 %v1289
    %v5828 = vpop.f32.mrf.mxu0
    %v5829 = vadd.f32 0.0, %v5828
    %v5830 = vpop.f32.mrf.mxu0
    %v5831 = vadd.f32 0.0, %v5830
    %5832 = vmatmul.bf16.gmra.mxu0 %v1291
    %v5833 = vpop.f32.mrf.mxu0
    %v5834 = vadd.f32 0.0, %v5833
    %v5835 = vpop.f32.mrf.mxu0
    %v5836 = vadd.f32 0.0, %v5835
    %5837 = vmatmul.bf16.gmra.mxu0 %v1293
    %v5838 = vpop.f32.mrf.mxu0
    %v5839 = vadd.f32 0.0, %v5838
    %v5840 = vpop.f32.mrf.mxu0
    %v5841 = vadd.f32 0.0, %v5840
    %5842 = vmatmul.bf16.gmra.mxu0 %v1295
    %v5843 = vpop.f32.mrf.mxu0
    %v5844 = vadd.f32 0.0, %v5843
    %v5845 = vpop.f32.mrf.mxu0
    %v5846 = vadd.f32 0.0, %v5845
    %5847 = vmatmul.bf16.gmra.mxu0 %v1297
    %v5848 = vpop.f32.mrf.mxu0
    %v5849 = vadd.f32 0.0, %v5848
    %v5850 = vpop.f32.mrf.mxu0
    %v5851 = vadd.f32 0.0, %v5850
    %5852 = vmatmul.bf16.gmra.mxu0 %v1299
    %v5853 = vpop.f32.mrf.mxu0
    %v5854 = vadd.f32 0.0, %v5853
    %v5855 = vpop.f32.mrf.mxu0
    %v5856 = vadd.f32 0.0, %v5855
    %5857 = vmatmul.bf16.gmra.mxu0 %v1301
    %v5858 = vpop.f32.mrf.mxu0
    %v5859 = vadd.f32 0.0, %v5858
    %v5860 = vpop.f32.mrf.mxu0
    %v5861 = vadd.f32 0.0, %v5860
    %5862 = vmatmul.bf16.gmra.mxu0 %v1303
    %v5863 = vpop.f32.mrf.mxu0
    %v5864 = vadd.f32 0.0, %v5863
    %v5865 = vpop.f32.mrf.mxu0
    %v5866 = vadd.f32 0.0, %v5865
    %5867 = vmatmul.bf16.gmra.mxu0 %v1305
    %v5868 = vpop.f32.mrf.mxu0
    %v5869 = vadd.f32 0.0, %v5868
    %v5870 = vpop.f32.mrf.mxu0
    %v5871 = vadd.f32 0.0, %v5870
    %5872 = vmatmul.bf16.gmra.mxu0 %v1307
    %v5873 = vpop.f32.mrf.mxu0
    %v5874 = vadd.f32 0.0, %v5873
    %v5875 = vpop.f32.mrf.mxu0
    %v5876 = vadd.f32 0.0, %v5875
    %5877 = vmatmul.bf16.gmra.mxu0 %v1309
    %v5878 = vpop.f32.mrf.mxu0
    %v5879 = vadd.f32 0.0, %v5878
    %v5880 = vpop.f32.mrf.mxu0
    %v5881 = vadd.f32 0.0, %v5880
    %5882 = vmatmul.bf16.gmra.mxu0 %v1311
    %v5883 = vpop.f32.mrf.mxu0
    %v5884 = vadd.f32 0.0, %v5883
    %v5885 = vpop.f32.mrf.mxu0
    %v5886 = vadd.f32 0.0, %v5885
    %5887 = vmatmul.bf16.gmra.mxu0 %v1313
    %v5888 = vpop.f32.mrf.mxu0
    %v5889 = vadd.f32 0.0, %v5888
    %v5890 = vpop.f32.mrf.mxu0
    %v5891 = vadd.f32 0.0, %v5890
    %5892 = vmatmul.bf16.gmra.mxu0 %v1315
    %v5893 = vpop.f32.mrf.mxu0
    %v5894 = vadd.f32 0.0, %v5893
    %v5895 = vpop.f32.mrf.mxu0
    %v5896 = vadd.f32 0.0, %v5895
    %5897 = vmatmul.bf16.gmra.mxu0 %v1317
    %v5898 = vpop.f32.mrf.mxu0
    %v5899 = vadd.f32 0.0, %v5898
    %v5900 = vpop.f32.mrf.mxu0
    %v5901 = vadd.f32 0.0, %v5900
    %5902 = vmatmul.bf16.gmra.mxu0 %v1319
    %v5903 = vpop.f32.mrf.mxu0
    %v5904 = vadd.f32 0.0, %v5903
    %v5905 = vpop.f32.mrf.mxu0
    %v5906 = vadd.f32 0.0, %v5905
    %5907 = vmatmul.bf16.gmra.mxu0 %v1321
    %v5908 = vpop.f32.mrf.mxu0
    %v5909 = vadd.f32 0.0, %v5908
    %v5910 = vpop.f32.mrf.mxu0
    %v5911 = vadd.f32 0.0, %v5910
    %5912 = vmatmul.bf16.gmra.mxu0 %v1323
    %v5913 = vpop.f32.mrf.mxu0
    %v5914 = vadd.f32 0.0, %v5913
    %v5915 = vpop.f32.mrf.mxu0
    %v5916 = vadd.f32 0.0, %v5915
    %5917 = vmatmul.bf16.gmra.mxu0 %v1325
    %v5918 = vpop.f32.mrf.mxu0
    %v5919 = vadd.f32 0.0, %v5918
    %v5920 = vpop.f32.mrf.mxu0
    %v5921 = vadd.f32 0.0, %v5920
    %5922 = vmatmul.bf16.gmra.mxu0 %v1327
    %v5923 = vpop.f32.mrf.mxu0
    %v5924 = vadd.f32 0.0, %v5923
    %v5925 = vpop.f32.mrf.mxu0
    %v5926 = vadd.f32 0.0, %v5925
    %5927 = vmatmul.bf16.gmra.mxu0 %v1329
    %v5928 = vpop.f32.mrf.mxu0
    %v5929 = vadd.f32 0.0, %v5928
    %v5930 = vpop.f32.mrf.mxu0
    %v5931 = vadd.f32 0.0, %v5930
    %5932 = vmatmul.bf16.gmra.mxu0 %v1331
    %v5933 = vpop.f32.mrf.mxu0
    %v5934 = vadd.f32 0.0, %v5933
    %v5935 = vpop.f32.mrf.mxu0
    %v5936 = vadd.f32 0.0, %v5935
    %5937 = vmatmul.bf16.gmra.mxu0 %v1333
    %v5938 = vpop.f32.mrf.mxu0
    %v5939 = vadd.f32 0.0, %v5938
    %v5940 = vpop.f32.mrf.mxu0
    %v5941 = vadd.f32 0.0, %v5940
    %5942 = vmatmul.bf16.gmra.mxu0 %v1335
    %v5943 = vpop.f32.mrf.mxu0
    %v5944 = vadd.f32 0.0, %v5943
    %v5945 = vpop.f32.mrf.mxu0
    %v5946 = vadd.f32 0.0, %v5945
    %5947 = vmatmul.bf16.gmra.mxu0 %v1337
    %v5948 = vpop.f32.mrf.mxu0
    %v5949 = vadd.f32 0.0, %v5948
    %v5950 = vpop.f32.mrf.mxu0
    %v5951 = vadd.f32 0.0, %v5950
    %5952 = vmatmul.bf16.gmra.mxu0 %v1339
    %v5953 = vpop.f32.mrf.mxu0
    %v5954 = vadd.f32 0.0, %v5953
    %v5955 = vpop.f32.mrf.mxu0
    %v5956 = vadd.f32 0.0, %v5955
    %5957 = vmatmul.bf16.gmra.mxu0 %v1341
    %v5958 = vpop.f32.mrf.mxu0
    %v5959 = vadd.f32 0.0, %v5958
    %v5960 = vpop.f32.mrf.mxu0
    %v5961 = vadd.f32 0.0, %v5960
    %5962 = vmatmul.bf16.gmra.mxu0 %v1343
    %v5963 = vpop.f32.mrf.mxu0
    %v5964 = vadd.f32 0.0, %v5963
    %v5965 = vpop.f32.mrf.mxu0
    %v5966 = vadd.f32 0.0, %v5965
    %5967 = vmatmul.bf16.gmra.mxu0 %v1345
    %v5968 = vpop.f32.mrf.mxu0
    %v5969 = vadd.f32 0.0, %v5968
    %v5970 = vpop.f32.mrf.mxu0
    %v5971 = vadd.f32 0.0, %v5970
    %5972 = vmatmul.bf16.gmra.mxu0 %v1347
    %v5973 = vpop.f32.mrf.mxu0
    %v5974 = vadd.f32 0.0, %v5973
    %v5975 = vpop.f32.mrf.mxu0
    %v5976 = vadd.f32 0.0, %v5975
    %5977 = vdwg.mxu0
    %5978 = vmatpush.bf16.msra.mxu0 0
    %5979 = vmatpush.bf16.msra.mxu0 0
    %5980 = vmatpush.bf16.msra.mxu0 0
    %5981 = vmatpush.bf16.msra.mxu0 0
    %5982 = vmatpush.bf16.msra.mxu0 %v5316
    %5983 = vmatpush.bf16.msra.mxu0 %v5315
    %5984 = vmatpush.bf16.msra.mxu0 %v5314
    %5985 = vmatpush.bf16.msra.mxu0 %v5313
    %5986 = vmatmul.bf16.gmra.mxu0 %v1551
    %v5987 = vpop.f32.mrf.mxu0
    %v5988 = vadd.f32 %v5339, %v5987
    %v5989 = vpop.f32.mrf.mxu0
    %v5990 = vadd.f32 %v5341, %v5989
    %5991 = vmatmul.bf16.gmra.mxu0 %v1554
    %v5992 = vpop.f32.mrf.mxu0
    %v5993 = vadd.f32 %v5344, %v5992
    %v5994 = vpop.f32.mrf.mxu0
    %v5995 = vadd.f32 %v5346, %v5994
    %5996 = vmatmul.bf16.gmra.mxu0 %v1557
    %v5997 = vpop.f32.mrf.mxu0
    %v5998 = vadd.f32 %v5349, %v5997
    %v5999 = vpop.f32.mrf.mxu0
    %v6000 = vadd.f32 %v5351, %v5999
    %6001 = vmatmul.bf16.gmra.mxu0 %v1560
    %v6002 = vpop.f32.mrf.mxu0
    %v6003 = vadd.f32 %v5354, %v6002
    %v6004 = vpop.f32.mrf.mxu0
    %v6005 = vadd.f32 %v5356, %v6004
    %6006 = vmatmul.bf16.gmra.mxu0 %v1563
    %v6007 = vpop.f32.mrf.mxu0
    %v6008 = vadd.f32 %v5359, %v6007
    %v6009 = vpop.f32.mrf.mxu0
    %v6010 = vadd.f32 %v5361, %v6009
    %6011 = vmatmul.bf16.gmra.mxu0 %v1566
    %v6012 = vpop.f32.mrf.mxu0
    %v6013 = vadd.f32 %v5364, %v6012
    %v6014 = vpop.f32.mrf.mxu0
    %v6015 = vadd.f32 %v5366, %v6014
    %6016 = vmatmul.bf16.gmra.mxu0 %v1569
    %v6017 = vpop.f32.mrf.mxu0
    %v6018 = vadd.f32 %v5369, %v6017
    %v6019 = vpop.f32.mrf.mxu0
    %v6020 = vadd.f32 %v5371, %v6019
    %6021 = vmatmul.bf16.gmra.mxu0 %v1572
    %v6022 = vpop.f32.mrf.mxu0
    %v6023 = vadd.f32 %v5374, %v6022
    %v6024 = vpop.f32.mrf.mxu0
    %v6025 = vadd.f32 %v5376, %v6024
    %6026 = vmatmul.bf16.gmra.mxu0 %v1575
    %v6027 = vpop.f32.mrf.mxu0
    %v6028 = vadd.f32 %v5379, %v6027
    %v6029 = vpop.f32.mrf.mxu0
    %v6030 = vadd.f32 %v5381, %v6029
    %6031 = vmatmul.bf16.gmra.mxu0 %v1578
    %v6032 = vpop.f32.mrf.mxu0
    %v6033 = vadd.f32 %v5384, %v6032
    %v6034 = vpop.f32.mrf.mxu0
    %v6035 = vadd.f32 %v5386, %v6034
    %6036 = vmatmul.bf16.gmra.mxu0 %v1581
    %v6037 = vpop.f32.mrf.mxu0
    %v6038 = vadd.f32 %v5389, %v6037
    %v6039 = vpop.f32.mrf.mxu0
    %v6040 = vadd.f32 %v5391, %v6039
    %6041 = vmatmul.bf16.gmra.mxu0 %v1584
    %v6042 = vpop.f32.mrf.mxu0
    %v6043 = vadd.f32 %v5394, %v6042
    %v6044 = vpop.f32.mrf.mxu0
    %v6045 = vadd.f32 %v5396, %v6044
    %6046 = vmatmul.bf16.gmra.mxu0 %v1587
    %v6047 = vpop.f32.mrf.mxu0
    %v6048 = vadd.f32 %v5399, %v6047
    %v6049 = vpop.f32.mrf.mxu0
    %v6050 = vadd.f32 %v5401, %v6049
    %6051 = vmatmul.bf16.gmra.mxu0 %v1590
    %v6052 = vpop.f32.mrf.mxu0
    %v6053 = vadd.f32 %v5404, %v6052
    %v6054 = vpop.f32.mrf.mxu0
    %v6055 = vadd.f32 %v5406, %v6054
    %6056 = vmatmul.bf16.gmra.mxu0 %v1593
    %v6057 = vpop.f32.mrf.mxu0
    %v6058 = vadd.f32 %v5409, %v6057
    %v6059 = vpop.f32.mrf.mxu0
    %v6060 = vadd.f32 %v5411, %v6059
    %6061 = vmatmul.bf16.gmra.mxu0 %v1596
    %v6062 = vpop.f32.mrf.mxu0
    %v6063 = vadd.f32 %v5414, %v6062
    %v6064 = vpop.f32.mrf.mxu0
    %v6065 = vadd.f32 %v5416, %v6064
    %6066 = vmatmul.bf16.gmra.mxu0 %v1599
    %v6067 = vpop.f32.mrf.mxu0
    %v6068 = vadd.f32 %v5419, %v6067
    %v6069 = vpop.f32.mrf.mxu0
    %v6070 = vadd.f32 %v5421, %v6069
    %6071 = vmatmul.bf16.gmra.mxu0 %v1602
    %v6072 = vpop.f32.mrf.mxu0
    %v6073 = vadd.f32 %v5424, %v6072
    %v6074 = vpop.f32.mrf.mxu0
    %v6075 = vadd.f32 %v5426, %v6074
    %6076 = vmatmul.bf16.gmra.mxu0 %v1605
    %v6077 = vpop.f32.mrf.mxu0
    %v6078 = vadd.f32 %v5429, %v6077
    %v6079 = vpop.f32.mrf.mxu0
    %v6080 = vadd.f32 %v5431, %v6079
    %6081 = vmatmul.bf16.gmra.mxu0 %v1608
    %v6082 = vpop.f32.mrf.mxu0
    %v6083 = vadd.f32 %v5434, %v6082
    %v6084 = vpop.f32.mrf.mxu0
    %v6085 = vadd.f32 %v5436, %v6084
    %6086 = vmatmul.bf16.gmra.mxu0 %v1611
    %v6087 = vpop.f32.mrf.mxu0
    %v6088 = vadd.f32 %v5439, %v6087
    %v6089 = vpop.f32.mrf.mxu0
    %v6090 = vadd.f32 %v5441, %v6089
    %6091 = vmatmul.bf16.gmra.mxu0 %v1614
    %v6092 = vpop.f32.mrf.mxu0
    %v6093 = vadd.f32 %v5444, %v6092
    %v6094 = vpop.f32.mrf.mxu0
    %v6095 = vadd.f32 %v5446, %v6094
    %6096 = vmatmul.bf16.gmra.mxu0 %v1617
    %v6097 = vpop.f32.mrf.mxu0
    %v6098 = vadd.f32 %v5449, %v6097
    %v6099 = vpop.f32.mrf.mxu0
    %v6100 = vadd.f32 %v5451, %v6099
    %6101 = vmatmul.bf16.gmra.mxu0 %v1620
    %v6102 = vpop.f32.mrf.mxu0
    %v6103 = vadd.f32 %v5454, %v6102
    %v6104 = vpop.f32.mrf.mxu0
    %v6105 = vadd.f32 %v5456, %v6104
    %6106 = vmatmul.bf16.gmra.mxu0 %v1623
    %v6107 = vpop.f32.mrf.mxu0
    %v6108 = vadd.f32 %v5459, %v6107
    %v6109 = vpop.f32.mrf.mxu0
    %v6110 = vadd.f32 %v5461, %v6109
    %6111 = vmatmul.bf16.gmra.mxu0 %v1626
    %v6112 = vpop.f32.mrf.mxu0
    %v6113 = vadd.f32 %v5464, %v6112
    %v6114 = vpop.f32.mrf.mxu0
    %v6115 = vadd.f32 %v5466, %v6114
    %6116 = vmatmul.bf16.gmra.mxu0 %v1629
    %v6117 = vpop.f32.mrf.mxu0
    %v6118 = vadd.f32 %v5469, %v6117
    %v6119 = vpop.f32.mrf.mxu0
    %v6120 = vadd.f32 %v5471, %v6119
    %6121 = vmatmul.bf16.gmra.mxu0 %v1632
    %v6122 = vpop.f32.mrf.mxu0
    %v6123 = vadd.f32 %v5474, %v6122
    %v6124 = vpop.f32.mrf.mxu0
    %v6125 = vadd.f32 %v5476, %v6124
    %6126 = vmatmul.bf16.gmra.mxu0 %v1635
    %v6127 = vpop.f32.mrf.mxu0
    %v6128 = vadd.f32 %v5479, %v6127
    %v6129 = vpop.f32.mrf.mxu0
    %v6130 = vadd.f32 %v5481, %v6129
    %6131 = vmatmul.bf16.gmra.mxu0 %v1638
    %v6132 = vpop.f32.mrf.mxu0
    %v6133 = vadd.f32 %v5484, %v6132
    %v6134 = vpop.f32.mrf.mxu0
    %v6135 = vadd.f32 %v5486, %v6134
    %6136 = vmatmul.bf16.gmra.mxu0 %v1641
    %v6137 = vpop.f32.mrf.mxu0
    %v6138 = vadd.f32 %v5489, %v6137
    %v6139 = vpop.f32.mrf.mxu0
    %v6140 = vadd.f32 %v5491, %v6139
    %6141 = vmatmul.bf16.gmra.mxu0 %v1644
    %v6142 = vpop.f32.mrf.mxu0
    %v6143 = vadd.f32 %v5494, %v6142
    %v6144 = vpop.f32.mrf.mxu0
    %v6145 = vadd.f32 %v5496, %v6144
    %6146 = vmatmul.bf16.gmra.mxu0 %v1647
    %v6147 = vpop.f32.mrf.mxu0
    %v6148 = vadd.f32 %v5499, %v6147
    %v6149 = vpop.f32.mrf.mxu0
    %v6150 = vadd.f32 %v5501, %v6149
    %6151 = vmatmul.bf16.gmra.mxu0 %v1650
    %v6152 = vpop.f32.mrf.mxu0
    %v6153 = vadd.f32 %v5504, %v6152
    %v6154 = vpop.f32.mrf.mxu0
    %v6155 = vadd.f32 %v5506, %v6154
    %6156 = vmatmul.bf16.gmra.mxu0 %v1653
    %v6157 = vpop.f32.mrf.mxu0
    %v6158 = vadd.f32 %v5509, %v6157
    %v6159 = vpop.f32.mrf.mxu0
    %v6160 = vadd.f32 %v5511, %v6159
    %6161 = vmatmul.bf16.gmra.mxu0 %v1656
    %v6162 = vpop.f32.mrf.mxu0
    %v6163 = vadd.f32 %v5514, %v6162
    %v6164 = vpop.f32.mrf.mxu0
    %v6165 = vadd.f32 %v5516, %v6164
    %6166 = vmatmul.bf16.gmra.mxu0 %v1659
    %v6167 = vpop.f32.mrf.mxu0
    %v6168 = vadd.f32 %v5519, %v6167
    %v6169 = vpop.f32.mrf.mxu0
    %v6170 = vadd.f32 %v5521, %v6169
    %6171 = vmatmul.bf16.gmra.mxu0 %v1662
    %v6172 = vpop.f32.mrf.mxu0
    %v6173 = vadd.f32 %v5524, %v6172
    %v6174 = vpop.f32.mrf.mxu0
    %v6175 = vadd.f32 %v5526, %v6174
    %6176 = vmatmul.bf16.gmra.mxu0 %v1665
    %v6177 = vpop.f32.mrf.mxu0
    %v6178 = vadd.f32 %v5529, %v6177
    %v6179 = vpop.f32.mrf.mxu0
    %v6180 = vadd.f32 %v5531, %v6179
    %6181 = vmatmul.bf16.gmra.mxu0 %v1668
    %v6182 = vpop.f32.mrf.mxu0
    %v6183 = vadd.f32 %v5534, %v6182
    %v6184 = vpop.f32.mrf.mxu0
    %v6185 = vadd.f32 %v5536, %v6184
    %6186 = vmatmul.bf16.gmra.mxu0 %v1671
    %v6187 = vpop.f32.mrf.mxu0
    %v6188 = vadd.f32 %v5539, %v6187
    %v6189 = vpop.f32.mrf.mxu0
    %v6190 = vadd.f32 %v5541, %v6189
    %6191 = vmatmul.bf16.gmra.mxu0 %v1674
    %v6192 = vpop.f32.mrf.mxu0
    %v6193 = vadd.f32 %v5544, %v6192
    %v6194 = vpop.f32.mrf.mxu0
    %v6195 = vadd.f32 %v5546, %v6194
    %6196 = vmatmul.bf16.gmra.mxu0 %v1677
    %v6197 = vpop.f32.mrf.mxu0
    %v6198 = vadd.f32 %v5549, %v6197
    %v6199 = vpop.f32.mrf.mxu0
    %v6200 = vadd.f32 %v5551, %v6199
    %6201 = vmatmul.bf16.gmra.mxu0 %v1680
    %v6202 = vpop.f32.mrf.mxu0
    %v6203 = vadd.f32 %v5554, %v6202
    %v6204 = vpop.f32.mrf.mxu0
    %v6205 = vadd.f32 %v5556, %v6204
    %6206 = vmatmul.bf16.gmra.mxu0 %v1683
    %v6207 = vpop.f32.mrf.mxu0
    %v6208 = vadd.f32 %v5559, %v6207
    %v6209 = vpop.f32.mrf.mxu0
    %v6210 = vadd.f32 %v5561, %v6209
    %6211 = vmatmul.bf16.gmra.mxu0 %v1686
    %v6212 = vpop.f32.mrf.mxu0
    %v6213 = vadd.f32 %v5564, %v6212
    %v6214 = vpop.f32.mrf.mxu0
    %v6215 = vadd.f32 %v5566, %v6214
    %6216 = vmatmul.bf16.gmra.mxu0 %v1689
    %v6217 = vpop.f32.mrf.mxu0
    %v6218 = vadd.f32 %v5569, %v6217
    %v6219 = vpop.f32.mrf.mxu0
    %v6220 = vadd.f32 %v5571, %v6219
    %6221 = vmatmul.bf16.gmra.mxu0 %v1692
    %v6222 = vpop.f32.mrf.mxu0
    %v6223 = vadd.f32 %v5574, %v6222
    %v6224 = vpop.f32.mrf.mxu0
    %v6225 = vadd.f32 %v5576, %v6224
    %6226 = vmatmul.bf16.gmra.mxu0 %v1695
    %v6227 = vpop.f32.mrf.mxu0
    %v6228 = vadd.f32 %v5579, %v6227
    %v6229 = vpop.f32.mrf.mxu0
    %v6230 = vadd.f32 %v5581, %v6229
    %6231 = vmatmul.bf16.gmra.mxu0 %v1698
    %v6232 = vpop.f32.mrf.mxu0
    %v6233 = vadd.f32 %v5584, %v6232
    %v6234 = vpop.f32.mrf.mxu0
    %v6235 = vadd.f32 %v5586, %v6234
    %6236 = vmatmul.bf16.gmra.mxu0 %v1701
    %v6237 = vpop.f32.mrf.mxu0
    %v6238 = vadd.f32 %v5589, %v6237
    %v6239 = vpop.f32.mrf.mxu0
    %v6240 = vadd.f32 %v5591, %v6239
    %6241 = vmatmul.bf16.gmra.mxu0 %v1704
    %v6242 = vpop.f32.mrf.mxu0
    %v6243 = vadd.f32 %v5594, %v6242
    %v6244 = vpop.f32.mrf.mxu0
    %v6245 = vadd.f32 %v5596, %v6244
    %6246 = vmatmul.bf16.gmra.mxu0 %v1707
    %v6247 = vpop.f32.mrf.mxu0
    %v6248 = vadd.f32 %v5599, %v6247
    %v6249 = vpop.f32.mrf.mxu0
    %v6250 = vadd.f32 %v5601, %v6249
    %6251 = vmatmul.bf16.gmra.mxu0 %v1710
    %v6252 = vpop.f32.mrf.mxu0
    %v6253 = vadd.f32 %v5604, %v6252
    %v6254 = vpop.f32.mrf.mxu0
    %v6255 = vadd.f32 %v5606, %v6254
    %6256 = vmatmul.bf16.gmra.mxu0 %v1713
    %v6257 = vpop.f32.mrf.mxu0
    %v6258 = vadd.f32 %v5609, %v6257
    %v6259 = vpop.f32.mrf.mxu0
    %v6260 = vadd.f32 %v5611, %v6259
    %6261 = vmatmul.bf16.gmra.mxu0 %v1716
    %v6262 = vpop.f32.mrf.mxu0
    %v6263 = vadd.f32 %v5614, %v6262
    %v6264 = vpop.f32.mrf.mxu0
    %v6265 = vadd.f32 %v5616, %v6264
    %6266 = vmatmul.bf16.gmra.mxu0 %v1719
    %v6267 = vpop.f32.mrf.mxu0
    %v6268 = vadd.f32 %v5619, %v6267
    %v6269 = vpop.f32.mrf.mxu0
    %v6270 = vadd.f32 %v5621, %v6269
    %6271 = vmatmul.bf16.gmra.mxu0 %v1722
    %v6272 = vpop.f32.mrf.mxu0
    %v6273 = vadd.f32 %v5624, %v6272
    %v6274 = vpop.f32.mrf.mxu0
    %v6275 = vadd.f32 %v5626, %v6274
    %6276 = vmatmul.bf16.gmra.mxu0 %v1725
    %v6277 = vpop.f32.mrf.mxu0
    %v6278 = vadd.f32 %v5629, %v6277
    %v6279 = vpop.f32.mrf.mxu0
    %v6280 = vadd.f32 %v5631, %v6279
    %6281 = vmatmul.bf16.gmra.mxu0 %v1728
    %v6282 = vpop.f32.mrf.mxu0
    %v6283 = vadd.f32 %v5634, %v6282
    %v6284 = vpop.f32.mrf.mxu0
    %v6285 = vadd.f32 %v5636, %v6284
    %6286 = vmatmul.bf16.gmra.mxu0 %v1731
    %v6287 = vpop.f32.mrf.mxu0
    %v6288 = vadd.f32 %v5639, %v6287
    %v6289 = vpop.f32.mrf.mxu0
    %v6290 = vadd.f32 %v5641, %v6289
    %6291 = vmatmul.bf16.gmra.mxu0 %v1734
    %v6292 = vpop.f32.mrf.mxu0
    %v6293 = vadd.f32 %v5644, %v6292
    %v6294 = vpop.f32.mrf.mxu0
    %v6295 = vadd.f32 %v5646, %v6294
    %6296 = vmatmul.bf16.gmra.mxu0 %v1737
    %v6297 = vpop.f32.mrf.mxu0
    %v6298 = vadd.f32 %v5649, %v6297
    %v6299 = vpop.f32.mrf.mxu0
    %v6300 = vadd.f32 %v5651, %v6299
    %6301 = vmatmul.bf16.gmra.mxu0 %v1740
    %v6302 = vpop.f32.mrf.mxu0
    %v6303 = vadd.f32 %v5654, %v6302
    %v6304 = vpop.f32.mrf.mxu0
    %v6305 = vadd.f32 %v5656, %v6304
    %6306 = vmatmul.bf16.gmra.mxu0 %v1743
    %v6307 = vpop.f32.mrf.mxu0
    %v6308 = vadd.f32 %v5659, %v6307
    %v6309 = vpop.f32.mrf.mxu0
    %v6310 = vadd.f32 %v5661, %v6309
    %6311 = vmatmul.bf16.gmra.mxu0 %v1746
    %v6312 = vpop.f32.mrf.mxu0
    %v6313 = vadd.f32 %v5664, %v6312
    %v6314 = vpop.f32.mrf.mxu0
    %v6315 = vadd.f32 %v5666, %v6314
    %6316 = vmatmul.bf16.gmra.mxu0 %v1749
    %v6317 = vpop.f32.mrf.mxu0
    %v6318 = vadd.f32 %v5669, %v6317
    %v6319 = vpop.f32.mrf.mxu0
    %v6320 = vadd.f32 %v5671, %v6319
    %6321 = vmatmul.bf16.gmra.mxu0 %v1752
    %v6322 = vpop.f32.mrf.mxu0
    %v6323 = vadd.f32 %v5674, %v6322
    %v6324 = vpop.f32.mrf.mxu0
    %v6325 = vadd.f32 %v5676, %v6324
    %6326 = vmatmul.bf16.gmra.mxu0 %v1755
    %v6327 = vpop.f32.mrf.mxu0
    %v6328 = vadd.f32 %v5679, %v6327
    %v6329 = vpop.f32.mrf.mxu0
    %v6330 = vadd.f32 %v5681, %v6329
    %6331 = vmatmul.bf16.gmra.mxu0 %v1758
    %v6332 = vpop.f32.mrf.mxu0
    %v6333 = vadd.f32 %v5684, %v6332
    %v6334 = vpop.f32.mrf.mxu0
    %v6335 = vadd.f32 %v5686, %v6334
    %6336 = vmatmul.bf16.gmra.mxu0 %v1761
    %v6337 = vpop.f32.mrf.mxu0
    %v6338 = vadd.f32 %v5689, %v6337
    %v6339 = vpop.f32.mrf.mxu0
    %v6340 = vadd.f32 %v5691, %v6339
    %6341 = vmatmul.bf16.gmra.mxu0 %v1764
    %v6342 = vpop.f32.mrf.mxu0
    %v6343 = vadd.f32 %v5694, %v6342
    %v6344 = vpop.f32.mrf.mxu0
    %v6345 = vadd.f32 %v5696, %v6344
    %6346 = vmatmul.bf16.gmra.mxu0 %v1767
    %v6347 = vpop.f32.mrf.mxu0
    %v6348 = vadd.f32 %v5699, %v6347
    %v6349 = vpop.f32.mrf.mxu0
    %v6350 = vadd.f32 %v5701, %v6349
    %6351 = vmatmul.bf16.gmra.mxu0 %v1770
    %v6352 = vpop.f32.mrf.mxu0
    %v6353 = vadd.f32 %v5704, %v6352
    %v6354 = vpop.f32.mrf.mxu0
    %v6355 = vadd.f32 %v5706, %v6354
    %6356 = vmatmul.bf16.gmra.mxu0 %v1773
    %v6357 = vpop.f32.mrf.mxu0
    %v6358 = vadd.f32 %v5709, %v6357
    %v6359 = vpop.f32.mrf.mxu0
    %v6360 = vadd.f32 %v5711, %v6359
    %6361 = vmatmul.bf16.gmra.mxu0 %v1776
    %v6362 = vpop.f32.mrf.mxu0
    %v6363 = vadd.f32 %v5714, %v6362
    %v6364 = vpop.f32.mrf.mxu0
    %v6365 = vadd.f32 %v5716, %v6364
    %6366 = vmatmul.bf16.gmra.mxu0 %v1779
    %v6367 = vpop.f32.mrf.mxu0
    %v6368 = vadd.f32 %v5719, %v6367
    %v6369 = vpop.f32.mrf.mxu0
    %v6370 = vadd.f32 %v5721, %v6369
    %6371 = vmatmul.bf16.gmra.mxu0 %v1782
    %v6372 = vpop.f32.mrf.mxu0
    %v6373 = vadd.f32 %v5724, %v6372
    %v6374 = vpop.f32.mrf.mxu0
    %v6375 = vadd.f32 %v5726, %v6374
    %6376 = vmatmul.bf16.gmra.mxu0 %v1785
    %v6377 = vpop.f32.mrf.mxu0
    %v6378 = vadd.f32 %v5729, %v6377
    %v6379 = vpop.f32.mrf.mxu0
    %v6380 = vadd.f32 %v5731, %v6379
    %6381 = vmatmul.bf16.gmra.mxu0 %v1788
    %v6382 = vpop.f32.mrf.mxu0
    %v6383 = vadd.f32 %v5734, %v6382
    %v6384 = vpop.f32.mrf.mxu0
    %v6385 = vadd.f32 %v5736, %v6384
    %6386 = vmatmul.bf16.gmra.mxu0 %v1791
    %v6387 = vpop.f32.mrf.mxu0
    %v6388 = vadd.f32 %v5739, %v6387
    %v6389 = vpop.f32.mrf.mxu0
    %v6390 = vadd.f32 %v5741, %v6389
    %6391 = vmatmul.bf16.gmra.mxu0 %v1794
    %v6392 = vpop.f32.mrf.mxu0
    %v6393 = vadd.f32 %v5744, %v6392
    %v6394 = vpop.f32.mrf.mxu0
    %v6395 = vadd.f32 %v5746, %v6394
    %6396 = vmatmul.bf16.gmra.mxu0 %v1797
    %v6397 = vpop.f32.mrf.mxu0
    %v6398 = vadd.f32 %v5749, %v6397
    %v6399 = vpop.f32.mrf.mxu0
    %v6400 = vadd.f32 %v5751, %v6399
    %6401 = vmatmul.bf16.gmra.mxu0 %v1800
    %v6402 = vpop.f32.mrf.mxu0
    %v6403 = vadd.f32 %v5754, %v6402
    %v6404 = vpop.f32.mrf.mxu0
    %v6405 = vadd.f32 %v5756, %v6404
    %6406 = vmatmul.bf16.gmra.mxu0 %v1803
    %v6407 = vpop.f32.mrf.mxu0
    %v6408 = vadd.f32 %v5759, %v6407
    %v6409 = vpop.f32.mrf.mxu0
    %v6410 = vadd.f32 %v5761, %v6409
    %6411 = vmatmul.bf16.gmra.mxu0 %v1806
    %v6412 = vpop.f32.mrf.mxu0
    %v6413 = vadd.f32 %v5764, %v6412
    %v6414 = vpop.f32.mrf.mxu0
    %v6415 = vadd.f32 %v5766, %v6414
    %6416 = vmatmul.bf16.gmra.mxu0 %v1809
    %v6417 = vpop.f32.mrf.mxu0
    %v6418 = vadd.f32 %v5769, %v6417
    %v6419 = vpop.f32.mrf.mxu0
    %v6420 = vadd.f32 %v5771, %v6419
    %6421 = vmatmul.bf16.gmra.mxu0 %v1812
    %v6422 = vpop.f32.mrf.mxu0
    %v6423 = vadd.f32 %v5774, %v6422
    %v6424 = vpop.f32.mrf.mxu0
    %v6425 = vadd.f32 %v5776, %v6424
    %6426 = vmatmul.bf16.gmra.mxu0 %v1815
    %v6427 = vpop.f32.mrf.mxu0
    %v6428 = vadd.f32 %v5779, %v6427
    %v6429 = vpop.f32.mrf.mxu0
    %v6430 = vadd.f32 %v5781, %v6429
    %6431 = vmatmul.bf16.gmra.mxu0 %v1818
    %v6432 = vpop.f32.mrf.mxu0
    %v6433 = vadd.f32 %v5784, %v6432
    %v6434 = vpop.f32.mrf.mxu0
    %v6435 = vadd.f32 %v5786, %v6434
    %6436 = vmatmul.bf16.gmra.mxu0 %v1821
    %v6437 = vpop.f32.mrf.mxu0
    %v6438 = vadd.f32 %v5789, %v6437
    %v6439 = vpop.f32.mrf.mxu0
    %v6440 = vadd.f32 %v5791, %v6439
    %6441 = vmatmul.bf16.gmra.mxu0 %v1824
    %v6442 = vpop.f32.mrf.mxu0
    %v6443 = vadd.f32 %v5794, %v6442
    %v6444 = vpop.f32.mrf.mxu0
    %v6445 = vadd.f32 %v5796, %v6444
    %6446 = vmatmul.bf16.gmra.mxu0 %v1827
    %v6447 = vpop.f32.mrf.mxu0
    %v6448 = vadd.f32 %v5799, %v6447
    %v6449 = vpop.f32.mrf.mxu0
    %v6450 = vadd.f32 %v5801, %v6449
    %6451 = vmatmul.bf16.gmra.mxu0 %v1830
    %v6452 = vpop.f32.mrf.mxu0
    %v6453 = vadd.f32 %v5804, %v6452
    %v6454 = vpop.f32.mrf.mxu0
    %v6455 = vadd.f32 %v5806, %v6454
    %6456 = vmatmul.bf16.gmra.mxu0 %v1833
    %v6457 = vpop.f32.mrf.mxu0
    %v6458 = vadd.f32 %v5809, %v6457
    %v6459 = vpop.f32.mrf.mxu0
    %v6460 = vadd.f32 %v5811, %v6459
    %6461 = vmatmul.bf16.gmra.mxu0 %v1836
    %v6462 = vpop.f32.mrf.mxu0
    %v6463 = vadd.f32 %v5814, %v6462
    %v6464 = vpop.f32.mrf.mxu0
    %v6465 = vadd.f32 %v5816, %v6464
    %6466 = vmatmul.bf16.gmra.mxu0 %v1839
    %v6467 = vpop.f32.mrf.mxu0
    %v6468 = vadd.f32 %v5819, %v6467
    %v6469 = vpop.f32.mrf.mxu0
    %v6470 = vadd.f32 %v5821, %v6469
    %6471 = vmatmul.bf16.gmra.mxu0 %v1842
    %v6472 = vpop.f32.mrf.mxu0
    %v6473 = vadd.f32 %v5824, %v6472
    %v6474 = vpop.f32.mrf.mxu0
    %v6475 = vadd.f32 %v5826, %v6474
    %6476 = vmatmul.bf16.gmra.mxu0 %v1845
    %v6477 = vpop.f32.mrf.mxu0
    %v6478 = vadd.f32 %v5829, %v6477
    %v6479 = vpop.f32.mrf.mxu0
    %v6480 = vadd.f32 %v5831, %v6479
    %6481 = vmatmul.bf16.gmra.mxu0 %v1848
    %v6482 = vpop.f32.mrf.mxu0
    %v6483 = vadd.f32 %v5834, %v6482
    %v6484 = vpop.f32.mrf.mxu0
    %v6485 = vadd.f32 %v5836, %v6484
    %6486 = vmatmul.bf16.gmra.mxu0 %v1851
    %v6487 = vpop.f32.mrf.mxu0
    %v6488 = vadd.f32 %v5839, %v6487
    %v6489 = vpop.f32.mrf.mxu0
    %v6490 = vadd.f32 %v5841, %v6489
    %6491 = vmatmul.bf16.gmra.mxu0 %v1854
    %v6492 = vpop.f32.mrf.mxu0
    %v6493 = vadd.f32 %v5844, %v6492
    %v6494 = vpop.f32.mrf.mxu0
    %v6495 = vadd.f32 %v5846, %v6494
    %6496 = vmatmul.bf16.gmra.mxu0 %v1857
    %v6497 = vpop.f32.mrf.mxu0
    %v6498 = vadd.f32 %v5849, %v6497
    %v6499 = vpop.f32.mrf.mxu0
    %v6500 = vadd.f32 %v5851, %v6499
    %6501 = vmatmul.bf16.gmra.mxu0 %v1860
    %v6502 = vpop.f32.mrf.mxu0
    %v6503 = vadd.f32 %v5854, %v6502
    %v6504 = vpop.f32.mrf.mxu0
    %v6505 = vadd.f32 %v5856, %v6504
    %6506 = vmatmul.bf16.gmra.mxu0 %v1863
    %v6507 = vpop.f32.mrf.mxu0
    %v6508 = vadd.f32 %v5859, %v6507
    %v6509 = vpop.f32.mrf.mxu0
    %v6510 = vadd.f32 %v5861, %v6509
    %6511 = vmatmul.bf16.gmra.mxu0 %v1866
    %v6512 = vpop.f32.mrf.mxu0
    %v6513 = vadd.f32 %v5864, %v6512
    %v6514 = vpop.f32.mrf.mxu0
    %v6515 = vadd.f32 %v5866, %v6514
    %6516 = vmatmul.bf16.gmra.mxu0 %v1869
    %v6517 = vpop.f32.mrf.mxu0
    %v6518 = vadd.f32 %v5869, %v6517
    %v6519 = vpop.f32.mrf.mxu0
    %v6520 = vadd.f32 %v5871, %v6519
    %6521 = vmatmul.bf16.gmra.mxu0 %v1872
    %v6522 = vpop.f32.mrf.mxu0
    %v6523 = vadd.f32 %v5874, %v6522
    %v6524 = vpop.f32.mrf.mxu0
    %v6525 = vadd.f32 %v5876, %v6524
    %6526 = vmatmul.bf16.gmra.mxu0 %v1875
    %v6527 = vpop.f32.mrf.mxu0
    %v6528 = vadd.f32 %v5879, %v6527
    %v6529 = vpop.f32.mrf.mxu0
    %v6530 = vadd.f32 %v5881, %v6529
    %6531 = vmatmul.bf16.gmra.mxu0 %v1878
    %v6532 = vpop.f32.mrf.mxu0
    %v6533 = vadd.f32 %v5884, %v6532
    %v6534 = vpop.f32.mrf.mxu0
    %v6535 = vadd.f32 %v5886, %v6534
    %6536 = vmatmul.bf16.gmra.mxu0 %v1881
    %v6537 = vpop.f32.mrf.mxu0
    %v6538 = vadd.f32 %v5889, %v6537
    %v6539 = vpop.f32.mrf.mxu0
    %v6540 = vadd.f32 %v5891, %v6539
    %6541 = vmatmul.bf16.gmra.mxu0 %v1884
    %v6542 = vpop.f32.mrf.mxu0
    %v6543 = vadd.f32 %v5894, %v6542
    %v6544 = vpop.f32.mrf.mxu0
    %v6545 = vadd.f32 %v5896, %v6544
    %6546 = vmatmul.bf16.gmra.mxu0 %v1887
    %v6547 = vpop.f32.mrf.mxu0
    %v6548 = vadd.f32 %v5899, %v6547
    %v6549 = vpop.f32.mrf.mxu0
    %v6550 = vadd.f32 %v5901, %v6549
    %6551 = vmatmul.bf16.gmra.mxu0 %v1890
    %v6552 = vpop.f32.mrf.mxu0
    %v6553 = vadd.f32 %v5904, %v6552
    %v6554 = vpop.f32.mrf.mxu0
    %v6555 = vadd.f32 %v5906, %v6554
    %6556 = vmatmul.bf16.gmra.mxu0 %v1893
    %v6557 = vpop.f32.mrf.mxu0
    %v6558 = vadd.f32 %v5909, %v6557
    %v6559 = vpop.f32.mrf.mxu0
    %v6560 = vadd.f32 %v5911, %v6559
    %6561 = vmatmul.bf16.gmra.mxu0 %v1896
    %v6562 = vpop.f32.mrf.mxu0
    %v6563 = vadd.f32 %v5914, %v6562
    %v6564 = vpop.f32.mrf.mxu0
    %v6565 = vadd.f32 %v5916, %v6564
    %6566 = vmatmul.bf16.gmra.mxu0 %v1899
    %v6567 = vpop.f32.mrf.mxu0
    %v6568 = vadd.f32 %v5919, %v6567
    %v6569 = vpop.f32.mrf.mxu0
    %v6570 = vadd.f32 %v5921, %v6569
    %6571 = vmatmul.bf16.gmra.mxu0 %v1902
    %v6572 = vpop.f32.mrf.mxu0
    %v6573 = vadd.f32 %v5924, %v6572
    %v6574 = vpop.f32.mrf.mxu0
    %v6575 = vadd.f32 %v5926, %v6574
    %6576 = vmatmul.bf16.gmra.mxu0 %v1905
    %v6577 = vpop.f32.mrf.mxu0
    %v6578 = vadd.f32 %v5929, %v6577
    %v6579 = vpop.f32.mrf.mxu0
    %v6580 = vadd.f32 %v5931, %v6579
    %6581 = vmatmul.bf16.gmra.mxu0 %v1908
    %v6582 = vpop.f32.mrf.mxu0
    %v6583 = vadd.f32 %v5934, %v6582
    %v6584 = vpop.f32.mrf.mxu0
    %v6585 = vadd.f32 %v5936, %v6584
    %6586 = vmatmul.bf16.gmra.mxu0 %v1911
    %v6587 = vpop.f32.mrf.mxu0
    %v6588 = vadd.f32 %v5939, %v6587
    %v6589 = vpop.f32.mrf.mxu0
    %v6590 = vadd.f32 %v5941, %v6589
    %6591 = vmatmul.bf16.gmra.mxu0 %v1914
    %v6592 = vpop.f32.mrf.mxu0
    %v6593 = vadd.f32 %v5944, %v6592
    %v6594 = vpop.f32.mrf.mxu0
    %v6595 = vadd.f32 %v5946, %v6594
    %6596 = vmatmul.bf16.gmra.mxu0 %v1917
    %v6597 = vpop.f32.mrf.mxu0
    %v6598 = vadd.f32 %v5949, %v6597
    %v6599 = vpop.f32.mrf.mxu0
    %v6600 = vadd.f32 %v5951, %v6599
    %6601 = vmatmul.bf16.gmra.mxu0 %v1920
    %v6602 = vpop.f32.mrf.mxu0
    %v6603 = vadd.f32 %v5954, %v6602
    %v6604 = vpop.f32.mrf.mxu0
    %v6605 = vadd.f32 %v5956, %v6604
    %6606 = vmatmul.bf16.gmra.mxu0 %v1923
    %v6607 = vpop.f32.mrf.mxu0
    %v6608 = vadd.f32 %v5959, %v6607
    %v6609 = vpop.f32.mrf.mxu0
    %v6610 = vadd.f32 %v5961, %v6609
    %6611 = vmatmul.bf16.gmra.mxu0 %v1926
    %v6612 = vpop.f32.mrf.mxu0
    %v6613 = vadd.f32 %v5964, %v6612
    %v6614 = vpop.f32.mrf.mxu0
    %v6615 = vadd.f32 %v5966, %v6614
    %6616 = vmatmul.bf16.gmra.mxu0 %v1929
    %v6617 = vpop.f32.mrf.mxu0
    %v6618 = vadd.f32 %v5969, %v6617
    %v6619 = vpop.f32.mrf.mxu0
    %v6620 = vadd.f32 %v5971, %v6619
    %6621 = vmatmul.bf16.gmra.mxu0 %v1932
    %v6622 = vpop.f32.mrf.mxu0
    %v6623 = vadd.f32 %v5974, %v6622
    %v6624 = vpop.f32.mrf.mxu0
    %v6625 = vadd.f32 %v5976, %v6624
    %6626 = vdwg.mxu0
    %s6627 = scalar_lea.vmem %s3, 2
    %v6628 = vld [vmem:[%s6627] sm:$0x3]
    %v6629 = vadd.f32 %v5988, %v3236
    %v6630 = vadd.f32 %v5990, %v3236
    %v6631 = vadd.f32 %v5993, %v3236
    %v6632 = vadd.f32 %v5995, %v3236
    %v6633 = vadd.f32 %v5998, %v3236
    %v6634 = vadd.f32 %v6000, %v3236
    %v6635 = vadd.f32 %v6003, %v3236
    %v6636 = vadd.f32 %v6005, %v3236
    %v6637 = vadd.f32 %v6008, %v3236
    %v6638 = vadd.f32 %v6010, %v3236
    %v6639 = vadd.f32 %v6013, %v3236
    %v6640 = vadd.f32 %v6015, %v3236
    %v6641 = vadd.f32 %v6018, %v3236
    %v6642 = vadd.f32 %v6020, %v3236
    %v6643 = vadd.f32 %v6023, %v3236
    %v6644 = vadd.f32 %v6025, %v3236
    %vm6645 = vcmp.gt.f32.partialorder %v6629, 0.0
    %vm6646 = vcmp.gt.f32.partialorder %v6630, 0.0
    %vm6647 = vcmp.gt.f32.partialorder %v6631, 0.0
    %vm6648 = vcmp.gt.f32.partialorder %v6632, 0.0
    %vm6649 = vcmp.gt.f32.partialorder %v6633, 0.0
    %vm6650 = vcmp.gt.f32.partialorder %v6634, 0.0
    %vm6651 = vcmp.gt.f32.partialorder %v6635, 0.0
    %vm6652 = vcmp.gt.f32.partialorder %v6636, 0.0
    %vm6653 = vcmp.gt.f32.partialorder %v6637, 0.0
    %vm6654 = vcmp.gt.f32.partialorder %v6638, 0.0
    %vm6655 = vcmp.gt.f32.partialorder %v6639, 0.0
    %vm6656 = vcmp.gt.f32.partialorder %v6640, 0.0
    %vm6657 = vcmp.gt.f32.partialorder %v6641, 0.0
    %vm6658 = vcmp.gt.f32.partialorder %v6642, 0.0
    %vm6659 = vcmp.gt.f32.partialorder %v6643, 0.0
    %vm6660 = vcmp.gt.f32.partialorder %v6644, 0.0
    %v6661 = vmin.f32 %v6629, 0.0
    %v6662 = vmin.f32 %v6630, 0.0
    %v6663 = vmin.f32 %v6631, 0.0
    %v6664 = vmin.f32 %v6632, 0.0
    %v6665 = vmin.f32 %v6633, 0.0
    %v6666 = vmin.f32 %v6634, 0.0
    %v6667 = vmin.f32 %v6635, 0.0
    %v6668 = vmin.f32 %v6636, 0.0
    %v6669 = vmin.f32 %v6637, 0.0
    %v6670 = vmin.f32 %v6638, 0.0
    %v6671 = vmin.f32 %v6639, 0.0
    %v6672 = vmin.f32 %v6640, 0.0
    %v6673 = vmin.f32 %v6641, 0.0
    %v6674 = vmin.f32 %v6642, 0.0
    %v6675 = vmin.f32 %v6643, 0.0
    %v6676 = vmin.f32 %v6644, 0.0
    %v6677 = vmul.f32 %v6661, 1.442695
    %v6678 = vpow.pop %v6677
    %v6679 = vmul.f32 %v6662, 1.442695
    %v6680 = vpow.pop %v6679
    %v6681 = vmul.f32 %v6663, 1.442695
    %v6682 = vpow.pop %v6681
    %v6683 = vmul.f32 %v6664, 1.442695
    %v6684 = vpow.pop %v6683
    %v6685 = vmul.f32 %v6665, 1.442695
    %v6686 = vpow.pop %v6685
    %v6687 = vmul.f32 %v6666, 1.442695
    %v6688 = vpow.pop %v6687
    %v6689 = vmul.f32 %v6667, 1.442695
    %v6690 = vpow.pop %v6689
    %v6691 = vmul.f32 %v6668, 1.442695
    %v6692 = vpow.pop %v6691
    %v6693 = vmul.f32 %v6669, 1.442695
    %v6694 = vpow.pop %v6693
    %v6695 = vmul.f32 %v6670, 1.442695
    %v6696 = vpow.pop %v6695
    %v6697 = vmul.f32 %v6671, 1.442695
    %v6698 = vpow.pop %v6697
    %v6699 = vmul.f32 %v6672, 1.442695
    %v6700 = vpow.pop %v6699
    %v6701 = vmul.f32 %v6673, 1.442695
    %v6702 = vpow.pop %v6701
    %v6703 = vmul.f32 %v6674, 1.442695
    %v6704 = vpow.pop %v6703
    %v6705 = vmul.f32 %v6675, 1.442695
    %v6706 = vpow.pop %v6705
    %v6707 = vmul.f32 %v6676, 1.442695
    %v6708 = vpow.pop %v6707
    %v6709 = vsub.f32 %v6678, 1.0
    %v6710 = vsub.f32 %v6680, 1.0
    %v6711 = vsub.f32 %v6682, 1.0
    %v6712 = vsub.f32 %v6684, 1.0
    %v6713 = vsub.f32 %v6686, 1.0
    %v6714 = vsub.f32 %v6688, 1.0
    %v6715 = vsub.f32 %v6690, 1.0
    %v6716 = vsub.f32 %v6692, 1.0
    %v6717 = vsub.f32 %v6694, 1.0
    %v6718 = vsub.f32 %v6696, 1.0
    %v6719 = vsub.f32 %v6698, 1.0
    %v6720 = vsub.f32 %v6700, 1.0
    %v6721 = vsub.f32 %v6702, 1.0
    %v6722 = vsub.f32 %v6704, 1.0
    %v6723 = vsub.f32 %v6706, 1.0
    %v6724 = vsub.f32 %v6708, 1.0
    %v6725 = vsel %vm6645, %v6629, %v6709
    %v6726 = vsel %vm6646, %v6630, %v6710
    %v6727 = vsel %vm6647, %v6631, %v6711
    %v6728 = vsel %vm6648, %v6632, %v6712
    %v6729 = vsel %vm6649, %v6633, %v6713
    %v6730 = vsel %vm6650, %v6634, %v6714
    %v6731 = vsel %vm6651, %v6635, %v6715
    %v6732 = vsel %vm6652, %v6636, %v6716
    %v6733 = vsel %vm6653, %v6637, %v6717
    %v6734 = vsel %vm6654, %v6638, %v6718
    %v6735 = vsel %vm6655, %v6639, %v6719
    %v6736 = vsel %vm6656, %v6640, %v6720
    %v6737 = vsel %vm6657, %v6641, %v6721
    %v6738 = vsel %vm6658, %v6642, %v6722
    %v6739 = vsel %vm6659, %v6643, %v6723
    %v6740 = vsel %vm6660, %v6644, %v6724
    %v6741 = vpack.c.bf16 %v6726, %v6725
    %v6742 = vpack.c.bf16 %v6728, %v6727
    %v6743 = vpack.c.bf16 %v6730, %v6729
    %v6744 = vpack.c.bf16 %v6732, %v6731
    %v6745 = vpack.c.bf16 %v6734, %v6733
    %v6746 = vpack.c.bf16 %v6736, %v6735
    %v6747 = vpack.c.bf16 %v6738, %v6737
    %v6748 = vpack.c.bf16 %v6740, %v6739
    %6749 = vmatpush.bf16.msra.mxu0 %v6748
    %6750 = vmatpush.bf16.msra.mxu0 %v6747
    %6751 = vmatpush.bf16.msra.mxu0 %v6746
    %6752 = vmatpush.bf16.msra.mxu0 %v6745
    %6753 = vmatpush.bf16.msra.mxu0 %v6744
    %6754 = vmatpush.bf16.msra.mxu0 %v6743
    %6755 = vmatpush.bf16.msra.mxu0 %v6742
    %6756 = vmatpush.bf16.msra.mxu0 %v6741
    %6757 = vmatmul.bf16.gmra.mxu0 %v6628
    %v6758 = vpop.f32.mrf.mxu0
    %v6759 = vadd.f32 0.0, %v6758
    %v6760 = vpop.f32.mrf.mxu0
    %6761 = vdwg.mxu0
    %6762 = vmatpush.bf16.msra.mxu0 %v3357
    %6763 = vmatpush.bf16.msra.mxu0 %v3356
    %6764 = vmatpush.bf16.msra.mxu0 %v3355
    %6765 = vmatpush.bf16.msra.mxu0 %v3354
    %6766 = vmatpush.bf16.msra.mxu0 %v3353
    %6767 = vmatpush.bf16.msra.mxu0 %v3352
    %6768 = vmatpush.bf16.msra.mxu0 %v3351
    %6769 = vmatpush.bf16.msra.mxu0 %v3350
    %6770 = vmatmul.bf16.gmra.mxu0 %v3232
    %v6771 = vpop.f32.mrf.mxu0
    %v6772 = vadd.f32 %v6759, %v6771
    %v6773 = vpop.f32.mrf.mxu0
    %6774 = vdwg.mxu0
    %v6775 = vadd.f32 %v6028, %v3361
    %v6776 = vadd.f32 %v6030, %v3361
    %v6777 = vadd.f32 %v6033, %v3361
    %v6778 = vadd.f32 %v6035, %v3361
    %v6779 = vadd.f32 %v6038, %v3361
    %v6780 = vadd.f32 %v6040, %v3361
    %v6781 = vadd.f32 %v6043, %v3361
    %v6782 = vadd.f32 %v6045, %v3361
    %v6783 = vadd.f32 %v6048, %v3361
    %v6784 = vadd.f32 %v6050, %v3361
    %v6785 = vadd.f32 %v6053, %v3361
    %v6786 = vadd.f32 %v6055, %v3361
    %v6787 = vadd.f32 %v6058, %v3361
    %v6788 = vadd.f32 %v6060, %v3361
    %v6789 = vadd.f32 %v6063, %v3361
    %v6790 = vadd.f32 %v6065, %v3361
    %vm6791 = vcmp.gt.f32.partialorder %v6775, 0.0
    %vm6792 = vcmp.gt.f32.partialorder %v6776, 0.0
    %vm6793 = vcmp.gt.f32.partialorder %v6777, 0.0
    %vm6794 = vcmp.gt.f32.partialorder %v6778, 0.0
    %vm6795 = vcmp.gt.f32.partialorder %v6779, 0.0
    %vm6796 = vcmp.gt.f32.partialorder %v6780, 0.0
    %vm6797 = vcmp.gt.f32.partialorder %v6781, 0.0
    %vm6798 = vcmp.gt.f32.partialorder %v6782, 0.0
    %vm6799 = vcmp.gt.f32.partialorder %v6783, 0.0
    %vm6800 = vcmp.gt.f32.partialorder %v6784, 0.0
    %vm6801 = vcmp.gt.f32.partialorder %v6785, 0.0
    %vm6802 = vcmp.gt.f32.partialorder %v6786, 0.0
    %vm6803 = vcmp.gt.f32.partialorder %v6787, 0.0
    %vm6804 = vcmp.gt.f32.partialorder %v6788, 0.0
    %vm6805 = vcmp.gt.f32.partialorder %v6789, 0.0
    %vm6806 = vcmp.gt.f32.partialorder %v6790, 0.0
    %v6807 = vmin.f32 %v6775, 0.0
    %v6808 = vmin.f32 %v6776, 0.0
    %v6809 = vmin.f32 %v6777, 0.0
    %v6810 = vmin.f32 %v6778, 0.0
    %v6811 = vmin.f32 %v6779, 0.0
    %v6812 = vmin.f32 %v6780, 0.0
    %v6813 = vmin.f32 %v6781, 0.0
    %v6814 = vmin.f32 %v6782, 0.0
    %v6815 = vmin.f32 %v6783, 0.0
    %v6816 = vmin.f32 %v6784, 0.0
    %v6817 = vmin.f32 %v6785, 0.0
    %v6818 = vmin.f32 %v6786, 0.0
    %v6819 = vmin.f32 %v6787, 0.0
    %v6820 = vmin.f32 %v6788, 0.0
    %v6821 = vmin.f32 %v6789, 0.0
    %v6822 = vmin.f32 %v6790, 0.0
    %v6823 = vmul.f32 %v6807, 1.442695
    %v6824 = vpow.pop %v6823
    %v6825 = vmul.f32 %v6808, 1.442695
    %v6826 = vpow.pop %v6825
    %v6827 = vmul.f32 %v6809, 1.442695
    %v6828 = vpow.pop %v6827
    %v6829 = vmul.f32 %v6810, 1.442695
    %v6830 = vpow.pop %v6829
    %v6831 = vmul.f32 %v6811, 1.442695
    %v6832 = vpow.pop %v6831
    %v6833 = vmul.f32 %v6812, 1.442695
    %v6834 = vpow.pop %v6833
    %v6835 = vmul.f32 %v6813, 1.442695
    %v6836 = vpow.pop %v6835
    %v6837 = vmul.f32 %v6814, 1.442695
    %v6838 = vpow.pop %v6837
    %v6839 = vmul.f32 %v6815, 1.442695
    %v6840 = vpow.pop %v6839
    %v6841 = vmul.f32 %v6816, 1.442695
    %v6842 = vpow.pop %v6841
    %v6843 = vmul.f32 %v6817, 1.442695
    %v6844 = vpow.pop %v6843
    %v6845 = vmul.f32 %v6818, 1.442695
    %v6846 = vpow.pop %v6845
    %v6847 = vmul.f32 %v6819, 1.442695
    %v6848 = vpow.pop %v6847
    %v6849 = vmul.f32 %v6820, 1.442695
    %v6850 = vpow.pop %v6849
    %v6851 = vmul.f32 %v6821, 1.442695
    %v6852 = vpow.pop %v6851
    %v6853 = vmul.f32 %v6822, 1.442695
    %v6854 = vpow.pop %v6853
    %v6855 = vsub.f32 %v6824, 1.0
    %v6856 = vsub.f32 %v6826, 1.0
    %v6857 = vsub.f32 %v6828, 1.0
    %v6858 = vsub.f32 %v6830, 1.0
    %v6859 = vsub.f32 %v6832, 1.0
    %v6860 = vsub.f32 %v6834, 1.0
    %v6861 = vsub.f32 %v6836, 1.0
    %v6862 = vsub.f32 %v6838, 1.0
    %v6863 = vsub.f32 %v6840, 1.0
    %v6864 = vsub.f32 %v6842, 1.0
    %v6865 = vsub.f32 %v6844, 1.0
    %v6866 = vsub.f32 %v6846, 1.0
    %v6867 = vsub.f32 %v6848, 1.0
    %v6868 = vsub.f32 %v6850, 1.0
    %v6869 = vsub.f32 %v6852, 1.0
    %v6870 = vsub.f32 %v6854, 1.0
    %v6871 = vsel %vm6791, %v6775, %v6855
    %v6872 = vsel %vm6792, %v6776, %v6856
    %v6873 = vsel %vm6793, %v6777, %v6857
    %v6874 = vsel %vm6794, %v6778, %v6858
    %v6875 = vsel %vm6795, %v6779, %v6859
    %v6876 = vsel %vm6796, %v6780, %v6860
    %v6877 = vsel %vm6797, %v6781, %v6861
    %v6878 = vsel %vm6798, %v6782, %v6862
    %v6879 = vsel %vm6799, %v6783, %v6863
    %v6880 = vsel %vm6800, %v6784, %v6864
    %v6881 = vsel %vm6801, %v6785, %v6865
    %v6882 = vsel %vm6802, %v6786, %v6866
    %v6883 = vsel %vm6803, %v6787, %v6867
    %v6884 = vsel %vm6804, %v6788, %v6868
    %v6885 = vsel %vm6805, %v6789, %v6869
    %v6886 = vsel %vm6806, %v6790, %v6870
    %v6887 = vpack.c.bf16 %v6872, %v6871
    %v6888 = vpack.c.bf16 %v6874, %v6873
    %v6889 = vpack.c.bf16 %v6876, %v6875
    %v6890 = vpack.c.bf16 %v6878, %v6877
    %v6891 = vpack.c.bf16 %v6880, %v6879
    %v6892 = vpack.c.bf16 %v6882, %v6881
    %v6893 = vpack.c.bf16 %v6884, %v6883
    %v6894 = vpack.c.bf16 %v6886, %v6885
    %6895 = vmatpush.bf16.msra.mxu0 %v6894
    %6896 = vmatpush.bf16.msra.mxu0 %v6893
    %6897 = vmatpush.bf16.msra.mxu0 %v6892
    %6898 = vmatpush.bf16.msra.mxu0 %v6891
    %6899 = vmatpush.bf16.msra.mxu0 %v6890
    %6900 = vmatpush.bf16.msra.mxu0 %v6889
    %6901 = vmatpush.bf16.msra.mxu0 %v6888
    %6902 = vmatpush.bf16.msra.mxu0 %v6887
    %6903 = vmatmul.bf16.gmra.mxu0 %v6628
    %v6904 = vpop.f32.mrf.mxu0
    %v6905 = vadd.f32 0.0, %v6904
    %v6906 = vpop.f32.mrf.mxu0
    %6907 = vdwg.mxu0
    %6908 = vmatpush.bf16.msra.mxu0 %v3482
    %6909 = vmatpush.bf16.msra.mxu0 %v3481
    %6910 = vmatpush.bf16.msra.mxu0 %v3480
    %6911 = vmatpush.bf16.msra.mxu0 %v3479
    %6912 = vmatpush.bf16.msra.mxu0 %v3478
    %6913 = vmatpush.bf16.msra.mxu0 %v3477
    %6914 = vmatpush.bf16.msra.mxu0 %v3476
    %6915 = vmatpush.bf16.msra.mxu0 %v3475
    %6916 = vmatmul.bf16.gmra.mxu0 %v3232
    %v6917 = vpop.f32.mrf.mxu0
    %v6918 = vadd.f32 %v6905, %v6917
    %v6919 = vpop.f32.mrf.mxu0
    %6920 = vdwg.mxu0
    %v6921 = vadd.f32 %v6068, %v3486
    %v6922 = vadd.f32 %v6070, %v3486
    %v6923 = vadd.f32 %v6073, %v3486
    %v6924 = vadd.f32 %v6075, %v3486
    %v6925 = vadd.f32 %v6078, %v3486
    %v6926 = vadd.f32 %v6080, %v3486
    %v6927 = vadd.f32 %v6083, %v3486
    %v6928 = vadd.f32 %v6085, %v3486
    %v6929 = vadd.f32 %v6088, %v3486
    %v6930 = vadd.f32 %v6090, %v3486
    %v6931 = vadd.f32 %v6093, %v3486
    %v6932 = vadd.f32 %v6095, %v3486
    %v6933 = vadd.f32 %v6098, %v3486
    %v6934 = vadd.f32 %v6100, %v3486
    %v6935 = vadd.f32 %v6103, %v3486
    %v6936 = vadd.f32 %v6105, %v3486
    %vm6937 = vcmp.gt.f32.partialorder %v6921, 0.0
    %vm6938 = vcmp.gt.f32.partialorder %v6922, 0.0
    %vm6939 = vcmp.gt.f32.partialorder %v6923, 0.0
    %vm6940 = vcmp.gt.f32.partialorder %v6924, 0.0
    %vm6941 = vcmp.gt.f32.partialorder %v6925, 0.0
    %vm6942 = vcmp.gt.f32.partialorder %v6926, 0.0
    %vm6943 = vcmp.gt.f32.partialorder %v6927, 0.0
    %vm6944 = vcmp.gt.f32.partialorder %v6928, 0.0
    %vm6945 = vcmp.gt.f32.partialorder %v6929, 0.0
    %vm6946 = vcmp.gt.f32.partialorder %v6930, 0.0
    %vm6947 = vcmp.gt.f32.partialorder %v6931, 0.0
    %vm6948 = vcmp.gt.f32.partialorder %v6932, 0.0
    %vm6949 = vcmp.gt.f32.partialorder %v6933, 0.0
    %vm6950 = vcmp.gt.f32.partialorder %v6934, 0.0
    %vm6951 = vcmp.gt.f32.partialorder %v6935, 0.0
    %vm6952 = vcmp.gt.f32.partialorder %v6936, 0.0
    %v6953 = vmin.f32 %v6921, 0.0
    %v6954 = vmin.f32 %v6922, 0.0
    %v6955 = vmin.f32 %v6923, 0.0
    %v6956 = vmin.f32 %v6924, 0.0
    %v6957 = vmin.f32 %v6925, 0.0
    %v6958 = vmin.f32 %v6926, 0.0
    %v6959 = vmin.f32 %v6927, 0.0
    %v6960 = vmin.f32 %v6928, 0.0
    %v6961 = vmin.f32 %v6929, 0.0
    %v6962 = vmin.f32 %v6930, 0.0
    %v6963 = vmin.f32 %v6931, 0.0
    %v6964 = vmin.f32 %v6932, 0.0
    %v6965 = vmin.f32 %v6933, 0.0
    %v6966 = vmin.f32 %v6934, 0.0
    %v6967 = vmin.f32 %v6935, 0.0
    %v6968 = vmin.f32 %v6936, 0.0
    %v6969 = vmul.f32 %v6953, 1.442695
    %v6970 = vpow.pop %v6969
    %v6971 = vmul.f32 %v6954, 1.442695
    %v6972 = vpow.pop %v6971
    %v6973 = vmul.f32 %v6955, 1.442695
    %v6974 = vpow.pop %v6973
    %v6975 = vmul.f32 %v6956, 1.442695
    %v6976 = vpow.pop %v6975
    %v6977 = vmul.f32 %v6957, 1.442695
    %v6978 = vpow.pop %v6977
    %v6979 = vmul.f32 %v6958, 1.442695
    %v6980 = vpow.pop %v6979
    %v6981 = vmul.f32 %v6959, 1.442695
    %v6982 = vpow.pop %v6981
    %v6983 = vmul.f32 %v6960, 1.442695
    %v6984 = vpow.pop %v6983
    %v6985 = vmul.f32 %v6961, 1.442695
    %v6986 = vpow.pop %v6985
    %v6987 = vmul.f32 %v6962, 1.442695
    %v6988 = vpow.pop %v6987
    %v6989 = vmul.f32 %v6963, 1.442695
    %v6990 = vpow.pop %v6989
    %v6991 = vmul.f32 %v6964, 1.442695
    %v6992 = vpow.pop %v6991
    %v6993 = vmul.f32 %v6965, 1.442695
    %v6994 = vpow.pop %v6993
    %v6995 = vmul.f32 %v6966, 1.442695
    %v6996 = vpow.pop %v6995
    %v6997 = vmul.f32 %v6967, 1.442695
    %v6998 = vpow.pop %v6997
    %v6999 = vmul.f32 %v6968, 1.442695
    %v7000 = vpow.pop %v6999
    %v7001 = vsub.f32 %v6970, 1.0
    %v7002 = vsub.f32 %v6972, 1.0
    %v7003 = vsub.f32 %v6974, 1.0
    %v7004 = vsub.f32 %v6976, 1.0
    %v7005 = vsub.f32 %v6978, 1.0
    %v7006 = vsub.f32 %v6980, 1.0
    %v7007 = vsub.f32 %v6982, 1.0
    %v7008 = vsub.f32 %v6984, 1.0
    %v7009 = vsub.f32 %v6986, 1.0
    %v7010 = vsub.f32 %v6988, 1.0
    %v7011 = vsub.f32 %v6990, 1.0
    %v7012 = vsub.f32 %v6992, 1.0
    %v7013 = vsub.f32 %v6994, 1.0
    %v7014 = vsub.f32 %v6996, 1.0
    %v7015 = vsub.f32 %v6998, 1.0
    %v7016 = vsub.f32 %v7000, 1.0
    %v7017 = vsel %vm6937, %v6921, %v7001
    %v7018 = vsel %vm6938, %v6922, %v7002
    %v7019 = vsel %vm6939, %v6923, %v7003
    %v7020 = vsel %vm6940, %v6924, %v7004
    %v7021 = vsel %vm6941, %v6925, %v7005
    %v7022 = vsel %vm6942, %v6926, %v7006
    %v7023 = vsel %vm6943, %v6927, %v7007
    %v7024 = vsel %vm6944, %v6928, %v7008
    %v7025 = vsel %vm6945, %v6929, %v7009
    %v7026 = vsel %vm6946, %v6930, %v7010
    %v7027 = vsel %vm6947, %v6931, %v7011
    %v7028 = vsel %vm6948, %v6932, %v7012
    %v7029 = vsel %vm6949, %v6933, %v7013
    %v7030 = vsel %vm6950, %v6934, %v7014
    %v7031 = vsel %vm6951, %v6935, %v7015
    %v7032 = vsel %vm6952, %v6936, %v7016
    %v7033 = vpack.c.bf16 %v7018, %v7017
    %v7034 = vpack.c.bf16 %v7020, %v7019
    %v7035 = vpack.c.bf16 %v7022, %v7021
    %v7036 = vpack.c.bf16 %v7024, %v7023
    %v7037 = vpack.c.bf16 %v7026, %v7025
    %v7038 = vpack.c.bf16 %v7028, %v7027
    %v7039 = vpack.c.bf16 %v7030, %v7029
    %v7040 = vpack.c.bf16 %v7032, %v7031
    %7041 = vmatpush.bf16.msra.mxu0 %v7040
    %7042 = vmatpush.bf16.msra.mxu0 %v7039
    %7043 = vmatpush.bf16.msra.mxu0 %v7038
    %7044 = vmatpush.bf16.msra.mxu0 %v7037
    %7045 = vmatpush.bf16.msra.mxu0 %v7036
    %7046 = vmatpush.bf16.msra.mxu0 %v7035
    %7047 = vmatpush.bf16.msra.mxu0 %v7034
    %7048 = vmatpush.bf16.msra.mxu0 %v7033
    %7049 = vmatmul.bf16.gmra.mxu0 %v6628
    %v7050 = vpop.f32.mrf.mxu0
    %v7051 = vadd.f32 0.0, %v7050
    %v7052 = vpop.f32.mrf.mxu0
    %7053 = vdwg.mxu0
    %7054 = vmatpush.bf16.msra.mxu0 %v3607
    %7055 = vmatpush.bf16.msra.mxu0 %v3606
    %7056 = vmatpush.bf16.msra.mxu0 %v3605
    %7057 = vmatpush.bf16.msra.mxu0 %v3604
    %7058 = vmatpush.bf16.msra.mxu0 %v3603
    %7059 = vmatpush.bf16.msra.mxu0 %v3602
    %7060 = vmatpush.bf16.msra.mxu0 %v3601
    %7061 = vmatpush.bf16.msra.mxu0 %v3600
    %7062 = vmatmul.bf16.gmra.mxu0 %v3232
    %v7063 = vpop.f32.mrf.mxu0
    %v7064 = vadd.f32 %v7051, %v7063
    %v7065 = vpop.f32.mrf.mxu0
    %7066 = vdwg.mxu0
    %v7067 = vadd.f32 %v6108, %v3611
    %v7068 = vadd.f32 %v6110, %v3611
    %v7069 = vadd.f32 %v6113, %v3611
    %v7070 = vadd.f32 %v6115, %v3611
    %v7071 = vadd.f32 %v6118, %v3611
    %v7072 = vadd.f32 %v6120, %v3611
    %v7073 = vadd.f32 %v6123, %v3611
    %v7074 = vadd.f32 %v6125, %v3611
    %v7075 = vadd.f32 %v6128, %v3611
    %v7076 = vadd.f32 %v6130, %v3611
    %v7077 = vadd.f32 %v6133, %v3611
    %v7078 = vadd.f32 %v6135, %v3611
    %v7079 = vadd.f32 %v6138, %v3611
    %v7080 = vadd.f32 %v6140, %v3611
    %v7081 = vadd.f32 %v6143, %v3611
    %v7082 = vadd.f32 %v6145, %v3611
    %vm7083 = vcmp.gt.f32.partialorder %v7067, 0.0
    %vm7084 = vcmp.gt.f32.partialorder %v7068, 0.0
    %vm7085 = vcmp.gt.f32.partialorder %v7069, 0.0
    %vm7086 = vcmp.gt.f32.partialorder %v7070, 0.0
    %vm7087 = vcmp.gt.f32.partialorder %v7071, 0.0
    %vm7088 = vcmp.gt.f32.partialorder %v7072, 0.0
    %vm7089 = vcmp.gt.f32.partialorder %v7073, 0.0
    %vm7090 = vcmp.gt.f32.partialorder %v7074, 0.0
    %vm7091 = vcmp.gt.f32.partialorder %v7075, 0.0
    %vm7092 = vcmp.gt.f32.partialorder %v7076, 0.0
    %vm7093 = vcmp.gt.f32.partialorder %v7077, 0.0
    %vm7094 = vcmp.gt.f32.partialorder %v7078, 0.0
    %vm7095 = vcmp.gt.f32.partialorder %v7079, 0.0
    %vm7096 = vcmp.gt.f32.partialorder %v7080, 0.0
    %vm7097 = vcmp.gt.f32.partialorder %v7081, 0.0
    %vm7098 = vcmp.gt.f32.partialorder %v7082, 0.0
    %v7099 = vmin.f32 %v7067, 0.0
    %v7100 = vmin.f32 %v7068, 0.0
    %v7101 = vmin.f32 %v7069, 0.0
    %v7102 = vmin.f32 %v7070, 0.0
    %v7103 = vmin.f32 %v7071, 0.0
    %v7104 = vmin.f32 %v7072, 0.0
    %v7105 = vmin.f32 %v7073, 0.0
    %v7106 = vmin.f32 %v7074, 0.0
    %v7107 = vmin.f32 %v7075, 0.0
    %v7108 = vmin.f32 %v7076, 0.0
    %v7109 = vmin.f32 %v7077, 0.0
    %v7110 = vmin.f32 %v7078, 0.0
    %v7111 = vmin.f32 %v7079, 0.0
    %v7112 = vmin.f32 %v7080, 0.0
    %v7113 = vmin.f32 %v7081, 0.0
    %v7114 = vmin.f32 %v7082, 0.0
    %v7115 = vmul.f32 %v7099, 1.442695
    %v7116 = vpow.pop %v7115
    %v7117 = vmul.f32 %v7100, 1.442695
    %v7118 = vpow.pop %v7117
    %v7119 = vmul.f32 %v7101, 1.442695
    %v7120 = vpow.pop %v7119
    %v7121 = vmul.f32 %v7102, 1.442695
    %v7122 = vpow.pop %v7121
    %v7123 = vmul.f32 %v7103, 1.442695
    %v7124 = vpow.pop %v7123
    %v7125 = vmul.f32 %v7104, 1.442695
    %v7126 = vpow.pop %v7125
    %v7127 = vmul.f32 %v7105, 1.442695
    %v7128 = vpow.pop %v7127
    %v7129 = vmul.f32 %v7106, 1.442695
    %v7130 = vpow.pop %v7129
    %v7131 = vmul.f32 %v7107, 1.442695
    %v7132 = vpow.pop %v7131
    %v7133 = vmul.f32 %v7108, 1.442695
    %v7134 = vpow.pop %v7133
    %v7135 = vmul.f32 %v7109, 1.442695
    %v7136 = vpow.pop %v7135
    %v7137 = vmul.f32 %v7110, 1.442695
    %v7138 = vpow.pop %v7137
    %v7139 = vmul.f32 %v7111, 1.442695
    %v7140 = vpow.pop %v7139
    %v7141 = vmul.f32 %v7112, 1.442695
    %v7142 = vpow.pop %v7141
    %v7143 = vmul.f32 %v7113, 1.442695
    %v7144 = vpow.pop %v7143
    %v7145 = vmul.f32 %v7114, 1.442695
    %v7146 = vpow.pop %v7145
    %v7147 = vsub.f32 %v7116, 1.0
    %v7148 = vsub.f32 %v7118, 1.0
    %v7149 = vsub.f32 %v7120, 1.0
    %v7150 = vsub.f32 %v7122, 1.0
    %v7151 = vsub.f32 %v7124, 1.0
    %v7152 = vsub.f32 %v7126, 1.0
    %v7153 = vsub.f32 %v7128, 1.0
    %v7154 = vsub.f32 %v7130, 1.0
    %v7155 = vsub.f32 %v7132, 1.0
    %v7156 = vsub.f32 %v7134, 1.0
    %v7157 = vsub.f32 %v7136, 1.0
    %v7158 = vsub.f32 %v7138, 1.0
    %v7159 = vsub.f32 %v7140, 1.0
    %v7160 = vsub.f32 %v7142, 1.0
    %v7161 = vsub.f32 %v7144, 1.0
    %v7162 = vsub.f32 %v7146, 1.0
    %v7163 = vsel %vm7083, %v7067, %v7147
    %v7164 = vsel %vm7084, %v7068, %v7148
    %v7165 = vsel %vm7085, %v7069, %v7149
    %v7166 = vsel %vm7086, %v7070, %v7150
    %v7167 = vsel %vm7087, %v7071, %v7151
    %v7168 = vsel %vm7088, %v7072, %v7152
    %v7169 = vsel %vm7089, %v7073, %v7153
    %v7170 = vsel %vm7090, %v7074, %v7154
    %v7171 = vsel %vm7091, %v7075, %v7155
    %v7172 = vsel %vm7092, %v7076, %v7156
    %v7173 = vsel %vm7093, %v7077, %v7157
    %v7174 = vsel %vm7094, %v7078, %v7158
    %v7175 = vsel %vm7095, %v7079, %v7159
    %v7176 = vsel %vm7096, %v7080, %v7160
    %v7177 = vsel %vm7097, %v7081, %v7161
    %v7178 = vsel %vm7098, %v7082, %v7162
    %v7179 = vpack.c.bf16 %v7164, %v7163
    %v7180 = vpack.c.bf16 %v7166, %v7165
    %v7181 = vpack.c.bf16 %v7168, %v7167
    %v7182 = vpack.c.bf16 %v7170, %v7169
    %v7183 = vpack.c.bf16 %v7172, %v7171
    %v7184 = vpack.c.bf16 %v7174, %v7173
    %v7185 = vpack.c.bf16 %v7176, %v7175
    %v7186 = vpack.c.bf16 %v7178, %v7177
    %7187 = vmatpush.bf16.msra.mxu0 %v7186
    %7188 = vmatpush.bf16.msra.mxu0 %v7185
    %7189 = vmatpush.bf16.msra.mxu0 %v7184
    %7190 = vmatpush.bf16.msra.mxu0 %v7183
    %7191 = vmatpush.bf16.msra.mxu0 %v7182
    %7192 = vmatpush.bf16.msra.mxu0 %v7181
    %7193 = vmatpush.bf16.msra.mxu0 %v7180
    %7194 = vmatpush.bf16.msra.mxu0 %v7179
    %7195 = vmatmul.bf16.gmra.mxu0 %v6628
    %v7196 = vpop.f32.mrf.mxu0
    %v7197 = vadd.f32 0.0, %v7196
    %v7198 = vpop.f32.mrf.mxu0
    %7199 = vdwg.mxu0
    %7200 = vmatpush.bf16.msra.mxu0 %v3732
    %7201 = vmatpush.bf16.msra.mxu0 %v3731
    %7202 = vmatpush.bf16.msra.mxu0 %v3730
    %7203 = vmatpush.bf16.msra.mxu0 %v3729
    %7204 = vmatpush.bf16.msra.mxu0 %v3728
    %7205 = vmatpush.bf16.msra.mxu0 %v3727
    %7206 = vmatpush.bf16.msra.mxu0 %v3726
    %7207 = vmatpush.bf16.msra.mxu0 %v3725
    %7208 = vmatmul.bf16.gmra.mxu0 %v3232
    %v7209 = vpop.f32.mrf.mxu0
    %v7210 = vadd.f32 %v7197, %v7209
    %v7211 = vpop.f32.mrf.mxu0
    %7212 = vdwg.mxu0
    %v7213 = vadd.f32 %v6148, %v3736
    %v7214 = vadd.f32 %v6150, %v3736
    %v7215 = vadd.f32 %v6153, %v3736
    %v7216 = vadd.f32 %v6155, %v3736
    %v7217 = vadd.f32 %v6158, %v3736
    %v7218 = vadd.f32 %v6160, %v3736
    %v7219 = vadd.f32 %v6163, %v3736
    %v7220 = vadd.f32 %v6165, %v3736
    %v7221 = vadd.f32 %v6168, %v3736
    %v7222 = vadd.f32 %v6170, %v3736
    %v7223 = vadd.f32 %v6173, %v3736
    %v7224 = vadd.f32 %v6175, %v3736
    %v7225 = vadd.f32 %v6178, %v3736
    %v7226 = vadd.f32 %v6180, %v3736
    %v7227 = vadd.f32 %v6183, %v3736
    %v7228 = vadd.f32 %v6185, %v3736
    %vm7229 = vcmp.gt.f32.partialorder %v7213, 0.0
    %vm7230 = vcmp.gt.f32.partialorder %v7214, 0.0
    %vm7231 = vcmp.gt.f32.partialorder %v7215, 0.0
    %vm7232 = vcmp.gt.f32.partialorder %v7216, 0.0
    %vm7233 = vcmp.gt.f32.partialorder %v7217, 0.0
    %vm7234 = vcmp.gt.f32.partialorder %v7218, 0.0
    %vm7235 = vcmp.gt.f32.partialorder %v7219, 0.0
    %vm7236 = vcmp.gt.f32.partialorder %v7220, 0.0
    %vm7237 = vcmp.gt.f32.partialorder %v7221, 0.0
    %vm7238 = vcmp.gt.f32.partialorder %v7222, 0.0
    %vm7239 = vcmp.gt.f32.partialorder %v7223, 0.0
    %vm7240 = vcmp.gt.f32.partialorder %v7224, 0.0
    %vm7241 = vcmp.gt.f32.partialorder %v7225, 0.0
    %vm7242 = vcmp.gt.f32.partialorder %v7226, 0.0
    %vm7243 = vcmp.gt.f32.partialorder %v7227, 0.0
    %vm7244 = vcmp.gt.f32.partialorder %v7228, 0.0
    %v7245 = vmin.f32 %v7213, 0.0
    %v7246 = vmin.f32 %v7214, 0.0
    %v7247 = vmin.f32 %v7215, 0.0
    %v7248 = vmin.f32 %v7216, 0.0
    %v7249 = vmin.f32 %v7217, 0.0
    %v7250 = vmin.f32 %v7218, 0.0
    %v7251 = vmin.f32 %v7219, 0.0
    %v7252 = vmin.f32 %v7220, 0.0
    %v7253 = vmin.f32 %v7221, 0.0
    %v7254 = vmin.f32 %v7222, 0.0
    %v7255 = vmin.f32 %v7223, 0.0
    %v7256 = vmin.f32 %v7224, 0.0
    %v7257 = vmin.f32 %v7225, 0.0
    %v7258 = vmin.f32 %v7226, 0.0
    %v7259 = vmin.f32 %v7227, 0.0
    %v7260 = vmin.f32 %v7228, 0.0
    %v7261 = vmul.f32 %v7245, 1.442695
    %v7262 = vpow.pop %v7261
    %v7263 = vmul.f32 %v7246, 1.442695
    %v7264 = vpow.pop %v7263
    %v7265 = vmul.f32 %v7247, 1.442695
    %v7266 = vpow.pop %v7265
    %v7267 = vmul.f32 %v7248, 1.442695
    %v7268 = vpow.pop %v7267
    %v7269 = vmul.f32 %v7249, 1.442695
    %v7270 = vpow.pop %v7269
    %v7271 = vmul.f32 %v7250, 1.442695
    %v7272 = vpow.pop %v7271
    %v7273 = vmul.f32 %v7251, 1.442695
    %v7274 = vpow.pop %v7273
    %v7275 = vmul.f32 %v7252, 1.442695
    %v7276 = vpow.pop %v7275
    %v7277 = vmul.f32 %v7253, 1.442695
    %v7278 = vpow.pop %v7277
    %v7279 = vmul.f32 %v7254, 1.442695
    %v7280 = vpow.pop %v7279
    %v7281 = vmul.f32 %v7255, 1.442695
    %v7282 = vpow.pop %v7281
    %v7283 = vmul.f32 %v7256, 1.442695
    %v7284 = vpow.pop %v7283
    %v7285 = vmul.f32 %v7257, 1.442695
    %v7286 = vpow.pop %v7285
    %v7287 = vmul.f32 %v7258, 1.442695
    %v7288 = vpow.pop %v7287
    %v7289 = vmul.f32 %v7259, 1.442695
    %v7290 = vpow.pop %v7289
    %v7291 = vmul.f32 %v7260, 1.442695
    %v7292 = vpow.pop %v7291
    %v7293 = vsub.f32 %v7262, 1.0
    %v7294 = vsub.f32 %v7264, 1.0
    %v7295 = vsub.f32 %v7266, 1.0
    %v7296 = vsub.f32 %v7268, 1.0
    %v7297 = vsub.f32 %v7270, 1.0
    %v7298 = vsub.f32 %v7272, 1.0
    %v7299 = vsub.f32 %v7274, 1.0
    %v7300 = vsub.f32 %v7276, 1.0
    %v7301 = vsub.f32 %v7278, 1.0
    %v7302 = vsub.f32 %v7280, 1.0
    %v7303 = vsub.f32 %v7282, 1.0
    %v7304 = vsub.f32 %v7284, 1.0
    %v7305 = vsub.f32 %v7286, 1.0
    %v7306 = vsub.f32 %v7288, 1.0
    %v7307 = vsub.f32 %v7290, 1.0
    %v7308 = vsub.f32 %v7292, 1.0
    %v7309 = vsel %vm7229, %v7213, %v7293
    %v7310 = vsel %vm7230, %v7214, %v7294
    %v7311 = vsel %vm7231, %v7215, %v7295
    %v7312 = vsel %vm7232, %v7216, %v7296
    %v7313 = vsel %vm7233, %v7217, %v7297
    %v7314 = vsel %vm7234, %v7218, %v7298
    %v7315 = vsel %vm7235, %v7219, %v7299
    %v7316 = vsel %vm7236, %v7220, %v7300
    %v7317 = vsel %vm7237, %v7221, %v7301
    %v7318 = vsel %vm7238, %v7222, %v7302
    %v7319 = vsel %vm7239, %v7223, %v7303
    %v7320 = vsel %vm7240, %v7224, %v7304
    %v7321 = vsel %vm7241, %v7225, %v7305
    %v7322 = vsel %vm7242, %v7226, %v7306
    %v7323 = vsel %vm7243, %v7227, %v7307
    %v7324 = vsel %vm7244, %v7228, %v7308
    %v7325 = vpack.c.bf16 %v7310, %v7309
    %v7326 = vpack.c.bf16 %v7312, %v7311
    %v7327 = vpack.c.bf16 %v7314, %v7313
    %v7328 = vpack.c.bf16 %v7316, %v7315
    %v7329 = vpack.c.bf16 %v7318, %v7317
    %v7330 = vpack.c.bf16 %v7320, %v7319
    %v7331 = vpack.c.bf16 %v7322, %v7321
    %v7332 = vpack.c.bf16 %v7324, %v7323
    %7333 = vmatpush.bf16.msra.mxu0 %v7332
    %7334 = vmatpush.bf16.msra.mxu0 %v7331
    %7335 = vmatpush.bf16.msra.mxu0 %v7330
    %7336 = vmatpush.bf16.msra.mxu0 %v7329
    %7337 = vmatpush.bf16.msra.mxu0 %v7328
    %7338 = vmatpush.bf16.msra.mxu0 %v7327
    %7339 = vmatpush.bf16.msra.mxu0 %v7326
    %7340 = vmatpush.bf16.msra.mxu0 %v7325
    %7341 = vmatmul.bf16.gmra.mxu0 %v6628
    %v7342 = vpop.f32.mrf.mxu0
    %v7343 = vadd.f32 0.0, %v7342
    %v7344 = vpop.f32.mrf.mxu0
    %7345 = vdwg.mxu0
    %7346 = vmatpush.bf16.msra.mxu0 %v3857
    %7347 = vmatpush.bf16.msra.mxu0 %v3856
    %7348 = vmatpush.bf16.msra.mxu0 %v3855
    %7349 = vmatpush.bf16.msra.mxu0 %v3854
    %7350 = vmatpush.bf16.msra.mxu0 %v3853
    %7351 = vmatpush.bf16.msra.mxu0 %v3852
    %7352 = vmatpush.bf16.msra.mxu0 %v3851
    %7353 = vmatpush.bf16.msra.mxu0 %v3850
    %7354 = vmatmul.bf16.gmra.mxu0 %v3232
    %v7355 = vpop.f32.mrf.mxu0
    %v7356 = vadd.f32 %v7343, %v7355
    %v7357 = vpop.f32.mrf.mxu0
    %7358 = vdwg.mxu0
    %v7359 = vadd.f32 %v6188, %v3861
    %v7360 = vadd.f32 %v6190, %v3861
    %v7361 = vadd.f32 %v6193, %v3861
    %v7362 = vadd.f32 %v6195, %v3861
    %v7363 = vadd.f32 %v6198, %v3861
    %v7364 = vadd.f32 %v6200, %v3861
    %v7365 = vadd.f32 %v6203, %v3861
    %v7366 = vadd.f32 %v6205, %v3861
    %v7367 = vadd.f32 %v6208, %v3861
    %v7368 = vadd.f32 %v6210, %v3861
    %v7369 = vadd.f32 %v6213, %v3861
    %v7370 = vadd.f32 %v6215, %v3861
    %v7371 = vadd.f32 %v6218, %v3861
    %v7372 = vadd.f32 %v6220, %v3861
    %v7373 = vadd.f32 %v6223, %v3861
    %v7374 = vadd.f32 %v6225, %v3861
    %vm7375 = vcmp.gt.f32.partialorder %v7359, 0.0
    %vm7376 = vcmp.gt.f32.partialorder %v7360, 0.0
    %vm7377 = vcmp.gt.f32.partialorder %v7361, 0.0
    %vm7378 = vcmp.gt.f32.partialorder %v7362, 0.0
    %vm7379 = vcmp.gt.f32.partialorder %v7363, 0.0
    %vm7380 = vcmp.gt.f32.partialorder %v7364, 0.0
    %vm7381 = vcmp.gt.f32.partialorder %v7365, 0.0
    %vm7382 = vcmp.gt.f32.partialorder %v7366, 0.0
    %vm7383 = vcmp.gt.f32.partialorder %v7367, 0.0
    %vm7384 = vcmp.gt.f32.partialorder %v7368, 0.0
    %vm7385 = vcmp.gt.f32.partialorder %v7369, 0.0
    %vm7386 = vcmp.gt.f32.partialorder %v7370, 0.0
    %vm7387 = vcmp.gt.f32.partialorder %v7371, 0.0
    %vm7388 = vcmp.gt.f32.partialorder %v7372, 0.0
    %vm7389 = vcmp.gt.f32.partialorder %v7373, 0.0
    %vm7390 = vcmp.gt.f32.partialorder %v7374, 0.0
    %v7391 = vmin.f32 %v7359, 0.0
    %v7392 = vmin.f32 %v7360, 0.0
    %v7393 = vmin.f32 %v7361, 0.0
    %v7394 = vmin.f32 %v7362, 0.0
    %v7395 = vmin.f32 %v7363, 0.0
    %v7396 = vmin.f32 %v7364, 0.0
    %v7397 = vmin.f32 %v7365, 0.0
    %v7398 = vmin.f32 %v7366, 0.0
    %v7399 = vmin.f32 %v7367, 0.0
    %v7400 = vmin.f32 %v7368, 0.0
    %v7401 = vmin.f32 %v7369, 0.0
    %v7402 = vmin.f32 %v7370, 0.0
    %v7403 = vmin.f32 %v7371, 0.0
    %v7404 = vmin.f32 %v7372, 0.0
    %v7405 = vmin.f32 %v7373, 0.0
    %v7406 = vmin.f32 %v7374, 0.0
    %v7407 = vmul.f32 %v7391, 1.442695
    %v7408 = vpow.pop %v7407
    %v7409 = vmul.f32 %v7392, 1.442695
    %v7410 = vpow.pop %v7409
    %v7411 = vmul.f32 %v7393, 1.442695
    %v7412 = vpow.pop %v7411
    %v7413 = vmul.f32 %v7394, 1.442695
    %v7414 = vpow.pop %v7413
    %v7415 = vmul.f32 %v7395, 1.442695
    %v7416 = vpow.pop %v7415
    %v7417 = vmul.f32 %v7396, 1.442695
    %v7418 = vpow.pop %v7417
    %v7419 = vmul.f32 %v7397, 1.442695
    %v7420 = vpow.pop %v7419
    %v7421 = vmul.f32 %v7398, 1.442695
    %v7422 = vpow.pop %v7421
    %v7423 = vmul.f32 %v7399, 1.442695
    %v7424 = vpow.pop %v7423
    %v7425 = vmul.f32 %v7400, 1.442695
    %v7426 = vpow.pop %v7425
    %v7427 = vmul.f32 %v7401, 1.442695
    %v7428 = vpow.pop %v7427
    %v7429 = vmul.f32 %v7402, 1.442695
    %v7430 = vpow.pop %v7429
    %v7431 = vmul.f32 %v7403, 1.442695
    %v7432 = vpow.pop %v7431
    %v7433 = vmul.f32 %v7404, 1.442695
    %v7434 = vpow.pop %v7433
    %v7435 = vmul.f32 %v7405, 1.442695
    %v7436 = vpow.pop %v7435
    %v7437 = vmul.f32 %v7406, 1.442695
    %v7438 = vpow.pop %v7437
    %v7439 = vsub.f32 %v7408, 1.0
    %v7440 = vsub.f32 %v7410, 1.0
    %v7441 = vsub.f32 %v7412, 1.0
    %v7442 = vsub.f32 %v7414, 1.0
    %v7443 = vsub.f32 %v7416, 1.0
    %v7444 = vsub.f32 %v7418, 1.0
    %v7445 = vsub.f32 %v7420, 1.0
    %v7446 = vsub.f32 %v7422, 1.0
    %v7447 = vsub.f32 %v7424, 1.0
    %v7448 = vsub.f32 %v7426, 1.0
    %v7449 = vsub.f32 %v7428, 1.0
    %v7450 = vsub.f32 %v7430, 1.0
    %v7451 = vsub.f32 %v7432, 1.0
    %v7452 = vsub.f32 %v7434, 1.0
    %v7453 = vsub.f32 %v7436, 1.0
    %v7454 = vsub.f32 %v7438, 1.0
    %v7455 = vsel %vm7375, %v7359, %v7439
    %v7456 = vsel %vm7376, %v7360, %v7440
    %v7457 = vsel %vm7377, %v7361, %v7441
    %v7458 = vsel %vm7378, %v7362, %v7442
    %v7459 = vsel %vm7379, %v7363, %v7443
    %v7460 = vsel %vm7380, %v7364, %v7444
    %v7461 = vsel %vm7381, %v7365, %v7445
    %v7462 = vsel %vm7382, %v7366, %v7446
    %v7463 = vsel %vm7383, %v7367, %v7447
    %v7464 = vsel %vm7384, %v7368, %v7448
    %v7465 = vsel %vm7385, %v7369, %v7449
    %v7466 = vsel %vm7386, %v7370, %v7450
    %v7467 = vsel %vm7387, %v7371, %v7451
    %v7468 = vsel %vm7388, %v7372, %v7452
    %v7469 = vsel %vm7389, %v7373, %v7453
    %v7470 = vsel %vm7390, %v7374, %v7454
    %v7471 = vpack.c.bf16 %v7456, %v7455
    %v7472 = vpack.c.bf16 %v7458, %v7457
    %v7473 = vpack.c.bf16 %v7460, %v7459
    %v7474 = vpack.c.bf16 %v7462, %v7461
    %v7475 = vpack.c.bf16 %v7464, %v7463
    %v7476 = vpack.c.bf16 %v7466, %v7465
    %v7477 = vpack.c.bf16 %v7468, %v7467
    %v7478 = vpack.c.bf16 %v7470, %v7469
    %7479 = vmatpush.bf16.msra.mxu0 %v7478
    %7480 = vmatpush.bf16.msra.mxu0 %v7477
    %7481 = vmatpush.bf16.msra.mxu0 %v7476
    %7482 = vmatpush.bf16.msra.mxu0 %v7475
    %7483 = vmatpush.bf16.msra.mxu0 %v7474
    %7484 = vmatpush.bf16.msra.mxu0 %v7473
    %7485 = vmatpush.bf16.msra.mxu0 %v7472
    %7486 = vmatpush.bf16.msra.mxu0 %v7471
    %7487 = vmatmul.bf16.gmra.mxu0 %v6628
    %v7488 = vpop.f32.mrf.mxu0
    %v7489 = vadd.f32 0.0, %v7488
    %v7490 = vpop.f32.mrf.mxu0
    %7491 = vdwg.mxu0
    %7492 = vmatpush.bf16.msra.mxu0 %v3982
    %7493 = vmatpush.bf16.msra.mxu0 %v3981
    %7494 = vmatpush.bf16.msra.mxu0 %v3980
    %7495 = vmatpush.bf16.msra.mxu0 %v3979
    %7496 = vmatpush.bf16.msra.mxu0 %v3978
    %7497 = vmatpush.bf16.msra.mxu0 %v3977
    %7498 = vmatpush.bf16.msra.mxu0 %v3976
    %7499 = vmatpush.bf16.msra.mxu0 %v3975
    %7500 = vmatmul.bf16.gmra.mxu0 %v3232
    %v7501 = vpop.f32.mrf.mxu0
    %v7502 = vadd.f32 %v7489, %v7501
    %v7503 = vpop.f32.mrf.mxu0
    %7504 = vdwg.mxu0
    %v7505 = vadd.f32 %v6228, %v3986
    %v7506 = vadd.f32 %v6230, %v3986
    %v7507 = vadd.f32 %v6233, %v3986
    %v7508 = vadd.f32 %v6235, %v3986
    %v7509 = vadd.f32 %v6238, %v3986
    %v7510 = vadd.f32 %v6240, %v3986
    %v7511 = vadd.f32 %v6243, %v3986
    %v7512 = vadd.f32 %v6245, %v3986
    %v7513 = vadd.f32 %v6248, %v3986
    %v7514 = vadd.f32 %v6250, %v3986
    %v7515 = vadd.f32 %v6253, %v3986
    %v7516 = vadd.f32 %v6255, %v3986
    %v7517 = vadd.f32 %v6258, %v3986
    %v7518 = vadd.f32 %v6260, %v3986
    %v7519 = vadd.f32 %v6263, %v3986
    %v7520 = vadd.f32 %v6265, %v3986
    %vm7521 = vcmp.gt.f32.partialorder %v7505, 0.0
    %vm7522 = vcmp.gt.f32.partialorder %v7506, 0.0
    %vm7523 = vcmp.gt.f32.partialorder %v7507, 0.0
    %vm7524 = vcmp.gt.f32.partialorder %v7508, 0.0
    %vm7525 = vcmp.gt.f32.partialorder %v7509, 0.0
    %vm7526 = vcmp.gt.f32.partialorder %v7510, 0.0
    %vm7527 = vcmp.gt.f32.partialorder %v7511, 0.0
    %vm7528 = vcmp.gt.f32.partialorder %v7512, 0.0
    %vm7529 = vcmp.gt.f32.partialorder %v7513, 0.0
    %vm7530 = vcmp.gt.f32.partialorder %v7514, 0.0
    %vm7531 = vcmp.gt.f32.partialorder %v7515, 0.0
    %vm7532 = vcmp.gt.f32.partialorder %v7516, 0.0
    %vm7533 = vcmp.gt.f32.partialorder %v7517, 0.0
    %vm7534 = vcmp.gt.f32.partialorder %v7518, 0.0
    %vm7535 = vcmp.gt.f32.partialorder %v7519, 0.0
    %vm7536 = vcmp.gt.f32.partialorder %v7520, 0.0
    %v7537 = vmin.f32 %v7505, 0.0
    %v7538 = vmin.f32 %v7506, 0.0
    %v7539 = vmin.f32 %v7507, 0.0
    %v7540 = vmin.f32 %v7508, 0.0
    %v7541 = vmin.f32 %v7509, 0.0
    %v7542 = vmin.f32 %v7510, 0.0
    %v7543 = vmin.f32 %v7511, 0.0
    %v7544 = vmin.f32 %v7512, 0.0
    %v7545 = vmin.f32 %v7513, 0.0
    %v7546 = vmin.f32 %v7514, 0.0
    %v7547 = vmin.f32 %v7515, 0.0
    %v7548 = vmin.f32 %v7516, 0.0
    %v7549 = vmin.f32 %v7517, 0.0
    %v7550 = vmin.f32 %v7518, 0.0
    %v7551 = vmin.f32 %v7519, 0.0
    %v7552 = vmin.f32 %v7520, 0.0
    %v7553 = vmul.f32 %v7537, 1.442695
    %v7554 = vpow.pop %v7553
    %v7555 = vmul.f32 %v7538, 1.442695
    %v7556 = vpow.pop %v7555
    %v7557 = vmul.f32 %v7539, 1.442695
    %v7558 = vpow.pop %v7557
    %v7559 = vmul.f32 %v7540, 1.442695
    %v7560 = vpow.pop %v7559
    %v7561 = vmul.f32 %v7541, 1.442695
    %v7562 = vpow.pop %v7561
    %v7563 = vmul.f32 %v7542, 1.442695
    %v7564 = vpow.pop %v7563
    %v7565 = vmul.f32 %v7543, 1.442695
    %v7566 = vpow.pop %v7565
    %v7567 = vmul.f32 %v7544, 1.442695
    %v7568 = vpow.pop %v7567
    %v7569 = vmul.f32 %v7545, 1.442695
    %v7570 = vpow.pop %v7569
    %v7571 = vmul.f32 %v7546, 1.442695
    %v7572 = vpow.pop %v7571
    %v7573 = vmul.f32 %v7547, 1.442695
    %v7574 = vpow.pop %v7573
    %v7575 = vmul.f32 %v7548, 1.442695
    %v7576 = vpow.pop %v7575
    %v7577 = vmul.f32 %v7549, 1.442695
    %v7578 = vpow.pop %v7577
    %v7579 = vmul.f32 %v7550, 1.442695
    %v7580 = vpow.pop %v7579
    %v7581 = vmul.f32 %v7551, 1.442695
    %v7582 = vpow.pop %v7581
    %v7583 = vmul.f32 %v7552, 1.442695
    %v7584 = vpow.pop %v7583
    %v7585 = vsub.f32 %v7554, 1.0
    %v7586 = vsub.f32 %v7556, 1.0
    %v7587 = vsub.f32 %v7558, 1.0
    %v7588 = vsub.f32 %v7560, 1.0
    %v7589 = vsub.f32 %v7562, 1.0
    %v7590 = vsub.f32 %v7564, 1.0
    %v7591 = vsub.f32 %v7566, 1.0
    %v7592 = vsub.f32 %v7568, 1.0
    %v7593 = vsub.f32 %v7570, 1.0
    %v7594 = vsub.f32 %v7572, 1.0
    %v7595 = vsub.f32 %v7574, 1.0
    %v7596 = vsub.f32 %v7576, 1.0
    %v7597 = vsub.f32 %v7578, 1.0
    %v7598 = vsub.f32 %v7580, 1.0
    %v7599 = vsub.f32 %v7582, 1.0
    %v7600 = vsub.f32 %v7584, 1.0
    %v7601 = vsel %vm7521, %v7505, %v7585
    %v7602 = vsel %vm7522, %v7506, %v7586
    %v7603 = vsel %vm7523, %v7507, %v7587
    %v7604 = vsel %vm7524, %v7508, %v7588
    %v7605 = vsel %vm7525, %v7509, %v7589
    %v7606 = vsel %vm7526, %v7510, %v7590
    %v7607 = vsel %vm7527, %v7511, %v7591
    %v7608 = vsel %vm7528, %v7512, %v7592
    %v7609 = vsel %vm7529, %v7513, %v7593
    %v7610 = vsel %vm7530, %v7514, %v7594
    %v7611 = vsel %vm7531, %v7515, %v7595
    %v7612 = vsel %vm7532, %v7516, %v7596
    %v7613 = vsel %vm7533, %v7517, %v7597
    %v7614 = vsel %vm7534, %v7518, %v7598
    %v7615 = vsel %vm7535, %v7519, %v7599
    %v7616 = vsel %vm7536, %v7520, %v7600
    %v7617 = vpack.c.bf16 %v7602, %v7601
    %v7618 = vpack.c.bf16 %v7604, %v7603
    %v7619 = vpack.c.bf16 %v7606, %v7605
    %v7620 = vpack.c.bf16 %v7608, %v7607
    %v7621 = vpack.c.bf16 %v7610, %v7609
    %v7622 = vpack.c.bf16 %v7612, %v7611
    %v7623 = vpack.c.bf16 %v7614, %v7613
    %v7624 = vpack.c.bf16 %v7616, %v7615
    %7625 = vmatpush.bf16.msra.mxu0 %v7624
    %7626 = vmatpush.bf16.msra.mxu0 %v7623
    %7627 = vmatpush.bf16.msra.mxu0 %v7622
    %7628 = vmatpush.bf16.msra.mxu0 %v7621
    %7629 = vmatpush.bf16.msra.mxu0 %v7620
    %7630 = vmatpush.bf16.msra.mxu0 %v7619
    %7631 = vmatpush.bf16.msra.mxu0 %v7618
    %7632 = vmatpush.bf16.msra.mxu0 %v7617
    %7633 = vmatmul.bf16.gmra.mxu0 %v6628
    %v7634 = vpop.f32.mrf.mxu0
    %v7635 = vadd.f32 0.0, %v7634
    %v7636 = vpop.f32.mrf.mxu0
    %7637 = vdwg.mxu0
    %7638 = vmatpush.bf16.msra.mxu0 %v4107
    %7639 = vmatpush.bf16.msra.mxu0 %v4106
    %7640 = vmatpush.bf16.msra.mxu0 %v4105
    %7641 = vmatpush.bf16.msra.mxu0 %v4104
    %7642 = vmatpush.bf16.msra.mxu0 %v4103
    %7643 = vmatpush.bf16.msra.mxu0 %v4102
    %7644 = vmatpush.bf16.msra.mxu0 %v4101
    %7645 = vmatpush.bf16.msra.mxu0 %v4100
    %7646 = vmatmul.bf16.gmra.mxu0 %v3232
    %v7647 = vpop.f32.mrf.mxu0
    %v7648 = vadd.f32 %v7635, %v7647
    %v7649 = vpop.f32.mrf.mxu0
    %7650 = vdwg.mxu0
    %v7651 = vadd.f32 %v6268, %v4111
    %v7652 = vadd.f32 %v6270, %v4111
    %v7653 = vadd.f32 %v6273, %v4111
    %v7654 = vadd.f32 %v6275, %v4111
    %v7655 = vadd.f32 %v6278, %v4111
    %v7656 = vadd.f32 %v6280, %v4111
    %v7657 = vadd.f32 %v6283, %v4111
    %v7658 = vadd.f32 %v6285, %v4111
    %v7659 = vadd.f32 %v6288, %v4111
    %v7660 = vadd.f32 %v6290, %v4111
    %v7661 = vadd.f32 %v6293, %v4111
    %v7662 = vadd.f32 %v6295, %v4111
    %v7663 = vadd.f32 %v6298, %v4111
    %v7664 = vadd.f32 %v6300, %v4111
    %v7665 = vadd.f32 %v6303, %v4111
    %v7666 = vadd.f32 %v6305, %v4111
    %vm7667 = vcmp.gt.f32.partialorder %v7651, 0.0
    %vm7668 = vcmp.gt.f32.partialorder %v7652, 0.0
    %vm7669 = vcmp.gt.f32.partialorder %v7653, 0.0
    %vm7670 = vcmp.gt.f32.partialorder %v7654, 0.0
    %vm7671 = vcmp.gt.f32.partialorder %v7655, 0.0
    %vm7672 = vcmp.gt.f32.partialorder %v7656, 0.0
    %vm7673 = vcmp.gt.f32.partialorder %v7657, 0.0
    %vm7674 = vcmp.gt.f32.partialorder %v7658, 0.0
    %vm7675 = vcmp.gt.f32.partialorder %v7659, 0.0
    %vm7676 = vcmp.gt.f32.partialorder %v7660, 0.0
    %vm7677 = vcmp.gt.f32.partialorder %v7661, 0.0
    %vm7678 = vcmp.gt.f32.partialorder %v7662, 0.0
    %vm7679 = vcmp.gt.f32.partialorder %v7663, 0.0
    %vm7680 = vcmp.gt.f32.partialorder %v7664, 0.0
    %vm7681 = vcmp.gt.f32.partialorder %v7665, 0.0
    %vm7682 = vcmp.gt.f32.partialorder %v7666, 0.0
    %v7683 = vmin.f32 %v7651, 0.0
    %v7684 = vmin.f32 %v7652, 0.0
    %v7685 = vmin.f32 %v7653, 0.0
    %v7686 = vmin.f32 %v7654, 0.0
    %v7687 = vmin.f32 %v7655, 0.0
    %v7688 = vmin.f32 %v7656, 0.0
    %v7689 = vmin.f32 %v7657, 0.0
    %v7690 = vmin.f32 %v7658, 0.0
    %v7691 = vmin.f32 %v7659, 0.0
    %v7692 = vmin.f32 %v7660, 0.0
    %v7693 = vmin.f32 %v7661, 0.0
    %v7694 = vmin.f32 %v7662, 0.0
    %v7695 = vmin.f32 %v7663, 0.0
    %v7696 = vmin.f32 %v7664, 0.0
    %v7697 = vmin.f32 %v7665, 0.0
    %v7698 = vmin.f32 %v7666, 0.0
    %v7699 = vmul.f32 %v7683, 1.442695
    %v7700 = vpow.pop %v7699
    %v7701 = vmul.f32 %v7684, 1.442695
    %v7702 = vpow.pop %v7701
    %v7703 = vmul.f32 %v7685, 1.442695
    %v7704 = vpow.pop %v7703
    %v7705 = vmul.f32 %v7686, 1.442695
    %v7706 = vpow.pop %v7705
    %v7707 = vmul.f32 %v7687, 1.442695
    %v7708 = vpow.pop %v7707
    %v7709 = vmul.f32 %v7688, 1.442695
    %v7710 = vpow.pop %v7709
    %v7711 = vmul.f32 %v7689, 1.442695
    %v7712 = vpow.pop %v7711
    %v7713 = vmul.f32 %v7690, 1.442695
    %v7714 = vpow.pop %v7713
    %v7715 = vmul.f32 %v7691, 1.442695
    %v7716 = vpow.pop %v7715
    %v7717 = vmul.f32 %v7692, 1.442695
    %v7718 = vpow.pop %v7717
    %v7719 = vmul.f32 %v7693, 1.442695
    %v7720 = vpow.pop %v7719
    %v7721 = vmul.f32 %v7694, 1.442695
    %v7722 = vpow.pop %v7721
    %v7723 = vmul.f32 %v7695, 1.442695
    %v7724 = vpow.pop %v7723
    %v7725 = vmul.f32 %v7696, 1.442695
    %v7726 = vpow.pop %v7725
    %v7727 = vmul.f32 %v7697, 1.442695
    %v7728 = vpow.pop %v7727
    %v7729 = vmul.f32 %v7698, 1.442695
    %v7730 = vpow.pop %v7729
    %v7731 = vsub.f32 %v7700, 1.0
    %v7732 = vsub.f32 %v7702, 1.0
    %v7733 = vsub.f32 %v7704, 1.0
    %v7734 = vsub.f32 %v7706, 1.0
    %v7735 = vsub.f32 %v7708, 1.0
    %v7736 = vsub.f32 %v7710, 1.0
    %v7737 = vsub.f32 %v7712, 1.0
    %v7738 = vsub.f32 %v7714, 1.0
    %v7739 = vsub.f32 %v7716, 1.0
    %v7740 = vsub.f32 %v7718, 1.0
    %v7741 = vsub.f32 %v7720, 1.0
    %v7742 = vsub.f32 %v7722, 1.0
    %v7743 = vsub.f32 %v7724, 1.0
    %v7744 = vsub.f32 %v7726, 1.0
    %v7745 = vsub.f32 %v7728, 1.0
    %v7746 = vsub.f32 %v7730, 1.0
    %v7747 = vsel %vm7667, %v7651, %v7731
    %v7748 = vsel %vm7668, %v7652, %v7732
    %v7749 = vsel %vm7669, %v7653, %v7733
    %v7750 = vsel %vm7670, %v7654, %v7734
    %v7751 = vsel %vm7671, %v7655, %v7735
    %v7752 = vsel %vm7672, %v7656, %v7736
    %v7753 = vsel %vm7673, %v7657, %v7737
    %v7754 = vsel %vm7674, %v7658, %v7738
    %v7755 = vsel %vm7675, %v7659, %v7739
    %v7756 = vsel %vm7676, %v7660, %v7740
    %v7757 = vsel %vm7677, %v7661, %v7741
    %v7758 = vsel %vm7678, %v7662, %v7742
    %v7759 = vsel %vm7679, %v7663, %v7743
    %v7760 = vsel %vm7680, %v7664, %v7744
    %v7761 = vsel %vm7681, %v7665, %v7745
    %v7762 = vsel %vm7682, %v7666, %v7746
    %v7763 = vpack.c.bf16 %v7748, %v7747
    %v7764 = vpack.c.bf16 %v7750, %v7749
    %v7765 = vpack.c.bf16 %v7752, %v7751
    %v7766 = vpack.c.bf16 %v7754, %v7753
    %v7767 = vpack.c.bf16 %v7756, %v7755
    %v7768 = vpack.c.bf16 %v7758, %v7757
    %v7769 = vpack.c.bf16 %v7760, %v7759
    %v7770 = vpack.c.bf16 %v7762, %v7761
    %7771 = vmatpush.bf16.msra.mxu0 %v7770
    %7772 = vmatpush.bf16.msra.mxu0 %v7769
    %7773 = vmatpush.bf16.msra.mxu0 %v7768
    %7774 = vmatpush.bf16.msra.mxu0 %v7767
    %7775 = vmatpush.bf16.msra.mxu0 %v7766
    %7776 = vmatpush.bf16.msra.mxu0 %v7765
    %7777 = vmatpush.bf16.msra.mxu0 %v7764
    %7778 = vmatpush.bf16.msra.mxu0 %v7763
    %7779 = vmatmul.bf16.gmra.mxu0 %v6628
    %v7780 = vpop.f32.mrf.mxu0
    %v7781 = vadd.f32 0.0, %v7780
    %v7782 = vpop.f32.mrf.mxu0
    %7783 = vdwg.mxu0
    %7784 = vmatpush.bf16.msra.mxu0 %v4232
    %7785 = vmatpush.bf16.msra.mxu0 %v4231
    %7786 = vmatpush.bf16.msra.mxu0 %v4230
    %7787 = vmatpush.bf16.msra.mxu0 %v4229
    %7788 = vmatpush.bf16.msra.mxu0 %v4228
    %7789 = vmatpush.bf16.msra.mxu0 %v4227
    %7790 = vmatpush.bf16.msra.mxu0 %v4226
    %7791 = vmatpush.bf16.msra.mxu0 %v4225
    %7792 = vmatmul.bf16.gmra.mxu0 %v3232
    %v7793 = vpop.f32.mrf.mxu0
    %v7794 = vadd.f32 %v7781, %v7793
    %v7795 = vpop.f32.mrf.mxu0
    %7796 = vdwg.mxu0
    %v7797 = vadd.f32 %v6308, %v4236
    %v7798 = vadd.f32 %v6310, %v4236
    %v7799 = vadd.f32 %v6313, %v4236
    %v7800 = vadd.f32 %v6315, %v4236
    %v7801 = vadd.f32 %v6318, %v4236
    %v7802 = vadd.f32 %v6320, %v4236
    %v7803 = vadd.f32 %v6323, %v4236
    %v7804 = vadd.f32 %v6325, %v4236
    %v7805 = vadd.f32 %v6328, %v4236
    %v7806 = vadd.f32 %v6330, %v4236
    %v7807 = vadd.f32 %v6333, %v4236
    %v7808 = vadd.f32 %v6335, %v4236
    %v7809 = vadd.f32 %v6338, %v4236
    %v7810 = vadd.f32 %v6340, %v4236
    %v7811 = vadd.f32 %v6343, %v4236
    %v7812 = vadd.f32 %v6345, %v4236
    %vm7813 = vcmp.gt.f32.partialorder %v7797, 0.0
    %vm7814 = vcmp.gt.f32.partialorder %v7798, 0.0
    %vm7815 = vcmp.gt.f32.partialorder %v7799, 0.0
    %vm7816 = vcmp.gt.f32.partialorder %v7800, 0.0
    %vm7817 = vcmp.gt.f32.partialorder %v7801, 0.0
    %vm7818 = vcmp.gt.f32.partialorder %v7802, 0.0
    %vm7819 = vcmp.gt.f32.partialorder %v7803, 0.0
    %vm7820 = vcmp.gt.f32.partialorder %v7804, 0.0
    %vm7821 = vcmp.gt.f32.partialorder %v7805, 0.0
    %vm7822 = vcmp.gt.f32.partialorder %v7806, 0.0
    %vm7823 = vcmp.gt.f32.partialorder %v7807, 0.0
    %vm7824 = vcmp.gt.f32.partialorder %v7808, 0.0
    %vm7825 = vcmp.gt.f32.partialorder %v7809, 0.0
    %vm7826 = vcmp.gt.f32.partialorder %v7810, 0.0
    %vm7827 = vcmp.gt.f32.partialorder %v7811, 0.0
    %vm7828 = vcmp.gt.f32.partialorder %v7812, 0.0
    %v7829 = vmin.f32 %v7797, 0.0
    %v7830 = vmin.f32 %v7798, 0.0
    %v7831 = vmin.f32 %v7799, 0.0
    %v7832 = vmin.f32 %v7800, 0.0
    %v7833 = vmin.f32 %v7801, 0.0
    %v7834 = vmin.f32 %v7802, 0.0
    %v7835 = vmin.f32 %v7803, 0.0
    %v7836 = vmin.f32 %v7804, 0.0
    %v7837 = vmin.f32 %v7805, 0.0
    %v7838 = vmin.f32 %v7806, 0.0
    %v7839 = vmin.f32 %v7807, 0.0
    %v7840 = vmin.f32 %v7808, 0.0
    %v7841 = vmin.f32 %v7809, 0.0
    %v7842 = vmin.f32 %v7810, 0.0
    %v7843 = vmin.f32 %v7811, 0.0
    %v7844 = vmin.f32 %v7812, 0.0
    %v7845 = vmul.f32 %v7829, 1.442695
    %v7846 = vpow.pop %v7845
    %v7847 = vmul.f32 %v7830, 1.442695
    %v7848 = vpow.pop %v7847
    %v7849 = vmul.f32 %v7831, 1.442695
    %v7850 = vpow.pop %v7849
    %v7851 = vmul.f32 %v7832, 1.442695
    %v7852 = vpow.pop %v7851
    %v7853 = vmul.f32 %v7833, 1.442695
    %v7854 = vpow.pop %v7853
    %v7855 = vmul.f32 %v7834, 1.442695
    %v7856 = vpow.pop %v7855
    %v7857 = vmul.f32 %v7835, 1.442695
    %v7858 = vpow.pop %v7857
    %v7859 = vmul.f32 %v7836, 1.442695
    %v7860 = vpow.pop %v7859
    %v7861 = vmul.f32 %v7837, 1.442695
    %v7862 = vpow.pop %v7861
    %v7863 = vmul.f32 %v7838, 1.442695
    %v7864 = vpow.pop %v7863
    %v7865 = vmul.f32 %v7839, 1.442695
    %v7866 = vpow.pop %v7865
    %v7867 = vmul.f32 %v7840, 1.442695
    %v7868 = vpow.pop %v7867
    %v7869 = vmul.f32 %v7841, 1.442695
    %v7870 = vpow.pop %v7869
    %v7871 = vmul.f32 %v7842, 1.442695
    %v7872 = vpow.pop %v7871
    %v7873 = vmul.f32 %v7843, 1.442695
    %v7874 = vpow.pop %v7873
    %v7875 = vmul.f32 %v7844, 1.442695
    %v7876 = vpow.pop %v7875
    %v7877 = vsub.f32 %v7846, 1.0
    %v7878 = vsub.f32 %v7848, 1.0
    %v7879 = vsub.f32 %v7850, 1.0
    %v7880 = vsub.f32 %v7852, 1.0
    %v7881 = vsub.f32 %v7854, 1.0
    %v7882 = vsub.f32 %v7856, 1.0
    %v7883 = vsub.f32 %v7858, 1.0
    %v7884 = vsub.f32 %v7860, 1.0
    %v7885 = vsub.f32 %v7862, 1.0
    %v7886 = vsub.f32 %v7864, 1.0
    %v7887 = vsub.f32 %v7866, 1.0
    %v7888 = vsub.f32 %v7868, 1.0
    %v7889 = vsub.f32 %v7870, 1.0
    %v7890 = vsub.f32 %v7872, 1.0
    %v7891 = vsub.f32 %v7874, 1.0
    %v7892 = vsub.f32 %v7876, 1.0
    %v7893 = vsel %vm7813, %v7797, %v7877
    %v7894 = vsel %vm7814, %v7798, %v7878
    %v7895 = vsel %vm7815, %v7799, %v7879
    %v7896 = vsel %vm7816, %v7800, %v7880
    %v7897 = vsel %vm7817, %v7801, %v7881
    %v7898 = vsel %vm7818, %v7802, %v7882
    %v7899 = vsel %vm7819, %v7803, %v7883
    %v7900 = vsel %vm7820, %v7804, %v7884
    %v7901 = vsel %vm7821, %v7805, %v7885
    %v7902 = vsel %vm7822, %v7806, %v7886
    %v7903 = vsel %vm7823, %v7807, %v7887
    %v7904 = vsel %vm7824, %v7808, %v7888
    %v7905 = vsel %vm7825, %v7809, %v7889
    %v7906 = vsel %vm7826, %v7810, %v7890
    %v7907 = vsel %vm7827, %v7811, %v7891
    %v7908 = vsel %vm7828, %v7812, %v7892
    %v7909 = vpack.c.bf16 %v7894, %v7893
    %v7910 = vpack.c.bf16 %v7896, %v7895
    %v7911 = vpack.c.bf16 %v7898, %v7897
    %v7912 = vpack.c.bf16 %v7900, %v7899
    %v7913 = vpack.c.bf16 %v7902, %v7901
    %v7914 = vpack.c.bf16 %v7904, %v7903
    %v7915 = vpack.c.bf16 %v7906, %v7905
    %v7916 = vpack.c.bf16 %v7908, %v7907
    %7917 = vmatpush.bf16.msra.mxu0 %v7916
    %7918 = vmatpush.bf16.msra.mxu0 %v7915
    %7919 = vmatpush.bf16.msra.mxu0 %v7914
    %7920 = vmatpush.bf16.msra.mxu0 %v7913
    %7921 = vmatpush.bf16.msra.mxu0 %v7912
    %7922 = vmatpush.bf16.msra.mxu0 %v7911
    %7923 = vmatpush.bf16.msra.mxu0 %v7910
    %7924 = vmatpush.bf16.msra.mxu0 %v7909
    %7925 = vmatmul.bf16.gmra.mxu0 %v6628
    %v7926 = vpop.f32.mrf.mxu0
    %v7927 = vadd.f32 0.0, %v7926
    %v7928 = vpop.f32.mrf.mxu0
    %7929 = vdwg.mxu0
    %7930 = vmatpush.bf16.msra.mxu0 %v4357
    %7931 = vmatpush.bf16.msra.mxu0 %v4356
    %7932 = vmatpush.bf16.msra.mxu0 %v4355
    %7933 = vmatpush.bf16.msra.mxu0 %v4354
    %7934 = vmatpush.bf16.msra.mxu0 %v4353
    %7935 = vmatpush.bf16.msra.mxu0 %v4352
    %7936 = vmatpush.bf16.msra.mxu0 %v4351
    %7937 = vmatpush.bf16.msra.mxu0 %v4350
    %7938 = vmatmul.bf16.gmra.mxu0 %v3232
    %v7939 = vpop.f32.mrf.mxu0
    %v7940 = vadd.f32 %v7927, %v7939
    %v7941 = vpop.f32.mrf.mxu0
    %7942 = vdwg.mxu0
    %v7943 = vadd.f32 %v6348, %v4361
    %v7944 = vadd.f32 %v6350, %v4361
    %v7945 = vadd.f32 %v6353, %v4361
    %v7946 = vadd.f32 %v6355, %v4361
    %v7947 = vadd.f32 %v6358, %v4361
    %v7948 = vadd.f32 %v6360, %v4361
    %v7949 = vadd.f32 %v6363, %v4361
    %v7950 = vadd.f32 %v6365, %v4361
    %v7951 = vadd.f32 %v6368, %v4361
    %v7952 = vadd.f32 %v6370, %v4361
    %v7953 = vadd.f32 %v6373, %v4361
    %v7954 = vadd.f32 %v6375, %v4361
    %v7955 = vadd.f32 %v6378, %v4361
    %v7956 = vadd.f32 %v6380, %v4361
    %v7957 = vadd.f32 %v6383, %v4361
    %v7958 = vadd.f32 %v6385, %v4361
    %vm7959 = vcmp.gt.f32.partialorder %v7943, 0.0
    %vm7960 = vcmp.gt.f32.partialorder %v7944, 0.0
    %vm7961 = vcmp.gt.f32.partialorder %v7945, 0.0
    %vm7962 = vcmp.gt.f32.partialorder %v7946, 0.0
    %vm7963 = vcmp.gt.f32.partialorder %v7947, 0.0
    %vm7964 = vcmp.gt.f32.partialorder %v7948, 0.0
    %vm7965 = vcmp.gt.f32.partialorder %v7949, 0.0
    %vm7966 = vcmp.gt.f32.partialorder %v7950, 0.0
    %vm7967 = vcmp.gt.f32.partialorder %v7951, 0.0
    %vm7968 = vcmp.gt.f32.partialorder %v7952, 0.0
    %vm7969 = vcmp.gt.f32.partialorder %v7953, 0.0
    %vm7970 = vcmp.gt.f32.partialorder %v7954, 0.0
    %vm7971 = vcmp.gt.f32.partialorder %v7955, 0.0
    %vm7972 = vcmp.gt.f32.partialorder %v7956, 0.0
    %vm7973 = vcmp.gt.f32.partialorder %v7957, 0.0
    %vm7974 = vcmp.gt.f32.partialorder %v7958, 0.0
    %v7975 = vmin.f32 %v7943, 0.0
    %v7976 = vmin.f32 %v7944, 0.0
    %v7977 = vmin.f32 %v7945, 0.0
    %v7978 = vmin.f32 %v7946, 0.0
    %v7979 = vmin.f32 %v7947, 0.0
    %v7980 = vmin.f32 %v7948, 0.0
    %v7981 = vmin.f32 %v7949, 0.0
    %v7982 = vmin.f32 %v7950, 0.0
    %v7983 = vmin.f32 %v7951, 0.0
    %v7984 = vmin.f32 %v7952, 0.0
    %v7985 = vmin.f32 %v7953, 0.0
    %v7986 = vmin.f32 %v7954, 0.0
    %v7987 = vmin.f32 %v7955, 0.0
    %v7988 = vmin.f32 %v7956, 0.0
    %v7989 = vmin.f32 %v7957, 0.0
    %v7990 = vmin.f32 %v7958, 0.0
    %v7991 = vmul.f32 %v7975, 1.442695
    %v7992 = vpow.pop %v7991
    %v7993 = vmul.f32 %v7976, 1.442695
    %v7994 = vpow.pop %v7993
    %v7995 = vmul.f32 %v7977, 1.442695
    %v7996 = vpow.pop %v7995
    %v7997 = vmul.f32 %v7978, 1.442695
    %v7998 = vpow.pop %v7997
    %v7999 = vmul.f32 %v7979, 1.442695
    %v8000 = vpow.pop %v7999
    %v8001 = vmul.f32 %v7980, 1.442695
    %v8002 = vpow.pop %v8001
    %v8003 = vmul.f32 %v7981, 1.442695
    %v8004 = vpow.pop %v8003
    %v8005 = vmul.f32 %v7982, 1.442695
    %v8006 = vpow.pop %v8005
    %v8007 = vmul.f32 %v7983, 1.442695
    %v8008 = vpow.pop %v8007
    %v8009 = vmul.f32 %v7984, 1.442695
    %v8010 = vpow.pop %v8009
    %v8011 = vmul.f32 %v7985, 1.442695
    %v8012 = vpow.pop %v8011
    %v8013 = vmul.f32 %v7986, 1.442695
    %v8014 = vpow.pop %v8013
    %v8015 = vmul.f32 %v7987, 1.442695
    %v8016 = vpow.pop %v8015
    %v8017 = vmul.f32 %v7988, 1.442695
    %v8018 = vpow.pop %v8017
    %v8019 = vmul.f32 %v7989, 1.442695
    %v8020 = vpow.pop %v8019
    %v8021 = vmul.f32 %v7990, 1.442695
    %v8022 = vpow.pop %v8021
    %v8023 = vsub.f32 %v7992, 1.0
    %v8024 = vsub.f32 %v7994, 1.0
    %v8025 = vsub.f32 %v7996, 1.0
    %v8026 = vsub.f32 %v7998, 1.0
    %v8027 = vsub.f32 %v8000, 1.0
    %v8028 = vsub.f32 %v8002, 1.0
    %v8029 = vsub.f32 %v8004, 1.0
    %v8030 = vsub.f32 %v8006, 1.0
    %v8031 = vsub.f32 %v8008, 1.0
    %v8032 = vsub.f32 %v8010, 1.0
    %v8033 = vsub.f32 %v8012, 1.0
    %v8034 = vsub.f32 %v8014, 1.0
    %v8035 = vsub.f32 %v8016, 1.0
    %v8036 = vsub.f32 %v8018, 1.0
    %v8037 = vsub.f32 %v8020, 1.0
    %v8038 = vsub.f32 %v8022, 1.0
    %v8039 = vsel %vm7959, %v7943, %v8023
    %v8040 = vsel %vm7960, %v7944, %v8024
    %v8041 = vsel %vm7961, %v7945, %v8025
    %v8042 = vsel %vm7962, %v7946, %v8026
    %v8043 = vsel %vm7963, %v7947, %v8027
    %v8044 = vsel %vm7964, %v7948, %v8028
    %v8045 = vsel %vm7965, %v7949, %v8029
    %v8046 = vsel %vm7966, %v7950, %v8030
    %v8047 = vsel %vm7967, %v7951, %v8031
    %v8048 = vsel %vm7968, %v7952, %v8032
    %v8049 = vsel %vm7969, %v7953, %v8033
    %v8050 = vsel %vm7970, %v7954, %v8034
    %v8051 = vsel %vm7971, %v7955, %v8035
    %v8052 = vsel %vm7972, %v7956, %v8036
    %v8053 = vsel %vm7973, %v7957, %v8037
    %v8054 = vsel %vm7974, %v7958, %v8038
    %v8055 = vpack.c.bf16 %v8040, %v8039
    %v8056 = vpack.c.bf16 %v8042, %v8041
    %v8057 = vpack.c.bf16 %v8044, %v8043
    %v8058 = vpack.c.bf16 %v8046, %v8045
    %v8059 = vpack.c.bf16 %v8048, %v8047
    %v8060 = vpack.c.bf16 %v8050, %v8049
    %v8061 = vpack.c.bf16 %v8052, %v8051
    %v8062 = vpack.c.bf16 %v8054, %v8053
    %8063 = vmatpush.bf16.msra.mxu0 %v8062
    %8064 = vmatpush.bf16.msra.mxu0 %v8061
    %8065 = vmatpush.bf16.msra.mxu0 %v8060
    %8066 = vmatpush.bf16.msra.mxu0 %v8059
    %8067 = vmatpush.bf16.msra.mxu0 %v8058
    %8068 = vmatpush.bf16.msra.mxu0 %v8057
    %8069 = vmatpush.bf16.msra.mxu0 %v8056
    %8070 = vmatpush.bf16.msra.mxu0 %v8055
    %8071 = vmatmul.bf16.gmra.mxu0 %v6628
    %v8072 = vpop.f32.mrf.mxu0
    %v8073 = vadd.f32 0.0, %v8072
    %v8074 = vpop.f32.mrf.mxu0
    %8075 = vdwg.mxu0
    %8076 = vmatpush.bf16.msra.mxu0 %v4482
    %8077 = vmatpush.bf16.msra.mxu0 %v4481
    %8078 = vmatpush.bf16.msra.mxu0 %v4480
    %8079 = vmatpush.bf16.msra.mxu0 %v4479
    %8080 = vmatpush.bf16.msra.mxu0 %v4478
    %8081 = vmatpush.bf16.msra.mxu0 %v4477
    %8082 = vmatpush.bf16.msra.mxu0 %v4476
    %8083 = vmatpush.bf16.msra.mxu0 %v4475
    %8084 = vmatmul.bf16.gmra.mxu0 %v3232
    %v8085 = vpop.f32.mrf.mxu0
    %v8086 = vadd.f32 %v8073, %v8085
    %v8087 = vpop.f32.mrf.mxu0
    %8088 = vdwg.mxu0
    %v8089 = vadd.f32 %v6388, %v4486
    %v8090 = vadd.f32 %v6390, %v4486
    %v8091 = vadd.f32 %v6393, %v4486
    %v8092 = vadd.f32 %v6395, %v4486
    %v8093 = vadd.f32 %v6398, %v4486
    %v8094 = vadd.f32 %v6400, %v4486
    %v8095 = vadd.f32 %v6403, %v4486
    %v8096 = vadd.f32 %v6405, %v4486
    %v8097 = vadd.f32 %v6408, %v4486
    %v8098 = vadd.f32 %v6410, %v4486
    %v8099 = vadd.f32 %v6413, %v4486
    %v8100 = vadd.f32 %v6415, %v4486
    %v8101 = vadd.f32 %v6418, %v4486
    %v8102 = vadd.f32 %v6420, %v4486
    %v8103 = vadd.f32 %v6423, %v4486
    %v8104 = vadd.f32 %v6425, %v4486
    %vm8105 = vcmp.gt.f32.partialorder %v8089, 0.0
    %vm8106 = vcmp.gt.f32.partialorder %v8090, 0.0
    %vm8107 = vcmp.gt.f32.partialorder %v8091, 0.0
    %vm8108 = vcmp.gt.f32.partialorder %v8092, 0.0
    %vm8109 = vcmp.gt.f32.partialorder %v8093, 0.0
    %vm8110 = vcmp.gt.f32.partialorder %v8094, 0.0
    %vm8111 = vcmp.gt.f32.partialorder %v8095, 0.0
    %vm8112 = vcmp.gt.f32.partialorder %v8096, 0.0
    %vm8113 = vcmp.gt.f32.partialorder %v8097, 0.0
    %vm8114 = vcmp.gt.f32.partialorder %v8098, 0.0
    %vm8115 = vcmp.gt.f32.partialorder %v8099, 0.0
    %vm8116 = vcmp.gt.f32.partialorder %v8100, 0.0
    %vm8117 = vcmp.gt.f32.partialorder %v8101, 0.0
    %vm8118 = vcmp.gt.f32.partialorder %v8102, 0.0
    %vm8119 = vcmp.gt.f32.partialorder %v8103, 0.0
    %vm8120 = vcmp.gt.f32.partialorder %v8104, 0.0
    %v8121 = vmin.f32 %v8089, 0.0
    %v8122 = vmin.f32 %v8090, 0.0
    %v8123 = vmin.f32 %v8091, 0.0
    %v8124 = vmin.f32 %v8092, 0.0
    %v8125 = vmin.f32 %v8093, 0.0
    %v8126 = vmin.f32 %v8094, 0.0
    %v8127 = vmin.f32 %v8095, 0.0
    %v8128 = vmin.f32 %v8096, 0.0
    %v8129 = vmin.f32 %v8097, 0.0
    %v8130 = vmin.f32 %v8098, 0.0
    %v8131 = vmin.f32 %v8099, 0.0
    %v8132 = vmin.f32 %v8100, 0.0
    %v8133 = vmin.f32 %v8101, 0.0
    %v8134 = vmin.f32 %v8102, 0.0
    %v8135 = vmin.f32 %v8103, 0.0
    %v8136 = vmin.f32 %v8104, 0.0
    %v8137 = vmul.f32 %v8121, 1.442695
    %v8138 = vpow.pop %v8137
    %v8139 = vmul.f32 %v8122, 1.442695
    %v8140 = vpow.pop %v8139
    %v8141 = vmul.f32 %v8123, 1.442695
    %v8142 = vpow.pop %v8141
    %v8143 = vmul.f32 %v8124, 1.442695
    %v8144 = vpow.pop %v8143
    %v8145 = vmul.f32 %v8125, 1.442695
    %v8146 = vpow.pop %v8145
    %v8147 = vmul.f32 %v8126, 1.442695
    %v8148 = vpow.pop %v8147
    %v8149 = vmul.f32 %v8127, 1.442695
    %v8150 = vpow.pop %v8149
    %v8151 = vmul.f32 %v8128, 1.442695
    %v8152 = vpow.pop %v8151
    %v8153 = vmul.f32 %v8129, 1.442695
    %v8154 = vpow.pop %v8153
    %v8155 = vmul.f32 %v8130, 1.442695
    %v8156 = vpow.pop %v8155
    %v8157 = vmul.f32 %v8131, 1.442695
    %v8158 = vpow.pop %v8157
    %v8159 = vmul.f32 %v8132, 1.442695
    %v8160 = vpow.pop %v8159
    %v8161 = vmul.f32 %v8133, 1.442695
    %v8162 = vpow.pop %v8161
    %v8163 = vmul.f32 %v8134, 1.442695
    %v8164 = vpow.pop %v8163
    %v8165 = vmul.f32 %v8135, 1.442695
    %v8166 = vpow.pop %v8165
    %v8167 = vmul.f32 %v8136, 1.442695
    %v8168 = vpow.pop %v8167
    %v8169 = vsub.f32 %v8138, 1.0
    %v8170 = vsub.f32 %v8140, 1.0
    %v8171 = vsub.f32 %v8142, 1.0
    %v8172 = vsub.f32 %v8144, 1.0
    %v8173 = vsub.f32 %v8146, 1.0
    %v8174 = vsub.f32 %v8148, 1.0
    %v8175 = vsub.f32 %v8150, 1.0
    %v8176 = vsub.f32 %v8152, 1.0
    %v8177 = vsub.f32 %v8154, 1.0
    %v8178 = vsub.f32 %v8156, 1.0
    %v8179 = vsub.f32 %v8158, 1.0
    %v8180 = vsub.f32 %v8160, 1.0
    %v8181 = vsub.f32 %v8162, 1.0
    %v8182 = vsub.f32 %v8164, 1.0
    %v8183 = vsub.f32 %v8166, 1.0
    %v8184 = vsub.f32 %v8168, 1.0
    %v8185 = vsel %vm8105, %v8089, %v8169
    %v8186 = vsel %vm8106, %v8090, %v8170
    %v8187 = vsel %vm8107, %v8091, %v8171
    %v8188 = vsel %vm8108, %v8092, %v8172
    %v8189 = vsel %vm8109, %v8093, %v8173
    %v8190 = vsel %vm8110, %v8094, %v8174
    %v8191 = vsel %vm8111, %v8095, %v8175
    %v8192 = vsel %vm8112, %v8096, %v8176
    %v8193 = vsel %vm8113, %v8097, %v8177
    %v8194 = vsel %vm8114, %v8098, %v8178
    %v8195 = vsel %vm8115, %v8099, %v8179
    %v8196 = vsel %vm8116, %v8100, %v8180
    %v8197 = vsel %vm8117, %v8101, %v8181
    %v8198 = vsel %vm8118, %v8102, %v8182
    %v8199 = vsel %vm8119, %v8103, %v8183
    %v8200 = vsel %vm8120, %v8104, %v8184
    %v8201 = vpack.c.bf16 %v8186, %v8185
    %v8202 = vpack.c.bf16 %v8188, %v8187
    %v8203 = vpack.c.bf16 %v8190, %v8189
    %v8204 = vpack.c.bf16 %v8192, %v8191
    %v8205 = vpack.c.bf16 %v8194, %v8193
    %v8206 = vpack.c.bf16 %v8196, %v8195
    %v8207 = vpack.c.bf16 %v8198, %v8197
    %v8208 = vpack.c.bf16 %v8200, %v8199
    %8209 = vmatpush.bf16.msra.mxu0 %v8208
    %8210 = vmatpush.bf16.msra.mxu0 %v8207
    %8211 = vmatpush.bf16.msra.mxu0 %v8206
    %8212 = vmatpush.bf16.msra.mxu0 %v8205
    %8213 = vmatpush.bf16.msra.mxu0 %v8204
    %8214 = vmatpush.bf16.msra.mxu0 %v8203
    %8215 = vmatpush.bf16.msra.mxu0 %v8202
    %8216 = vmatpush.bf16.msra.mxu0 %v8201
    %8217 = vmatmul.bf16.gmra.mxu0 %v6628
    %v8218 = vpop.f32.mrf.mxu0
    %v8219 = vadd.f32 0.0, %v8218
    %v8220 = vpop.f32.mrf.mxu0
    %8221 = vdwg.mxu0
    %8222 = vmatpush.bf16.msra.mxu0 %v4607
    %8223 = vmatpush.bf16.msra.mxu0 %v4606
    %8224 = vmatpush.bf16.msra.mxu0 %v4605
    %8225 = vmatpush.bf16.msra.mxu0 %v4604
    %8226 = vmatpush.bf16.msra.mxu0 %v4603
    %8227 = vmatpush.bf16.msra.mxu0 %v4602
    %8228 = vmatpush.bf16.msra.mxu0 %v4601
    %8229 = vmatpush.bf16.msra.mxu0 %v4600
    %8230 = vmatmul.bf16.gmra.mxu0 %v3232
    %v8231 = vpop.f32.mrf.mxu0
    %v8232 = vadd.f32 %v8219, %v8231
    %v8233 = vpop.f32.mrf.mxu0
    %8234 = vdwg.mxu0
    %v8235 = vadd.f32 %v6428, %v4611
    %v8236 = vadd.f32 %v6430, %v4611
    %v8237 = vadd.f32 %v6433, %v4611
    %v8238 = vadd.f32 %v6435, %v4611
    %v8239 = vadd.f32 %v6438, %v4611
    %v8240 = vadd.f32 %v6440, %v4611
    %v8241 = vadd.f32 %v6443, %v4611
    %v8242 = vadd.f32 %v6445, %v4611
    %v8243 = vadd.f32 %v6448, %v4611
    %v8244 = vadd.f32 %v6450, %v4611
    %v8245 = vadd.f32 %v6453, %v4611
    %v8246 = vadd.f32 %v6455, %v4611
    %v8247 = vadd.f32 %v6458, %v4611
    %v8248 = vadd.f32 %v6460, %v4611
    %v8249 = vadd.f32 %v6463, %v4611
    %v8250 = vadd.f32 %v6465, %v4611
    %vm8251 = vcmp.gt.f32.partialorder %v8235, 0.0
    %vm8252 = vcmp.gt.f32.partialorder %v8236, 0.0
    %vm8253 = vcmp.gt.f32.partialorder %v8237, 0.0
    %vm8254 = vcmp.gt.f32.partialorder %v8238, 0.0
    %vm8255 = vcmp.gt.f32.partialorder %v8239, 0.0
    %vm8256 = vcmp.gt.f32.partialorder %v8240, 0.0
    %vm8257 = vcmp.gt.f32.partialorder %v8241, 0.0
    %vm8258 = vcmp.gt.f32.partialorder %v8242, 0.0
    %vm8259 = vcmp.gt.f32.partialorder %v8243, 0.0
    %vm8260 = vcmp.gt.f32.partialorder %v8244, 0.0
    %vm8261 = vcmp.gt.f32.partialorder %v8245, 0.0
    %vm8262 = vcmp.gt.f32.partialorder %v8246, 0.0
    %vm8263 = vcmp.gt.f32.partialorder %v8247, 0.0
    %vm8264 = vcmp.gt.f32.partialorder %v8248, 0.0
    %vm8265 = vcmp.gt.f32.partialorder %v8249, 0.0
    %vm8266 = vcmp.gt.f32.partialorder %v8250, 0.0
    %v8267 = vmin.f32 %v8235, 0.0
    %v8268 = vmin.f32 %v8236, 0.0
    %v8269 = vmin.f32 %v8237, 0.0
    %v8270 = vmin.f32 %v8238, 0.0
    %v8271 = vmin.f32 %v8239, 0.0
    %v8272 = vmin.f32 %v8240, 0.0
    %v8273 = vmin.f32 %v8241, 0.0
    %v8274 = vmin.f32 %v8242, 0.0
    %v8275 = vmin.f32 %v8243, 0.0
    %v8276 = vmin.f32 %v8244, 0.0
    %v8277 = vmin.f32 %v8245, 0.0
    %v8278 = vmin.f32 %v8246, 0.0
    %v8279 = vmin.f32 %v8247, 0.0
    %v8280 = vmin.f32 %v8248, 0.0
    %v8281 = vmin.f32 %v8249, 0.0
    %v8282 = vmin.f32 %v8250, 0.0
    %v8283 = vmul.f32 %v8267, 1.442695
    %v8284 = vpow.pop %v8283
    %v8285 = vmul.f32 %v8268, 1.442695
    %v8286 = vpow.pop %v8285
    %v8287 = vmul.f32 %v8269, 1.442695
    %v8288 = vpow.pop %v8287
    %v8289 = vmul.f32 %v8270, 1.442695
    %v8290 = vpow.pop %v8289
    %v8291 = vmul.f32 %v8271, 1.442695
    %v8292 = vpow.pop %v8291
    %v8293 = vmul.f32 %v8272, 1.442695
    %v8294 = vpow.pop %v8293
    %v8295 = vmul.f32 %v8273, 1.442695
    %v8296 = vpow.pop %v8295
    %v8297 = vmul.f32 %v8274, 1.442695
    %v8298 = vpow.pop %v8297
    %v8299 = vmul.f32 %v8275, 1.442695
    %v8300 = vpow.pop %v8299
    %v8301 = vmul.f32 %v8276, 1.442695
    %v8302 = vpow.pop %v8301
    %v8303 = vmul.f32 %v8277, 1.442695
    %v8304 = vpow.pop %v8303
    %v8305 = vmul.f32 %v8278, 1.442695
    %v8306 = vpow.pop %v8305
    %v8307 = vmul.f32 %v8279, 1.442695
    %v8308 = vpow.pop %v8307
    %v8309 = vmul.f32 %v8280, 1.442695
    %v8310 = vpow.pop %v8309
    %v8311 = vmul.f32 %v8281, 1.442695
    %v8312 = vpow.pop %v8311
    %v8313 = vmul.f32 %v8282, 1.442695
    %v8314 = vpow.pop %v8313
    %v8315 = vsub.f32 %v8284, 1.0
    %v8316 = vsub.f32 %v8286, 1.0
    %v8317 = vsub.f32 %v8288, 1.0
    %v8318 = vsub.f32 %v8290, 1.0
    %v8319 = vsub.f32 %v8292, 1.0
    %v8320 = vsub.f32 %v8294, 1.0
    %v8321 = vsub.f32 %v8296, 1.0
    %v8322 = vsub.f32 %v8298, 1.0
    %v8323 = vsub.f32 %v8300, 1.0
    %v8324 = vsub.f32 %v8302, 1.0
    %v8325 = vsub.f32 %v8304, 1.0
    %v8326 = vsub.f32 %v8306, 1.0
    %v8327 = vsub.f32 %v8308, 1.0
    %v8328 = vsub.f32 %v8310, 1.0
    %v8329 = vsub.f32 %v8312, 1.0
    %v8330 = vsub.f32 %v8314, 1.0
    %v8331 = vsel %vm8251, %v8235, %v8315
    %v8332 = vsel %vm8252, %v8236, %v8316
    %v8333 = vsel %vm8253, %v8237, %v8317
    %v8334 = vsel %vm8254, %v8238, %v8318
    %v8335 = vsel %vm8255, %v8239, %v8319
    %v8336 = vsel %vm8256, %v8240, %v8320
    %v8337 = vsel %vm8257, %v8241, %v8321
    %v8338 = vsel %vm8258, %v8242, %v8322
    %v8339 = vsel %vm8259, %v8243, %v8323
    %v8340 = vsel %vm8260, %v8244, %v8324
    %v8341 = vsel %vm8261, %v8245, %v8325
    %v8342 = vsel %vm8262, %v8246, %v8326
    %v8343 = vsel %vm8263, %v8247, %v8327
    %v8344 = vsel %vm8264, %v8248, %v8328
    %v8345 = vsel %vm8265, %v8249, %v8329
    %v8346 = vsel %vm8266, %v8250, %v8330
    %v8347 = vpack.c.bf16 %v8332, %v8331
    %v8348 = vpack.c.bf16 %v8334, %v8333
    %v8349 = vpack.c.bf16 %v8336, %v8335
    %v8350 = vpack.c.bf16 %v8338, %v8337
    %v8351 = vpack.c.bf16 %v8340, %v8339
    %v8352 = vpack.c.bf16 %v8342, %v8341
    %v8353 = vpack.c.bf16 %v8344, %v8343
    %v8354 = vpack.c.bf16 %v8346, %v8345
    %8355 = vmatpush.bf16.msra.mxu0 %v8354
    %8356 = vmatpush.bf16.msra.mxu0 %v8353
    %8357 = vmatpush.bf16.msra.mxu0 %v8352
    %8358 = vmatpush.bf16.msra.mxu0 %v8351
    %8359 = vmatpush.bf16.msra.mxu0 %v8350
    %8360 = vmatpush.bf16.msra.mxu0 %v8349
    %8361 = vmatpush.bf16.msra.mxu0 %v8348
    %8362 = vmatpush.bf16.msra.mxu0 %v8347
    %8363 = vmatmul.bf16.gmra.mxu0 %v6628
    %v8364 = vpop.f32.mrf.mxu0
    %v8365 = vadd.f32 0.0, %v8364
    %v8366 = vpop.f32.mrf.mxu0
    %8367 = vdwg.mxu0
    %8368 = vmatpush.bf16.msra.mxu0 %v4732
    %8369 = vmatpush.bf16.msra.mxu0 %v4731
    %8370 = vmatpush.bf16.msra.mxu0 %v4730
    %8371 = vmatpush.bf16.msra.mxu0 %v4729
    %8372 = vmatpush.bf16.msra.mxu0 %v4728
    %8373 = vmatpush.bf16.msra.mxu0 %v4727
    %8374 = vmatpush.bf16.msra.mxu0 %v4726
    %8375 = vmatpush.bf16.msra.mxu0 %v4725
    %8376 = vmatmul.bf16.gmra.mxu0 %v3232
    %v8377 = vpop.f32.mrf.mxu0
    %v8378 = vadd.f32 %v8365, %v8377
    %v8379 = vpop.f32.mrf.mxu0
    %8380 = vdwg.mxu0
    %v8381 = vadd.f32 %v6468, %v4736
    %v8382 = vadd.f32 %v6470, %v4736
    %v8383 = vadd.f32 %v6473, %v4736
    %v8384 = vadd.f32 %v6475, %v4736
    %v8385 = vadd.f32 %v6478, %v4736
    %v8386 = vadd.f32 %v6480, %v4736
    %v8387 = vadd.f32 %v6483, %v4736
    %v8388 = vadd.f32 %v6485, %v4736
    %v8389 = vadd.f32 %v6488, %v4736
    %v8390 = vadd.f32 %v6490, %v4736
    %v8391 = vadd.f32 %v6493, %v4736
    %v8392 = vadd.f32 %v6495, %v4736
    %v8393 = vadd.f32 %v6498, %v4736
    %v8394 = vadd.f32 %v6500, %v4736
    %v8395 = vadd.f32 %v6503, %v4736
    %v8396 = vadd.f32 %v6505, %v4736
    %vm8397 = vcmp.gt.f32.partialorder %v8381, 0.0
    %vm8398 = vcmp.gt.f32.partialorder %v8382, 0.0
    %vm8399 = vcmp.gt.f32.partialorder %v8383, 0.0
    %vm8400 = vcmp.gt.f32.partialorder %v8384, 0.0
    %vm8401 = vcmp.gt.f32.partialorder %v8385, 0.0
    %vm8402 = vcmp.gt.f32.partialorder %v8386, 0.0
    %vm8403 = vcmp.gt.f32.partialorder %v8387, 0.0
    %vm8404 = vcmp.gt.f32.partialorder %v8388, 0.0
    %vm8405 = vcmp.gt.f32.partialorder %v8389, 0.0
    %vm8406 = vcmp.gt.f32.partialorder %v8390, 0.0
    %vm8407 = vcmp.gt.f32.partialorder %v8391, 0.0
    %vm8408 = vcmp.gt.f32.partialorder %v8392, 0.0
    %vm8409 = vcmp.gt.f32.partialorder %v8393, 0.0
    %vm8410 = vcmp.gt.f32.partialorder %v8394, 0.0
    %vm8411 = vcmp.gt.f32.partialorder %v8395, 0.0
    %vm8412 = vcmp.gt.f32.partialorder %v8396, 0.0
    %v8413 = vmin.f32 %v8381, 0.0
    %v8414 = vmin.f32 %v8382, 0.0
    %v8415 = vmin.f32 %v8383, 0.0
    %v8416 = vmin.f32 %v8384, 0.0
    %v8417 = vmin.f32 %v8385, 0.0
    %v8418 = vmin.f32 %v8386, 0.0
    %v8419 = vmin.f32 %v8387, 0.0
    %v8420 = vmin.f32 %v8388, 0.0
    %v8421 = vmin.f32 %v8389, 0.0
    %v8422 = vmin.f32 %v8390, 0.0
    %v8423 = vmin.f32 %v8391, 0.0
    %v8424 = vmin.f32 %v8392, 0.0
    %v8425 = vmin.f32 %v8393, 0.0
    %v8426 = vmin.f32 %v8394, 0.0
    %v8427 = vmin.f32 %v8395, 0.0
    %v8428 = vmin.f32 %v8396, 0.0
    %v8429 = vmul.f32 %v8413, 1.442695
    %v8430 = vpow.pop %v8429
    %v8431 = vmul.f32 %v8414, 1.442695
    %v8432 = vpow.pop %v8431
    %v8433 = vmul.f32 %v8415, 1.442695
    %v8434 = vpow.pop %v8433
    %v8435 = vmul.f32 %v8416, 1.442695
    %v8436 = vpow.pop %v8435
    %v8437 = vmul.f32 %v8417, 1.442695
    %v8438 = vpow.pop %v8437
    %v8439 = vmul.f32 %v8418, 1.442695
    %v8440 = vpow.pop %v8439
    %v8441 = vmul.f32 %v8419, 1.442695
    %v8442 = vpow.pop %v8441
    %v8443 = vmul.f32 %v8420, 1.442695
    %v8444 = vpow.pop %v8443
    %v8445 = vmul.f32 %v8421, 1.442695
    %v8446 = vpow.pop %v8445
    %v8447 = vmul.f32 %v8422, 1.442695
    %v8448 = vpow.pop %v8447
    %v8449 = vmul.f32 %v8423, 1.442695
    %v8450 = vpow.pop %v8449
    %v8451 = vmul.f32 %v8424, 1.442695
    %v8452 = vpow.pop %v8451
    %v8453 = vmul.f32 %v8425, 1.442695
    %v8454 = vpow.pop %v8453
    %v8455 = vmul.f32 %v8426, 1.442695
    %v8456 = vpow.pop %v8455
    %v8457 = vmul.f32 %v8427, 1.442695
    %v8458 = vpow.pop %v8457
    %v8459 = vmul.f32 %v8428, 1.442695
    %v8460 = vpow.pop %v8459
    %v8461 = vsub.f32 %v8430, 1.0
    %v8462 = vsub.f32 %v8432, 1.0
    %v8463 = vsub.f32 %v8434, 1.0
    %v8464 = vsub.f32 %v8436, 1.0
    %v8465 = vsub.f32 %v8438, 1.0
    %v8466 = vsub.f32 %v8440, 1.0
    %v8467 = vsub.f32 %v8442, 1.0
    %v8468 = vsub.f32 %v8444, 1.0
    %v8469 = vsub.f32 %v8446, 1.0
    %v8470 = vsub.f32 %v8448, 1.0
    %v8471 = vsub.f32 %v8450, 1.0
    %v8472 = vsub.f32 %v8452, 1.0
    %v8473 = vsub.f32 %v8454, 1.0
    %v8474 = vsub.f32 %v8456, 1.0
    %v8475 = vsub.f32 %v8458, 1.0
    %v8476 = vsub.f32 %v8460, 1.0
    %v8477 = vsel %vm8397, %v8381, %v8461
    %v8478 = vsel %vm8398, %v8382, %v8462
    %v8479 = vsel %vm8399, %v8383, %v8463
    %v8480 = vsel %vm8400, %v8384, %v8464
    %v8481 = vsel %vm8401, %v8385, %v8465
    %v8482 = vsel %vm8402, %v8386, %v8466
    %v8483 = vsel %vm8403, %v8387, %v8467
    %v8484 = vsel %vm8404, %v8388, %v8468
    %v8485 = vsel %vm8405, %v8389, %v8469
    %v8486 = vsel %vm8406, %v8390, %v8470
    %v8487 = vsel %vm8407, %v8391, %v8471
    %v8488 = vsel %vm8408, %v8392, %v8472
    %v8489 = vsel %vm8409, %v8393, %v8473
    %v8490 = vsel %vm8410, %v8394, %v8474
    %v8491 = vsel %vm8411, %v8395, %v8475
    %v8492 = vsel %vm8412, %v8396, %v8476
    %v8493 = vpack.c.bf16 %v8478, %v8477
    %v8494 = vpack.c.bf16 %v8480, %v8479
    %v8495 = vpack.c.bf16 %v8482, %v8481
    %v8496 = vpack.c.bf16 %v8484, %v8483
    %v8497 = vpack.c.bf16 %v8486, %v8485
    %v8498 = vpack.c.bf16 %v8488, %v8487
    %v8499 = vpack.c.bf16 %v8490, %v8489
    %v8500 = vpack.c.bf16 %v8492, %v8491
    %8501 = vmatpush.bf16.msra.mxu0 %v8500
    %8502 = vmatpush.bf16.msra.mxu0 %v8499
    %8503 = vmatpush.bf16.msra.mxu0 %v8498
    %8504 = vmatpush.bf16.msra.mxu0 %v8497
    %8505 = vmatpush.bf16.msra.mxu0 %v8496
    %8506 = vmatpush.bf16.msra.mxu0 %v8495
    %8507 = vmatpush.bf16.msra.mxu0 %v8494
    %8508 = vmatpush.bf16.msra.mxu0 %v8493
    %8509 = vmatmul.bf16.gmra.mxu0 %v6628
    %v8510 = vpop.f32.mrf.mxu0
    %v8511 = vadd.f32 0.0, %v8510
    %v8512 = vpop.f32.mrf.mxu0
    %8513 = vdwg.mxu0
    %8514 = vmatpush.bf16.msra.mxu0 %v4857
    %8515 = vmatpush.bf16.msra.mxu0 %v4856
    %8516 = vmatpush.bf16.msra.mxu0 %v4855
    %8517 = vmatpush.bf16.msra.mxu0 %v4854
    %8518 = vmatpush.bf16.msra.mxu0 %v4853
    %8519 = vmatpush.bf16.msra.mxu0 %v4852
    %8520 = vmatpush.bf16.msra.mxu0 %v4851
    %8521 = vmatpush.bf16.msra.mxu0 %v4850
    %8522 = vmatmul.bf16.gmra.mxu0 %v3232
    %v8523 = vpop.f32.mrf.mxu0
    %v8524 = vadd.f32 %v8511, %v8523
    %v8525 = vpop.f32.mrf.mxu0
    %8526 = vdwg.mxu0
    %v8527 = vadd.f32 %v6508, %v4861
    %v8528 = vadd.f32 %v6510, %v4861
    %v8529 = vadd.f32 %v6513, %v4861
    %v8530 = vadd.f32 %v6515, %v4861
    %v8531 = vadd.f32 %v6518, %v4861
    %v8532 = vadd.f32 %v6520, %v4861
    %v8533 = vadd.f32 %v6523, %v4861
    %v8534 = vadd.f32 %v6525, %v4861
    %v8535 = vadd.f32 %v6528, %v4861
    %v8536 = vadd.f32 %v6530, %v4861
    %v8537 = vadd.f32 %v6533, %v4861
    %v8538 = vadd.f32 %v6535, %v4861
    %v8539 = vadd.f32 %v6538, %v4861
    %v8540 = vadd.f32 %v6540, %v4861
    %v8541 = vadd.f32 %v6543, %v4861
    %v8542 = vadd.f32 %v6545, %v4861
    %vm8543 = vcmp.gt.f32.partialorder %v8527, 0.0
    %vm8544 = vcmp.gt.f32.partialorder %v8528, 0.0
    %vm8545 = vcmp.gt.f32.partialorder %v8529, 0.0
    %vm8546 = vcmp.gt.f32.partialorder %v8530, 0.0
    %vm8547 = vcmp.gt.f32.partialorder %v8531, 0.0
    %vm8548 = vcmp.gt.f32.partialorder %v8532, 0.0
    %vm8549 = vcmp.gt.f32.partialorder %v8533, 0.0
    %vm8550 = vcmp.gt.f32.partialorder %v8534, 0.0
    %vm8551 = vcmp.gt.f32.partialorder %v8535, 0.0
    %vm8552 = vcmp.gt.f32.partialorder %v8536, 0.0
    %vm8553 = vcmp.gt.f32.partialorder %v8537, 0.0
    %vm8554 = vcmp.gt.f32.partialorder %v8538, 0.0
    %vm8555 = vcmp.gt.f32.partialorder %v8539, 0.0
    %vm8556 = vcmp.gt.f32.partialorder %v8540, 0.0
    %vm8557 = vcmp.gt.f32.partialorder %v8541, 0.0
    %vm8558 = vcmp.gt.f32.partialorder %v8542, 0.0
    %v8559 = vmin.f32 %v8527, 0.0
    %v8560 = vmin.f32 %v8528, 0.0
    %v8561 = vmin.f32 %v8529, 0.0
    %v8562 = vmin.f32 %v8530, 0.0
    %v8563 = vmin.f32 %v8531, 0.0
    %v8564 = vmin.f32 %v8532, 0.0
    %v8565 = vmin.f32 %v8533, 0.0
    %v8566 = vmin.f32 %v8534, 0.0
    %v8567 = vmin.f32 %v8535, 0.0
    %v8568 = vmin.f32 %v8536, 0.0
    %v8569 = vmin.f32 %v8537, 0.0
    %v8570 = vmin.f32 %v8538, 0.0
    %v8571 = vmin.f32 %v8539, 0.0
    %v8572 = vmin.f32 %v8540, 0.0
    %v8573 = vmin.f32 %v8541, 0.0
    %v8574 = vmin.f32 %v8542, 0.0
    %v8575 = vmul.f32 %v8559, 1.442695
    %v8576 = vpow.pop %v8575
    %v8577 = vmul.f32 %v8560, 1.442695
    %v8578 = vpow.pop %v8577
    %v8579 = vmul.f32 %v8561, 1.442695
    %v8580 = vpow.pop %v8579
    %v8581 = vmul.f32 %v8562, 1.442695
    %v8582 = vpow.pop %v8581
    %v8583 = vmul.f32 %v8563, 1.442695
    %v8584 = vpow.pop %v8583
    %v8585 = vmul.f32 %v8564, 1.442695
    %v8586 = vpow.pop %v8585
    %v8587 = vmul.f32 %v8565, 1.442695
    %v8588 = vpow.pop %v8587
    %v8589 = vmul.f32 %v8566, 1.442695
    %v8590 = vpow.pop %v8589
    %v8591 = vmul.f32 %v8567, 1.442695
    %v8592 = vpow.pop %v8591
    %v8593 = vmul.f32 %v8568, 1.442695
    %v8594 = vpow.pop %v8593
    %v8595 = vmul.f32 %v8569, 1.442695
    %v8596 = vpow.pop %v8595
    %v8597 = vmul.f32 %v8570, 1.442695
    %v8598 = vpow.pop %v8597
    %v8599 = vmul.f32 %v8571, 1.442695
    %v8600 = vpow.pop %v8599
    %v8601 = vmul.f32 %v8572, 1.442695
    %v8602 = vpow.pop %v8601
    %v8603 = vmul.f32 %v8573, 1.442695
    %v8604 = vpow.pop %v8603
    %v8605 = vmul.f32 %v8574, 1.442695
    %v8606 = vpow.pop %v8605
    %v8607 = vsub.f32 %v8576, 1.0
    %v8608 = vsub.f32 %v8578, 1.0
    %v8609 = vsub.f32 %v8580, 1.0
    %v8610 = vsub.f32 %v8582, 1.0
    %v8611 = vsub.f32 %v8584, 1.0
    %v8612 = vsub.f32 %v8586, 1.0
    %v8613 = vsub.f32 %v8588, 1.0
    %v8614 = vsub.f32 %v8590, 1.0
    %v8615 = vsub.f32 %v8592, 1.0
    %v8616 = vsub.f32 %v8594, 1.0
    %v8617 = vsub.f32 %v8596, 1.0
    %v8618 = vsub.f32 %v8598, 1.0
    %v8619 = vsub.f32 %v8600, 1.0
    %v8620 = vsub.f32 %v8602, 1.0
    %v8621 = vsub.f32 %v8604, 1.0
    %v8622 = vsub.f32 %v8606, 1.0
    %v8623 = vsel %vm8543, %v8527, %v8607
    %v8624 = vsel %vm8544, %v8528, %v8608
    %v8625 = vsel %vm8545, %v8529, %v8609
    %v8626 = vsel %vm8546, %v8530, %v8610
    %v8627 = vsel %vm8547, %v8531, %v8611
    %v8628 = vsel %vm8548, %v8532, %v8612
    %v8629 = vsel %vm8549, %v8533, %v8613
    %v8630 = vsel %vm8550, %v8534, %v8614
    %v8631 = vsel %vm8551, %v8535, %v8615
    %v8632 = vsel %vm8552, %v8536, %v8616
    %v8633 = vsel %vm8553, %v8537, %v8617
    %v8634 = vsel %vm8554, %v8538, %v8618
    %v8635 = vsel %vm8555, %v8539, %v8619
    %v8636 = vsel %vm8556, %v8540, %v8620
    %v8637 = vsel %vm8557, %v8541, %v8621
    %v8638 = vsel %vm8558, %v8542, %v8622
    %v8639 = vpack.c.bf16 %v8624, %v8623
    %v8640 = vpack.c.bf16 %v8626, %v8625
    %v8641 = vpack.c.bf16 %v8628, %v8627
    %v8642 = vpack.c.bf16 %v8630, %v8629
    %v8643 = vpack.c.bf16 %v8632, %v8631
    %v8644 = vpack.c.bf16 %v8634, %v8633
    %v8645 = vpack.c.bf16 %v8636, %v8635
    %v8646 = vpack.c.bf16 %v8638, %v8637
    %8647 = vmatpush.bf16.msra.mxu0 %v8646
    %8648 = vmatpush.bf16.msra.mxu0 %v8645
    %8649 = vmatpush.bf16.msra.mxu0 %v8644
    %8650 = vmatpush.bf16.msra.mxu0 %v8643
    %8651 = vmatpush.bf16.msra.mxu0 %v8642
    %8652 = vmatpush.bf16.msra.mxu0 %v8641
    %8653 = vmatpush.bf16.msra.mxu0 %v8640
    %8654 = vmatpush.bf16.msra.mxu0 %v8639
    %8655 = vmatmul.bf16.gmra.mxu0 %v6628
    %v8656 = vpop.f32.mrf.mxu0
    %v8657 = vadd.f32 0.0, %v8656
    %v8658 = vpop.f32.mrf.mxu0
    %8659 = vdwg.mxu0
    %8660 = vmatpush.bf16.msra.mxu0 %v4982
    %8661 = vmatpush.bf16.msra.mxu0 %v4981
    %8662 = vmatpush.bf16.msra.mxu0 %v4980
    %8663 = vmatpush.bf16.msra.mxu0 %v4979
    %8664 = vmatpush.bf16.msra.mxu0 %v4978
    %8665 = vmatpush.bf16.msra.mxu0 %v4977
    %8666 = vmatpush.bf16.msra.mxu0 %v4976
    %8667 = vmatpush.bf16.msra.mxu0 %v4975
    %8668 = vmatmul.bf16.gmra.mxu0 %v3232
    %v8669 = vpop.f32.mrf.mxu0
    %v8670 = vadd.f32 %v8657, %v8669
    %v8671 = vpop.f32.mrf.mxu0
    %8672 = vdwg.mxu0
    %v8673 = vadd.f32 %v6548, %v4986
    %v8674 = vadd.f32 %v6550, %v4986
    %v8675 = vadd.f32 %v6553, %v4986
    %v8676 = vadd.f32 %v6555, %v4986
    %v8677 = vadd.f32 %v6558, %v4986
    %v8678 = vadd.f32 %v6560, %v4986
    %v8679 = vadd.f32 %v6563, %v4986
    %v8680 = vadd.f32 %v6565, %v4986
    %v8681 = vadd.f32 %v6568, %v4986
    %v8682 = vadd.f32 %v6570, %v4986
    %v8683 = vadd.f32 %v6573, %v4986
    %v8684 = vadd.f32 %v6575, %v4986
    %v8685 = vadd.f32 %v6578, %v4986
    %v8686 = vadd.f32 %v6580, %v4986
    %v8687 = vadd.f32 %v6583, %v4986
    %v8688 = vadd.f32 %v6585, %v4986
    %vm8689 = vcmp.gt.f32.partialorder %v8673, 0.0
    %vm8690 = vcmp.gt.f32.partialorder %v8674, 0.0
    %vm8691 = vcmp.gt.f32.partialorder %v8675, 0.0
    %vm8692 = vcmp.gt.f32.partialorder %v8676, 0.0
    %vm8693 = vcmp.gt.f32.partialorder %v8677, 0.0
    %vm8694 = vcmp.gt.f32.partialorder %v8678, 0.0
    %vm8695 = vcmp.gt.f32.partialorder %v8679, 0.0
    %vm8696 = vcmp.gt.f32.partialorder %v8680, 0.0
    %vm8697 = vcmp.gt.f32.partialorder %v8681, 0.0
    %vm8698 = vcmp.gt.f32.partialorder %v8682, 0.0
    %vm8699 = vcmp.gt.f32.partialorder %v8683, 0.0
    %vm8700 = vcmp.gt.f32.partialorder %v8684, 0.0
    %vm8701 = vcmp.gt.f32.partialorder %v8685, 0.0
    %vm8702 = vcmp.gt.f32.partialorder %v8686, 0.0
    %vm8703 = vcmp.gt.f32.partialorder %v8687, 0.0
    %vm8704 = vcmp.gt.f32.partialorder %v8688, 0.0
    %v8705 = vmin.f32 %v8673, 0.0
    %v8706 = vmin.f32 %v8674, 0.0
    %v8707 = vmin.f32 %v8675, 0.0
    %v8708 = vmin.f32 %v8676, 0.0
    %v8709 = vmin.f32 %v8677, 0.0
    %v8710 = vmin.f32 %v8678, 0.0
    %v8711 = vmin.f32 %v8679, 0.0
    %v8712 = vmin.f32 %v8680, 0.0
    %v8713 = vmin.f32 %v8681, 0.0
    %v8714 = vmin.f32 %v8682, 0.0
    %v8715 = vmin.f32 %v8683, 0.0
    %v8716 = vmin.f32 %v8684, 0.0
    %v8717 = vmin.f32 %v8685, 0.0
    %v8718 = vmin.f32 %v8686, 0.0
    %v8719 = vmin.f32 %v8687, 0.0
    %v8720 = vmin.f32 %v8688, 0.0
    %v8721 = vmul.f32 %v8705, 1.442695
    %v8722 = vpow.pop %v8721
    %v8723 = vmul.f32 %v8706, 1.442695
    %v8724 = vpow.pop %v8723
    %v8725 = vmul.f32 %v8707, 1.442695
    %v8726 = vpow.pop %v8725
    %v8727 = vmul.f32 %v8708, 1.442695
    %v8728 = vpow.pop %v8727
    %v8729 = vmul.f32 %v8709, 1.442695
    %v8730 = vpow.pop %v8729
    %v8731 = vmul.f32 %v8710, 1.442695
    %v8732 = vpow.pop %v8731
    %v8733 = vmul.f32 %v8711, 1.442695
    %v8734 = vpow.pop %v8733
    %v8735 = vmul.f32 %v8712, 1.442695
    %v8736 = vpow.pop %v8735
    %v8737 = vmul.f32 %v8713, 1.442695
    %v8738 = vpow.pop %v8737
    %v8739 = vmul.f32 %v8714, 1.442695
    %v8740 = vpow.pop %v8739
    %v8741 = vmul.f32 %v8715, 1.442695
    %v8742 = vpow.pop %v8741
    %v8743 = vmul.f32 %v8716, 1.442695
    %v8744 = vpow.pop %v8743
    %v8745 = vmul.f32 %v8717, 1.442695
    %v8746 = vpow.pop %v8745
    %v8747 = vmul.f32 %v8718, 1.442695
    %v8748 = vpow.pop %v8747
    %v8749 = vmul.f32 %v8719, 1.442695
    %v8750 = vpow.pop %v8749
    %v8751 = vmul.f32 %v8720, 1.442695
    %v8752 = vpow.pop %v8751
    %v8753 = vsub.f32 %v8722, 1.0
    %v8754 = vsub.f32 %v8724, 1.0
    %v8755 = vsub.f32 %v8726, 1.0
    %v8756 = vsub.f32 %v8728, 1.0
    %v8757 = vsub.f32 %v8730, 1.0
    %v8758 = vsub.f32 %v8732, 1.0
    %v8759 = vsub.f32 %v8734, 1.0
    %v8760 = vsub.f32 %v8736, 1.0
    %v8761 = vsub.f32 %v8738, 1.0
    %v8762 = vsub.f32 %v8740, 1.0
    %v8763 = vsub.f32 %v8742, 1.0
    %v8764 = vsub.f32 %v8744, 1.0
    %v8765 = vsub.f32 %v8746, 1.0
    %v8766 = vsub.f32 %v8748, 1.0
    %v8767 = vsub.f32 %v8750, 1.0
    %v8768 = vsub.f32 %v8752, 1.0
    %v8769 = vsel %vm8689, %v8673, %v8753
    %v8770 = vsel %vm8690, %v8674, %v8754
    %v8771 = vsel %vm8691, %v8675, %v8755
    %v8772 = vsel %vm8692, %v8676, %v8756
    %v8773 = vsel %vm8693, %v8677, %v8757
    %v8774 = vsel %vm8694, %v8678, %v8758
    %v8775 = vsel %vm8695, %v8679, %v8759
    %v8776 = vsel %vm8696, %v8680, %v8760
    %v8777 = vsel %vm8697, %v8681, %v8761
    %v8778 = vsel %vm8698, %v8682, %v8762
    %v8779 = vsel %vm8699, %v8683, %v8763
    %v8780 = vsel %vm8700, %v8684, %v8764
    %v8781 = vsel %vm8701, %v8685, %v8765
    %v8782 = vsel %vm8702, %v8686, %v8766
    %v8783 = vsel %vm8703, %v8687, %v8767
    %v8784 = vsel %vm8704, %v8688, %v8768
    %v8785 = vpack.c.bf16 %v8770, %v8769
    %v8786 = vpack.c.bf16 %v8772, %v8771
    %v8787 = vpack.c.bf16 %v8774, %v8773
    %v8788 = vpack.c.bf16 %v8776, %v8775
    %v8789 = vpack.c.bf16 %v8778, %v8777
    %v8790 = vpack.c.bf16 %v8780, %v8779
    %v8791 = vpack.c.bf16 %v8782, %v8781
    %v8792 = vpack.c.bf16 %v8784, %v8783
    %8793 = vmatpush.bf16.msra.mxu0 %v8792
    %8794 = vmatpush.bf16.msra.mxu0 %v8791
    %8795 = vmatpush.bf16.msra.mxu0 %v8790
    %8796 = vmatpush.bf16.msra.mxu0 %v8789
    %8797 = vmatpush.bf16.msra.mxu0 %v8788
    %8798 = vmatpush.bf16.msra.mxu0 %v8787
    %8799 = vmatpush.bf16.msra.mxu0 %v8786
    %8800 = vmatpush.bf16.msra.mxu0 %v8785
    %8801 = vmatmul.bf16.gmra.mxu0 %v6628
    %v8802 = vpop.f32.mrf.mxu0
    %v8803 = vadd.f32 0.0, %v8802
    %v8804 = vpop.f32.mrf.mxu0
    %8805 = vdwg.mxu0
    %8806 = vmatpush.bf16.msra.mxu0 %v5107
    %8807 = vmatpush.bf16.msra.mxu0 %v5106
    %8808 = vmatpush.bf16.msra.mxu0 %v5105
    %8809 = vmatpush.bf16.msra.mxu0 %v5104
    %8810 = vmatpush.bf16.msra.mxu0 %v5103
    %8811 = vmatpush.bf16.msra.mxu0 %v5102
    %8812 = vmatpush.bf16.msra.mxu0 %v5101
    %8813 = vmatpush.bf16.msra.mxu0 %v5100
    %8814 = vmatmul.bf16.gmra.mxu0 %v3232
    %v8815 = vpop.f32.mrf.mxu0
    %v8816 = vadd.f32 %v8803, %v8815
    %v8817 = vpop.f32.mrf.mxu0
    %8818 = vdwg.mxu0
    %v8819 = vadd.f32 %v6588, %v5111
    %v8820 = vadd.f32 %v6590, %v5111
    %v8821 = vadd.f32 %v6593, %v5111
    %v8822 = vadd.f32 %v6595, %v5111
    %v8823 = vadd.f32 %v6598, %v5111
    %v8824 = vadd.f32 %v6600, %v5111
    %v8825 = vadd.f32 %v6603, %v5111
    %v8826 = vadd.f32 %v6605, %v5111
    %v8827 = vadd.f32 %v6608, %v5111
    %v8828 = vadd.f32 %v6610, %v5111
    %v8829 = vadd.f32 %v6613, %v5111
    %v8830 = vadd.f32 %v6615, %v5111
    %v8831 = vadd.f32 %v6618, %v5111
    %v8832 = vadd.f32 %v6620, %v5111
    %v8833 = vadd.f32 %v6623, %v5111
    %v8834 = vadd.f32 %v6625, %v5111
    %vm8835 = vcmp.gt.f32.partialorder %v8819, 0.0
    %vm8836 = vcmp.gt.f32.partialorder %v8820, 0.0
    %vm8837 = vcmp.gt.f32.partialorder %v8821, 0.0
    %vm8838 = vcmp.gt.f32.partialorder %v8822, 0.0
    %vm8839 = vcmp.gt.f32.partialorder %v8823, 0.0
    %vm8840 = vcmp.gt.f32.partialorder %v8824, 0.0
    %vm8841 = vcmp.gt.f32.partialorder %v8825, 0.0
    %vm8842 = vcmp.gt.f32.partialorder %v8826, 0.0
    %vm8843 = vcmp.gt.f32.partialorder %v8827, 0.0
    %vm8844 = vcmp.gt.f32.partialorder %v8828, 0.0
    %vm8845 = vcmp.gt.f32.partialorder %v8829, 0.0
    %vm8846 = vcmp.gt.f32.partialorder %v8830, 0.0
    %vm8847 = vcmp.gt.f32.partialorder %v8831, 0.0
    %vm8848 = vcmp.gt.f32.partialorder %v8832, 0.0
    %vm8849 = vcmp.gt.f32.partialorder %v8833, 0.0
    %vm8850 = vcmp.gt.f32.partialorder %v8834, 0.0
    %v8851 = vmin.f32 %v8819, 0.0
    %v8852 = vmin.f32 %v8820, 0.0
    %v8853 = vmin.f32 %v8821, 0.0
    %v8854 = vmin.f32 %v8822, 0.0
    %v8855 = vmin.f32 %v8823, 0.0
    %v8856 = vmin.f32 %v8824, 0.0
    %v8857 = vmin.f32 %v8825, 0.0
    %v8858 = vmin.f32 %v8826, 0.0
    %v8859 = vmin.f32 %v8827, 0.0
    %v8860 = vmin.f32 %v8828, 0.0
    %v8861 = vmin.f32 %v8829, 0.0
    %v8862 = vmin.f32 %v8830, 0.0
    %v8863 = vmin.f32 %v8831, 0.0
    %v8864 = vmin.f32 %v8832, 0.0
    %v8865 = vmin.f32 %v8833, 0.0
    %v8866 = vmin.f32 %v8834, 0.0
    %v8867 = vmul.f32 %v8851, 1.442695
    %v8868 = vpow.pop %v8867
    %v8869 = vmul.f32 %v8852, 1.442695
    %v8870 = vpow.pop %v8869
    %v8871 = vmul.f32 %v8853, 1.442695
    %v8872 = vpow.pop %v8871
    %v8873 = vmul.f32 %v8854, 1.442695
    %v8874 = vpow.pop %v8873
    %v8875 = vmul.f32 %v8855, 1.442695
    %v8876 = vpow.pop %v8875
    %v8877 = vmul.f32 %v8856, 1.442695
    %v8878 = vpow.pop %v8877
    %v8879 = vmul.f32 %v8857, 1.442695
    %v8880 = vpow.pop %v8879
    %v8881 = vmul.f32 %v8858, 1.442695
    %v8882 = vpow.pop %v8881
    %v8883 = vmul.f32 %v8859, 1.442695
    %v8884 = vpow.pop %v8883
    %v8885 = vmul.f32 %v8860, 1.442695
    %v8886 = vpow.pop %v8885
    %v8887 = vmul.f32 %v8861, 1.442695
    %v8888 = vpow.pop %v8887
    %v8889 = vmul.f32 %v8862, 1.442695
    %v8890 = vpow.pop %v8889
    %v8891 = vmul.f32 %v8863, 1.442695
    %v8892 = vpow.pop %v8891
    %v8893 = vmul.f32 %v8864, 1.442695
    %v8894 = vpow.pop %v8893
    %v8895 = vmul.f32 %v8865, 1.442695
    %v8896 = vpow.pop %v8895
    %v8897 = vmul.f32 %v8866, 1.442695
    %v8898 = vpow.pop %v8897
    %v8899 = vsub.f32 %v8868, 1.0
    %v8900 = vsub.f32 %v8870, 1.0
    %v8901 = vsub.f32 %v8872, 1.0
    %v8902 = vsub.f32 %v8874, 1.0
    %v8903 = vsub.f32 %v8876, 1.0
    %v8904 = vsub.f32 %v8878, 1.0
    %v8905 = vsub.f32 %v8880, 1.0
    %v8906 = vsub.f32 %v8882, 1.0
    %v8907 = vsub.f32 %v8884, 1.0
    %v8908 = vsub.f32 %v8886, 1.0
    %v8909 = vsub.f32 %v8888, 1.0
    %v8910 = vsub.f32 %v8890, 1.0
    %v8911 = vsub.f32 %v8892, 1.0
    %v8912 = vsub.f32 %v8894, 1.0
    %v8913 = vsub.f32 %v8896, 1.0
    %v8914 = vsub.f32 %v8898, 1.0
    %v8915 = vsel %vm8835, %v8819, %v8899
    %v8916 = vsel %vm8836, %v8820, %v8900
    %v8917 = vsel %vm8837, %v8821, %v8901
    %v8918 = vsel %vm8838, %v8822, %v8902
    %v8919 = vsel %vm8839, %v8823, %v8903
    %v8920 = vsel %vm8840, %v8824, %v8904
    %v8921 = vsel %vm8841, %v8825, %v8905
    %v8922 = vsel %vm8842, %v8826, %v8906
    %v8923 = vsel %vm8843, %v8827, %v8907
    %v8924 = vsel %vm8844, %v8828, %v8908
    %v8925 = vsel %vm8845, %v8829, %v8909
    %v8926 = vsel %vm8846, %v8830, %v8910
    %v8927 = vsel %vm8847, %v8831, %v8911
    %v8928 = vsel %vm8848, %v8832, %v8912
    %v8929 = vsel %vm8849, %v8833, %v8913
    %v8930 = vsel %vm8850, %v8834, %v8914
    %v8931 = vpack.c.bf16 %v8916, %v8915
    %v8932 = vpack.c.bf16 %v8918, %v8917
    %v8933 = vpack.c.bf16 %v8920, %v8919
    %v8934 = vpack.c.bf16 %v8922, %v8921
    %v8935 = vpack.c.bf16 %v8924, %v8923
    %v8936 = vpack.c.bf16 %v8926, %v8925
    %v8937 = vpack.c.bf16 %v8928, %v8927
    %v8938 = vpack.c.bf16 %v8930, %v8929
    %8939 = vmatpush.bf16.msra.mxu0 %v8938
    %8940 = vmatpush.bf16.msra.mxu0 %v8937
    %8941 = vmatpush.bf16.msra.mxu0 %v8936
    %8942 = vmatpush.bf16.msra.mxu0 %v8935
    %8943 = vmatpush.bf16.msra.mxu0 %v8934
    %8944 = vmatpush.bf16.msra.mxu0 %v8933
    %8945 = vmatpush.bf16.msra.mxu0 %v8932
    %8946 = vmatpush.bf16.msra.mxu0 %v8931
    %8947 = vmatmul.bf16.gmra.mxu0 %v6628
    %v8948 = vpop.f32.mrf.mxu0
    %v8949 = vadd.f32 0.0, %v8948
    %v8950 = vpop.f32.mrf.mxu0
    %8951 = vdwg.mxu0
    %8952 = vmatpush.bf16.msra.mxu0 %v5232
    %8953 = vmatpush.bf16.msra.mxu0 %v5231
    %8954 = vmatpush.bf16.msra.mxu0 %v5230
    %8955 = vmatpush.bf16.msra.mxu0 %v5229
    %8956 = vmatpush.bf16.msra.mxu0 %v5228
    %8957 = vmatpush.bf16.msra.mxu0 %v5227
    %8958 = vmatpush.bf16.msra.mxu0 %v5226
    %8959 = vmatpush.bf16.msra.mxu0 %v5225
    %8960 = vmatmul.bf16.gmra.mxu0 %v3232
    %v8961 = vpop.f32.mrf.mxu0
    %v8962 = vadd.f32 %v8949, %v8961
    %v8963 = vpop.f32.mrf.mxu0
    %8964 = vdwg.mxu0
    %v8966 = vrot.slane %v6918, 4
    %v8969 = vrot.slane %v7210, 4
    %v8972 = vrot.slane %v7502, 4
    %v8975 = vrot.slane %v7794, 4
    %v8978 = vrot.slane %v8086, 4
    %v8981 = vrot.slane %v8378, 4
    %v8984 = vrot.slane %v8670, 4
    %v8987 = vrot.slane %v8962, 4
    %vm8989 = vcmask 1043456
    %v8990 = vsel %vm8989, %v6772, %v8966
    %v8991 = vsel %vm8989, %v7064, %v8969
    %v8992 = vsel %vm8989, %v7356, %v8972
    %v8993 = vsel %vm8989, %v7648, %v8975
    %v8994 = vsel %vm8989, %v7940, %v8978
    %v8995 = vsel %vm8989, %v8232, %v8981
    %v8996 = vsel %vm8989, %v8524, %v8984
    %v8997 = vsel %vm8989, %v8816, %v8987
    %v8998 = vld [vmem:[%s4] sm:$0xf]
    %v8999 = vld [vmem:[%s4 + $0x4] sm:$0xf]
    %v9000 = vld [vmem:[%s4 + $0x8] sm:$0xf]
    %v9001 = vld [vmem:[%s4 + $0xc] sm:$0xf]
    %v9002 = vld [vmem:[%s4 + $0x10] sm:$0xf]
    %v9003 = vld [vmem:[%s4 + $0x14] sm:$0xf]
    %v9004 = vld [vmem:[%s4 + $0x18] sm:$0xf]
    %v9005 = vld [vmem:[%s4 + $0x1c] sm:$0xf]
    %v9006 = vld [vmem:[%s4 + $0x20] sm:$0xf]
    %v9007 = vld [vmem:[%s4 + $0x24] sm:$0xf]
    %v9008 = vpack.c.bf16 %v8991, %v8990
    %v9009 = vpack.c.bf16 %v8993, %v8992
    %v9010 = vpack.c.bf16 %v8995, %v8994
    %v9011 = vpack.c.bf16 %v8997, %v8996
    %v9022 = vunpack.c.l.b16 %v8998
    %v9023 = vunpack.c.l.b16 %v8999
    %v9024 = vunpack.c.l.b16 %v9000
    %v9025 = vunpack.c.l.b16 %v9001
    %v9026 = vunpack.c.l.b16 %v9002
    %v9027 = vunpack.c.l.b16 %v9003
    %v9028 = vunpack.c.l.b16 %v9004
    %v9029 = vunpack.c.l.b16 %v9005
    %v9030 = vunpack.c.l.b16 %v9006
    %v9031 = vunpack.c.l.b16 %v9007
    %v9032 = vpack.c.b16 %v9023, %v9022
    %v9033 = vpack.c.b16 %v9025, %v9024
    %v9034 = vpack.c.b16 %v9027, %v9026
    %v9035 = vpack.c.b16 %v9029, %v9028
    %v9036 = vpack.c.b16 %v9031, %v9030
    %v9038 = vsel %vm1549, %v9032, 0
    %v9041 = vsel %vm1549, %v9033, 0
    %v9044 = vsel %vm1549, %v9034, 0
    %v9047 = vsel %vm1549, %v9035, 0
    %v9050 = vsel %vm1549, %v9036, 0
    %9052 = vmatpush.bf16.msra.mxu0 0
    %9053 = vmatpush.bf16.msra.mxu0 0
    %9054 = vmatpush.bf16.msra.mxu0 0
    %9055 = vmatpush.bf16.msra.mxu0 0
    %9056 = vmatpush.bf16.msra.mxu0 %v9011
    %9057 = vmatpush.bf16.msra.mxu0 %v9010
    %9058 = vmatpush.bf16.msra.mxu0 %v9009
    %9059 = vmatpush.bf16.msra.mxu0 %v9008
    %9060 = vmatmul.bf16.gmra.mxu0 %v9038
    %v9061 = vpop.f32.mrf.mxu0
    %v9062 = vadd.f32 0.0, %v9061
    %v9063 = vpop.f32.mrf.mxu0
    %v9064 = vadd.f32 0.0, %v9063
    %9065 = vmatmul.bf16.gmra.mxu0 %v9041
    %v9066 = vpop.f32.mrf.mxu0
    %v9067 = vadd.f32 0.0, %v9066
    %v9068 = vpop.f32.mrf.mxu0
    %v9069 = vadd.f32 0.0, %v9068
    %9070 = vmatmul.bf16.gmra.mxu0 %v9044
    %v9071 = vpop.f32.mrf.mxu0
    %v9072 = vadd.f32 0.0, %v9071
    %v9073 = vpop.f32.mrf.mxu0
    %v9074 = vadd.f32 0.0, %v9073
    %9075 = vmatmul.bf16.gmra.mxu0 %v9047
    %v9076 = vpop.f32.mrf.mxu0
    %v9077 = vadd.f32 0.0, %v9076
    %v9078 = vpop.f32.mrf.mxu0
    %v9079 = vadd.f32 0.0, %v9078
    %9080 = vmatmul.bf16.gmra.mxu0 %v9050
    %v9081 = vpop.f32.mrf.mxu0
    %v9082 = vadd.f32 0.0, %v9081
    %v9083 = vpop.f32.mrf.mxu0
    %v9084 = vadd.f32 0.0, %v9083
    %9085 = vdwg.mxu0
    %vm9086 = vcmp.gt.f32.partialorder %v9062, 0.0
    %vm9087 = vcmp.gt.f32.partialorder %v9064, 0.0
    %vm9088 = vcmp.gt.f32.partialorder %v9067, 0.0
    %vm9089 = vcmp.gt.f32.partialorder %v9069, 0.0
    %vm9090 = vcmp.gt.f32.partialorder %v9072, 0.0
    %vm9091 = vcmp.gt.f32.partialorder %v9074, 0.0
    %vm9092 = vcmp.gt.f32.partialorder %v9077, 0.0
    %vm9093 = vcmp.gt.f32.partialorder %v9079, 0.0
    %vm9094 = vcmp.gt.f32.partialorder %v9082, 0.0
    %vm9095 = vcmp.gt.f32.partialorder %v9084, 0.0
    %v9096 = vmin.f32 %v9062, 0.0
    %v9097 = vmin.f32 %v9064, 0.0
    %v9098 = vmin.f32 %v9067, 0.0
    %v9099 = vmin.f32 %v9069, 0.0
    %v9100 = vmin.f32 %v9072, 0.0
    %v9101 = vmin.f32 %v9074, 0.0
    %v9102 = vmin.f32 %v9077, 0.0
    %v9103 = vmin.f32 %v9079, 0.0
    %v9104 = vmin.f32 %v9082, 0.0
    %v9105 = vmin.f32 %v9084, 0.0
    %v9106 = vmul.f32 %v9096, 1.442695
    %v9107 = vpow.pop %v9106
    %v9108 = vmul.f32 %v9097, 1.442695
    %v9109 = vpow.pop %v9108
    %v9110 = vmul.f32 %v9098, 1.442695
    %v9111 = vpow.pop %v9110
    %v9112 = vmul.f32 %v9099, 1.442695
    %v9113 = vpow.pop %v9112
    %v9114 = vmul.f32 %v9100, 1.442695
    %v9115 = vpow.pop %v9114
    %v9116 = vmul.f32 %v9101, 1.442695
    %v9117 = vpow.pop %v9116
    %v9118 = vmul.f32 %v9102, 1.442695
    %v9119 = vpow.pop %v9118
    %v9120 = vmul.f32 %v9103, 1.442695
    %v9121 = vpow.pop %v9120
    %v9122 = vmul.f32 %v9104, 1.442695
    %v9123 = vpow.pop %v9122
    %v9124 = vmul.f32 %v9105, 1.442695
    %v9125 = vpow.pop %v9124
    %v9126 = vsub.f32 %v9107, 1.0
    %v9127 = vsub.f32 %v9109, 1.0
    %v9128 = vsub.f32 %v9111, 1.0
    %v9129 = vsub.f32 %v9113, 1.0
    %v9130 = vsub.f32 %v9115, 1.0
    %v9131 = vsub.f32 %v9117, 1.0
    %v9132 = vsub.f32 %v9119, 1.0
    %v9133 = vsub.f32 %v9121, 1.0
    %v9134 = vsub.f32 %v9123, 1.0
    %v9135 = vsub.f32 %v9125, 1.0
    %v9136 = vsel %vm9086, %v9062, %v9126
    %v9137 = vsel %vm9087, %v9064, %v9127
    %v9138 = vsel %vm9088, %v9067, %v9128
    %v9139 = vsel %vm9089, %v9069, %v9129
    %v9140 = vsel %vm9090, %v9072, %v9130
    %v9141 = vsel %vm9091, %v9074, %v9131
    %v9142 = vsel %vm9092, %v9077, %v9132
    %v9143 = vsel %vm9093, %v9079, %v9133
    %v9144 = vsel %vm9094, %v9082, %v9134
    %v9145 = vsel %vm9095, %v9084, %v9135
    %v9146 = vld [vmem:[%s5] sm:$0x1]
    %v9147 = vpack.c.bf16 %v9137, %v9136
    %v9148 = vpack.c.bf16 %v9139, %v9138
    %v9149 = vpack.c.bf16 %v9141, %v9140
    %v9150 = vpack.c.bf16 %v9143, %v9142
    %v9151 = vpack.c.bf16 %v9145, %v9144
    %v9152 = vld [vmem:[#allocation2] sm:$0x1]
    %9154 = vset.pattern.permute.xlu0 0
    %9155 = vperm.xlu0 %9154, %v9152
    %v9156 = vpop.permute.xlu0 %9155
    %v9158 = vperm.slane %v9156, 0
    %vm9159 = vcmask 654336
    %v9161 = vsel %vm9159, %v9146, 0
    %9163 = vmatpush.bf16.msra.mxu0 0
    %9164 = vmatpush.bf16.msra.mxu0 0
    %9165 = vmatpush.bf16.msra.mxu0 0
    %9166 = vmatpush.bf16.msra.mxu0 %v9151
    %9167 = vmatpush.bf16.msra.mxu0 %v9150
    %9168 = vmatpush.bf16.msra.mxu0 %v9149
    %9169 = vmatpush.bf16.msra.mxu0 %v9148
    %9170 = vmatpush.bf16.msra.mxu0 %v9147
    %9171 = vmatmul.bf16.gmra.mxu0 %v9161
    %v9172 = vpop.f32.mrf.mxu0
    %v9173 = vadd.f32 %v9158, %v9172
    %v9174 = vpop.f32.mrf.mxu0
    %9175 = vdwg.mxu0
    %9176 = vst [vmem:[%s7] sm:$0x1] %v9173
    // Predicated region
    $region34: #{forward.1} parent=1 // pred_check
      _
    $region35: #{forward.1} parent=1 // pred_check_branch
      %9178 = sbr.rel (0) target = $region37
    $region36: #{forward.1} parent=1 // pred_region
      _
    $region37: #{forward.1} parent=1 // pred_fallthru
      _
    // Predicated region
    $region38: #{forward.1} parent=1 // pred_check
      _
    $region39: #{forward.1} parent=1 // pred_check_branch
      %9180 = sbr.rel (0) target = $region41
    $region40: #{forward.1} parent=1 // pred_region
      _
    $region41: #{forward.1} parent=1 // pred_fallthru
      _
    %9181 = vsyncpa [#allocation4], 1

</llo_original>
